<compile_context>
chip_gen: v7x
topology: tpu7x:2x2x1
jax: 0.10.0
libtpu: 0.0.40
codegen_flags: <defaults>
</compile_context>

<pallas_src>
import jax
import jax.numpy as jnp
from jax import lax
from jax.experimental import pallas as pl
from jax.experimental.pallas import tpu as pltpu

# ---------------- small CLIP-like config ----------------
IMAGE_SIZE = 16
PATCH_SIZE = 8
CHANNELS = 3
HIDDEN = 32
HEADS = 4
HEAD_DIM = HIDDEN // HEADS
INTERMEDIATE = 64
NUM_LAYERS = 3
NUM_PATCHES = (IMAGE_SIZE // PATCH_SIZE) ** 2           # 4
SEQ = NUM_PATCHES + 1                                    # CLS + patches = 5
SEQ_PAD = 8                                              # padded to a full sublane group
PATCH_DIM = CHANNELS * PATCH_SIZE * PATCH_SIZE           # 192
EPS = 1e-5
SELECT_LAYER = -2
SELECT_FEATURE = "patch"
ATTN_SCALE = HEAD_DIM ** -0.5

BATCH_TILE = 8            # images per grid step (use 32-128 at production sizes)
MM_DTYPE = jnp.bfloat16   # MXU operand dtype (f32 accumulation; set to float32 for parity)

# hidden_states index picked by feature_select.  hidden_states has NUM_LAYERS+1 entries;
# hidden_states[k] (k>=1) is the output of encoder layer k-1, so only the first
# NUM_RUN_LAYERS layers are ever needed -- later layers are dead work and skipped.
_FEATS_IDX = SELECT_LAYER % (NUM_LAYERS + 1)
NUM_RUN_LAYERS = _FEATS_IDX
assert 1 <= NUM_RUN_LAYERS <= NUM_LAYERS

# Internal row layout: for 'patch' the patch rows come first and the CLS row after them,
# so the feature_select slice starts at row 0 (attention is permutation-equivariant, so
# this reordering is exact).  Rows SEQ..SEQ_PAD-1 are padding (masked out of attention).
if SELECT_FEATURE == "patch":
    _PATCH_ROW0, _CLS_ROW, OUT_ROWS = 0, NUM_PATCHES, NUM_PATCHES
elif SELECT_FEATURE == "cls_patch":
    _PATCH_ROW0, _CLS_ROW, OUT_ROWS = 1, 0, SEQ
else:
    raise ValueError(f"Unexpected select feature: {SELECT_FEATURE}")

OUT_WIDTH = OUT_ROWS * HIDDEN        # 128 for 'patch' -> lane-dense output stores
ROWS = BATCH_TILE * SEQ_PAD          # M dimension of the batched matmuls (64)


# ---------------- in-kernel helpers ----------------
def _layer_norm(x, gamma, beta):
    mu = jnp.mean(x, axis=-1, keepdims=True)
    var = jnp.mean((x - mu) ** 2, axis=-1, keepdims=True)
    return (x - mu) * lax.rsqrt(var + EPS) * gamma + beta


# ---------------- fused Pallas kernel (whole tower, BATCH_TILE images per step) --------
def tower_kernel(
    patches_ref,                       # (ROWS, PATCH_DIM) bf16, CLS/pad rows zero
    patch_w,                           # (PATCH_DIM, D)    bf16
    emb_base,                          # (ROWS, D) f32: pos+conv_b / cls+pos0 / 0 per row
    pre_g, pre_b,                      # (1, D) f32
    ln1_g, ln1_b,                      # (L, 1, D) f32
    wqkv, bqkv,                        # (L, D, 3D) bf16, (L, 1, 3D) f32
    wo, bo,                            # (L, D, D)  bf16, (L, 1, D)  f32
    ln2_g, ln2_b,                      # (L, 1, D) f32
    w1, b1,                            # (L, D, I)  bf16, (L, 1, I)  f32
    w2, b2,                            # (L, I, D)  bf16, (L, 1, D)  f32
    out_ref,                           # (BATCH_TILE, OUT_ROWS*D) f32
):
    # ---- patch embedding + CLS + positional embedding for the whole image tile ----
    emb = jnp.dot(patches_ref[...], patch_w[...],
                  preferred_element_type=jnp.float32) + emb_base[...]       # (ROWS, D)

    # ---- pre_layrnorm (hidden_states[0]) ----
    h = _layer_norm(emb, pre_g[...], pre_b[...])                            # (ROWS, D) f32

    # Pad key columns get a large negative bias so real rows never attend to them.
    col = lax.broadcasted_iota(jnp.int32, (1, SEQ_PAD), 1)
    key_bias = jnp.where(col < SEQ, 0.0, -1e30).astype(jnp.float32)         # (1, SEQ_PAD)

    # ---- encoder layers (unrolled; only the layers feature_select needs) ----
    for li in range(NUM_RUN_LAYERS):
        # --- self attention (pre-LN), fused QKV projection over all TB*SEQ_PAD rows ---
        x = _layer_norm(h, ln1_g[li], ln1_b[li])
        qkv = jnp.dot(x.astype(MM_DTYPE), wqkv[li],
                      preferred_element_type=jnp.float32) + bqkv[li]        # (ROWS, 3D)
        q = (qkv[:, 0:HIDDEN] * ATTN_SCALE).reshape(BATCH_TILE, SEQ_PAD, HIDDEN)
        k = qkv[:, HIDDEN:2 * HIDDEN].reshape(BATCH_TILE, SEQ_PAD, HIDDEN)
        v = qkv[:, 2 * HIDDEN:3 * HIDDEN].reshape(BATCH_TILE, SEQ_PAD, HIDDEN)

        attn = jnp.zeros((ROWS, HIDDEN), jnp.float32)
        for hd in range(HEADS):
            sl = slice(hd * HEAD_DIM, (hd + 1) * HEAD_DIM)
            qh = q[:, :, sl].astype(MM_DTYPE)
            kh = k[:, :, sl].astype(MM_DTYPE)
            vh = v[:, :, sl].astype(MM_DTYPE)
            # scores / softmax, batched over the image tile
            s = jnp.einsum("bqd,bkd->bqk", qh, kh,
                           preferred_element_type=jnp.float32) + key_bias
            s = s - jnp.max(s, axis=-1, keepdims=True)
            p = jnp.exp(s)
            p = p * pl.reciprocal(jnp.sum(p, axis=-1, keepdims=True), approx=True)
            ctx = jnp.einsum("bqk,bkd->bqd", p.astype(MM_DTYPE), vh,
                             preferred_element_type=jnp.float32)            # (TB, S, Hd)
            # concat_h(ctx_h) @ Wo  ==  sum_h ctx_h @ Wo[h*Hd:(h+1)*Hd, :]
            attn = attn + jnp.dot(ctx.reshape(ROWS, HEAD_DIM).astype(MM_DTYPE),
                                  wo[li, sl, :], preferred_element_type=jnp.float32)
        h = h + attn + bo[li]

        # --- MLP (pre-LN, quick_gelu) ---
        y = _layer_norm(h, ln2_g[li], ln2_b[li])
        m = jnp.dot(y.astype(MM_DTYPE), w1[li],
                    preferred_element_type=jnp.float32) + b1[li]
        m = m * jax.nn.sigmoid(1.702 * m)                                   # quick_gelu
        m = jnp.dot(m.astype(MM_DTYPE), w2[li],
                    preferred_element_type=jnp.float32) + b2[li]
        h = h + m

    # ---- feature_select slice, written lane-dense as (TB, OUT_ROWS*D) ----
    h3 = h.reshape(BATCH_TILE, SEQ_PAD, HIDDEN)
    out_ref[...] = h3[:, 0:OUT_ROWS, :].reshape(BATCH_TILE, OUT_WIDTH)


# ---------------- pallas_call wrapper ----------------
def _full_spec(arr):
    # Constant (grid-invariant) input: full array, block index always 0.
    # TODO(synk): single-buffer these (pipeline_mode) at production scale to halve their
    # VMEM footprint on v7x; irrelevant at toy size.
    return pl.BlockSpec(arr.shape, lambda i, _n=arr.ndim: (0,) * _n)


def _stack_layer_params(layers):
    """Stack the first NUM_RUN_LAYERS layers into the kernel's stacked arrays (QKV fused
    along the output dim; matmul weights cast to MM_DTYPE, LN/bias params kept f32)."""
    ls = layers[:NUM_RUN_LAYERS]
    st = lambda xs: jnp.stack(xs, axis=0)
    wc = lambda w: w.astype(MM_DTYPE)
    return (
        st([l[0] for l in ls]),                                                 # ln1_g
        st([l[1] for l in ls]),                                                 # ln1_b
        wc(st([jnp.concatenate([l[2], l[4], l[6]], axis=1) for l in ls])),      # wqkv
        st([jnp.concatenate([l[3], l[5], l[7]], axis=1) for l in ls]),          # bqkv
        wc(st([l[8] for l in ls])),                                             # wo
        st([l[9] for l in ls]),                                                 # bo
        st([l[10] for l in ls]),                                                # ln2_g
        st([l[11] for l in ls]),                                                # ln2_b
        wc(st([l[12] for l in ls])),                                            # w1
        st([l[13] for l in ls]),                                                # b1
        wc(st([l[14] for l in ls])),                                            # w2
        st([l[15] for l in ls]),                                                # b2
    )


def extract_patches(images):
    # images: (B, C, H, W) NCHW -> (B, num_patches, C*P*P), flatten order (C, ph, pw).
    # TODO(synk): if real HF Conv2d weights are loaded, reshape the (D, C, P, P) conv
    # kernel with the same (C, ph, pw) flatten order.
    B, C, H, W = images.shape
    gh, gw = H // PATCH_SIZE, W // PATCH_SIZE
    x = images.reshape(B, C, gh, PATCH_SIZE, gw, PATCH_SIZE)
    x = x.transpose(0, 2, 4, 1, 3, 5)            # (B, gh, gw, C, P, P)
    return x.reshape(B, gh * gw, C * PATCH_SIZE * PATCH_SIZE)


def clip_vision_tower_forward(images, params):
    B = images.shape[0]
    patches = extract_patches(images.astype(jnp.float32))           # (B, NP, PD)

    num_tiles = pl.cdiv(B, BATCH_TILE)
    b_pad = num_tiles * BATCH_TILE

    # Zero-padded per-row patch input: rows [_PATCH_ROW0, _PATCH_ROW0+NP) hold the real
    # patches; CLS / pad rows are zero so the patch-embed matmul contributes nothing there.
    patches_pad = jnp.zeros((b_pad, SEQ_PAD, PATCH_DIM), MM_DTYPE)
    patches_pad = patches_pad.at[:B, _PATCH_ROW0:_PATCH_ROW0 + NUM_PATCHES, :].set(
        patches.astype(MM_DTYPE))
    patches_flat = patches_pad.reshape(b_pad * SEQ_PAD, PATCH_DIM)

    # Per-row embedding base (added after the patch-embed matmul):
    #   patch rows: position embedding + conv bias; CLS row: class emb + pos[0]; pad: 0.
    base = jnp.zeros((SEQ_PAD, HIDDEN), jnp.float32)
    base = base.at[_PATCH_ROW0:_PATCH_ROW0 + NUM_PATCHES, :].set(
        params["pos"][1:SEQ] + params["patch_b"])
    base = base.at[_CLS_ROW, :].set((params["cls"] + params["pos"][0:1])[0])
    base_tiled = jnp.tile(base, (BATCH_TILE, 1))                     # (ROWS, D)

    stacked = _stack_layer_params(params["layers"])
    const_inputs = (params["patch_w"].astype(MM_DTYPE), base_tiled,
                    params["pre_ln_g"], params["pre_ln_b"]) + stacked

    feats = pl.pallas_call(
        tower_kernel,
        out_shape=jax.ShapeDtypeStruct((b_pad, OUT_WIDTH), jnp.float32),
        grid=(num_tiles,),
        in_specs=[pl.BlockSpec((ROWS, PATCH_DIM), lambda i: (i, 0))]
                 + [_full_spec(a) for a in const_inputs],
        out_specs=pl.BlockSpec((BATCH_TILE, OUT_WIDTH), lambda i: (i, 0)),
        compiler_params=pltpu.CompilerParams(dimension_semantics=("parallel",)),
    )(patches_flat, *const_inputs)

    feats = feats[:B].reshape(B, OUT_ROWS, HIDDEN)
    return feats.astype(images.dtype)


# ---------------- parameter init (deterministic, synthetic) ----------------
def init_params(key):
    def nrm(k, shape):
        return jax.random.normal(k, shape, dtype=jnp.float32) * 0.02

    keys = jax.random.split(key, 4 + NUM_LAYERS)
    params = {
        # Conv2d(C, D, kernel=P, stride=P) expressed as a (C*P*P, D) matmul weight
        "patch_w": nrm(keys[0], (PATCH_DIM, HIDDEN)),
        "patch_b": jnp.zeros((1, HIDDEN), jnp.float32),
        "cls": nrm(keys[1], (1, HIDDEN)),
        "pos": nrm(keys[2], (SEQ, HIDDEN)),
        "pre_ln_g": jnp.ones((1, HIDDEN), jnp.float32),
        "pre_ln_b": jnp.zeros((1, HIDDEN), jnp.float32),
        "layers": [],
    }
    for li in range(NUM_LAYERS):
        lk = jax.random.split(keys[4 + li], 6)
        layer = (
            jnp.ones((1, HIDDEN), jnp.float32),            # ln1_g
            jnp.zeros((1, HIDDEN), jnp.float32),           # ln1_b
            nrm(lk[0], (HIDDEN, HIDDEN)),                  # wq
            jnp.zeros((1, HIDDEN), jnp.float32),           # bq
            nrm(lk[1], (HIDDEN, HIDDEN)),                  # wk
            jnp.zeros((1, HIDDEN), jnp.float32),           # bk
            nrm(lk[2], (HIDDEN, HIDDEN)),                  # wv
            jnp.zeros((1, HIDDEN), jnp.float32),           # bv
            nrm(lk[3], (HIDDEN, HIDDEN)),                  # wo
            jnp.zeros((1, HIDDEN), jnp.float32),           # bo
            jnp.ones((1, HIDDEN), jnp.float32),            # ln2_g
            jnp.zeros((1, HIDDEN), jnp.float32),           # ln2_b
            nrm(lk[4], (HIDDEN, INTERMEDIATE)),            # w1 (fc1)
            jnp.zeros((1, INTERMEDIATE), jnp.float32),     # b1
            nrm(lk[5], (INTERMEDIATE, HIDDEN)),            # w2 (fc2)
            jnp.zeros((1, HIDDEN), jnp.float32),           # b2
        )
        params["layers"].append(layer)
    return params


if __name__ == "__main__":
    key = jax.random.PRNGKey(0)
    k_img, k_par = jax.random.split(key)
    images = jax.random.normal(k_img, (2, CHANNELS, IMAGE_SIZE, IMAGE_SIZE),
                               dtype=jnp.float32)
    params = init_params(k_par)

    feats = clip_vision_tower_forward(images, params)
    jax.block_until_ready(feats)

    assert feats.shape == (2, NUM_PATCHES, HIDDEN), feats.shape
    print("KERNEL_OK")
</pallas_src>

<mosaic_0001>
module attributes {stable_mosaic.version = 11 : i64} {
  func.func @tower_kernel(%arg0: i32, %arg1: memref<64x192xbf16, #tpu.memory_space<vmem>>, %arg2: memref<192x32xbf16, #tpu.memory_space<vmem>>, %arg3: memref<64x32xf32, #tpu.memory_space<vmem>>, %arg4: memref<1x32xf32, #tpu.memory_space<vmem>>, %arg5: memref<1x32xf32, #tpu.memory_space<vmem>>, %arg6: memref<2x1x32xf32, #tpu.memory_space<vmem>>, %arg7: memref<2x1x32xf32, #tpu.memory_space<vmem>>, %arg8: memref<2x32x96xbf16, #tpu.memory_space<vmem>>, %arg9: memref<2x1x96xf32, #tpu.memory_space<vmem>>, %arg10: memref<2x32x32xbf16, #tpu.memory_space<vmem>>, %arg11: memref<2x1x32xf32, #tpu.memory_space<vmem>>, %arg12: memref<2x1x32xf32, #tpu.memory_space<vmem>>, %arg13: memref<2x1x32xf32, #tpu.memory_space<vmem>>, %arg14: memref<2x32x64xbf16, #tpu.memory_space<vmem>>, %arg15: memref<2x1x64xf32, #tpu.memory_space<vmem>>, %arg16: memref<2x64x32xbf16, #tpu.memory_space<vmem>>, %arg17: memref<2x1x32xf32, #tpu.memory_space<vmem>>, %arg18: memref<8x128xf32, #tpu.memory_space<vmem>>) attributes {dimension_semantics = [#tpu.dimension_semantics<parallel>], iteration_bounds = array<i64: 1>, scalar_prefetch = 0 : i64, scratch_operands = 0 : i64, tpu.core_type = #tpu.core_type<tc>, window_params = [{transform_indices = @transform_0, window_bounds = array<i64: 64, 192>}, {pipeline_mode = #tpu.pipeline_mode<synchronous>, transform_indices = @transform_1, window_bounds = array<i64: 192, 32>}, {pipeline_mode = #tpu.pipeline_mode<synchronous>, transform_indices = @transform_2, window_bounds = array<i64: 64, 32>}, {pipeline_mode = #tpu.pipeline_mode<synchronous>, transform_indices = @transform_3, window_bounds = array<i64: 1, 32>}, {pipeline_mode = #tpu.pipeline_mode<synchronous>, transform_indices = @transform_4, window_bounds = array<i64: 1, 32>}, {pipeline_mode = #tpu.pipeline_mode<synchronous>, transform_indices = @transform_5, window_bounds = array<i64: 2, 1, 32>}, {pipeline_mode = #tpu.pipeline_mode<synchronous>, transform_indices = @transform_6, window_bounds = array<i64: 2, 1, 32>}, {pipeline_mode = #tpu.pipeline_mode<synchronous>, transform_indices = @transform_7, window_bounds = array<i64: 2, 32, 96>}, {pipeline_mode = #tpu.pipeline_mode<synchronous>, transform_indices = @transform_8, window_bounds = array<i64: 2, 1, 96>}, {pipeline_mode = #tpu.pipeline_mode<synchronous>, transform_indices = @transform_9, window_bounds = array<i64: 2, 32, 32>}, {pipeline_mode = #tpu.pipeline_mode<synchronous>, transform_indices = @transform_10, window_bounds = array<i64: 2, 1, 32>}, {pipeline_mode = #tpu.pipeline_mode<synchronous>, transform_indices = @transform_11, window_bounds = array<i64: 2, 1, 32>}, {pipeline_mode = #tpu.pipeline_mode<synchronous>, transform_indices = @transform_12, window_bounds = array<i64: 2, 1, 32>}, {pipeline_mode = #tpu.pipeline_mode<synchronous>, transform_indices = @transform_13, window_bounds = array<i64: 2, 32, 64>}, {pipeline_mode = #tpu.pipeline_mode<synchronous>, transform_indices = @transform_14, window_bounds = array<i64: 2, 1, 64>}, {pipeline_mode = #tpu.pipeline_mode<synchronous>, transform_indices = @transform_15, window_bounds = array<i64: 2, 64, 32>}, {pipeline_mode = #tpu.pipeline_mode<synchronous>, transform_indices = @transform_16, window_bounds = array<i64: 2, 1, 32>}, {transform_indices = @transform_17, window_bounds = array<i64: 8, 128>}]} {
    %c0 = arith.constant 0 : index
    %c0_0 = arith.constant 0 : index
    %0 = vector.load %arg1[%c0, %c0_0] : memref<64x192xbf16, #tpu.memory_space<vmem>>, vector<64x192xbf16>
    %c0_1 = arith.constant 0 : index
    %c0_2 = arith.constant 0 : index
    %1 = vector.load %arg2[%c0_1, %c0_2] : memref<192x32xbf16, #tpu.memory_space<vmem>>, vector<192x32xbf16>
    %cst = arith.constant dense<0.000000e+00> : vector<64x32xf32>
    %2 = tpu.matmul %0, %1, %cst {dimension_numbers = #tpu.dot_dimension_numbers<[1], [0], [0], [1], [0, 0, 1, 1], [], []>} : vector<64x192xbf16>, vector<192x32xbf16>, vector<64x32xf32> -> vector<64x32xf32>
    %c0_3 = arith.constant 0 : index
    %c0_4 = arith.constant 0 : index
    %3 = vector.load %arg3[%c0_3, %c0_4] : memref<64x32xf32, #tpu.memory_space<vmem>>, vector<64x32xf32>
    %4 = arith.addf %2, %3 : vector<64x32xf32>
    %c0_5 = arith.constant 0 : index
    %c0_6 = arith.constant 0 : index
    %5 = vector.load %arg4[%c0_5, %c0_6] : memref<1x32xf32, #tpu.memory_space<vmem>>, vector<1x32xf32>
    %c0_7 = arith.constant 0 : index
    %c0_8 = arith.constant 0 : index
    %6 = vector.load %arg5[%c0_7, %c0_8] : memref<1x32xf32, #tpu.memory_space<vmem>>, vector<1x32xf32>
    %cst_9 = arith.constant dense<0.000000e+00> : vector<64xf32>
    %7 = vector.multi_reduction <add>, %4, %cst_9 [1] : vector<64x32xf32> to vector<64xf32>
    %8 = vector.shape_cast %7 : vector<64xf32> to vector<64x1xf32>
    %cst_10 = arith.constant 3.200000e+01 : f32
    %9 = vector.broadcast %cst_10 : f32 to vector<64x1xf32>
    %10 = arith.divf %8, %9 : vector<64x1xf32>
    %11 = vector.broadcast %10 : vector<64x1xf32> to vector<64x32xf32>
    %12 = arith.subf %4, %11 : vector<64x32xf32>
    %13 = arith.mulf %12, %12 : vector<64x32xf32>
    %cst_11 = arith.constant dense<0.000000e+00> : vector<64xf32>
    %14 = vector.multi_reduction <add>, %13, %cst_11 [1] : vector<64x32xf32> to vector<64xf32>
    %15 = vector.shape_cast %14 : vector<64xf32> to vector<64x1xf32>
    %cst_12 = arith.constant 3.200000e+01 : f32
    %16 = vector.broadcast %cst_12 : f32 to vector<64x1xf32>
    %17 = arith.divf %15, %16 : vector<64x1xf32>
    %18 = vector.broadcast %10 : vector<64x1xf32> to vector<64x32xf32>
    %19 = arith.subf %4, %18 : vector<64x32xf32>
    %cst_13 = arith.constant 9.99999974E-6 : f32
    %20 = vector.broadcast %cst_13 : f32 to vector<64x1xf32>
    %21 = arith.addf %17, %20 : vector<64x1xf32>
    %22 = math.rsqrt %21 : vector<64x1xf32>
    %23 = vector.broadcast %22 : vector<64x1xf32> to vector<64x32xf32>
    %24 = arith.mulf %19, %23 : vector<64x32xf32>
    %25 = vector.broadcast %5 : vector<1x32xf32> to vector<64x32xf32>
    %26 = arith.mulf %24, %25 : vector<64x32xf32>
    %27 = vector.broadcast %6 : vector<1x32xf32> to vector<64x32xf32>
    %28 = arith.addf %26, %27 : vector<64x32xf32>
    %29 = tpu.iota {dimensions = array<i32: 1>} : vector<1x8xi32>
    %c5_i32 = arith.constant 5 : i32
    %30 = vector.broadcast %c5_i32 : i32 to vector<1x8xi32>
    %31 = arith.cmpi slt, %29, %30 : vector<1x8xi32>
    %cst_14 = arith.constant 0.000000e+00 : f32
    %cst_15 = arith.constant -1.000000e+30 : f32
    %32 = vector.broadcast %cst_14 : f32 to vector<1x8xf32>
    %33 = vector.broadcast %cst_15 : f32 to vector<1x8xf32>
    %34 = arith.select %31, %32, %33 : vector<1x8xi1>, vector<1x8xf32>
    %c0_16 = arith.constant 0 : index
    %c0_17 = arith.constant 0 : index
    %c0_18 = arith.constant 0 : index
    %35 = vector.load %arg6[%c0_16, %c0_17, %c0_18] : memref<2x1x32xf32, #tpu.memory_space<vmem>>, vector<1x1x32xf32>
    %36 = vector.shape_cast %35 : vector<1x1x32xf32> to vector<1x32xf32>
    %c0_19 = arith.constant 0 : index
    %c0_20 = arith.constant 0 : index
    %c0_21 = arith.constant 0 : index
    %37 = vector.load %arg7[%c0_19, %c0_20, %c0_21] : memref<2x1x32xf32, #tpu.memory_space<vmem>>, vector<1x1x32xf32>
    %38 = vector.shape_cast %37 : vector<1x1x32xf32> to vector<1x32xf32>
    %cst_22 = arith.constant dense<0.000000e+00> : vector<64xf32>
    %39 = vector.multi_reduction <add>, %28, %cst_22 [1] : vector<64x32xf32> to vector<64xf32>
    %40 = vector.shape_cast %39 : vector<64xf32> to vector<64x1xf32>
    %cst_23 = arith.constant 3.200000e+01 : f32
    %41 = vector.broadcast %cst_23 : f32 to vector<64x1xf32>
    %42 = arith.divf %40, %41 : vector<64x1xf32>
    %43 = vector.broadcast %42 : vector<64x1xf32> to vector<64x32xf32>
    %44 = arith.subf %28, %43 : vector<64x32xf32>
    %45 = arith.mulf %44, %44 : vector<64x32xf32>
    %cst_24 = arith.constant dense<0.000000e+00> : vector<64xf32>
    %46 = vector.multi_reduction <add>, %45, %cst_24 [1] : vector<64x32xf32> to vector<64xf32>
    %47 = vector.shape_cast %46 : vector<64xf32> to vector<64x1xf32>
    %cst_25 = arith.constant 3.200000e+01 : f32
    %48 = vector.broadcast %cst_25 : f32 to vector<64x1xf32>
    %49 = arith.divf %47, %48 : vector<64x1xf32>
    %50 = vector.broadcast %42 : vector<64x1xf32> to vector<64x32xf32>
    %51 = arith.subf %28, %50 : vector<64x32xf32>
    %cst_26 = arith.constant 9.99999974E-6 : f32
    %52 = vector.broadcast %cst_26 : f32 to vector<64x1xf32>
    %53 = arith.addf %49, %52 : vector<64x1xf32>
    %54 = math.rsqrt %53 : vector<64x1xf32>
    %55 = vector.broadcast %54 : vector<64x1xf32> to vector<64x32xf32>
    %56 = arith.mulf %51, %55 : vector<64x32xf32>
    %57 = vector.broadcast %36 : vector<1x32xf32> to vector<64x32xf32>
    %58 = arith.mulf %56, %57 : vector<64x32xf32>
    %59 = vector.broadcast %38 : vector<1x32xf32> to vector<64x32xf32>
    %60 = arith.addf %58, %59 : vector<64x32xf32>
    %61 = arith.truncf %60 : vector<64x32xf32> to vector<64x32xbf16>
    %c0_27 = arith.constant 0 : index
    %c0_28 = arith.constant 0 : index
    %c0_29 = arith.constant 0 : index
    %62 = vector.load %arg8[%c0_27, %c0_28, %c0_29] : memref<2x32x96xbf16, #tpu.memory_space<vmem>>, vector<1x32x96xbf16>
    %63 = vector.shape_cast %62 : vector<1x32x96xbf16> to vector<32x96xbf16>
    %cst_30 = arith.constant dense<0.000000e+00> : vector<64x96xf32>
    %64 = tpu.matmul %61, %63, %cst_30 {dimension_numbers = #tpu.dot_dimension_numbers<[1], [0], [0], [1], [0, 0, 1, 1], [], []>} : vector<64x32xbf16>, vector<32x96xbf16>, vector<64x96xf32> -> vector<64x96xf32>
    %c0_31 = arith.constant 0 : index
    %c0_32 = arith.constant 0 : index
    %c0_33 = arith.constant 0 : index
    %65 = vector.load %arg9[%c0_31, %c0_32, %c0_33] : memref<2x1x96xf32, #tpu.memory_space<vmem>>, vector<1x1x96xf32>
    %66 = vector.shape_cast %65 : vector<1x1x96xf32> to vector<1x96xf32>
    %67 = vector.broadcast %66 : vector<1x96xf32> to vector<64x96xf32>
    %68 = arith.addf %64, %67 : vector<64x96xf32>
    %69 = vector.extract_strided_slice %68 {offsets = [0, 0], sizes = [64, 32], strides = [1, 1]} : vector<64x96xf32> to vector<64x32xf32>
    %cst_34 = arith.constant 0.353553385 : f32
    %70 = vector.broadcast %cst_34 : f32 to vector<64x32xf32>
    %71 = arith.mulf %69, %70 : vector<64x32xf32>
    %72 = vector.shape_cast %71 : vector<64x32xf32> to vector<8x8x32xf32>
    %73 = vector.extract_strided_slice %68 {offsets = [0, 32], sizes = [64, 32], strides = [1, 1]} : vector<64x96xf32> to vector<64x32xf32>
    %74 = vector.shape_cast %73 : vector<64x32xf32> to vector<8x8x32xf32>
    %75 = vector.extract_strided_slice %68 {offsets = [0, 64], sizes = [64, 32], strides = [1, 1]} : vector<64x96xf32> to vector<64x32xf32>
    %76 = vector.shape_cast %75 : vector<64x32xf32> to vector<8x8x32xf32>
    %cst_35 = arith.constant 0.000000e+00 : f32
    %77 = vector.broadcast %cst_35 : f32 to vector<64x32xf32>
    %78 = vector.extract_strided_slice %72 {offsets = [0, 0, 0], sizes = [8, 8, 8], strides = [1, 1, 1]} : vector<8x8x32xf32> to vector<8x8x8xf32>
    %79 = arith.truncf %78 : vector<8x8x8xf32> to vector<8x8x8xbf16>
    %80 = vector.extract_strided_slice %74 {offsets = [0, 0, 0], sizes = [8, 8, 8], strides = [1, 1, 1]} : vector<8x8x32xf32> to vector<8x8x8xf32>
    %81 = arith.truncf %80 : vector<8x8x8xf32> to vector<8x8x8xbf16>
    %82 = vector.extract_strided_slice %76 {offsets = [0, 0, 0], sizes = [8, 8, 8], strides = [1, 1, 1]} : vector<8x8x32xf32> to vector<8x8x8xf32>
    %83 = arith.truncf %82 : vector<8x8x8xf32> to vector<8x8x8xbf16>
    "tpu.trace_start"() <{level = 10 : i32, message = "bqd,bkd->bqk"}> : () -> ()
    %cst_36 = arith.constant dense<0.000000e+00> : vector<8x8x8xf32>
    %84 = tpu.matmul %79, %81, %cst_36 {dimension_numbers = #tpu.dot_dimension_numbers<[2], [2], [1], [1], [0, 0, 0, 1, 1, 1], [0], [0]>} : vector<8x8x8xbf16>, vector<8x8x8xbf16>, vector<8x8x8xf32> -> vector<8x8x8xf32>
    "tpu.trace_stop"() : () -> ()
    %85 = vector.shape_cast %34 : vector<1x8xf32> to vector<1x1x8xf32>
    %86 = vector.broadcast %85 : vector<1x1x8xf32> to vector<8x8x8xf32>
    %87 = arith.addf %84, %86 : vector<8x8x8xf32>
    %cst_37 = arith.constant dense<0xFF800000> : vector<8x8xf32>
    %88 = vector.multi_reduction <maximumf>, %87, %cst_37 [2] : vector<8x8x8xf32> to vector<8x8xf32>
    %89 = vector.shape_cast %88 : vector<8x8xf32> to vector<8x8x1xf32>
    %90 = vector.broadcast %89 : vector<8x8x1xf32> to vector<8x8x8xf32>
    %91 = arith.subf %87, %90 : vector<8x8x8xf32>
    %92 = math.exp %91 : vector<8x8x8xf32>
    %cst_38 = arith.constant dense<0.000000e+00> : vector<8x8xf32>
    %93 = vector.multi_reduction <add>, %92, %cst_38 [2] : vector<8x8x8xf32> to vector<8x8xf32>
    %94 = vector.shape_cast %93 : vector<8x8xf32> to vector<8x8x1xf32>
    %95 = tpu.reciprocal %94 {approx = true} : vector<8x8x1xf32> -> vector<8x8x1xf32>
    %96 = vector.broadcast %95 : vector<8x8x1xf32> to vector<8x8x8xf32>
    %97 = arith.mulf %92, %96 : vector<8x8x8xf32>
    %98 = arith.truncf %97 : vector<8x8x8xf32> to vector<8x8x8xbf16>
    "tpu.trace_start"() <{level = 10 : i32, message = "bqk,bkd->bqd"}> : () -> ()
    %cst_39 = arith.constant dense<0.000000e+00> : vector<8x8x8xf32>
    %99 = tpu.matmul %98, %83, %cst_39 {dimension_numbers = #tpu.dot_dimension_numbers<[2], [1], [1], [2], [0, 0, 0, 1, 1, 2], [0], [0]>} : vector<8x8x8xbf16>, vector<8x8x8xbf16>, vector<8x8x8xf32> -> vector<8x8x8xf32>
    "tpu.trace_stop"() : () -> ()
    %100 = vector.shape_cast %99 : vector<8x8x8xf32> to vector<64x8xf32>
    %101 = arith.truncf %100 : vector<64x8xf32> to vector<64x8xbf16>
    %c0_40 = arith.constant 0 : index
    %c0_41 = arith.constant 0 : index
    %c0_42 = arith.constant 0 : index
    %102 = vector.load %arg10[%c0_40, %c0_41, %c0_42] : memref<2x32x32xbf16, #tpu.memory_space<vmem>>, vector<1x8x32xbf16>
    %103 = vector.shape_cast %102 : vector<1x8x32xbf16> to vector<8x32xbf16>
    %cst_43 = arith.constant dense<0.000000e+00> : vector<64x32xf32>
    %104 = tpu.matmul %101, %103, %cst_43 {dimension_numbers = #tpu.dot_dimension_numbers<[1], [0], [0], [1], [0, 0, 1, 1], [], []>} : vector<64x8xbf16>, vector<8x32xbf16>, vector<64x32xf32> -> vector<64x32xf32>
    %105 = arith.addf %77, %104 : vector<64x32xf32>
    %106 = vector.extract_strided_slice %72 {offsets = [0, 0, 8], sizes = [8, 8, 8], strides = [1, 1, 1]} : vector<8x8x32xf32> to vector<8x8x8xf32>
    %107 = arith.truncf %106 : vector<8x8x8xf32> to vector<8x8x8xbf16>
    %108 = vector.extract_strided_slice %74 {offsets = [0, 0, 8], sizes = [8, 8, 8], strides = [1, 1, 1]} : vector<8x8x32xf32> to vector<8x8x8xf32>
    %109 = arith.truncf %108 : vector<8x8x8xf32> to vector<8x8x8xbf16>
    %110 = vector.extract_strided_slice %76 {offsets = [0, 0, 8], sizes = [8, 8, 8], strides = [1, 1, 1]} : vector<8x8x32xf32> to vector<8x8x8xf32>
    %111 = arith.truncf %110 : vector<8x8x8xf32> to vector<8x8x8xbf16>
    "tpu.trace_start"() <{level = 10 : i32, message = "bqd,bkd->bqk"}> : () -> ()
    %cst_44 = arith.constant dense<0.000000e+00> : vector<8x8x8xf32>
    %112 = tpu.matmul %107, %109, %cst_44 {dimension_numbers = #tpu.dot_dimension_numbers<[2], [2], [1], [1], [0, 0, 0, 1, 1, 1], [0], [0]>} : vector<8x8x8xbf16>, vector<8x8x8xbf16>, vector<8x8x8xf32> -> vector<8x8x8xf32>
    "tpu.trace_stop"() : () -> ()
    %113 = vector.shape_cast %34 : vector<1x8xf32> to vector<1x1x8xf32>
    %114 = vector.broadcast %113 : vector<1x1x8xf32> to vector<8x8x8xf32>
    %115 = arith.addf %112, %114 : vector<8x8x8xf32>
    %cst_45 = arith.constant dense<0xFF800000> : vector<8x8xf32>
    %116 = vector.multi_reduction <maximumf>, %115, %cst_45 [2] : vector<8x8x8xf32> to vector<8x8xf32>
    %117 = vector.shape_cast %116 : vector<8x8xf32> to vector<8x8x1xf32>
    %118 = vector.broadcast %117 : vector<8x8x1xf32> to vector<8x8x8xf32>
    %119 = arith.subf %115, %118 : vector<8x8x8xf32>
    %120 = math.exp %119 : vector<8x8x8xf32>
    %cst_46 = arith.constant dense<0.000000e+00> : vector<8x8xf32>
    %121 = vector.multi_reduction <add>, %120, %cst_46 [2] : vector<8x8x8xf32> to vector<8x8xf32>
    %122 = vector.shape_cast %121 : vector<8x8xf32> to vector<8x8x1xf32>
    %123 = tpu.reciprocal %122 {approx = true} : vector<8x8x1xf32> -> vector<8x8x1xf32>
    %124 = vector.broadcast %123 : vector<8x8x1xf32> to vector<8x8x8xf32>
    %125 = arith.mulf %120, %124 : vector<8x8x8xf32>
    %126 = arith.truncf %125 : vector<8x8x8xf32> to vector<8x8x8xbf16>
    "tpu.trace_start"() <{level = 10 : i32, message = "bqk,bkd->bqd"}> : () -> ()
    %cst_47 = arith.constant dense<0.000000e+00> : vector<8x8x8xf32>
    %127 = tpu.matmul %126, %111, %cst_47 {dimension_numbers = #tpu.dot_dimension_numbers<[2], [1], [1], [2], [0, 0, 0, 1, 1, 2], [0], [0]>} : vector<8x8x8xbf16>, vector<8x8x8xbf16>, vector<8x8x8xf32> -> vector<8x8x8xf32>
    "tpu.trace_stop"() : () -> ()
    %128 = vector.shape_cast %127 : vector<8x8x8xf32> to vector<64x8xf32>
    %129 = arith.truncf %128 : vector<64x8xf32> to vector<64x8xbf16>
    %c0_48 = arith.constant 0 : index
    %c8 = arith.constant 8 : index
    %c0_49 = arith.constant 0 : index
    %130 = vector.load %arg10[%c0_48, %c8, %c0_49] : memref<2x32x32xbf16, #tpu.memory_space<vmem>>, vector<1x8x32xbf16>
    %131 = vector.shape_cast %130 : vector<1x8x32xbf16> to vector<8x32xbf16>
    %cst_50 = arith.constant dense<0.000000e+00> : vector<64x32xf32>
    %132 = tpu.matmul %129, %131, %cst_50 {dimension_numbers = #tpu.dot_dimension_numbers<[1], [0], [0], [1], [0, 0, 1, 1], [], []>} : vector<64x8xbf16>, vector<8x32xbf16>, vector<64x32xf32> -> vector<64x32xf32>
    %133 = arith.addf %105, %132 : vector<64x32xf32>
    %134 = vector.extract_strided_slice %72 {offsets = [0, 0, 16], sizes = [8, 8, 8], strides = [1, 1, 1]} : vector<8x8x32xf32> to vector<8x8x8xf32>
    %135 = arith.truncf %134 : vector<8x8x8xf32> to vector<8x8x8xbf16>
    %136 = vector.extract_strided_slice %74 {offsets = [0, 0, 16], sizes = [8, 8, 8], strides = [1, 1, 1]} : vector<8x8x32xf32> to vector<8x8x8xf32>
    %137 = arith.truncf %136 : vector<8x8x8xf32> to vector<8x8x8xbf16>
    %138 = vector.extract_strided_slice %76 {offsets = [0, 0, 16], sizes = [8, 8, 8], strides = [1, 1, 1]} : vector<8x8x32xf32> to vector<8x8x8xf32>
    %139 = arith.truncf %138 : vector<8x8x8xf32> to vector<8x8x8xbf16>
    "tpu.trace_start"() <{level = 10 : i32, message = "bqd,bkd->bqk"}> : () -> ()
    %cst_51 = arith.constant dense<0.000000e+00> : vector<8x8x8xf32>
    %140 = tpu.matmul %135, %137, %cst_51 {dimension_numbers = #tpu.dot_dimension_numbers<[2], [2], [1], [1], [0, 0, 0, 1, 1, 1], [0], [0]>} : vector<8x8x8xbf16>, vector<8x8x8xbf16>, vector<8x8x8xf32> -> vector<8x8x8xf32>
    "tpu.trace_stop"() : () -> ()
    %141 = vector.shape_cast %34 : vector<1x8xf32> to vector<1x1x8xf32>
    %142 = vector.broadcast %141 : vector<1x1x8xf32> to vector<8x8x8xf32>
    %143 = arith.addf %140, %142 : vector<8x8x8xf32>
    %cst_52 = arith.constant dense<0xFF800000> : vector<8x8xf32>
    %144 = vector.multi_reduction <maximumf>, %143, %cst_52 [2] : vector<8x8x8xf32> to vector<8x8xf32>
    %145 = vector.shape_cast %144 : vector<8x8xf32> to vector<8x8x1xf32>
    %146 = vector.broadcast %145 : vector<8x8x1xf32> to vector<8x8x8xf32>
    %147 = arith.subf %143, %146 : vector<8x8x8xf32>
    %148 = math.exp %147 : vector<8x8x8xf32>
    %cst_53 = arith.constant dense<0.000000e+00> : vector<8x8xf32>
    %149 = vector.multi_reduction <add>, %148, %cst_53 [2] : vector<8x8x8xf32> to vector<8x8xf32>
    %150 = vector.shape_cast %149 : vector<8x8xf32> to vector<8x8x1xf32>
    %151 = tpu.reciprocal %150 {approx = true} : vector<8x8x1xf32> -> vector<8x8x1xf32>
    %152 = vector.broadcast %151 : vector<8x8x1xf32> to vector<8x8x8xf32>
    %153 = arith.mulf %148, %152 : vector<8x8x8xf32>
    %154 = arith.truncf %153 : vector<8x8x8xf32> to vector<8x8x8xbf16>
    "tpu.trace_start"() <{level = 10 : i32, message = "bqk,bkd->bqd"}> : () -> ()
    %cst_54 = arith.constant dense<0.000000e+00> : vector<8x8x8xf32>
    %155 = tpu.matmul %154, %139, %cst_54 {dimension_numbers = #tpu.dot_dimension_numbers<[2], [1], [1], [2], [0, 0, 0, 1, 1, 2], [0], [0]>} : vector<8x8x8xbf16>, vector<8x8x8xbf16>, vector<8x8x8xf32> -> vector<8x8x8xf32>
    "tpu.trace_stop"() : () -> ()
    %156 = vector.shape_cast %155 : vector<8x8x8xf32> to vector<64x8xf32>
    %157 = arith.truncf %156 : vector<64x8xf32> to vector<64x8xbf16>
    %c0_55 = arith.constant 0 : index
    %c16 = arith.constant 16 : index
    %c0_56 = arith.constant 0 : index
    %158 = vector.load %arg10[%c0_55, %c16, %c0_56] : memref<2x32x32xbf16, #tpu.memory_space<vmem>>, vector<1x8x32xbf16>
    %159 = vector.shape_cast %158 : vector<1x8x32xbf16> to vector<8x32xbf16>
    %cst_57 = arith.constant dense<0.000000e+00> : vector<64x32xf32>
    %160 = tpu.matmul %157, %159, %cst_57 {dimension_numbers = #tpu.dot_dimension_numbers<[1], [0], [0], [1], [0, 0, 1, 1], [], []>} : vector<64x8xbf16>, vector<8x32xbf16>, vector<64x32xf32> -> vector<64x32xf32>
    %161 = arith.addf %133, %160 : vector<64x32xf32>
    %162 = vector.extract_strided_slice %72 {offsets = [0, 0, 24], sizes = [8, 8, 8], strides = [1, 1, 1]} : vector<8x8x32xf32> to vector<8x8x8xf32>
    %163 = arith.truncf %162 : vector<8x8x8xf32> to vector<8x8x8xbf16>
    %164 = vector.extract_strided_slice %74 {offsets = [0, 0, 24], sizes = [8, 8, 8], strides = [1, 1, 1]} : vector<8x8x32xf32> to vector<8x8x8xf32>
    %165 = arith.truncf %164 : vector<8x8x8xf32> to vector<8x8x8xbf16>
    %166 = vector.extract_strided_slice %76 {offsets = [0, 0, 24], sizes = [8, 8, 8], strides = [1, 1, 1]} : vector<8x8x32xf32> to vector<8x8x8xf32>
    %167 = arith.truncf %166 : vector<8x8x8xf32> to vector<8x8x8xbf16>
    "tpu.trace_start"() <{level = 10 : i32, message = "bqd,bkd->bqk"}> : () -> ()
    %cst_58 = arith.constant dense<0.000000e+00> : vector<8x8x8xf32>
    %168 = tpu.matmul %163, %165, %cst_58 {dimension_numbers = #tpu.dot_dimension_numbers<[2], [2], [1], [1], [0, 0, 0, 1, 1, 1], [0], [0]>} : vector<8x8x8xbf16>, vector<8x8x8xbf16>, vector<8x8x8xf32> -> vector<8x8x8xf32>
    "tpu.trace_stop"() : () -> ()
    %169 = vector.shape_cast %34 : vector<1x8xf32> to vector<1x1x8xf32>
    %170 = vector.broadcast %169 : vector<1x1x8xf32> to vector<8x8x8xf32>
    %171 = arith.addf %168, %170 : vector<8x8x8xf32>
    %cst_59 = arith.constant dense<0xFF800000> : vector<8x8xf32>
    %172 = vector.multi_reduction <maximumf>, %171, %cst_59 [2] : vector<8x8x8xf32> to vector<8x8xf32>
    %173 = vector.shape_cast %172 : vector<8x8xf32> to vector<8x8x1xf32>
    %174 = vector.broadcast %173 : vector<8x8x1xf32> to vector<8x8x8xf32>
    %175 = arith.subf %171, %174 : vector<8x8x8xf32>
    %176 = math.exp %175 : vector<8x8x8xf32>
    %cst_60 = arith.constant dense<0.000000e+00> : vector<8x8xf32>
    %177 = vector.multi_reduction <add>, %176, %cst_60 [2] : vector<8x8x8xf32> to vector<8x8xf32>
    %178 = vector.shape_cast %177 : vector<8x8xf32> to vector<8x8x1xf32>
    %179 = tpu.reciprocal %178 {approx = true} : vector<8x8x1xf32> -> vector<8x8x1xf32>
    %180 = vector.broadcast %179 : vector<8x8x1xf32> to vector<8x8x8xf32>
    %181 = arith.mulf %176, %180 : vector<8x8x8xf32>
    %182 = arith.truncf %181 : vector<8x8x8xf32> to vector<8x8x8xbf16>
    "tpu.trace_start"() <{level = 10 : i32, message = "bqk,bkd->bqd"}> : () -> ()
    %cst_61 = arith.constant dense<0.000000e+00> : vector<8x8x8xf32>
    %183 = tpu.matmul %182, %167, %cst_61 {dimension_numbers = #tpu.dot_dimension_numbers<[2], [1], [1], [2], [0, 0, 0, 1, 1, 2], [0], [0]>} : vector<8x8x8xbf16>, vector<8x8x8xbf16>, vector<8x8x8xf32> -> vector<8x8x8xf32>
    "tpu.trace_stop"() : () -> ()
    %184 = vector.shape_cast %183 : vector<8x8x8xf32> to vector<64x8xf32>
    %185 = arith.truncf %184 : vector<64x8xf32> to vector<64x8xbf16>
    %c0_62 = arith.constant 0 : index
    %c24 = arith.constant 24 : index
    %c0_63 = arith.constant 0 : index
    %186 = vector.load %arg10[%c0_62, %c24, %c0_63] : memref<2x32x32xbf16, #tpu.memory_space<vmem>>, vector<1x8x32xbf16>
    %187 = vector.shape_cast %186 : vector<1x8x32xbf16> to vector<8x32xbf16>
    %cst_64 = arith.constant dense<0.000000e+00> : vector<64x32xf32>
    %188 = tpu.matmul %185, %187, %cst_64 {dimension_numbers = #tpu.dot_dimension_numbers<[1], [0], [0], [1], [0, 0, 1, 1], [], []>} : vector<64x8xbf16>, vector<8x32xbf16>, vector<64x32xf32> -> vector<64x32xf32>
    %189 = arith.addf %161, %188 : vector<64x32xf32>
    %190 = arith.addf %28, %189 : vector<64x32xf32>
    %c0_65 = arith.constant 0 : index
    %c0_66 = arith.constant 0 : index
    %c0_67 = arith.constant 0 : index
    %191 = vector.load %arg11[%c0_65, %c0_66, %c0_67] : memref<2x1x32xf32, #tpu.memory_space<vmem>>, vector<1x1x32xf32>
    %192 = vector.shape_cast %191 : vector<1x1x32xf32> to vector<1x32xf32>
    %193 = vector.broadcast %192 : vector<1x32xf32> to vector<64x32xf32>
    %194 = arith.addf %190, %193 : vector<64x32xf32>
    %c0_68 = arith.constant 0 : index
    %c0_69 = arith.constant 0 : index
    %c0_70 = arith.constant 0 : index
    %195 = vector.load %arg12[%c0_68, %c0_69, %c0_70] : memref<2x1x32xf32, #tpu.memory_space<vmem>>, vector<1x1x32xf32>
    %196 = vector.shape_cast %195 : vector<1x1x32xf32> to vector<1x32xf32>
    %c0_71 = arith.constant 0 : index
    %c0_72 = arith.constant 0 : index
    %c0_73 = arith.constant 0 : index
    %197 = vector.load %arg13[%c0_71, %c0_72, %c0_73] : memref<2x1x32xf32, #tpu.memory_space<vmem>>, vector<1x1x32xf32>
    %198 = vector.shape_cast %197 : vector<1x1x32xf32> to vector<1x32xf32>
    %cst_74 = arith.constant dense<0.000000e+00> : vector<64xf32>
    %199 = vector.multi_reduction <add>, %194, %cst_74 [1] : vector<64x32xf32> to vector<64xf32>
    %200 = vector.shape_cast %199 : vector<64xf32> to vector<64x1xf32>
    %cst_75 = arith.constant 3.200000e+01 : f32
    %201 = vector.broadcast %cst_75 : f32 to vector<64x1xf32>
    %202 = arith.divf %200, %201 : vector<64x1xf32>
    %203 = vector.broadcast %202 : vector<64x1xf32> to vector<64x32xf32>
    %204 = arith.subf %194, %203 : vector<64x32xf32>
    %205 = arith.mulf %204, %204 : vector<64x32xf32>
    %cst_76 = arith.constant dense<0.000000e+00> : vector<64xf32>
    %206 = vector.multi_reduction <add>, %205, %cst_76 [1] : vector<64x32xf32> to vector<64xf32>
    %207 = vector.shape_cast %206 : vector<64xf32> to vector<64x1xf32>
    %cst_77 = arith.constant 3.200000e+01 : f32
    %208 = vector.broadcast %cst_77 : f32 to vector<64x1xf32>
    %209 = arith.divf %207, %208 : vector<64x1xf32>
    %210 = vector.broadcast %202 : vector<64x1xf32> to vector<64x32xf32>
    %211 = arith.subf %194, %210 : vector<64x32xf32>
    %cst_78 = arith.constant 9.99999974E-6 : f32
    %212 = vector.broadcast %cst_78 : f32 to vector<64x1xf32>
    %213 = arith.addf %209, %212 : vector<64x1xf32>
    %214 = math.rsqrt %213 : vector<64x1xf32>
    %215 = vector.broadcast %214 : vector<64x1xf32> to vector<64x32xf32>
    %216 = arith.mulf %211, %215 : vector<64x32xf32>
    %217 = vector.broadcast %196 : vector<1x32xf32> to vector<64x32xf32>
    %218 = arith.mulf %216, %217 : vector<64x32xf32>
    %219 = vector.broadcast %198 : vector<1x32xf32> to vector<64x32xf32>
    %220 = arith.addf %218, %219 : vector<64x32xf32>
    %221 = arith.truncf %220 : vector<64x32xf32> to vector<64x32xbf16>
    %c0_79 = arith.constant 0 : index
    %c0_80 = arith.constant 0 : index
    %c0_81 = arith.constant 0 : index
    %222 = vector.load %arg14[%c0_79, %c0_80, %c0_81] : memref<2x32x64xbf16, #tpu.memory_space<vmem>>, vector<1x32x64xbf16>
    %223 = vector.shape_cast %222 : vector<1x32x64xbf16> to vector<32x64xbf16>
    %cst_82 = arith.constant dense<0.000000e+00> : vector<64x64xf32>
    %224 = tpu.matmul %221, %223, %cst_82 {dimension_numbers = #tpu.dot_dimension_numbers<[1], [0], [0], [1], [0, 0, 1, 1], [], []>} : vector<64x32xbf16>, vector<32x64xbf16>, vector<64x64xf32> -> vector<64x64xf32>
    %c0_83 = arith.constant 0 : index
    %c0_84 = arith.constant 0 : index
    %c0_85 = arith.constant 0 : index
    %225 = vector.load %arg15[%c0_83, %c0_84, %c0_85] : memref<2x1x64xf32, #tpu.memory_space<vmem>>, vector<1x1x64xf32>
    %226 = vector.shape_cast %225 : vector<1x1x64xf32> to vector<1x64xf32>
    %227 = vector.broadcast %226 : vector<1x64xf32> to vector<64x64xf32>
    %228 = arith.addf %224, %227 : vector<64x64xf32>
    %cst_86 = arith.constant 1.702000e+00 : f32
    %229 = vector.broadcast %cst_86 : f32 to vector<64x64xf32>
    %230 = arith.mulf %229, %228 : vector<64x64xf32>
    %231 = arith.negf %230 : vector<64x64xf32>
    %232 = math.exp %231 : vector<64x64xf32>
    %cst_87 = arith.constant 1.000000e+00 : f32
    %233 = vector.broadcast %cst_87 : f32 to vector<64x64xf32>
    %234 = arith.addf %233, %232 : vector<64x64xf32>
    %235 = arith.divf %233, %234 : vector<64x64xf32>
    %236 = arith.mulf %228, %235 : vector<64x64xf32>
    %237 = arith.truncf %236 : vector<64x64xf32> to vector<64x64xbf16>
    %c0_88 = arith.constant 0 : index
    %c0_89 = arith.constant 0 : index
    %c0_90 = arith.constant 0 : index
    %238 = vector.load %arg16[%c0_88, %c0_89, %c0_90] : memref<2x64x32xbf16, #tpu.memory_space<vmem>>, vector<1x64x32xbf16>
    %239 = vector.shape_cast %238 : vector<1x64x32xbf16> to vector<64x32xbf16>
    %cst_91 = arith.constant dense<0.000000e+00> : vector<64x32xf32>
    %240 = tpu.matmul %237, %239, %cst_91 {dimension_numbers = #tpu.dot_dimension_numbers<[1], [0], [0], [1], [0, 0, 1, 1], [], []>} : vector<64x64xbf16>, vector<64x32xbf16>, vector<64x32xf32> -> vector<64x32xf32>
    %c0_92 = arith.constant 0 : index
    %c0_93 = arith.constant 0 : index
    %c0_94 = arith.constant 0 : index
    %241 = vector.load %arg17[%c0_92, %c0_93, %c0_94] : memref<2x1x32xf32, #tpu.memory_space<vmem>>, vector<1x1x32xf32>
    %242 = vector.shape_cast %241 : vector<1x1x32xf32> to vector<1x32xf32>
    %243 = vector.broadcast %242 : vector<1x32xf32> to vector<64x32xf32>
    %244 = arith.addf %240, %243 : vector<64x32xf32>
    %245 = arith.addf %194, %244 : vector<64x32xf32>
    %c1 = arith.constant 1 : index
    %c0_95 = arith.constant 0 : index
    %c0_96 = arith.constant 0 : index
    %246 = vector.load %arg6[%c1, %c0_95, %c0_96] : memref<2x1x32xf32, #tpu.memory_space<vmem>>, vector<1x1x32xf32>
    %247 = vector.shape_cast %246 : vector<1x1x32xf32> to vector<1x32xf32>
    %c1_97 = arith.constant 1 : index
    %c0_98 = arith.constant 0 : index
    %c0_99 = arith.constant 0 : index
    %248 = vector.load %arg7[%c1_97, %c0_98, %c0_99] : memref<2x1x32xf32, #tpu.memory_space<vmem>>, vector<1x1x32xf32>
    %249 = vector.shape_cast %248 : vector<1x1x32xf32> to vector<1x32xf32>
    %cst_100 = arith.constant dense<0.000000e+00> : vector<64xf32>
    %250 = vector.multi_reduction <add>, %245, %cst_100 [1] : vector<64x32xf32> to vector<64xf32>
    %251 = vector.shape_cast %250 : vector<64xf32> to vector<64x1xf32>
    %cst_101 = arith.constant 3.200000e+01 : f32
    %252 = vector.broadcast %cst_101 : f32 to vector<64x1xf32>
    %253 = arith.divf %251, %252 : vector<64x1xf32>
    %254 = vector.broadcast %253 : vector<64x1xf32> to vector<64x32xf32>
    %255 = arith.subf %245, %254 : vector<64x32xf32>
    %256 = arith.mulf %255, %255 : vector<64x32xf32>
    %cst_102 = arith.constant dense<0.000000e+00> : vector<64xf32>
    %257 = vector.multi_reduction <add>, %256, %cst_102 [1] : vector<64x32xf32> to vector<64xf32>
    %258 = vector.shape_cast %257 : vector<64xf32> to vector<64x1xf32>
    %cst_103 = arith.constant 3.200000e+01 : f32
    %259 = vector.broadcast %cst_103 : f32 to vector<64x1xf32>
    %260 = arith.divf %258, %259 : vector<64x1xf32>
    %261 = vector.broadcast %253 : vector<64x1xf32> to vector<64x32xf32>
    %262 = arith.subf %245, %261 : vector<64x32xf32>
    %cst_104 = arith.constant 9.99999974E-6 : f32
    %263 = vector.broadcast %cst_104 : f32 to vector<64x1xf32>
    %264 = arith.addf %260, %263 : vector<64x1xf32>
    %265 = math.rsqrt %264 : vector<64x1xf32>
    %266 = vector.broadcast %265 : vector<64x1xf32> to vector<64x32xf32>
    %267 = arith.mulf %262, %266 : vector<64x32xf32>
    %268 = vector.broadcast %247 : vector<1x32xf32> to vector<64x32xf32>
    %269 = arith.mulf %267, %268 : vector<64x32xf32>
    %270 = vector.broadcast %249 : vector<1x32xf32> to vector<64x32xf32>
    %271 = arith.addf %269, %270 : vector<64x32xf32>
    %272 = arith.truncf %271 : vector<64x32xf32> to vector<64x32xbf16>
    %c1_105 = arith.constant 1 : index
    %c0_106 = arith.constant 0 : index
    %c0_107 = arith.constant 0 : index
    %273 = vector.load %arg8[%c1_105, %c0_106, %c0_107] : memref<2x32x96xbf16, #tpu.memory_space<vmem>>, vector<1x32x96xbf16>
    %274 = vector.shape_cast %273 : vector<1x32x96xbf16> to vector<32x96xbf16>
    %cst_108 = arith.constant dense<0.000000e+00> : vector<64x96xf32>
    %275 = tpu.matmul %272, %274, %cst_108 {dimension_numbers = #tpu.dot_dimension_numbers<[1], [0], [0], [1], [0, 0, 1, 1], [], []>} : vector<64x32xbf16>, vector<32x96xbf16>, vector<64x96xf32> -> vector<64x96xf32>
    %c1_109 = arith.constant 1 : index
    %c0_110 = arith.constant 0 : index
    %c0_111 = arith.constant 0 : index
    %276 = vector.load %arg9[%c1_109, %c0_110, %c0_111] : memref<2x1x96xf32, #tpu.memory_space<vmem>>, vector<1x1x96xf32>
    %277 = vector.shape_cast %276 : vector<1x1x96xf32> to vector<1x96xf32>
    %278 = vector.broadcast %277 : vector<1x96xf32> to vector<64x96xf32>
    %279 = arith.addf %275, %278 : vector<64x96xf32>
    %280 = vector.extract_strided_slice %279 {offsets = [0, 0], sizes = [64, 32], strides = [1, 1]} : vector<64x96xf32> to vector<64x32xf32>
    %cst_112 = arith.constant 0.353553385 : f32
    %281 = vector.broadcast %cst_112 : f32 to vector<64x32xf32>
    %282 = arith.mulf %280, %281 : vector<64x32xf32>
    %283 = vector.shape_cast %282 : vector<64x32xf32> to vector<8x8x32xf32>
    %284 = vector.extract_strided_slice %279 {offsets = [0, 32], sizes = [64, 32], strides = [1, 1]} : vector<64x96xf32> to vector<64x32xf32>
    %285 = vector.shape_cast %284 : vector<64x32xf32> to vector<8x8x32xf32>
    %286 = vector.extract_strided_slice %279 {offsets = [0, 64], sizes = [64, 32], strides = [1, 1]} : vector<64x96xf32> to vector<64x32xf32>
    %287 = vector.shape_cast %286 : vector<64x32xf32> to vector<8x8x32xf32>
    %cst_113 = arith.constant 0.000000e+00 : f32
    %288 = vector.broadcast %cst_113 : f32 to vector<64x32xf32>
    %289 = vector.extract_strided_slice %283 {offsets = [0, 0, 0], sizes = [8, 8, 8], strides = [1, 1, 1]} : vector<8x8x32xf32> to vector<8x8x8xf32>
    %290 = arith.truncf %289 : vector<8x8x8xf32> to vector<8x8x8xbf16>
    %291 = vector.extract_strided_slice %285 {offsets = [0, 0, 0], sizes = [8, 8, 8], strides = [1, 1, 1]} : vector<8x8x32xf32> to vector<8x8x8xf32>
    %292 = arith.truncf %291 : vector<8x8x8xf32> to vector<8x8x8xbf16>
    %293 = vector.extract_strided_slice %287 {offsets = [0, 0, 0], sizes = [8, 8, 8], strides = [1, 1, 1]} : vector<8x8x32xf32> to vector<8x8x8xf32>
    %294 = arith.truncf %293 : vector<8x8x8xf32> to vector<8x8x8xbf16>
    "tpu.trace_start"() <{level = 10 : i32, message = "bqd,bkd->bqk"}> : () -> ()
    %cst_114 = arith.constant dense<0.000000e+00> : vector<8x8x8xf32>
    %295 = tpu.matmul %290, %292, %cst_114 {dimension_numbers = #tpu.dot_dimension_numbers<[2], [2], [1], [1], [0, 0, 0, 1, 1, 1], [0], [0]>} : vector<8x8x8xbf16>, vector<8x8x8xbf16>, vector<8x8x8xf32> -> vector<8x8x8xf32>
    "tpu.trace_stop"() : () -> ()
    %296 = vector.shape_cast %34 : vector<1x8xf32> to vector<1x1x8xf32>
    %297 = vector.broadcast %296 : vector<1x1x8xf32> to vector<8x8x8xf32>
    %298 = arith.addf %295, %297 : vector<8x8x8xf32>
    %cst_115 = arith.constant dense<0xFF800000> : vector<8x8xf32>
    %299 = vector.multi_reduction <maximumf>, %298, %cst_115 [2] : vector<8x8x8xf32> to vector<8x8xf32>
    %300 = vector.shape_cast %299 : vector<8x8xf32> to vector<8x8x1xf32>
    %301 = vector.broadcast %300 : vector<8x8x1xf32> to vector<8x8x8xf32>
    %302 = arith.subf %298, %301 : vector<8x8x8xf32>
    %303 = math.exp %302 : vector<8x8x8xf32>
    %cst_116 = arith.constant dense<0.000000e+00> : vector<8x8xf32>
    %304 = vector.multi_reduction <add>, %303, %cst_116 [2] : vector<8x8x8xf32> to vector<8x8xf32>
    %305 = vector.shape_cast %304 : vector<8x8xf32> to vector<8x8x1xf32>
    %306 = tpu.reciprocal %305 {approx = true} : vector<8x8x1xf32> -> vector<8x8x1xf32>
    %307 = vector.broadcast %306 : vector<8x8x1xf32> to vector<8x8x8xf32>
    %308 = arith.mulf %303, %307 : vector<8x8x8xf32>
    %309 = arith.truncf %308 : vector<8x8x8xf32> to vector<8x8x8xbf16>
    "tpu.trace_start"() <{level = 10 : i32, message = "bqk,bkd->bqd"}> : () -> ()
    %cst_117 = arith.constant dense<0.000000e+00> : vector<8x8x8xf32>
    %310 = tpu.matmul %309, %294, %cst_117 {dimension_numbers = #tpu.dot_dimension_numbers<[2], [1], [1], [2], [0, 0, 0, 1, 1, 2], [0], [0]>} : vector<8x8x8xbf16>, vector<8x8x8xbf16>, vector<8x8x8xf32> -> vector<8x8x8xf32>
    "tpu.trace_stop"() : () -> ()
    %311 = vector.shape_cast %310 : vector<8x8x8xf32> to vector<64x8xf32>
    %312 = arith.truncf %311 : vector<64x8xf32> to vector<64x8xbf16>
    %c1_118 = arith.constant 1 : index
    %c0_119 = arith.constant 0 : index
    %c0_120 = arith.constant 0 : index
    %313 = vector.load %arg10[%c1_118, %c0_119, %c0_120] : memref<2x32x32xbf16, #tpu.memory_space<vmem>>, vector<1x8x32xbf16>
    %314 = vector.shape_cast %313 : vector<1x8x32xbf16> to vector<8x32xbf16>
    %cst_121 = arith.constant dense<0.000000e+00> : vector<64x32xf32>
    %315 = tpu.matmul %312, %314, %cst_121 {dimension_numbers = #tpu.dot_dimension_numbers<[1], [0], [0], [1], [0, 0, 1, 1], [], []>} : vector<64x8xbf16>, vector<8x32xbf16>, vector<64x32xf32> -> vector<64x32xf32>
    %316 = arith.addf %288, %315 : vector<64x32xf32>
    %317 = vector.extract_strided_slice %283 {offsets = [0, 0, 8], sizes = [8, 8, 8], strides = [1, 1, 1]} : vector<8x8x32xf32> to vector<8x8x8xf32>
    %318 = arith.truncf %317 : vector<8x8x8xf32> to vector<8x8x8xbf16>
    %319 = vector.extract_strided_slice %285 {offsets = [0, 0, 8], sizes = [8, 8, 8], strides = [1, 1, 1]} : vector<8x8x32xf32> to vector<8x8x8xf32>
    %320 = arith.truncf %319 : vector<8x8x8xf32> to vector<8x8x8xbf16>
    %321 = vector.extract_strided_slice %287 {offsets = [0, 0, 8], sizes = [8, 8, 8], strides = [1, 1, 1]} : vector<8x8x32xf32> to vector<8x8x8xf32>
    %322 = arith.truncf %321 : vector<8x8x8xf32> to vector<8x8x8xbf16>
    "tpu.trace_start"() <{level = 10 : i32, message = "bqd,bkd->bqk"}> : () -> ()
    %cst_122 = arith.constant dense<0.000000e+00> : vector<8x8x8xf32>
    %323 = tpu.matmul %318, %320, %cst_122 {dimension_numbers = #tpu.dot_dimension_numbers<[2], [2], [1], [1], [0, 0, 0, 1, 1, 1], [0], [0]>} : vector<8x8x8xbf16>, vector<8x8x8xbf16>, vector<8x8x8xf32> -> vector<8x8x8xf32>
    "tpu.trace_stop"() : () -> ()
    %324 = vector.shape_cast %34 : vector<1x8xf32> to vector<1x1x8xf32>
    %325 = vector.broadcast %324 : vector<1x1x8xf32> to vector<8x8x8xf32>
    %326 = arith.addf %323, %325 : vector<8x8x8xf32>
    %cst_123 = arith.constant dense<0xFF800000> : vector<8x8xf32>
    %327 = vector.multi_reduction <maximumf>, %326, %cst_123 [2] : vector<8x8x8xf32> to vector<8x8xf32>
    %328 = vector.shape_cast %327 : vector<8x8xf32> to vector<8x8x1xf32>
    %329 = vector.broadcast %328 : vector<8x8x1xf32> to vector<8x8x8xf32>
    %330 = arith.subf %326, %329 : vector<8x8x8xf32>
    %331 = math.exp %330 : vector<8x8x8xf32>
    %cst_124 = arith.constant dense<0.000000e+00> : vector<8x8xf32>
    %332 = vector.multi_reduction <add>, %331, %cst_124 [2] : vector<8x8x8xf32> to vector<8x8xf32>
    %333 = vector.shape_cast %332 : vector<8x8xf32> to vector<8x8x1xf32>
    %334 = tpu.reciprocal %333 {approx = true} : vector<8x8x1xf32> -> vector<8x8x1xf32>
    %335 = vector.broadcast %334 : vector<8x8x1xf32> to vector<8x8x8xf32>
    %336 = arith.mulf %331, %335 : vector<8x8x8xf32>
    %337 = arith.truncf %336 : vector<8x8x8xf32> to vector<8x8x8xbf16>
    "tpu.trace_start"() <{level = 10 : i32, message = "bqk,bkd->bqd"}> : () -> ()
    %cst_125 = arith.constant dense<0.000000e+00> : vector<8x8x8xf32>
    %338 = tpu.matmul %337, %322, %cst_125 {dimension_numbers = #tpu.dot_dimension_numbers<[2], [1], [1], [2], [0, 0, 0, 1, 1, 2], [0], [0]>} : vector<8x8x8xbf16>, vector<8x8x8xbf16>, vector<8x8x8xf32> -> vector<8x8x8xf32>
    "tpu.trace_stop"() : () -> ()
    %339 = vector.shape_cast %338 : vector<8x8x8xf32> to vector<64x8xf32>
    %340 = arith.truncf %339 : vector<64x8xf32> to vector<64x8xbf16>
    %c1_126 = arith.constant 1 : index
    %c8_127 = arith.constant 8 : index
    %c0_128 = arith.constant 0 : index
    %341 = vector.load %arg10[%c1_126, %c8_127, %c0_128] : memref<2x32x32xbf16, #tpu.memory_space<vmem>>, vector<1x8x32xbf16>
    %342 = vector.shape_cast %341 : vector<1x8x32xbf16> to vector<8x32xbf16>
    %cst_129 = arith.constant dense<0.000000e+00> : vector<64x32xf32>
    %343 = tpu.matmul %340, %342, %cst_129 {dimension_numbers = #tpu.dot_dimension_numbers<[1], [0], [0], [1], [0, 0, 1, 1], [], []>} : vector<64x8xbf16>, vector<8x32xbf16>, vector<64x32xf32> -> vector<64x32xf32>
    %344 = arith.addf %316, %343 : vector<64x32xf32>
    %345 = vector.extract_strided_slice %283 {offsets = [0, 0, 16], sizes = [8, 8, 8], strides = [1, 1, 1]} : vector<8x8x32xf32> to vector<8x8x8xf32>
    %346 = arith.truncf %345 : vector<8x8x8xf32> to vector<8x8x8xbf16>
    %347 = vector.extract_strided_slice %285 {offsets = [0, 0, 16], sizes = [8, 8, 8], strides = [1, 1, 1]} : vector<8x8x32xf32> to vector<8x8x8xf32>
    %348 = arith.truncf %347 : vector<8x8x8xf32> to vector<8x8x8xbf16>
    %349 = vector.extract_strided_slice %287 {offsets = [0, 0, 16], sizes = [8, 8, 8], strides = [1, 1, 1]} : vector<8x8x32xf32> to vector<8x8x8xf32>
    %350 = arith.truncf %349 : vector<8x8x8xf32> to vector<8x8x8xbf16>
    "tpu.trace_start"() <{level = 10 : i32, message = "bqd,bkd->bqk"}> : () -> ()
    %cst_130 = arith.constant dense<0.000000e+00> : vector<8x8x8xf32>
    %351 = tpu.matmul %346, %348, %cst_130 {dimension_numbers = #tpu.dot_dimension_numbers<[2], [2], [1], [1], [0, 0, 0, 1, 1, 1], [0], [0]>} : vector<8x8x8xbf16>, vector<8x8x8xbf16>, vector<8x8x8xf32> -> vector<8x8x8xf32>
    "tpu.trace_stop"() : () -> ()
    %352 = vector.shape_cast %34 : vector<1x8xf32> to vector<1x1x8xf32>
    %353 = vector.broadcast %352 : vector<1x1x8xf32> to vector<8x8x8xf32>
    %354 = arith.addf %351, %353 : vector<8x8x8xf32>
    %cst_131 = arith.constant dense<0xFF800000> : vector<8x8xf32>
    %355 = vector.multi_reduction <maximumf>, %354, %cst_131 [2] : vector<8x8x8xf32> to vector<8x8xf32>
    %356 = vector.shape_cast %355 : vector<8x8xf32> to vector<8x8x1xf32>
    %357 = vector.broadcast %356 : vector<8x8x1xf32> to vector<8x8x8xf32>
    %358 = arith.subf %354, %357 : vector<8x8x8xf32>
    %359 = math.exp %358 : vector<8x8x8xf32>
    %cst_132 = arith.constant dense<0.000000e+00> : vector<8x8xf32>
    %360 = vector.multi_reduction <add>, %359, %cst_132 [2] : vector<8x8x8xf32> to vector<8x8xf32>
    %361 = vector.shape_cast %360 : vector<8x8xf32> to vector<8x8x1xf32>
    %362 = tpu.reciprocal %361 {approx = true} : vector<8x8x1xf32> -> vector<8x8x1xf32>
    %363 = vector.broadcast %362 : vector<8x8x1xf32> to vector<8x8x8xf32>
    %364 = arith.mulf %359, %363 : vector<8x8x8xf32>
    %365 = arith.truncf %364 : vector<8x8x8xf32> to vector<8x8x8xbf16>
    "tpu.trace_start"() <{level = 10 : i32, message = "bqk,bkd->bqd"}> : () -> ()
    %cst_133 = arith.constant dense<0.000000e+00> : vector<8x8x8xf32>
    %366 = tpu.matmul %365, %350, %cst_133 {dimension_numbers = #tpu.dot_dimension_numbers<[2], [1], [1], [2], [0, 0, 0, 1, 1, 2], [0], [0]>} : vector<8x8x8xbf16>, vector<8x8x8xbf16>, vector<8x8x8xf32> -> vector<8x8x8xf32>
    "tpu.trace_stop"() : () -> ()
    %367 = vector.shape_cast %366 : vector<8x8x8xf32> to vector<64x8xf32>
    %368 = arith.truncf %367 : vector<64x8xf32> to vector<64x8xbf16>
    %c1_134 = arith.constant 1 : index
    %c16_135 = arith.constant 16 : index
    %c0_136 = arith.constant 0 : index
    %369 = vector.load %arg10[%c1_134, %c16_135, %c0_136] : memref<2x32x32xbf16, #tpu.memory_space<vmem>>, vector<1x8x32xbf16>
    %370 = vector.shape_cast %369 : vector<1x8x32xbf16> to vector<8x32xbf16>
    %cst_137 = arith.constant dense<0.000000e+00> : vector<64x32xf32>
    %371 = tpu.matmul %368, %370, %cst_137 {dimension_numbers = #tpu.dot_dimension_numbers<[1], [0], [0], [1], [0, 0, 1, 1], [], []>} : vector<64x8xbf16>, vector<8x32xbf16>, vector<64x32xf32> -> vector<64x32xf32>
    %372 = arith.addf %344, %371 : vector<64x32xf32>
    %373 = vector.extract_strided_slice %283 {offsets = [0, 0, 24], sizes = [8, 8, 8], strides = [1, 1, 1]} : vector<8x8x32xf32> to vector<8x8x8xf32>
    %374 = arith.truncf %373 : vector<8x8x8xf32> to vector<8x8x8xbf16>
    %375 = vector.extract_strided_slice %285 {offsets = [0, 0, 24], sizes = [8, 8, 8], strides = [1, 1, 1]} : vector<8x8x32xf32> to vector<8x8x8xf32>
    %376 = arith.truncf %375 : vector<8x8x8xf32> to vector<8x8x8xbf16>
    %377 = vector.extract_strided_slice %287 {offsets = [0, 0, 24], sizes = [8, 8, 8], strides = [1, 1, 1]} : vector<8x8x32xf32> to vector<8x8x8xf32>
    %378 = arith.truncf %377 : vector<8x8x8xf32> to vector<8x8x8xbf16>
    "tpu.trace_start"() <{level = 10 : i32, message = "bqd,bkd->bqk"}> : () -> ()
    %cst_138 = arith.constant dense<0.000000e+00> : vector<8x8x8xf32>
    %379 = tpu.matmul %374, %376, %cst_138 {dimension_numbers = #tpu.dot_dimension_numbers<[2], [2], [1], [1], [0, 0, 0, 1, 1, 1], [0], [0]>} : vector<8x8x8xbf16>, vector<8x8x8xbf16>, vector<8x8x8xf32> -> vector<8x8x8xf32>
    "tpu.trace_stop"() : () -> ()
    %380 = vector.shape_cast %34 : vector<1x8xf32> to vector<1x1x8xf32>
    %381 = vector.broadcast %380 : vector<1x1x8xf32> to vector<8x8x8xf32>
    %382 = arith.addf %379, %381 : vector<8x8x8xf32>
    %cst_139 = arith.constant dense<0xFF800000> : vector<8x8xf32>
    %383 = vector.multi_reduction <maximumf>, %382, %cst_139 [2] : vector<8x8x8xf32> to vector<8x8xf32>
    %384 = vector.shape_cast %383 : vector<8x8xf32> to vector<8x8x1xf32>
    %385 = vector.broadcast %384 : vector<8x8x1xf32> to vector<8x8x8xf32>
    %386 = arith.subf %382, %385 : vector<8x8x8xf32>
    %387 = math.exp %386 : vector<8x8x8xf32>
    %cst_140 = arith.constant dense<0.000000e+00> : vector<8x8xf32>
    %388 = vector.multi_reduction <add>, %387, %cst_140 [2] : vector<8x8x8xf32> to vector<8x8xf32>
    %389 = vector.shape_cast %388 : vector<8x8xf32> to vector<8x8x1xf32>
    %390 = tpu.reciprocal %389 {approx = true} : vector<8x8x1xf32> -> vector<8x8x1xf32>
    %391 = vector.broadcast %390 : vector<8x8x1xf32> to vector<8x8x8xf32>
    %392 = arith.mulf %387, %391 : vector<8x8x8xf32>
    %393 = arith.truncf %392 : vector<8x8x8xf32> to vector<8x8x8xbf16>
    "tpu.trace_start"() <{level = 10 : i32, message = "bqk,bkd->bqd"}> : () -> ()
    %cst_141 = arith.constant dense<0.000000e+00> : vector<8x8x8xf32>
    %394 = tpu.matmul %393, %378, %cst_141 {dimension_numbers = #tpu.dot_dimension_numbers<[2], [1], [1], [2], [0, 0, 0, 1, 1, 2], [0], [0]>} : vector<8x8x8xbf16>, vector<8x8x8xbf16>, vector<8x8x8xf32> -> vector<8x8x8xf32>
    "tpu.trace_stop"() : () -> ()
    %395 = vector.shape_cast %394 : vector<8x8x8xf32> to vector<64x8xf32>
    %396 = arith.truncf %395 : vector<64x8xf32> to vector<64x8xbf16>
    %c1_142 = arith.constant 1 : index
    %c24_143 = arith.constant 24 : index
    %c0_144 = arith.constant 0 : index
    %397 = vector.load %arg10[%c1_142, %c24_143, %c0_144] : memref<2x32x32xbf16, #tpu.memory_space<vmem>>, vector<1x8x32xbf16>
    %398 = vector.shape_cast %397 : vector<1x8x32xbf16> to vector<8x32xbf16>
    %cst_145 = arith.constant dense<0.000000e+00> : vector<64x32xf32>
    %399 = tpu.matmul %396, %398, %cst_145 {dimension_numbers = #tpu.dot_dimension_numbers<[1], [0], [0], [1], [0, 0, 1, 1], [], []>} : vector<64x8xbf16>, vector<8x32xbf16>, vector<64x32xf32> -> vector<64x32xf32>
    %400 = arith.addf %372, %399 : vector<64x32xf32>
    %401 = arith.addf %245, %400 : vector<64x32xf32>
    %c1_146 = arith.constant 1 : index
    %c0_147 = arith.constant 0 : index
    %c0_148 = arith.constant 0 : index
    %402 = vector.load %arg11[%c1_146, %c0_147, %c0_148] : memref<2x1x32xf32, #tpu.memory_space<vmem>>, vector<1x1x32xf32>
    %403 = vector.shape_cast %402 : vector<1x1x32xf32> to vector<1x32xf32>
    %404 = vector.broadcast %403 : vector<1x32xf32> to vector<64x32xf32>
    %405 = arith.addf %401, %404 : vector<64x32xf32>
    %c1_149 = arith.constant 1 : index
    %c0_150 = arith.constant 0 : index
    %c0_151 = arith.constant 0 : index
    %406 = vector.load %arg12[%c1_149, %c0_150, %c0_151] : memref<2x1x32xf32, #tpu.memory_space<vmem>>, vector<1x1x32xf32>
    %407 = vector.shape_cast %406 : vector<1x1x32xf32> to vector<1x32xf32>
    %c1_152 = arith.constant 1 : index
    %c0_153 = arith.constant 0 : index
    %c0_154 = arith.constant 0 : index
    %408 = vector.load %arg13[%c1_152, %c0_153, %c0_154] : memref<2x1x32xf32, #tpu.memory_space<vmem>>, vector<1x1x32xf32>
    %409 = vector.shape_cast %408 : vector<1x1x32xf32> to vector<1x32xf32>
    %cst_155 = arith.constant dense<0.000000e+00> : vector<64xf32>
    %410 = vector.multi_reduction <add>, %405, %cst_155 [1] : vector<64x32xf32> to vector<64xf32>
    %411 = vector.shape_cast %410 : vector<64xf32> to vector<64x1xf32>
    %cst_156 = arith.constant 3.200000e+01 : f32
    %412 = vector.broadcast %cst_156 : f32 to vector<64x1xf32>
    %413 = arith.divf %411, %412 : vector<64x1xf32>
    %414 = vector.broadcast %413 : vector<64x1xf32> to vector<64x32xf32>
    %415 = arith.subf %405, %414 : vector<64x32xf32>
    %416 = arith.mulf %415, %415 : vector<64x32xf32>
    %cst_157 = arith.constant dense<0.000000e+00> : vector<64xf32>
    %417 = vector.multi_reduction <add>, %416, %cst_157 [1] : vector<64x32xf32> to vector<64xf32>
    %418 = vector.shape_cast %417 : vector<64xf32> to vector<64x1xf32>
    %cst_158 = arith.constant 3.200000e+01 : f32
    %419 = vector.broadcast %cst_158 : f32 to vector<64x1xf32>
    %420 = arith.divf %418, %419 : vector<64x1xf32>
    %421 = vector.broadcast %413 : vector<64x1xf32> to vector<64x32xf32>
    %422 = arith.subf %405, %421 : vector<64x32xf32>
    %cst_159 = arith.constant 9.99999974E-6 : f32
    %423 = vector.broadcast %cst_159 : f32 to vector<64x1xf32>
    %424 = arith.addf %420, %423 : vector<64x1xf32>
    %425 = math.rsqrt %424 : vector<64x1xf32>
    %426 = vector.broadcast %425 : vector<64x1xf32> to vector<64x32xf32>
    %427 = arith.mulf %422, %426 : vector<64x32xf32>
    %428 = vector.broadcast %407 : vector<1x32xf32> to vector<64x32xf32>
    %429 = arith.mulf %427, %428 : vector<64x32xf32>
    %430 = vector.broadcast %409 : vector<1x32xf32> to vector<64x32xf32>
    %431 = arith.addf %429, %430 : vector<64x32xf32>
    %432 = arith.truncf %431 : vector<64x32xf32> to vector<64x32xbf16>
    %c1_160 = arith.constant 1 : index
    %c0_161 = arith.constant 0 : index
    %c0_162 = arith.constant 0 : index
    %433 = vector.load %arg14[%c1_160, %c0_161, %c0_162] : memref<2x32x64xbf16, #tpu.memory_space<vmem>>, vector<1x32x64xbf16>
    %434 = vector.shape_cast %433 : vector<1x32x64xbf16> to vector<32x64xbf16>
    %cst_163 = arith.constant dense<0.000000e+00> : vector<64x64xf32>
    %435 = tpu.matmul %432, %434, %cst_163 {dimension_numbers = #tpu.dot_dimension_numbers<[1], [0], [0], [1], [0, 0, 1, 1], [], []>} : vector<64x32xbf16>, vector<32x64xbf16>, vector<64x64xf32> -> vector<64x64xf32>
    %c1_164 = arith.constant 1 : index
    %c0_165 = arith.constant 0 : index
    %c0_166 = arith.constant 0 : index
    %436 = vector.load %arg15[%c1_164, %c0_165, %c0_166] : memref<2x1x64xf32, #tpu.memory_space<vmem>>, vector<1x1x64xf32>
    %437 = vector.shape_cast %436 : vector<1x1x64xf32> to vector<1x64xf32>
    %438 = vector.broadcast %437 : vector<1x64xf32> to vector<64x64xf32>
    %439 = arith.addf %435, %438 : vector<64x64xf32>
    %cst_167 = arith.constant 1.702000e+00 : f32
    %440 = vector.broadcast %cst_167 : f32 to vector<64x64xf32>
    %441 = arith.mulf %440, %439 : vector<64x64xf32>
    %442 = arith.negf %441 : vector<64x64xf32>
    %443 = math.exp %442 : vector<64x64xf32>
    %cst_168 = arith.constant 1.000000e+00 : f32
    %444 = vector.broadcast %cst_168 : f32 to vector<64x64xf32>
    %445 = arith.addf %444, %443 : vector<64x64xf32>
    %446 = arith.divf %444, %445 : vector<64x64xf32>
    %447 = arith.mulf %439, %446 : vector<64x64xf32>
    %448 = arith.truncf %447 : vector<64x64xf32> to vector<64x64xbf16>
    %c1_169 = arith.constant 1 : index
    %c0_170 = arith.constant 0 : index
    %c0_171 = arith.constant 0 : index
    %449 = vector.load %arg16[%c1_169, %c0_170, %c0_171] : memref<2x64x32xbf16, #tpu.memory_space<vmem>>, vector<1x64x32xbf16>
    %450 = vector.shape_cast %449 : vector<1x64x32xbf16> to vector<64x32xbf16>
    %cst_172 = arith.constant dense<0.000000e+00> : vector<64x32xf32>
    %451 = tpu.matmul %448, %450, %cst_172 {dimension_numbers = #tpu.dot_dimension_numbers<[1], [0], [0], [1], [0, 0, 1, 1], [], []>} : vector<64x64xbf16>, vector<64x32xbf16>, vector<64x32xf32> -> vector<64x32xf32>
    %c1_173 = arith.constant 1 : index
    %c0_174 = arith.constant 0 : index
    %c0_175 = arith.constant 0 : index
    %452 = vector.load %arg17[%c1_173, %c0_174, %c0_175] : memref<2x1x32xf32, #tpu.memory_space<vmem>>, vector<1x1x32xf32>
    %453 = vector.shape_cast %452 : vector<1x1x32xf32> to vector<1x32xf32>
    %454 = vector.broadcast %453 : vector<1x32xf32> to vector<64x32xf32>
    %455 = arith.addf %451, %454 : vector<64x32xf32>
    %456 = arith.addf %405, %455 : vector<64x32xf32>
    %457 = vector.shape_cast %456 : vector<64x32xf32> to vector<8x8x32xf32>
    %458 = vector.extract_strided_slice %457 {offsets = [0, 0, 0], sizes = [8, 4, 32], strides = [1, 1, 1]} : vector<8x8x32xf32> to vector<8x4x32xf32>
    %459 = vector.shape_cast %458 : vector<8x4x32xf32> to vector<8x128xf32>
    %c0_176 = arith.constant 0 : index
    %c0_177 = arith.constant 0 : index
    %460 = vector.load %arg18[%c0_176, %c0_177] : memref<8x128xf32, #tpu.memory_space<vmem>>, vector<8x128xf32>
    tpu.vector_store %arg18[%c0_176, %c0_177], %459 {strides = array<i32>} : memref<8x128xf32, #tpu.memory_space<vmem>>, vector<8x128xf32>,
    return
  }
  func.func @transform_0(%arg0: i32) -> (i32, i32) {
    %c0_i32 = arith.constant 0 : i32
    %c0_i32_0 = arith.constant 0 : i32
    return %arg0, %c0_i32 : i32, i32
  }
  func.func @transform_1(%arg0: i32) -> (i32, i32) {
    %c0_i32 = arith.constant 0 : i32
    %c0_i32_0 = arith.constant 0 : i32
    %c0_i32_1 = arith.constant 0 : i32
    return %c0_i32, %c0_i32_0 : i32, i32
  }
  func.func @transform_2(%arg0: i32) -> (i32, i32) {
    %c0_i32 = arith.constant 0 : i32
    %c0_i32_0 = arith.constant 0 : i32
    %c0_i32_1 = arith.constant 0 : i32
    return %c0_i32, %c0_i32_0 : i32, i32
  }
  func.func @transform_3(%arg0: i32) -> (i32, i32) {
    %c0_i32 = arith.constant 0 : i32
    %c0_i32_0 = arith.constant 0 : i32
    %c0_i32_1 = arith.constant 0 : i32
    return %c0_i32, %c0_i32_0 : i32, i32
  }
  func.func @transform_4(%arg0: i32) -> (i32, i32) {
    %c0_i32 = arith.constant 0 : i32
    %c0_i32_0 = arith.constant 0 : i32
    %c0_i32_1 = arith.constant 0 : i32
    return %c0_i32, %c0_i32_0 : i32, i32
  }
  func.func @transform_5(%arg0: i32) -> (i32, i32, i32) {
    %c0_i32 = arith.constant 0 : i32
    %c0_i32_0 = arith.constant 0 : i32
    %c0_i32_1 = arith.constant 0 : i32
    %c0_i32_2 = arith.constant 0 : i32
    return %c0_i32, %c0_i32_0, %c0_i32_1 : i32, i32, i32
  }
  func.func @transform_6(%arg0: i32) -> (i32, i32, i32) {
    %c0_i32 = arith.constant 0 : i32
    %c0_i32_0 = arith.constant 0 : i32
    %c0_i32_1 = arith.constant 0 : i32
    %c0_i32_2 = arith.constant 0 : i32
    return %c0_i32, %c0_i32_0, %c0_i32_1 : i32, i32, i32
  }
  func.func @transform_7(%arg0: i32) -> (i32, i32, i32) {
    %c0_i32 = arith.constant 0 : i32
    %c0_i32_0 = arith.constant 0 : i32
    %c0_i32_1 = arith.constant 0 : i32
    %c0_i32_2 = arith.constant 0 : i32
    return %c0_i32, %c0_i32_0, %c0_i32_1 : i32, i32, i32
  }
  func.func @transform_8(%arg0: i32) -> (i32, i32, i32) {
    %c0_i32 = arith.constant 0 : i32
    %c0_i32_0 = arith.constant 0 : i32
    %c0_i32_1 = arith.constant 0 : i32
    %c0_i32_2 = arith.constant 0 : i32
    return %c0_i32, %c0_i32_0, %c0_i32_1 : i32, i32, i32
  }
  func.func @transform_9(%arg0: i32) -> (i32, i32, i32) {
    %c0_i32 = arith.constant 0 : i32
    %c0_i32_0 = arith.constant 0 : i32
    %c0_i32_1 = arith.constant 0 : i32
    %c0_i32_2 = arith.constant 0 : i32
    return %c0_i32, %c0_i32_0, %c0_i32_1 : i32, i32, i32
  }
  func.func @transform_10(%arg0: i32) -> (i32, i32, i32) {
    %c0_i32 = arith.constant 0 : i32
    %c0_i32_0 = arith.constant 0 : i32
    %c0_i32_1 = arith.constant 0 : i32
    %c0_i32_2 = arith.constant 0 : i32
    return %c0_i32, %c0_i32_0, %c0_i32_1 : i32, i32, i32
  }
  func.func @transform_11(%arg0: i32) -> (i32, i32, i32) {
    %c0_i32 = arith.constant 0 : i32
    %c0_i32_0 = arith.constant 0 : i32
    %c0_i32_1 = arith.constant 0 : i32
    %c0_i32_2 = arith.constant 0 : i32
    return %c0_i32, %c0_i32_0, %c0_i32_1 : i32, i32, i32
  }
  func.func @transform_12(%arg0: i32) -> (i32, i32, i32) {
    %c0_i32 = arith.constant 0 : i32
    %c0_i32_0 = arith.constant 0 : i32
    %c0_i32_1 = arith.constant 0 : i32
    %c0_i32_2 = arith.constant 0 : i32
    return %c0_i32, %c0_i32_0, %c0_i32_1 : i32, i32, i32
  }
  func.func @transform_13(%arg0: i32) -> (i32, i32, i32) {
    %c0_i32 = arith.constant 0 : i32
    %c0_i32_0 = arith.constant 0 : i32
    %c0_i32_1 = arith.constant 0 : i32
    %c0_i32_2 = arith.constant 0 : i32
    return %c0_i32, %c0_i32_0, %c0_i32_1 : i32, i32, i32
  }
  func.func @transform_14(%arg0: i32) -> (i32, i32, i32) {
    %c0_i32 = arith.constant 0 : i32
    %c0_i32_0 = arith.constant 0 : i32
    %c0_i32_1 = arith.constant 0 : i32
    %c0_i32_2 = arith.constant 0 : i32
    return %c0_i32, %c0_i32_0, %c0_i32_1 : i32, i32, i32
  }
  func.func @transform_15(%arg0: i32) -> (i32, i32, i32) {
    %c0_i32 = arith.constant 0 : i32
    %c0_i32_0 = arith.constant 0 : i32
    %c0_i32_1 = arith.constant 0 : i32
    %c0_i32_2 = arith.constant 0 : i32
    return %c0_i32, %c0_i32_0, %c0_i32_1 : i32, i32, i32
  }
  func.func @transform_16(%arg0: i32) -> (i32, i32, i32) {
    %c0_i32 = arith.constant 0 : i32
    %c0_i32_0 = arith.constant 0 : i32
    %c0_i32_1 = arith.constant 0 : i32
    %c0_i32_2 = arith.constant 0 : i32
    return %c0_i32, %c0_i32_0, %c0_i32_1 : i32, i32, i32
  }
  func.func @transform_17(%arg0: i32) -> (i32, i32) {
    %c0_i32 = arith.constant 0 : i32
    %c0_i32_0 = arith.constant 0 : i32
    return %arg0, %c0_i32 : i32, i32
  }
}

</mosaic_0001>

<llo_original>
// kernel: tpu_custom_call.1
$region0: #{tpu_custom_call.1}
  #allocation0 [shape = 'u32[]', space=smem, size = 0x4, offset = 0x4, fixed_abs, tag = 'smem constant byte address 0x4 - core index']
  #allocation1 [shape = 'u32[144,128]{1,0:T(1,128)}', space=vmem, size = 0x12000, scoped, tag = 'internal scratch']
  %s0 = inlined_call_operand.vmem [shape: bf16[64,192], index: 0, kind: input, shape index: {}]
  %s1 = inlined_call_operand.vmem [shape: bf16[192,32], index: 1, kind: input, shape index: {}]
  %s2 = inlined_call_operand.vmem [shape: f32[64,32], index: 2, kind: input, shape index: {}]
  %s3 = inlined_call_operand.vmem [shape: f32[1,32], index: 3, kind: input, shape index: {}]
  %s4 = inlined_call_operand.vmem [shape: f32[1,32], index: 4, kind: input, shape index: {}]
  %s5 = inlined_call_operand.vmem [shape: f32[2,1,32], index: 5, kind: input, shape index: {}]
  %s6 = inlined_call_operand.vmem [shape: f32[2,1,32], index: 6, kind: input, shape index: {}]
  %s7 = inlined_call_operand.vmem [shape: bf16[2,32,96], index: 7, kind: input, shape index: {}]
  %s8 = inlined_call_operand.vmem [shape: f32[2,1,96], index: 8, kind: input, shape index: {}]
  %s9 = inlined_call_operand.vmem [shape: bf16[2,32,32], index: 9, kind: input, shape index: {}]
  %s10 = inlined_call_operand.vmem [shape: f32[2,1,32], index: 10, kind: input, shape index: {}]
  %s11 = inlined_call_operand.vmem [shape: f32[2,1,32], index: 11, kind: input, shape index: {}]
  %s12 = inlined_call_operand.vmem [shape: f32[2,1,32], index: 12, kind: input, shape index: {}]
  %s13 = inlined_call_operand.vmem [shape: bf16[2,32,64], index: 13, kind: input, shape index: {}]
  %s14 = inlined_call_operand.vmem [shape: f32[2,1,64], index: 14, kind: input, shape index: {}]
  %s15 = inlined_call_operand.vmem [shape: bf16[2,64,32], index: 15, kind: input, shape index: {}]
  %s16 = inlined_call_operand.vmem [shape: f32[2,1,32], index: 16, kind: input, shape index: {}]
  %s17 = inlined_call_operand.hbm [shape: f32[8,128], index: 17, kind: output, shape index: {}]
  %s18 = sld [smem:[#allocation0]]
  $region78: #{tpu_custom_call.1} parent=0
    _
  %s20 = ssub.s32 1, %s18
  %s21 = scalar_select 0, %s20, %s18
  $region1: #{tpu_custom_call.1} parent=0
    #allocation2 [shape = 'u8[4096]{0}', space=vmem, size = 0x1000, scoped, tag = 'output window, operand 0, single buffered']
    #allocation3 [shape = 's32[1]{0}', space=sflag, size = 0x4, scoped, tag = 'scoped memory for tpu_custom_call.1']
    %22 = vsyncpa [#allocation3], 0
    // Predicated region
    $region2: #{tpu_custom_call.1} parent=1 // pred_check
      _
    $region3: #{tpu_custom_call.1} parent=1 // pred_check_branch
      %24 = sbr.rel (0) target = $region5
    $region4: #{tpu_custom_call.1} parent=1 // pred_region
      _
    $region5: #{tpu_custom_call.1} parent=1 // pred_fallthru
      _
    // Predicated region
    $region6: #{tpu_custom_call.1} parent=1 // pred_check
      _
    $region7: #{tpu_custom_call.1} parent=1 // pred_check_branch
      %26 = sbr.rel (0) target = $region9
    $region8: #{tpu_custom_call.1} parent=1 // pred_region
      _
    $region9: #{tpu_custom_call.1} parent=1 // pred_fallthru
      _
    // Predicated region
    $region10: #{tpu_custom_call.1} parent=1 // pred_check
      _
    $region11: #{tpu_custom_call.1} parent=1 // pred_check_branch
      %28 = sbr.rel (0) target = $region13
    $region12: #{tpu_custom_call.1} parent=1 // pred_region
      _
    $region13: #{tpu_custom_call.1} parent=1 // pred_fallthru
      _
    // Predicated region
    $region14: #{tpu_custom_call.1} parent=1 // pred_check
      _
    $region15: #{tpu_custom_call.1} parent=1 // pred_check_branch
      %30 = sbr.rel (0) target = $region17
    $region16: #{tpu_custom_call.1} parent=1 // pred_region
      _
    $region17: #{tpu_custom_call.1} parent=1 // pred_fallthru
      _
    // Predicated region
    $region18: #{tpu_custom_call.1} parent=1 // pred_check
      _
    $region19: #{tpu_custom_call.1} parent=1 // pred_check_branch
      %32 = sbr.rel (0) target = $region21
    $region20: #{tpu_custom_call.1} parent=1 // pred_region
      _
    $region21: #{tpu_custom_call.1} parent=1 // pred_fallthru
      _
    // Predicated region
    $region22: #{tpu_custom_call.1} parent=1 // pred_check
      _
    $region23: #{tpu_custom_call.1} parent=1 // pred_check_branch
      %34 = sbr.rel (0) target = $region25
    $region24: #{tpu_custom_call.1} parent=1 // pred_region
      _
    $region25: #{tpu_custom_call.1} parent=1 // pred_fallthru
      _
    // Predicated region
    $region26: #{tpu_custom_call.1} parent=1 // pred_check
      _
    $region27: #{tpu_custom_call.1} parent=1 // pred_check_branch
      %36 = sbr.rel (0) target = $region29
    $region28: #{tpu_custom_call.1} parent=1 // pred_region
      _
    $region29: #{tpu_custom_call.1} parent=1 // pred_fallthru
      _
    // Predicated region
    $region30: #{tpu_custom_call.1} parent=1 // pred_check
      _
    $region31: #{tpu_custom_call.1} parent=1 // pred_check_branch
      %38 = sbr.rel (0) target = $region33
    $region32: #{tpu_custom_call.1} parent=1 // pred_region
      _
    $region33: #{tpu_custom_call.1} parent=1 // pred_fallthru
      _
    // Predicated region
    $region34: #{tpu_custom_call.1} parent=1 // pred_check
      _
    $region35: #{tpu_custom_call.1} parent=1 // pred_check_branch
      %40 = sbr.rel (0) target = $region37
    $region36: #{tpu_custom_call.1} parent=1 // pred_region
      _
    $region37: #{tpu_custom_call.1} parent=1 // pred_fallthru
      _
    // Predicated region
    $region38: #{tpu_custom_call.1} parent=1 // pred_check
      _
    $region39: #{tpu_custom_call.1} parent=1 // pred_check_branch
      %42 = sbr.rel (0) target = $region41
    $region40: #{tpu_custom_call.1} parent=1 // pred_region
      _
    $region41: #{tpu_custom_call.1} parent=1 // pred_fallthru
      _
    // Predicated region
    $region42: #{tpu_custom_call.1} parent=1 // pred_check
      _
    $region43: #{tpu_custom_call.1} parent=1 // pred_check_branch
      %44 = sbr.rel (0) target = $region45
    $region44: #{tpu_custom_call.1} parent=1 // pred_region
      _
    $region45: #{tpu_custom_call.1} parent=1 // pred_fallthru
      _
    // Predicated region
    $region46: #{tpu_custom_call.1} parent=1 // pred_check
      _
    $region47: #{tpu_custom_call.1} parent=1 // pred_check_branch
      %46 = sbr.rel (0) target = $region49
    $region48: #{tpu_custom_call.1} parent=1 // pred_region
      _
    $region49: #{tpu_custom_call.1} parent=1 // pred_fallthru
      _
    // Predicated region
    $region50: #{tpu_custom_call.1} parent=1 // pred_check
      _
    $region51: #{tpu_custom_call.1} parent=1 // pred_check_branch
      %48 = sbr.rel (0) target = $region53
    $region52: #{tpu_custom_call.1} parent=1 // pred_region
      _
    $region53: #{tpu_custom_call.1} parent=1 // pred_fallthru
      _
    // Predicated region
    $region54: #{tpu_custom_call.1} parent=1 // pred_check
      _
    $region55: #{tpu_custom_call.1} parent=1 // pred_check_branch
      %50 = sbr.rel (0) target = $region57
    $region56: #{tpu_custom_call.1} parent=1 // pred_region
      _
    $region57: #{tpu_custom_call.1} parent=1 // pred_fallthru
      _
    // Predicated region
    $region58: #{tpu_custom_call.1} parent=1 // pred_check
      _
    $region59: #{tpu_custom_call.1} parent=1 // pred_check_branch
      %52 = sbr.rel (0) target = $region61
    $region60: #{tpu_custom_call.1} parent=1 // pred_region
      _
    $region61: #{tpu_custom_call.1} parent=1 // pred_fallthru
      _
    // Predicated region
    $region62: #{tpu_custom_call.1} parent=1 // pred_check
      _
    $region63: #{tpu_custom_call.1} parent=1 // pred_check_branch
      %54 = sbr.rel (0) target = $region65
    $region64: #{tpu_custom_call.1} parent=1 // pred_region
      _
    $region65: #{tpu_custom_call.1} parent=1 // pred_fallthru
      _
    // Predicated region
    $region66: #{tpu_custom_call.1} parent=1 // pred_check
      _
    $region67: #{tpu_custom_call.1} parent=1 // pred_check_branch
      %56 = sbr.rel (0) target = $region69
    $region68: #{tpu_custom_call.1} parent=1 // pred_region
      _
    $region69: #{tpu_custom_call.1} parent=1 // pred_fallthru
      _
    %v58 = vld [vmem:[%s0] sm:$0xff]
    %v59 = vld [vmem:[%s0 + $0x8] sm:$0xff]
    %v60 = vld [vmem:[%s0 + $0x10] sm:$0xff]
    %v61 = vld [vmem:[%s0 + $0x18] sm:$0xff]
    %v62 = vld [vmem:[%s0 + $0x20] sm:$0xff]
    %v63 = vld [vmem:[%s0 + $0x28] sm:$0xff]
    %v64 = vld [vmem:[%s0 + $0x30] sm:$0xff]
    %v65 = vld [vmem:[%s0 + $0x38] sm:$0xff]
    %v66 = vld [vmem:[%s1] sm:$0xf]
    %v67 = vld [vmem:[%s1 + $0x4] sm:$0xf]
    %v68 = vld [vmem:[%s1 + $0x8] sm:$0xf]
    %v69 = vld [vmem:[%s1 + $0xc] sm:$0xf]
    %v70 = vld [vmem:[%s1 + $0x10] sm:$0xf]
    %v71 = vld [vmem:[%s1 + $0x14] sm:$0xf]
    %v72 = vld [vmem:[%s1 + $0x18] sm:$0xf]
    %v73 = vld [vmem:[%s1 + $0x1c] sm:$0xf]
    %v74 = vld [vmem:[%s1 + $0x20] sm:$0xf]
    %v75 = vld [vmem:[%s1 + $0x24] sm:$0xf]
    %v76 = vld [vmem:[%s1 + $0x28] sm:$0xf]
    %v77 = vld [vmem:[%s1 + $0x2c] sm:$0xf]
    %v78 = vld [vmem:[%s1 + $0x30] sm:$0xf]
    %v79 = vld [vmem:[%s1 + $0x34] sm:$0xf]
    %v80 = vld [vmem:[%s1 + $0x38] sm:$0xf]
    %v81 = vld [vmem:[%s1 + $0x3c] sm:$0xf]
    %v82 = vld [vmem:[%s1 + $0x40] sm:$0xf]
    %v83 = vld [vmem:[%s1 + $0x44] sm:$0xf]
    %v84 = vld [vmem:[%s1 + $0x48] sm:$0xf]
    %v85 = vld [vmem:[%s1 + $0x4c] sm:$0xf]
    %v86 = vld [vmem:[%s1 + $0x50] sm:$0xf]
    %v87 = vld [vmem:[%s1 + $0x54] sm:$0xf]
    %v88 = vld [vmem:[%s1 + $0x58] sm:$0xf]
    %v89 = vld [vmem:[%s1 + $0x5c] sm:$0xf]
    %v90 = vld [vmem:[%s2] sm:$0xff]
    %v91 = vld [vmem:[%s2 + $0x8] sm:$0xff]
    %v92 = vld [vmem:[%s2 + $0x10] sm:$0xff]
    %v93 = vld [vmem:[%s2 + $0x18] sm:$0xff]
    %v94 = vld [vmem:[%s2 + $0x20] sm:$0xff]
    %v95 = vld [vmem:[%s2 + $0x28] sm:$0xff]
    %v96 = vld [vmem:[%s2 + $0x30] sm:$0xff]
    %v97 = vld [vmem:[%s2 + $0x38] sm:$0xff]
    %v106 = vunpack.c.l.b16 %v58
    %v107 = vunpack.c.h.b16 %v58
    %v108 = vunpack.c.l.b16 %v59
    %v109 = vunpack.c.h.b16 %v59
    %v110 = vunpack.c.l.b16 %v60
    %v111 = vunpack.c.h.b16 %v60
    %v112 = vunpack.c.l.b16 %v61
    %v113 = vunpack.c.h.b16 %v61
    %v114 = vunpack.c.l.b16 %v62
    %v115 = vunpack.c.h.b16 %v62
    %v116 = vunpack.c.l.b16 %v63
    %v117 = vunpack.c.h.b16 %v63
    %v118 = vunpack.c.l.b16 %v64
    %v119 = vunpack.c.h.b16 %v64
    %v120 = vunpack.c.l.b16 %v65
    %v121 = vunpack.c.h.b16 %v65
    %v122 = vpack.c.b16 %v108, %v106
    %v123 = vpack.c.b16 %v109, %v107
    %v124 = vpack.c.b16 %v112, %v110
    %v125 = vpack.c.b16 %v113, %v111
    %v126 = vpack.c.b16 %v116, %v114
    %v127 = vpack.c.b16 %v117, %v115
    %v128 = vpack.c.b16 %v120, %v118
    %v129 = vpack.c.b16 %v121, %v119
    %v158 = vunpack.c.l.b16 %v66
    %v159 = vunpack.c.l.b16 %v67
    %v160 = vunpack.c.l.b16 %v68
    %v161 = vunpack.c.l.b16 %v69
    %v162 = vunpack.c.l.b16 %v70
    %v163 = vunpack.c.l.b16 %v71
    %v164 = vunpack.c.l.b16 %v72
    %v165 = vunpack.c.l.b16 %v73
    %v166 = vunpack.c.l.b16 %v74
    %v167 = vunpack.c.l.b16 %v75
    %v168 = vunpack.c.l.b16 %v76
    %v169 = vunpack.c.l.b16 %v77
    %v170 = vunpack.c.l.b16 %v78
    %v171 = vunpack.c.l.b16 %v79
    %v172 = vunpack.c.l.b16 %v80
    %v173 = vunpack.c.l.b16 %v81
    %v174 = vunpack.c.l.b16 %v82
    %v175 = vunpack.c.l.b16 %v83
    %v176 = vunpack.c.l.b16 %v84
    %v177 = vunpack.c.l.b16 %v85
    %v178 = vunpack.c.l.b16 %v86
    %v179 = vunpack.c.l.b16 %v87
    %v180 = vunpack.c.l.b16 %v88
    %v181 = vunpack.c.l.b16 %v89
    %v182 = vpack.c.b16 %v159, %v158
    %v183 = vpack.c.b16 %v161, %v160
    %v184 = vpack.c.b16 %v163, %v162
    %v185 = vpack.c.b16 %v165, %v164
    %v186 = vpack.c.b16 %v167, %v166
    %v187 = vpack.c.b16 %v169, %v168
    %v188 = vpack.c.b16 %v171, %v170
    %v189 = vpack.c.b16 %v173, %v172
    %v190 = vpack.c.b16 %v175, %v174
    %v191 = vpack.c.b16 %v177, %v176
    %v192 = vpack.c.b16 %v179, %v178
    %v193 = vpack.c.b16 %v181, %v180
    %vm206 = vcmask 523264
    %v208 = vsel %vm206, %v123, 0
    %v211 = vsel %vm206, %v125, 0
    %v214 = vsel %vm206, %v127, 0
    %v217 = vsel %vm206, %v129, 0
    %219 = vmatprep.subr.bf16.mxu0 0
    %220 = vmatpush1.bf16.msra.mxu0 %v182
    %221 = vmatprep.subr.bf16.mxu0 0
    %222 = vmatpush1.bf16.msra.mxu0 %v183
    %223 = vmatprep.subr.bf16.mxu0 0
    %224 = vmatpush1.bf16.msra.mxu0 %v184
    %225 = vmatprep.subr.bf16.mxu0 0
    %226 = vmatpush1.bf16.msra.mxu0 %v185
    %227 = vmatprep.subr.bf16.mxu0 0
    %228 = vmatpush1.bf16.msra.mxu0 %v186
    %229 = vmatprep.subr.bf16.mxu0 0
    %230 = vmatpush1.bf16.msra.mxu0 %v187
    %231 = vmatprep.subr.bf16.mxu0 0
    %232 = vmatpush1.bf16.msra.mxu0 %v188
    %233 = vmatprep.subr.bf16.mxu0 0
    %234 = vmatpush1.bf16.msra.mxu0 %v189
    %235 = vmatprep.subr.bf16.mxu0 0
    %236 = vmatpush1.bf16.msra.mxu0 %v190
    %237 = vmatprep.subr.bf16.mxu0 0
    %238 = vmatpush1.bf16.msra.mxu0 %v191
    %239 = vmatprep.subr.bf16.mxu0 0
    %240 = vmatpush1.bf16.msra.mxu0 %v192
    %241 = vmatprep.subr.bf16.mxu0 0
    %242 = vmatpush1.bf16.msra.mxu0 %v193
    %243 = vmatprep.subr.bf16.mxu0 0
    %244 = vmatpush1.bf16.msra.mxu0 0
    %245 = vmatprep.subr.bf16.mxu0 0
    %246 = vmatpush1.bf16.msra.mxu0 0
    %247 = vmatprep.subr.bf16.mxu0 0
    %248 = vmatpush1.bf16.msra.mxu0 0
    %249 = vmatprep.subr.bf16.mxu0 0
    %250 = vmatpush1.bf16.msra.mxu0 0
    %251 = vmatprep.mubr.bf16.mxu0 %v208
    %252 = vmatmul.mubr.bf16.gmra.mrb[0].mxu0 %v122
    %v253 = vpop.f32.mrb[0].mxu0
    %v254 = vadd.f32 %v90, %v253
    %v255 = vpop.f32.mrb[0].mxu0
    %v256 = vpop.f32.mrb[0].mxu0
    %v257 = vadd.f32 %v91, %v256
    %v258 = vpop.f32.mrb[0].mxu0
    %259 = vmatprep.mubr.bf16.mxu0 %v211
    %260 = vmatmul.mubr.bf16.gmra.mrb[0].mxu0 %v124
    %v261 = vpop.f32.mrb[0].mxu0
    %v262 = vadd.f32 %v92, %v261
    %v263 = vpop.f32.mrb[0].mxu0
    %v264 = vpop.f32.mrb[0].mxu0
    %v265 = vadd.f32 %v93, %v264
    %v266 = vpop.f32.mrb[0].mxu0
    %267 = vmatprep.mubr.bf16.mxu0 %v214
    %268 = vmatmul.mubr.bf16.gmra.mrb[0].mxu0 %v126
    %v269 = vpop.f32.mrb[0].mxu0
    %v270 = vadd.f32 %v94, %v269
    %v271 = vpop.f32.mrb[0].mxu0
    %v272 = vpop.f32.mrb[0].mxu0
    %v273 = vadd.f32 %v95, %v272
    %v274 = vpop.f32.mrb[0].mxu0
    %275 = vmatprep.mubr.bf16.mxu0 %v217
    %276 = vmatmul.mubr.bf16.gmra.mrb[0].mxu0 %v128
    %v277 = vpop.f32.mrb[0].mxu0
    %v278 = vadd.f32 %v96, %v277
    %v279 = vpop.f32.mrb[0].mxu0
    %v280 = vpop.f32.mrb[0].mxu0
    %v281 = vadd.f32 %v97, %v280
    %v282 = vpop.f32.mrb[0].mxu0
    %283 = vdwg.mxu0
    %v284 = vld [vmem:[%s3] sm:$0x1]
    %v285 = vld [vmem:[%s4] sm:$0x1]
    %vm286 = vcmask 261120
    %v287 = vsel %vm286, %v254, 0.0
    %288 = vadd.xlane.f32.xlu0 %v287
    %v289 = vpop.xlane.xlu0 %288
    %v290 = vsel %vm286, %v257, 0.0
    %291 = vadd.xlane.f32.xlu0 %v290
    %v292 = vpop.xlane.xlu0 %291
    %v293 = vsel %vm286, %v262, 0.0
    %294 = vadd.xlane.f32.xlu0 %v293
    %v295 = vpop.xlane.xlu0 %294
    %v296 = vsel %vm286, %v265, 0.0
    %297 = vadd.xlane.f32.xlu0 %v296
    %v298 = vpop.xlane.xlu0 %297
    %v299 = vsel %vm286, %v270, 0.0
    %300 = vadd.xlane.f32.xlu0 %v299
    %v301 = vpop.xlane.xlu0 %300
    %v302 = vsel %vm286, %v273, 0.0
    %303 = vadd.xlane.f32.xlu0 %v302
    %v304 = vpop.xlane.xlu0 %303
    %v305 = vsel %vm286, %v278, 0.0
    %306 = vadd.xlane.f32.xlu0 %v305
    %v307 = vpop.xlane.xlu0 %306
    %v308 = vsel %vm286, %v281, 0.0
    %309 = vadd.xlane.f32.xlu0 %v308
    %v310 = vpop.xlane.xlu0 %309
    %v311 = vrcp.pop 32.0
    %v312 = vmul.f32 %v289, %v311
    %v313 = vmul.f32 %v292, %v311
    %v314 = vmul.f32 %v295, %v311
    %v315 = vmul.f32 %v298, %v311
    %v316 = vmul.f32 %v301, %v311
    %v317 = vmul.f32 %v304, %v311
    %v318 = vmul.f32 %v307, %v311
    %v319 = vmul.f32 %v310, %v311
    %v320 = vsub.f32 %v254, %v312
    %v321 = vsub.f32 %v257, %v313
    %v322 = vsub.f32 %v262, %v314
    %v323 = vsub.f32 %v265, %v315
    %v324 = vsub.f32 %v270, %v316
    %v325 = vsub.f32 %v273, %v317
    %v326 = vsub.f32 %v278, %v318
    %v327 = vsub.f32 %v281, %v319
    %v328 = vmul.f32 %v320, %v320
    %v329 = vmul.f32 %v321, %v321
    %v330 = vmul.f32 %v322, %v322
    %v331 = vmul.f32 %v323, %v323
    %v332 = vmul.f32 %v324, %v324
    %v333 = vmul.f32 %v325, %v325
    %v334 = vmul.f32 %v326, %v326
    %v335 = vmul.f32 %v327, %v327
    %v336 = vsel %vm286, %v328, 0.0
    %337 = vadd.xlane.f32.xlu0 %v336
    %v338 = vpop.xlane.xlu0 %337
    %v339 = vsel %vm286, %v329, 0.0
    %340 = vadd.xlane.f32.xlu0 %v339
    %v341 = vpop.xlane.xlu0 %340
    %v342 = vsel %vm286, %v330, 0.0
    %343 = vadd.xlane.f32.xlu0 %v342
    %v344 = vpop.xlane.xlu0 %343
    %v345 = vsel %vm286, %v331, 0.0
    %346 = vadd.xlane.f32.xlu0 %v345
    %v347 = vpop.xlane.xlu0 %346
    %v348 = vsel %vm286, %v332, 0.0
    %349 = vadd.xlane.f32.xlu0 %v348
    %v350 = vpop.xlane.xlu0 %349
    %v351 = vsel %vm286, %v333, 0.0
    %352 = vadd.xlane.f32.xlu0 %v351
    %v353 = vpop.xlane.xlu0 %352
    %v354 = vsel %vm286, %v334, 0.0
    %355 = vadd.xlane.f32.xlu0 %v354
    %v356 = vpop.xlane.xlu0 %355
    %v357 = vsel %vm286, %v335, 0.0
    %358 = vadd.xlane.f32.xlu0 %v357
    %v359 = vpop.xlane.xlu0 %358
    %v360 = vmul.f32 %v338, %v311
    %v361 = vmul.f32 %v341, %v311
    %v362 = vmul.f32 %v344, %v311
    %v363 = vmul.f32 %v347, %v311
    %v364 = vmul.f32 %v350, %v311
    %v365 = vmul.f32 %v353, %v311
    %v366 = vmul.f32 %v356, %v311
    %v367 = vmul.f32 %v359, %v311
    %v368 = vadd.f32 %v360, 1e-05
    %v369 = vadd.f32 %v361, 1e-05
    %v370 = vadd.f32 %v362, 1e-05
    %v371 = vadd.f32 %v363, 1e-05
    %v372 = vadd.f32 %v364, 1e-05
    %v373 = vadd.f32 %v365, 1e-05
    %v374 = vadd.f32 %v366, 1e-05
    %v375 = vadd.f32 %v367, 1e-05
    %v376 = vrsqrt.pop %v368
    %v377 = vrsqrt.pop %v369
    %v378 = vrsqrt.pop %v370
    %v379 = vrsqrt.pop %v371
    %v380 = vrsqrt.pop %v372
    %v381 = vrsqrt.pop %v373
    %v382 = vrsqrt.pop %v374
    %v383 = vrsqrt.pop %v375
    %v384 = vmul.f32 %v320, %v376
    %v385 = vmul.f32 %v321, %v377
    %v386 = vmul.f32 %v322, %v378
    %v387 = vmul.f32 %v323, %v379
    %v388 = vmul.f32 %v324, %v380
    %v389 = vmul.f32 %v325, %v381
    %v390 = vmul.f32 %v326, %v382
    %v391 = vmul.f32 %v327, %v383
    %v393 = vlaneseq
    %v394 = vshrl.u32 %v393, 7
    %v395 = vsub.s32 0, %v394
    %v396 = vrot.slane %v284, %v395
    %v398 = vmul.f32 %v384, %v396
    %v399 = vmul.f32 %v385, %v396
    %v400 = vmul.f32 %v386, %v396
    %v401 = vmul.f32 %v387, %v396
    %v402 = vmul.f32 %v388, %v396
    %v403 = vmul.f32 %v389, %v396
    %v404 = vmul.f32 %v390, %v396
    %v405 = vmul.f32 %v391, %v396
    %v407 = vlaneseq
    %v408 = vshrl.u32 %v407, 7
    %v409 = vsub.s32 0, %v408
    %v410 = vrot.slane %v285, %v409
    %v412 = vadd.f32 %v398, %v410
    %v413 = vadd.f32 %v399, %v410
    %v414 = vadd.f32 %v400, %v410
    %v415 = vadd.f32 %v401, %v410
    %v416 = vadd.f32 %v402, %v410
    %v417 = vadd.f32 %v403, %v410
    %v418 = vadd.f32 %v404, %v410
    %v419 = vadd.f32 %v405, %v410
    %v420 = vlaneseq
    %v421 = vand.u32 %v420, 127
    %vm422 = vcmp.lt.s32.totalorder %v421, 5
    %v423 = vsel %vm422, 0.0, -1e+30
    %v424 = vld [vmem:[%s5] sm:$0x1]
    %v425 = vld [vmem:[%s6] sm:$0x1]
    %v426 = vsel %vm286, %v412, 0.0
    %427 = vadd.xlane.f32.xlu0 %v426
    %v428 = vpop.xlane.xlu0 %427
    %v429 = vsel %vm286, %v413, 0.0
    %430 = vadd.xlane.f32.xlu0 %v429
    %v431 = vpop.xlane.xlu0 %430
    %v432 = vsel %vm286, %v414, 0.0
    %433 = vadd.xlane.f32.xlu0 %v432
    %v434 = vpop.xlane.xlu0 %433
    %v435 = vsel %vm286, %v415, 0.0
    %436 = vadd.xlane.f32.xlu0 %v435
    %v437 = vpop.xlane.xlu0 %436
    %v438 = vsel %vm286, %v416, 0.0
    %439 = vadd.xlane.f32.xlu0 %v438
    %v440 = vpop.xlane.xlu0 %439
    %v441 = vsel %vm286, %v417, 0.0
    %442 = vadd.xlane.f32.xlu0 %v441
    %v443 = vpop.xlane.xlu0 %442
    %v444 = vsel %vm286, %v418, 0.0
    %445 = vadd.xlane.f32.xlu0 %v444
    %v446 = vpop.xlane.xlu0 %445
    %v447 = vsel %vm286, %v419, 0.0
    %448 = vadd.xlane.f32.xlu0 %v447
    %v449 = vpop.xlane.xlu0 %448
    %v450 = vmul.f32 %v428, %v311
    %v451 = vmul.f32 %v431, %v311
    %v452 = vmul.f32 %v434, %v311
    %v453 = vmul.f32 %v437, %v311
    %v454 = vmul.f32 %v440, %v311
    %v455 = vmul.f32 %v443, %v311
    %v456 = vmul.f32 %v446, %v311
    %v457 = vmul.f32 %v449, %v311
    %v458 = vsub.f32 %v412, %v450
    %v459 = vsub.f32 %v413, %v451
    %v460 = vsub.f32 %v414, %v452
    %v461 = vsub.f32 %v415, %v453
    %v462 = vsub.f32 %v416, %v454
    %v463 = vsub.f32 %v417, %v455
    %v464 = vsub.f32 %v418, %v456
    %v465 = vsub.f32 %v419, %v457
    %v466 = vmul.f32 %v458, %v458
    %v467 = vmul.f32 %v459, %v459
    %v468 = vmul.f32 %v460, %v460
    %v469 = vmul.f32 %v461, %v461
    %v470 = vmul.f32 %v462, %v462
    %v471 = vmul.f32 %v463, %v463
    %v472 = vmul.f32 %v464, %v464
    %v473 = vmul.f32 %v465, %v465
    %v474 = vsel %vm286, %v466, 0.0
    %475 = vadd.xlane.f32.xlu0 %v474
    %v476 = vpop.xlane.xlu0 %475
    %v477 = vsel %vm286, %v467, 0.0
    %478 = vadd.xlane.f32.xlu0 %v477
    %v479 = vpop.xlane.xlu0 %478
    %v480 = vsel %vm286, %v468, 0.0
    %481 = vadd.xlane.f32.xlu0 %v480
    %v482 = vpop.xlane.xlu0 %481
    %v483 = vsel %vm286, %v469, 0.0
    %484 = vadd.xlane.f32.xlu0 %v483
    %v485 = vpop.xlane.xlu0 %484
    %v486 = vsel %vm286, %v470, 0.0
    %487 = vadd.xlane.f32.xlu0 %v486
    %v488 = vpop.xlane.xlu0 %487
    %v489 = vsel %vm286, %v471, 0.0
    %490 = vadd.xlane.f32.xlu0 %v489
    %v491 = vpop.xlane.xlu0 %490
    %v492 = vsel %vm286, %v472, 0.0
    %493 = vadd.xlane.f32.xlu0 %v492
    %v494 = vpop.xlane.xlu0 %493
    %v495 = vsel %vm286, %v473, 0.0
    %496 = vadd.xlane.f32.xlu0 %v495
    %v497 = vpop.xlane.xlu0 %496
    %v498 = vmul.f32 %v476, %v311
    %v499 = vmul.f32 %v479, %v311
    %v500 = vmul.f32 %v482, %v311
    %v501 = vmul.f32 %v485, %v311
    %v502 = vmul.f32 %v488, %v311
    %v503 = vmul.f32 %v491, %v311
    %v504 = vmul.f32 %v494, %v311
    %v505 = vmul.f32 %v497, %v311
    %v506 = vadd.f32 %v498, 1e-05
    %v507 = vadd.f32 %v499, 1e-05
    %v508 = vadd.f32 %v500, 1e-05
    %v509 = vadd.f32 %v501, 1e-05
    %v510 = vadd.f32 %v502, 1e-05
    %v511 = vadd.f32 %v503, 1e-05
    %v512 = vadd.f32 %v504, 1e-05
    %v513 = vadd.f32 %v505, 1e-05
    %v514 = vrsqrt.pop %v506
    %v515 = vrsqrt.pop %v507
    %v516 = vrsqrt.pop %v508
    %v517 = vrsqrt.pop %v509
    %v518 = vrsqrt.pop %v510
    %v519 = vrsqrt.pop %v511
    %v520 = vrsqrt.pop %v512
    %v521 = vrsqrt.pop %v513
    %v522 = vmul.f32 %v458, %v514
    %v523 = vmul.f32 %v459, %v515
    %v524 = vmul.f32 %v460, %v516
    %v525 = vmul.f32 %v461, %v517
    %v526 = vmul.f32 %v462, %v518
    %v527 = vmul.f32 %v463, %v519
    %v528 = vmul.f32 %v464, %v520
    %v529 = vmul.f32 %v465, %v521
    %v531 = vlaneseq
    %v532 = vshrl.u32 %v531, 7
    %v533 = vsub.s32 0, %v532
    %v534 = vrot.slane %v424, %v533
    %v536 = vmul.f32 %v522, %v534
    %v537 = vmul.f32 %v523, %v534
    %v538 = vmul.f32 %v524, %v534
    %v539 = vmul.f32 %v525, %v534
    %v540 = vmul.f32 %v526, %v534
    %v541 = vmul.f32 %v527, %v534
    %v542 = vmul.f32 %v528, %v534
    %v543 = vmul.f32 %v529, %v534
    %v545 = vlaneseq
    %v546 = vshrl.u32 %v545, 7
    %v547 = vsub.s32 0, %v546
    %v548 = vrot.slane %v425, %v547
    %v550 = vadd.f32 %v536, %v548
    %v551 = vadd.f32 %v537, %v548
    %v552 = vadd.f32 %v538, %v548
    %v553 = vadd.f32 %v539, %v548
    %v554 = vadd.f32 %v540, %v548
    %v555 = vadd.f32 %v541, %v548
    %v556 = vadd.f32 %v542, %v548
    %v557 = vadd.f32 %v543, %v548
    %v558 = vpack.c.bf16 %v551, %v550
    %v559 = vpack.c.bf16 %v553, %v552
    %v560 = vpack.c.bf16 %v555, %v554
    %v561 = vpack.c.bf16 %v557, %v556
    %v562 = vld [vmem:[%s7] sm:$0xf]
    %v563 = vld [vmem:[%s7 + $0x4] sm:$0xf]
    %v564 = vld [vmem:[%s7 + $0x8] sm:$0xf]
    %v565 = vld [vmem:[%s7 + $0xc] sm:$0xf]
    %v566 = vld [vmem:[%s8] sm:$0x1]
    %v568 = vlaneseq
    %v569 = vshrl.u32 %v568, 7
    %v570 = vsub.s32 0, %v569
    %v571 = vrot.slane %v566, %v570
    %v577 = vunpack.c.l.b16 %v562
    %v578 = vunpack.c.l.b16 %v563
    %v579 = vunpack.c.l.b16 %v564
    %v580 = vunpack.c.l.b16 %v565
    %v581 = vpack.c.b16 %v578, %v577
    %v582 = vpack.c.b16 %v580, %v579
    %v586 = vsel %vm286, %v558, 0
    %v589 = vsel %vm286, %v559, 0
    %v592 = vsel %vm286, %v560, 0
    %v595 = vsel %vm286, %v561, 0
    %597 = vmatprep.subr.bf16.mxu0 0
    %598 = vmatpush1.bf16.msra.mxu0 %v581
    %599 = vmatprep.subr.bf16.mxu0 0
    %600 = vmatpush1.bf16.msra.mxu0 %v582
    %601 = vmatprep.subr.bf16.mxu0 0
    %602 = vmatpush1.bf16.msra.mxu0 0
    %603 = vmatprep.subr.bf16.mxu0 0
    %604 = vmatpush1.bf16.msra.mxu0 0
    %605 = vmatprep.subr.bf16.mxu0 0
    %606 = vmatpush1.bf16.msra.mxu0 0
    %607 = vmatprep.subr.bf16.mxu0 0
    %608 = vmatpush1.bf16.msra.mxu0 0
    %609 = vmatprep.subr.bf16.mxu0 0
    %610 = vmatpush1.bf16.msra.mxu0 0
    %611 = vmatprep.subr.bf16.mxu0 0
    %612 = vmatpush1.bf16.msra.mxu0 0
    %613 = vmatprep.subr.bf16.mxu0 0
    %614 = vmatpush1.bf16.msra.mxu0 0
    %615 = vmatprep.subr.bf16.mxu0 0
    %616 = vmatpush1.bf16.msra.mxu0 0
    %617 = vmatprep.subr.bf16.mxu0 0
    %618 = vmatpush1.bf16.msra.mxu0 0
    %619 = vmatprep.subr.bf16.mxu0 0
    %620 = vmatpush1.bf16.msra.mxu0 0
    %621 = vmatprep.subr.bf16.mxu0 0
    %622 = vmatpush1.bf16.msra.mxu0 0
    %623 = vmatprep.subr.bf16.mxu0 0
    %624 = vmatpush1.bf16.msra.mxu0 0
    %625 = vmatprep.subr.bf16.mxu0 0
    %626 = vmatpush1.bf16.msra.mxu0 0
    %627 = vmatprep.subr.bf16.mxu0 0
    %628 = vmatpush1.bf16.msra.mxu0 0
    %629 = vmatprep.mubr.bf16.mxu0 0
    %630 = vmatmul.mubr.bf16.gmra.mrb[0].mxu0 %v586
    %v631 = vpop.f32.mrb[0].mxu0
    %v632 = vadd.f32 %v571, %v631
    %v633 = vpop.f32.mrb[0].mxu0
    %v634 = vpop.f32.mrb[0].mxu0
    %v635 = vadd.f32 %v571, %v634
    %v636 = vpop.f32.mrb[0].mxu0
    %637 = vmatprep.mubr.bf16.mxu0 0
    %638 = vmatmul.mubr.bf16.gmra.mrb[0].mxu0 %v589
    %v639 = vpop.f32.mrb[0].mxu0
    %v640 = vadd.f32 %v571, %v639
    %v641 = vpop.f32.mrb[0].mxu0
    %v642 = vpop.f32.mrb[0].mxu0
    %v643 = vadd.f32 %v571, %v642
    %v644 = vpop.f32.mrb[0].mxu0
    %645 = vmatprep.mubr.bf16.mxu0 0
    %646 = vmatmul.mubr.bf16.gmra.mrb[0].mxu0 %v592
    %v647 = vpop.f32.mrb[0].mxu0
    %v648 = vadd.f32 %v571, %v647
    %v649 = vpop.f32.mrb[0].mxu0
    %v650 = vpop.f32.mrb[0].mxu0
    %v651 = vadd.f32 %v571, %v650
    %v652 = vpop.f32.mrb[0].mxu0
    %653 = vmatprep.mubr.bf16.mxu0 0
    %654 = vmatmul.mubr.bf16.gmra.mrb[0].mxu0 %v595
    %v655 = vpop.f32.mrb[0].mxu0
    %v656 = vadd.f32 %v571, %v655
    %v657 = vpop.f32.mrb[0].mxu0
    %v658 = vpop.f32.mrb[0].mxu0
    %v659 = vadd.f32 %v571, %v658
    %v660 = vpop.f32.mrb[0].mxu0
    %661 = vdwg.mxu0
    %v662 = vmul.f32 %v632, 0.35355338
    %v663 = vmul.f32 %v635, 0.35355338
    %v664 = vmul.f32 %v640, 0.35355338
    %v665 = vmul.f32 %v643, 0.35355338
    %v666 = vmul.f32 %v648, 0.35355338
    %v667 = vmul.f32 %v651, 0.35355338
    %v668 = vmul.f32 %v656, 0.35355338
    %v669 = vmul.f32 %v659, 0.35355338
    %v670 = vpack.c.bf16 %v662, %v662
    %v671 = vpack.c.bf16 %v663, %v663
    %v672 = vpack.c.bf16 %v664, %v664
    %v673 = vpack.c.bf16 %v665, %v665
    %v674 = vpack.c.bf16 %v666, %v666
    %v675 = vpack.c.bf16 %v667, %v667
    %v676 = vpack.c.bf16 %v668, %v668
    %v677 = vpack.c.bf16 %v669, %v669
    %v678 = vpack.c.bf16 %v632, %v632
    %v679 = vpack.c.bf16 %v635, %v635
    %v680 = vpack.c.bf16 %v640, %v640
    %v681 = vpack.c.bf16 %v643, %v643
    %v682 = vpack.c.bf16 %v648, %v648
    %v683 = vpack.c.bf16 %v651, %v651
    %v684 = vpack.c.bf16 %v656, %v656
    %v685 = vpack.c.bf16 %v659, %v659
    %687 = vrot.lane.b32.xlu0 %v678, 96
    %v688 = vpop.permute.xlu0 %687
    %vm689 = vcmask 64512
    %v691 = vsel %vm689, %v670, 0
    %v694 = vsel %vm689, %v688, 0
    %696 = vmatprep.subr.bf16.mxu0 0
    %697 = vmatpush1.bf16.xpose.msra.mxu0 %v694
    %698 = vmatprep.subr.bf16.mxu0 0
    %699 = vmatpush1.bf16.xpose.msra.mxu0 0
    %700 = vmatprep.subr.bf16.mxu0 0
    %701 = vmatpush1.bf16.xpose.msra.mxu0 0
    %702 = vmatprep.subr.bf16.mxu0 0
    %703 = vmatpush1.bf16.xpose.msra.mxu0 0
    %704 = vmatprep.subr.bf16.mxu0 0
    %705 = vmatpush1.bf16.xpose.msra.mxu0 0
    %706 = vmatprep.subr.bf16.mxu0 0
    %707 = vmatpush1.bf16.xpose.msra.mxu0 0
    %708 = vmatprep.subr.bf16.mxu0 0
    %709 = vmatpush1.bf16.xpose.msra.mxu0 0
    %710 = vmatprep.subr.bf16.mxu0 0
    %711 = vmatpush1.bf16.xpose.msra.mxu0 0
    %712 = vmatprep.subr.bf16.mxu0 0
    %713 = vmatpush1.bf16.xpose.msra.mxu0 0
    %714 = vmatprep.subr.bf16.mxu0 0
    %715 = vmatpush1.bf16.xpose.msra.mxu0 0
    %716 = vmatprep.subr.bf16.mxu0 0
    %717 = vmatpush1.bf16.xpose.msra.mxu0 0
    %718 = vmatprep.subr.bf16.mxu0 0
    %719 = vmatpush1.bf16.xpose.msra.mxu0 0
    %720 = vmatprep.subr.bf16.mxu0 0
    %721 = vmatpush1.bf16.xpose.msra.mxu0 0
    %722 = vmatprep.subr.bf16.mxu0 0
    %723 = vmatpush1.bf16.xpose.msra.mxu0 0
    %724 = vmatprep.subr.bf16.mxu0 0
    %725 = vmatpush1.bf16.xpose.msra.mxu0 0
    %726 = vmatprep.subr.bf16.mxu0 0
    %727 = vmatpush1.bf16.xpose.msra.mxu0 0
    %728 = vmatprep.mubr.bf16.mxu0 0
    %729 = vmatmul.mubr.bf16.gmra.mrb[0].mxu0 %v691
    %v730 = vpop.f32.mrb[0].mxu0
    %v731 = vadd.f32 %v423, %v730
    %v732 = vpop.f32.mrb[0].mxu0
    %v733 = vpop.f32.mrb[0].mxu0
    %v734 = vpop.f32.mrb[0].mxu0
    %735 = vdwg.mxu0
    %737 = vrot.lane.b32.xlu0 %v679, 96
    %v738 = vpop.permute.xlu0 %737
    %v740 = vsel %vm689, %v671, 0
    %v743 = vsel %vm689, %v738, 0
    %745 = vmatprep.subr.bf16.mxu0 0
    %746 = vmatpush1.bf16.xpose.msra.mxu0 %v743
    %747 = vmatprep.subr.bf16.mxu0 0
    %748 = vmatpush1.bf16.xpose.msra.mxu0 0
    %749 = vmatprep.subr.bf16.mxu0 0
    %750 = vmatpush1.bf16.xpose.msra.mxu0 0
    %751 = vmatprep.subr.bf16.mxu0 0
    %752 = vmatpush1.bf16.xpose.msra.mxu0 0
    %753 = vmatprep.subr.bf16.mxu0 0
    %754 = vmatpush1.bf16.xpose.msra.mxu0 0
    %755 = vmatprep.subr.bf16.mxu0 0
    %756 = vmatpush1.bf16.xpose.msra.mxu0 0
    %757 = vmatprep.subr.bf16.mxu0 0
    %758 = vmatpush1.bf16.xpose.msra.mxu0 0
    %759 = vmatprep.subr.bf16.mxu0 0
    %760 = vmatpush1.bf16.xpose.msra.mxu0 0
    %761 = vmatprep.subr.bf16.mxu0 0
    %762 = vmatpush1.bf16.xpose.msra.mxu0 0
    %763 = vmatprep.subr.bf16.mxu0 0
    %764 = vmatpush1.bf16.xpose.msra.mxu0 0
    %765 = vmatprep.subr.bf16.mxu0 0
    %766 = vmatpush1.bf16.xpose.msra.mxu0 0
    %767 = vmatprep.subr.bf16.mxu0 0
    %768 = vmatpush1.bf16.xpose.msra.mxu0 0
    %769 = vmatprep.subr.bf16.mxu0 0
    %770 = vmatpush1.bf16.xpose.msra.mxu0 0
    %771 = vmatprep.subr.bf16.mxu0 0
    %772 = vmatpush1.bf16.xpose.msra.mxu0 0
    %773 = vmatprep.subr.bf16.mxu0 0
    %774 = vmatpush1.bf16.xpose.msra.mxu0 0
    %775 = vmatprep.subr.bf16.mxu0 0
    %776 = vmatpush1.bf16.xpose.msra.mxu0 0
    %777 = vmatprep.mubr.bf16.mxu0 0
    %778 = vmatmul.mubr.bf16.gmra.mrb[0].mxu0 %v740
    %v779 = vpop.f32.mrb[0].mxu0
    %v780 = vadd.f32 %v423, %v779
    %v781 = vpop.f32.mrb[0].mxu0
    %v782 = vpop.f32.mrb[0].mxu0
    %v783 = vpop.f32.mrb[0].mxu0
    %784 = vdwg.mxu0
    %786 = vrot.lane.b32.xlu0 %v680, 96
    %v787 = vpop.permute.xlu0 %786
    %v789 = vsel %vm689, %v672, 0
    %v792 = vsel %vm689, %v787, 0
    %794 = vmatprep.subr.bf16.mxu0 0
    %795 = vmatpush1.bf16.xpose.msra.mxu0 %v792
    %796 = vmatprep.subr.bf16.mxu0 0
    %797 = vmatpush1.bf16.xpose.msra.mxu0 0
    %798 = vmatprep.subr.bf16.mxu0 0
    %799 = vmatpush1.bf16.xpose.msra.mxu0 0
    %800 = vmatprep.subr.bf16.mxu0 0
    %801 = vmatpush1.bf16.xpose.msra.mxu0 0
    %802 = vmatprep.subr.bf16.mxu0 0
    %803 = vmatpush1.bf16.xpose.msra.mxu0 0
    %804 = vmatprep.subr.bf16.mxu0 0
    %805 = vmatpush1.bf16.xpose.msra.mxu0 0
    %806 = vmatprep.subr.bf16.mxu0 0
    %807 = vmatpush1.bf16.xpose.msra.mxu0 0
    %808 = vmatprep.subr.bf16.mxu0 0
    %809 = vmatpush1.bf16.xpose.msra.mxu0 0
    %810 = vmatprep.subr.bf16.mxu0 0
    %811 = vmatpush1.bf16.xpose.msra.mxu0 0
    %812 = vmatprep.subr.bf16.mxu0 0
    %813 = vmatpush1.bf16.xpose.msra.mxu0 0
    %814 = vmatprep.subr.bf16.mxu0 0
    %815 = vmatpush1.bf16.xpose.msra.mxu0 0
    %816 = vmatprep.subr.bf16.mxu0 0
    %817 = vmatpush1.bf16.xpose.msra.mxu0 0
    %818 = vmatprep.subr.bf16.mxu0 0
    %819 = vmatpush1.bf16.xpose.msra.mxu0 0
    %820 = vmatprep.subr.bf16.mxu0 0
    %821 = vmatpush1.bf16.xpose.msra.mxu0 0
    %822 = vmatprep.subr.bf16.mxu0 0
    %823 = vmatpush1.bf16.xpose.msra.mxu0 0
    %824 = vmatprep.subr.bf16.mxu0 0
    %825 = vmatpush1.bf16.xpose.msra.mxu0 0
    %826 = vmatprep.mubr.bf16.mxu0 0
    %827 = vmatmul.mubr.bf16.gmra.mrb[0].mxu0 %v789
    %v828 = vpop.f32.mrb[0].mxu0
    %v829 = vadd.f32 %v423, %v828
    %v830 = vpop.f32.mrb[0].mxu0
    %v831 = vpop.f32.mrb[0].mxu0
    %v832 = vpop.f32.mrb[0].mxu0
    %833 = vdwg.mxu0
    %835 = vrot.lane.b32.xlu0 %v681, 96
    %v836 = vpop.permute.xlu0 %835
    %v838 = vsel %vm689, %v673, 0
    %v841 = vsel %vm689, %v836, 0
    %843 = vmatprep.subr.bf16.mxu0 0
    %844 = vmatpush1.bf16.xpose.msra.mxu0 %v841
    %845 = vmatprep.subr.bf16.mxu0 0
    %846 = vmatpush1.bf16.xpose.msra.mxu0 0
    %847 = vmatprep.subr.bf16.mxu0 0
    %848 = vmatpush1.bf16.xpose.msra.mxu0 0
    %849 = vmatprep.subr.bf16.mxu0 0
    %850 = vmatpush1.bf16.xpose.msra.mxu0 0
    %851 = vmatprep.subr.bf16.mxu0 0
    %852 = vmatpush1.bf16.xpose.msra.mxu0 0
    %853 = vmatprep.subr.bf16.mxu0 0
    %854 = vmatpush1.bf16.xpose.msra.mxu0 0
    %855 = vmatprep.subr.bf16.mxu0 0
    %856 = vmatpush1.bf16.xpose.msra.mxu0 0
    %857 = vmatprep.subr.bf16.mxu0 0
    %858 = vmatpush1.bf16.xpose.msra.mxu0 0
    %859 = vmatprep.subr.bf16.mxu0 0
    %860 = vmatpush1.bf16.xpose.msra.mxu0 0
    %861 = vmatprep.subr.bf16.mxu0 0
    %862 = vmatpush1.bf16.xpose.msra.mxu0 0
    %863 = vmatprep.subr.bf16.mxu0 0
    %864 = vmatpush1.bf16.xpose.msra.mxu0 0
    %865 = vmatprep.subr.bf16.mxu0 0
    %866 = vmatpush1.bf16.xpose.msra.mxu0 0
    %867 = vmatprep.subr.bf16.mxu0 0
    %868 = vmatpush1.bf16.xpose.msra.mxu0 0
    %869 = vmatprep.subr.bf16.mxu0 0
    %870 = vmatpush1.bf16.xpose.msra.mxu0 0
    %871 = vmatprep.subr.bf16.mxu0 0
    %872 = vmatpush1.bf16.xpose.msra.mxu0 0
    %873 = vmatprep.subr.bf16.mxu0 0
    %874 = vmatpush1.bf16.xpose.msra.mxu0 0
    %875 = vmatprep.mubr.bf16.mxu0 0
    %876 = vmatmul.mubr.bf16.gmra.mrb[0].mxu0 %v838
    %v877 = vpop.f32.mrb[0].mxu0
    %v878 = vadd.f32 %v423, %v877
    %v879 = vpop.f32.mrb[0].mxu0
    %v880 = vpop.f32.mrb[0].mxu0
    %v881 = vpop.f32.mrb[0].mxu0
    %882 = vdwg.mxu0
    %884 = vrot.lane.b32.xlu0 %v682, 96
    %v885 = vpop.permute.xlu0 %884
    %v887 = vsel %vm689, %v674, 0
    %v890 = vsel %vm689, %v885, 0
    %892 = vmatprep.subr.bf16.mxu0 0
    %893 = vmatpush1.bf16.xpose.msra.mxu0 %v890
    %894 = vmatprep.subr.bf16.mxu0 0
    %895 = vmatpush1.bf16.xpose.msra.mxu0 0
    %896 = vmatprep.subr.bf16.mxu0 0
    %897 = vmatpush1.bf16.xpose.msra.mxu0 0
    %898 = vmatprep.subr.bf16.mxu0 0
    %899 = vmatpush1.bf16.xpose.msra.mxu0 0
    %900 = vmatprep.subr.bf16.mxu0 0
    %901 = vmatpush1.bf16.xpose.msra.mxu0 0
    %902 = vmatprep.subr.bf16.mxu0 0
    %903 = vmatpush1.bf16.xpose.msra.mxu0 0
    %904 = vmatprep.subr.bf16.mxu0 0
    %905 = vmatpush1.bf16.xpose.msra.mxu0 0
    %906 = vmatprep.subr.bf16.mxu0 0
    %907 = vmatpush1.bf16.xpose.msra.mxu0 0
    %908 = vmatprep.subr.bf16.mxu0 0
    %909 = vmatpush1.bf16.xpose.msra.mxu0 0
    %910 = vmatprep.subr.bf16.mxu0 0
    %911 = vmatpush1.bf16.xpose.msra.mxu0 0
    %912 = vmatprep.subr.bf16.mxu0 0
    %913 = vmatpush1.bf16.xpose.msra.mxu0 0
    %914 = vmatprep.subr.bf16.mxu0 0
    %915 = vmatpush1.bf16.xpose.msra.mxu0 0
    %916 = vmatprep.subr.bf16.mxu0 0
    %917 = vmatpush1.bf16.xpose.msra.mxu0 0
    %918 = vmatprep.subr.bf16.mxu0 0
    %919 = vmatpush1.bf16.xpose.msra.mxu0 0
    %920 = vmatprep.subr.bf16.mxu0 0
    %921 = vmatpush1.bf16.xpose.msra.mxu0 0
    %922 = vmatprep.subr.bf16.mxu0 0
    %923 = vmatpush1.bf16.xpose.msra.mxu0 0
    %924 = vmatprep.mubr.bf16.mxu0 0
    %925 = vmatmul.mubr.bf16.gmra.mrb[0].mxu0 %v887
    %v926 = vpop.f32.mrb[0].mxu0
    %v927 = vadd.f32 %v423, %v926
    %v928 = vpop.f32.mrb[0].mxu0
    %v929 = vpop.f32.mrb[0].mxu0
    %v930 = vpop.f32.mrb[0].mxu0
    %931 = vdwg.mxu0
    %933 = vrot.lane.b32.xlu0 %v683, 96
    %v934 = vpop.permute.xlu0 %933
    %v936 = vsel %vm689, %v675, 0
    %v939 = vsel %vm689, %v934, 0
    %941 = vmatprep.subr.bf16.mxu0 0
    %942 = vmatpush1.bf16.xpose.msra.mxu0 %v939
    %943 = vmatprep.subr.bf16.mxu0 0
    %944 = vmatpush1.bf16.xpose.msra.mxu0 0
    %945 = vmatprep.subr.bf16.mxu0 0
    %946 = vmatpush1.bf16.xpose.msra.mxu0 0
    %947 = vmatprep.subr.bf16.mxu0 0
    %948 = vmatpush1.bf16.xpose.msra.mxu0 0
    %949 = vmatprep.subr.bf16.mxu0 0
    %950 = vmatpush1.bf16.xpose.msra.mxu0 0
    %951 = vmatprep.subr.bf16.mxu0 0
    %952 = vmatpush1.bf16.xpose.msra.mxu0 0
    %953 = vmatprep.subr.bf16.mxu0 0
    %954 = vmatpush1.bf16.xpose.msra.mxu0 0
    %955 = vmatprep.subr.bf16.mxu0 0
    %956 = vmatpush1.bf16.xpose.msra.mxu0 0
    %957 = vmatprep.subr.bf16.mxu0 0
    %958 = vmatpush1.bf16.xpose.msra.mxu0 0
    %959 = vmatprep.subr.bf16.mxu0 0
    %960 = vmatpush1.bf16.xpose.msra.mxu0 0
    %961 = vmatprep.subr.bf16.mxu0 0
    %962 = vmatpush1.bf16.xpose.msra.mxu0 0
    %963 = vmatprep.subr.bf16.mxu0 0
    %964 = vmatpush1.bf16.xpose.msra.mxu0 0
    %965 = vmatprep.subr.bf16.mxu0 0
    %966 = vmatpush1.bf16.xpose.msra.mxu0 0
    %967 = vmatprep.subr.bf16.mxu0 0
    %968 = vmatpush1.bf16.xpose.msra.mxu0 0
    %969 = vmatprep.subr.bf16.mxu0 0
    %970 = vmatpush1.bf16.xpose.msra.mxu0 0
    %971 = vmatprep.subr.bf16.mxu0 0
    %972 = vmatpush1.bf16.xpose.msra.mxu0 0
    %973 = vmatprep.mubr.bf16.mxu0 0
    %974 = vmatmul.mubr.bf16.gmra.mrb[0].mxu0 %v936
    %v975 = vpop.f32.mrb[0].mxu0
    %v976 = vadd.f32 %v423, %v975
    %v977 = vpop.f32.mrb[0].mxu0
    %v978 = vpop.f32.mrb[0].mxu0
    %v979 = vpop.f32.mrb[0].mxu0
    %980 = vdwg.mxu0
    %982 = vrot.lane.b32.xlu0 %v684, 96
    %v983 = vpop.permute.xlu0 %982
    %v985 = vsel %vm689, %v676, 0
    %v988 = vsel %vm689, %v983, 0
    %990 = vmatprep.subr.bf16.mxu0 0
    %991 = vmatpush1.bf16.xpose.msra.mxu0 %v988
    %992 = vmatprep.subr.bf16.mxu0 0
    %993 = vmatpush1.bf16.xpose.msra.mxu0 0
    %994 = vmatprep.subr.bf16.mxu0 0
    %995 = vmatpush1.bf16.xpose.msra.mxu0 0
    %996 = vmatprep.subr.bf16.mxu0 0
    %997 = vmatpush1.bf16.xpose.msra.mxu0 0
    %998 = vmatprep.subr.bf16.mxu0 0
    %999 = vmatpush1.bf16.xpose.msra.mxu0 0
    %1000 = vmatprep.subr.bf16.mxu0 0
    %1001 = vmatpush1.bf16.xpose.msra.mxu0 0
    %1002 = vmatprep.subr.bf16.mxu0 0
    %1003 = vmatpush1.bf16.xpose.msra.mxu0 0
    %1004 = vmatprep.subr.bf16.mxu0 0
    %1005 = vmatpush1.bf16.xpose.msra.mxu0 0
    %1006 = vmatprep.subr.bf16.mxu0 0
    %1007 = vmatpush1.bf16.xpose.msra.mxu0 0
    %1008 = vmatprep.subr.bf16.mxu0 0
    %1009 = vmatpush1.bf16.xpose.msra.mxu0 0
    %1010 = vmatprep.subr.bf16.mxu0 0
    %1011 = vmatpush1.bf16.xpose.msra.mxu0 0
    %1012 = vmatprep.subr.bf16.mxu0 0
    %1013 = vmatpush1.bf16.xpose.msra.mxu0 0
    %1014 = vmatprep.subr.bf16.mxu0 0
    %1015 = vmatpush1.bf16.xpose.msra.mxu0 0
    %1016 = vmatprep.subr.bf16.mxu0 0
    %1017 = vmatpush1.bf16.xpose.msra.mxu0 0
    %1018 = vmatprep.subr.bf16.mxu0 0
    %1019 = vmatpush1.bf16.xpose.msra.mxu0 0
    %1020 = vmatprep.subr.bf16.mxu0 0
    %1021 = vmatpush1.bf16.xpose.msra.mxu0 0
    %1022 = vmatprep.mubr.bf16.mxu0 0
    %1023 = vmatmul.mubr.bf16.gmra.mrb[0].mxu0 %v985
    %v1024 = vpop.f32.mrb[0].mxu0
    %v1025 = vadd.f32 %v423, %v1024
    %v1026 = vpop.f32.mrb[0].mxu0
    %v1027 = vpop.f32.mrb[0].mxu0
    %v1028 = vpop.f32.mrb[0].mxu0
    %1029 = vdwg.mxu0
    %1031 = vrot.lane.b32.xlu0 %v685, 96
    %v1032 = vpop.permute.xlu0 %1031
    %v1034 = vsel %vm689, %v677, 0
    %v1037 = vsel %vm689, %v1032, 0
    %1039 = vmatprep.subr.bf16.mxu0 0
    %1040 = vmatpush1.bf16.xpose.msra.mxu0 %v1037
    %1041 = vmatprep.subr.bf16.mxu0 0
    %1042 = vmatpush1.bf16.xpose.msra.mxu0 0
    %1043 = vmatprep.subr.bf16.mxu0 0
    %1044 = vmatpush1.bf16.xpose.msra.mxu0 0
    %1045 = vmatprep.subr.bf16.mxu0 0
    %1046 = vmatpush1.bf16.xpose.msra.mxu0 0
    %1047 = vmatprep.subr.bf16.mxu0 0
    %1048 = vmatpush1.bf16.xpose.msra.mxu0 0
    %1049 = vmatprep.subr.bf16.mxu0 0
    %1050 = vmatpush1.bf16.xpose.msra.mxu0 0
    %1051 = vmatprep.subr.bf16.mxu0 0
    %1052 = vmatpush1.bf16.xpose.msra.mxu0 0
    %1053 = vmatprep.subr.bf16.mxu0 0
    %1054 = vmatpush1.bf16.xpose.msra.mxu0 0
    %1055 = vmatprep.subr.bf16.mxu0 0
    %1056 = vmatpush1.bf16.xpose.msra.mxu0 0
    %1057 = vmatprep.subr.bf16.mxu0 0
    %1058 = vmatpush1.bf16.xpose.msra.mxu0 0
    %1059 = vmatprep.subr.bf16.mxu0 0
    %1060 = vmatpush1.bf16.xpose.msra.mxu0 0
    %1061 = vmatprep.subr.bf16.mxu0 0
    %1062 = vmatpush1.bf16.xpose.msra.mxu0 0
    %1063 = vmatprep.subr.bf16.mxu0 0
    %1064 = vmatpush1.bf16.xpose.msra.mxu0 0
    %1065 = vmatprep.subr.bf16.mxu0 0
    %1066 = vmatpush1.bf16.xpose.msra.mxu0 0
    %1067 = vmatprep.subr.bf16.mxu0 0
    %1068 = vmatpush1.bf16.xpose.msra.mxu0 0
    %1069 = vmatprep.subr.bf16.mxu0 0
    %1070 = vmatpush1.bf16.xpose.msra.mxu0 0
    %1071 = vmatprep.mubr.bf16.mxu0 0
    %1072 = vmatmul.mubr.bf16.gmra.mrb[0].mxu0 %v1034
    %v1073 = vpop.f32.mrb[0].mxu0
    %v1074 = vadd.f32 %v423, %v1073
    %v1075 = vpop.f32.mrb[0].mxu0
    %v1076 = vpop.f32.mrb[0].mxu0
    %v1077 = vpop.f32.mrb[0].mxu0
    %1078 = vdwg.mxu0
    %v1079 = vsel %vm689, %v731, -inf
    %1080 = vmax.xlane.f32.xlu0 %v1079
    %v1081 = vpop.xlane.xlu0 %1080
    %v1082 = vsel %vm689, %v780, -inf
    %1083 = vmax.xlane.f32.xlu0 %v1082
    %v1084 = vpop.xlane.xlu0 %1083
    %v1085 = vsel %vm689, %v829, -inf
    %1086 = vmax.xlane.f32.xlu0 %v1085
    %v1087 = vpop.xlane.xlu0 %1086
    %v1088 = vsel %vm689, %v878, -inf
    %1089 = vmax.xlane.f32.xlu0 %v1088
    %v1090 = vpop.xlane.xlu0 %1089
    %v1091 = vsel %vm689, %v927, -inf
    %1092 = vmax.xlane.f32.xlu0 %v1091
    %v1093 = vpop.xlane.xlu0 %1092
    %v1094 = vsel %vm689, %v976, -inf
    %1095 = vmax.xlane.f32.xlu0 %v1094
    %v1096 = vpop.xlane.xlu0 %1095
    %v1097 = vsel %vm689, %v1025, -inf
    %1098 = vmax.xlane.f32.xlu0 %v1097
    %v1099 = vpop.xlane.xlu0 %1098
    %v1100 = vsel %vm689, %v1074, -inf
    %1101 = vmax.xlane.f32.xlu0 %v1100
    %v1102 = vpop.xlane.xlu0 %1101
    %v1103 = vsub.f32 %v731, %v1081
    %v1104 = vsub.f32 %v780, %v1084
    %v1105 = vsub.f32 %v829, %v1087
    %v1106 = vsub.f32 %v878, %v1090
    %v1107 = vsub.f32 %v927, %v1093
    %v1108 = vsub.f32 %v976, %v1096
    %v1109 = vsub.f32 %v1025, %v1099
    %v1110 = vsub.f32 %v1074, %v1102
    %v1111 = vmul.f32 %v1103, 1.442695
    %v1112 = vpow.pop %v1111
    %v1113 = vmul.f32 %v1104, 1.442695
    %v1114 = vpow.pop %v1113
    %v1115 = vmul.f32 %v1105, 1.442695
    %v1116 = vpow.pop %v1115
    %v1117 = vmul.f32 %v1106, 1.442695
    %v1118 = vpow.pop %v1117
    %v1119 = vmul.f32 %v1107, 1.442695
    %v1120 = vpow.pop %v1119
    %v1121 = vmul.f32 %v1108, 1.442695
    %v1122 = vpow.pop %v1121
    %v1123 = vmul.f32 %v1109, 1.442695
    %v1124 = vpow.pop %v1123
    %v1125 = vmul.f32 %v1110, 1.442695
    %v1126 = vpow.pop %v1125
    %v1127 = vsel %vm689, %v1112, 0.0
    %1128 = vadd.xlane.f32.xlu0 %v1127
    %v1129 = vpop.xlane.xlu0 %1128
    %v1130 = vsel %vm689, %v1114, 0.0
    %1131 = vadd.xlane.f32.xlu0 %v1130
    %v1132 = vpop.xlane.xlu0 %1131
    %v1133 = vsel %vm689, %v1116, 0.0
    %1134 = vadd.xlane.f32.xlu0 %v1133
    %v1135 = vpop.xlane.xlu0 %1134
    %v1136 = vsel %vm689, %v1118, 0.0
    %1137 = vadd.xlane.f32.xlu0 %v1136
    %v1138 = vpop.xlane.xlu0 %1137
    %v1139 = vsel %vm689, %v1120, 0.0
    %1140 = vadd.xlane.f32.xlu0 %v1139
    %v1141 = vpop.xlane.xlu0 %1140
    %v1142 = vsel %vm689, %v1122, 0.0
    %1143 = vadd.xlane.f32.xlu0 %v1142
    %v1144 = vpop.xlane.xlu0 %1143
    %v1145 = vsel %vm689, %v1124, 0.0
    %1146 = vadd.xlane.f32.xlu0 %v1145
    %v1147 = vpop.xlane.xlu0 %1146
    %v1148 = vsel %vm689, %v1126, 0.0
    %1149 = vadd.xlane.f32.xlu0 %v1148
    %v1150 = vpop.xlane.xlu0 %1149
    %v1151 = vrcp.pop %v1129
    %v1152 = vrcp.pop %v1132
    %v1153 = vrcp.pop %v1135
    %v1154 = vrcp.pop %v1138
    %v1155 = vrcp.pop %v1141
    %v1156 = vrcp.pop %v1144
    %v1157 = vrcp.pop %v1147
    %v1158 = vrcp.pop %v1150
    %v1159 = vmul.f32 %v1112, %v1151
    %v1160 = vmul.f32 %v1114, %v1152
    %v1161 = vmul.f32 %v1116, %v1153
    %v1162 = vmul.f32 %v1118, %v1154
    %v1163 = vmul.f32 %v1120, %v1155
    %v1164 = vmul.f32 %v1122, %v1156
    %v1165 = vmul.f32 %v1124, %v1157
    %v1166 = vmul.f32 %v1126, %v1158
    %v1167 = vpack.c.bf16 %v1159, %v1159
    %v1168 = vpack.c.bf16 %v1160, %v1160
    %v1169 = vpack.c.bf16 %v1161, %v1161
    %v1170 = vpack.c.bf16 %v1162, %v1162
    %v1171 = vpack.c.bf16 %v1163, %v1163
    %v1172 = vpack.c.bf16 %v1164, %v1164
    %v1173 = vpack.c.bf16 %v1165, %v1165
    %v1174 = vpack.c.bf16 %v1166, %v1166
    %1175 = vrot.lane.b32.xlu0 %v678, 64
    %v1176 = vpop.permute.xlu0 %1175
    %v1178 = vsel %vm689, %v1167, 0
    %vm1180 = vcmask 1043456
    %v1182 = vsel %vm1180, %v1176, 0
    %1184 = vmatprep.subr.bf16.mxu0 0
    %1185 = vmatpush1.bf16.msra.mxu0 %v1182
    %1186 = vmatprep.subr.bf16.mxu0 0
    %1187 = vmatpush1.bf16.msra.mxu0 0
    %1188 = vmatprep.subr.bf16.mxu0 0
    %1189 = vmatpush1.bf16.msra.mxu0 0
    %1190 = vmatprep.subr.bf16.mxu0 0
    %1191 = vmatpush1.bf16.msra.mxu0 0
    %1192 = vmatprep.subr.bf16.mxu0 0
    %1193 = vmatpush1.bf16.msra.mxu0 0
    %1194 = vmatprep.subr.bf16.mxu0 0
    %1195 = vmatpush1.bf16.msra.mxu0 0
    %1196 = vmatprep.subr.bf16.mxu0 0
    %1197 = vmatpush1.bf16.msra.mxu0 0
    %1198 = vmatprep.subr.bf16.mxu0 0
    %1199 = vmatpush1.bf16.msra.mxu0 0
    %1200 = vmatprep.subr.bf16.mxu0 0
    %1201 = vmatpush1.bf16.msra.mxu0 0
    %1202 = vmatprep.subr.bf16.mxu0 0
    %1203 = vmatpush1.bf16.msra.mxu0 0
    %1204 = vmatprep.subr.bf16.mxu0 0
    %1205 = vmatpush1.bf16.msra.mxu0 0
    %1206 = vmatprep.subr.bf16.mxu0 0
    %1207 = vmatpush1.bf16.msra.mxu0 0
    %1208 = vmatprep.subr.bf16.mxu0 0
    %1209 = vmatpush1.bf16.msra.mxu0 0
    %1210 = vmatprep.subr.bf16.mxu0 0
    %1211 = vmatpush1.bf16.msra.mxu0 0
    %1212 = vmatprep.subr.bf16.mxu0 0
    %1213 = vmatpush1.bf16.msra.mxu0 0
    %1214 = vmatprep.subr.bf16.mxu0 0
    %1215 = vmatpush1.bf16.msra.mxu0 0
    %1216 = vmatprep.mubr.bf16.mxu0 0
    %1217 = vmatmul.mubr.bf16.gmra.mrb[0].mxu0 %v1178
    %v1218 = vpop.f32.mrb[0].mxu0
    %v1219 = vadd.f32 0.0, %v1218
    %v1220 = vpop.f32.mrb[0].mxu0
    %v1221 = vpop.f32.mrb[0].mxu0
    %v1222 = vpop.f32.mrb[0].mxu0
    %1223 = vdwg.mxu0
    %1224 = vrot.lane.b32.xlu0 %v679, 64
    %v1225 = vpop.permute.xlu0 %1224
    %v1227 = vsel %vm689, %v1168, 0
    %v1230 = vsel %vm1180, %v1225, 0
    %1232 = vmatprep.subr.bf16.mxu0 0
    %1233 = vmatpush1.bf16.msra.mxu0 %v1230
    %1234 = vmatprep.subr.bf16.mxu0 0
    %1235 = vmatpush1.bf16.msra.mxu0 0
    %1236 = vmatprep.subr.bf16.mxu0 0
    %1237 = vmatpush1.bf16.msra.mxu0 0
    %1238 = vmatprep.subr.bf16.mxu0 0
    %1239 = vmatpush1.bf16.msra.mxu0 0
    %1240 = vmatprep.subr.bf16.mxu0 0
    %1241 = vmatpush1.bf16.msra.mxu0 0
    %1242 = vmatprep.subr.bf16.mxu0 0
    %1243 = vmatpush1.bf16.msra.mxu0 0
    %1244 = vmatprep.subr.bf16.mxu0 0
    %1245 = vmatpush1.bf16.msra.mxu0 0
    %1246 = vmatprep.subr.bf16.mxu0 0
    %1247 = vmatpush1.bf16.msra.mxu0 0
    %1248 = vmatprep.subr.bf16.mxu0 0
    %1249 = vmatpush1.bf16.msra.mxu0 0
    %1250 = vmatprep.subr.bf16.mxu0 0
    %1251 = vmatpush1.bf16.msra.mxu0 0
    %1252 = vmatprep.subr.bf16.mxu0 0
    %1253 = vmatpush1.bf16.msra.mxu0 0
    %1254 = vmatprep.subr.bf16.mxu0 0
    %1255 = vmatpush1.bf16.msra.mxu0 0
    %1256 = vmatprep.subr.bf16.mxu0 0
    %1257 = vmatpush1.bf16.msra.mxu0 0
    %1258 = vmatprep.subr.bf16.mxu0 0
    %1259 = vmatpush1.bf16.msra.mxu0 0
    %1260 = vmatprep.subr.bf16.mxu0 0
    %1261 = vmatpush1.bf16.msra.mxu0 0
    %1262 = vmatprep.subr.bf16.mxu0 0
    %1263 = vmatpush1.bf16.msra.mxu0 0
    %1264 = vmatprep.mubr.bf16.mxu0 0
    %1265 = vmatmul.mubr.bf16.gmra.mrb[0].mxu0 %v1227
    %v1266 = vpop.f32.mrb[0].mxu0
    %v1267 = vadd.f32 0.0, %v1266
    %v1268 = vpop.f32.mrb[0].mxu0
    %v1269 = vpop.f32.mrb[0].mxu0
    %v1270 = vpop.f32.mrb[0].mxu0
    %1271 = vdwg.mxu0
    %1272 = vrot.lane.b32.xlu0 %v680, 64
    %v1273 = vpop.permute.xlu0 %1272
    %v1275 = vsel %vm689, %v1169, 0
    %v1278 = vsel %vm1180, %v1273, 0
    %1280 = vmatprep.subr.bf16.mxu0 0
    %1281 = vmatpush1.bf16.msra.mxu0 %v1278
    %1282 = vmatprep.subr.bf16.mxu0 0
    %1283 = vmatpush1.bf16.msra.mxu0 0
    %1284 = vmatprep.subr.bf16.mxu0 0
    %1285 = vmatpush1.bf16.msra.mxu0 0
    %1286 = vmatprep.subr.bf16.mxu0 0
    %1287 = vmatpush1.bf16.msra.mxu0 0
    %1288 = vmatprep.subr.bf16.mxu0 0
    %1289 = vmatpush1.bf16.msra.mxu0 0
    %1290 = vmatprep.subr.bf16.mxu0 0
    %1291 = vmatpush1.bf16.msra.mxu0 0
    %1292 = vmatprep.subr.bf16.mxu0 0
    %1293 = vmatpush1.bf16.msra.mxu0 0
    %1294 = vmatprep.subr.bf16.mxu0 0
    %1295 = vmatpush1.bf16.msra.mxu0 0
    %1296 = vmatprep.subr.bf16.mxu0 0
    %1297 = vmatpush1.bf16.msra.mxu0 0
    %1298 = vmatprep.subr.bf16.mxu0 0
    %1299 = vmatpush1.bf16.msra.mxu0 0
    %1300 = vmatprep.subr.bf16.mxu0 0
    %1301 = vmatpush1.bf16.msra.mxu0 0
    %1302 = vmatprep.subr.bf16.mxu0 0
    %1303 = vmatpush1.bf16.msra.mxu0 0
    %1304 = vmatprep.subr.bf16.mxu0 0
    %1305 = vmatpush1.bf16.msra.mxu0 0
    %1306 = vmatprep.subr.bf16.mxu0 0
    %1307 = vmatpush1.bf16.msra.mxu0 0
    %1308 = vmatprep.subr.bf16.mxu0 0
    %1309 = vmatpush1.bf16.msra.mxu0 0
    %1310 = vmatprep.subr.bf16.mxu0 0
    %1311 = vmatpush1.bf16.msra.mxu0 0
    %1312 = vmatprep.mubr.bf16.mxu0 0
    %1313 = vmatmul.mubr.bf16.gmra.mrb[0].mxu0 %v1275
    %v1314 = vpop.f32.mrb[0].mxu0
    %v1315 = vadd.f32 0.0, %v1314
    %v1316 = vpop.f32.mrb[0].mxu0
    %v1317 = vpop.f32.mrb[0].mxu0
    %v1318 = vpop.f32.mrb[0].mxu0
    %1319 = vdwg.mxu0
    %1320 = vrot.lane.b32.xlu0 %v681, 64
    %v1321 = vpop.permute.xlu0 %1320
    %v1323 = vsel %vm689, %v1170, 0
    %v1326 = vsel %vm1180, %v1321, 0
    %1328 = vmatprep.subr.bf16.mxu0 0
    %1329 = vmatpush1.bf16.msra.mxu0 %v1326
    %1330 = vmatprep.subr.bf16.mxu0 0
    %1331 = vmatpush1.bf16.msra.mxu0 0
    %1332 = vmatprep.subr.bf16.mxu0 0
    %1333 = vmatpush1.bf16.msra.mxu0 0
    %1334 = vmatprep.subr.bf16.mxu0 0
    %1335 = vmatpush1.bf16.msra.mxu0 0
    %1336 = vmatprep.subr.bf16.mxu0 0
    %1337 = vmatpush1.bf16.msra.mxu0 0
    %1338 = vmatprep.subr.bf16.mxu0 0
    %1339 = vmatpush1.bf16.msra.mxu0 0
    %1340 = vmatprep.subr.bf16.mxu0 0
    %1341 = vmatpush1.bf16.msra.mxu0 0
    %1342 = vmatprep.subr.bf16.mxu0 0
    %1343 = vmatpush1.bf16.msra.mxu0 0
    %1344 = vmatprep.subr.bf16.mxu0 0
    %1345 = vmatpush1.bf16.msra.mxu0 0
    %1346 = vmatprep.subr.bf16.mxu0 0
    %1347 = vmatpush1.bf16.msra.mxu0 0
    %1348 = vmatprep.subr.bf16.mxu0 0
    %1349 = vmatpush1.bf16.msra.mxu0 0
    %1350 = vmatprep.subr.bf16.mxu0 0
    %1351 = vmatpush1.bf16.msra.mxu0 0
    %1352 = vmatprep.subr.bf16.mxu0 0
    %1353 = vmatpush1.bf16.msra.mxu0 0
    %1354 = vmatprep.subr.bf16.mxu0 0
    %1355 = vmatpush1.bf16.msra.mxu0 0
    %1356 = vmatprep.subr.bf16.mxu0 0
    %1357 = vmatpush1.bf16.msra.mxu0 0
    %1358 = vmatprep.subr.bf16.mxu0 0
    %1359 = vmatpush1.bf16.msra.mxu0 0
    %1360 = vmatprep.mubr.bf16.mxu0 0
    %1361 = vmatmul.mubr.bf16.gmra.mrb[0].mxu0 %v1323
    %v1362 = vpop.f32.mrb[0].mxu0
    %v1363 = vadd.f32 0.0, %v1362
    %v1364 = vpop.f32.mrb[0].mxu0
    %v1365 = vpop.f32.mrb[0].mxu0
    %v1366 = vpop.f32.mrb[0].mxu0
    %1367 = vdwg.mxu0
    %1368 = vrot.lane.b32.xlu0 %v682, 64
    %v1369 = vpop.permute.xlu0 %1368
    %v1371 = vsel %vm689, %v1171, 0
    %v1374 = vsel %vm1180, %v1369, 0
    %1376 = vmatprep.subr.bf16.mxu0 0
    %1377 = vmatpush1.bf16.msra.mxu0 %v1374
    %1378 = vmatprep.subr.bf16.mxu0 0
    %1379 = vmatpush1.bf16.msra.mxu0 0
    %1380 = vmatprep.subr.bf16.mxu0 0
    %1381 = vmatpush1.bf16.msra.mxu0 0
    %1382 = vmatprep.subr.bf16.mxu0 0
    %1383 = vmatpush1.bf16.msra.mxu0 0
    %1384 = vmatprep.subr.bf16.mxu0 0
    %1385 = vmatpush1.bf16.msra.mxu0 0
    %1386 = vmatprep.subr.bf16.mxu0 0
    %1387 = vmatpush1.bf16.msra.mxu0 0
    %1388 = vmatprep.subr.bf16.mxu0 0
    %1389 = vmatpush1.bf16.msra.mxu0 0
    %1390 = vmatprep.subr.bf16.mxu0 0
    %1391 = vmatpush1.bf16.msra.mxu0 0
    %1392 = vmatprep.subr.bf16.mxu0 0
    %1393 = vmatpush1.bf16.msra.mxu0 0
    %1394 = vmatprep.subr.bf16.mxu0 0
    %1395 = vmatpush1.bf16.msra.mxu0 0
    %1396 = vmatprep.subr.bf16.mxu0 0
    %1397 = vmatpush1.bf16.msra.mxu0 0
    %1398 = vmatprep.subr.bf16.mxu0 0
    %1399 = vmatpush1.bf16.msra.mxu0 0
    %1400 = vmatprep.subr.bf16.mxu0 0
    %1401 = vmatpush1.bf16.msra.mxu0 0
    %1402 = vmatprep.subr.bf16.mxu0 0
    %1403 = vmatpush1.bf16.msra.mxu0 0
    %1404 = vmatprep.subr.bf16.mxu0 0
    %1405 = vmatpush1.bf16.msra.mxu0 0
    %1406 = vmatprep.subr.bf16.mxu0 0
    %1407 = vmatpush1.bf16.msra.mxu0 0
    %1408 = vmatprep.mubr.bf16.mxu0 0
    %1409 = vmatmul.mubr.bf16.gmra.mrb[0].mxu0 %v1371
    %v1410 = vpop.f32.mrb[0].mxu0
    %v1411 = vadd.f32 0.0, %v1410
    %v1412 = vpop.f32.mrb[0].mxu0
    %v1413 = vpop.f32.mrb[0].mxu0
    %v1414 = vpop.f32.mrb[0].mxu0
    %1415 = vdwg.mxu0
    %1416 = vrot.lane.b32.xlu0 %v683, 64
    %v1417 = vpop.permute.xlu0 %1416
    %v1419 = vsel %vm689, %v1172, 0
    %v1422 = vsel %vm1180, %v1417, 0
    %1424 = vmatprep.subr.bf16.mxu0 0
    %1425 = vmatpush1.bf16.msra.mxu0 %v1422
    %1426 = vmatprep.subr.bf16.mxu0 0
    %1427 = vmatpush1.bf16.msra.mxu0 0
    %1428 = vmatprep.subr.bf16.mxu0 0
    %1429 = vmatpush1.bf16.msra.mxu0 0
    %1430 = vmatprep.subr.bf16.mxu0 0
    %1431 = vmatpush1.bf16.msra.mxu0 0
    %1432 = vmatprep.subr.bf16.mxu0 0
    %1433 = vmatpush1.bf16.msra.mxu0 0
    %1434 = vmatprep.subr.bf16.mxu0 0
    %1435 = vmatpush1.bf16.msra.mxu0 0
    %1436 = vmatprep.subr.bf16.mxu0 0
    %1437 = vmatpush1.bf16.msra.mxu0 0
    %1438 = vmatprep.subr.bf16.mxu0 0
    %1439 = vmatpush1.bf16.msra.mxu0 0
    %1440 = vmatprep.subr.bf16.mxu0 0
    %1441 = vmatpush1.bf16.msra.mxu0 0
    %1442 = vmatprep.subr.bf16.mxu0 0
    %1443 = vmatpush1.bf16.msra.mxu0 0
    %1444 = vmatprep.subr.bf16.mxu0 0
    %1445 = vmatpush1.bf16.msra.mxu0 0
    %1446 = vmatprep.subr.bf16.mxu0 0
    %1447 = vmatpush1.bf16.msra.mxu0 0
    %1448 = vmatprep.subr.bf16.mxu0 0
    %1449 = vmatpush1.bf16.msra.mxu0 0
    %1450 = vmatprep.subr.bf16.mxu0 0
    %1451 = vmatpush1.bf16.msra.mxu0 0
    %1452 = vmatprep.subr.bf16.mxu0 0
    %1453 = vmatpush1.bf16.msra.mxu0 0
    %1454 = vmatprep.subr.bf16.mxu0 0
    %1455 = vmatpush1.bf16.msra.mxu0 0
    %1456 = vmatprep.mubr.bf16.mxu0 0
    %1457 = vmatmul.mubr.bf16.gmra.mrb[0].mxu0 %v1419
    %v1458 = vpop.f32.mrb[0].mxu0
    %v1459 = vadd.f32 0.0, %v1458
    %v1460 = vpop.f32.mrb[0].mxu0
    %v1461 = vpop.f32.mrb[0].mxu0
    %v1462 = vpop.f32.mrb[0].mxu0
    %1463 = vdwg.mxu0
    %1464 = vrot.lane.b32.xlu0 %v684, 64
    %v1465 = vpop.permute.xlu0 %1464
    %v1467 = vsel %vm689, %v1173, 0
    %v1470 = vsel %vm1180, %v1465, 0
    %1472 = vmatprep.subr.bf16.mxu0 0
    %1473 = vmatpush1.bf16.msra.mxu0 %v1470
    %1474 = vmatprep.subr.bf16.mxu0 0
    %1475 = vmatpush1.bf16.msra.mxu0 0
    %1476 = vmatprep.subr.bf16.mxu0 0
    %1477 = vmatpush1.bf16.msra.mxu0 0
    %1478 = vmatprep.subr.bf16.mxu0 0
    %1479 = vmatpush1.bf16.msra.mxu0 0
    %1480 = vmatprep.subr.bf16.mxu0 0
    %1481 = vmatpush1.bf16.msra.mxu0 0
    %1482 = vmatprep.subr.bf16.mxu0 0
    %1483 = vmatpush1.bf16.msra.mxu0 0
    %1484 = vmatprep.subr.bf16.mxu0 0
    %1485 = vmatpush1.bf16.msra.mxu0 0
    %1486 = vmatprep.subr.bf16.mxu0 0
    %1487 = vmatpush1.bf16.msra.mxu0 0
    %1488 = vmatprep.subr.bf16.mxu0 0
    %1489 = vmatpush1.bf16.msra.mxu0 0
    %1490 = vmatprep.subr.bf16.mxu0 0
    %1491 = vmatpush1.bf16.msra.mxu0 0
    %1492 = vmatprep.subr.bf16.mxu0 0
    %1493 = vmatpush1.bf16.msra.mxu0 0
    %1494 = vmatprep.subr.bf16.mxu0 0
    %1495 = vmatpush1.bf16.msra.mxu0 0
    %1496 = vmatprep.subr.bf16.mxu0 0
    %1497 = vmatpush1.bf16.msra.mxu0 0
    %1498 = vmatprep.subr.bf16.mxu0 0
    %1499 = vmatpush1.bf16.msra.mxu0 0
    %1500 = vmatprep.subr.bf16.mxu0 0
    %1501 = vmatpush1.bf16.msra.mxu0 0
    %1502 = vmatprep.subr.bf16.mxu0 0
    %1503 = vmatpush1.bf16.msra.mxu0 0
    %1504 = vmatprep.mubr.bf16.mxu0 0
    %1505 = vmatmul.mubr.bf16.gmra.mrb[0].mxu0 %v1467
    %v1506 = vpop.f32.mrb[0].mxu0
    %v1507 = vadd.f32 0.0, %v1506
    %v1508 = vpop.f32.mrb[0].mxu0
    %v1509 = vpop.f32.mrb[0].mxu0
    %v1510 = vpop.f32.mrb[0].mxu0
    %1511 = vdwg.mxu0
    %1512 = vrot.lane.b32.xlu0 %v685, 64
    %v1513 = vpop.permute.xlu0 %1512
    %v1515 = vsel %vm689, %v1174, 0
    %v1518 = vsel %vm1180, %v1513, 0
    %1520 = vmatprep.subr.bf16.mxu0 0
    %1521 = vmatpush1.bf16.msra.mxu0 %v1518
    %1522 = vmatprep.subr.bf16.mxu0 0
    %1523 = vmatpush1.bf16.msra.mxu0 0
    %1524 = vmatprep.subr.bf16.mxu0 0
    %1525 = vmatpush1.bf16.msra.mxu0 0
    %1526 = vmatprep.subr.bf16.mxu0 0
    %1527 = vmatpush1.bf16.msra.mxu0 0
    %1528 = vmatprep.subr.bf16.mxu0 0
    %1529 = vmatpush1.bf16.msra.mxu0 0
    %1530 = vmatprep.subr.bf16.mxu0 0
    %1531 = vmatpush1.bf16.msra.mxu0 0
    %1532 = vmatprep.subr.bf16.mxu0 0
    %1533 = vmatpush1.bf16.msra.mxu0 0
    %1534 = vmatprep.subr.bf16.mxu0 0
    %1535 = vmatpush1.bf16.msra.mxu0 0
    %1536 = vmatprep.subr.bf16.mxu0 0
    %1537 = vmatpush1.bf16.msra.mxu0 0
    %1538 = vmatprep.subr.bf16.mxu0 0
    %1539 = vmatpush1.bf16.msra.mxu0 0
    %1540 = vmatprep.subr.bf16.mxu0 0
    %1541 = vmatpush1.bf16.msra.mxu0 0
    %1542 = vmatprep.subr.bf16.mxu0 0
    %1543 = vmatpush1.bf16.msra.mxu0 0
    %1544 = vmatprep.subr.bf16.mxu0 0
    %1545 = vmatpush1.bf16.msra.mxu0 0
    %1546 = vmatprep.subr.bf16.mxu0 0
    %1547 = vmatpush1.bf16.msra.mxu0 0
    %1548 = vmatprep.subr.bf16.mxu0 0
    %1549 = vmatpush1.bf16.msra.mxu0 0
    %1550 = vmatprep.subr.bf16.mxu0 0
    %1551 = vmatpush1.bf16.msra.mxu0 0
    %1552 = vmatprep.mubr.bf16.mxu0 0
    %1553 = vmatmul.mubr.bf16.gmra.mrb[0].mxu0 %v1515
    %v1554 = vpop.f32.mrb[0].mxu0
    %v1555 = vadd.f32 0.0, %v1554
    %v1556 = vpop.f32.mrb[0].mxu0
    %v1557 = vpop.f32.mrb[0].mxu0
    %v1558 = vpop.f32.mrb[0].mxu0
    %1559 = vdwg.mxu0
    %v1560 = vpack.c.bf16 %v1267, %v1219
    %v1561 = vpack.c.bf16 %v1363, %v1315
    %v1562 = vpack.c.bf16 %v1459, %v1411
    %v1563 = vpack.c.bf16 %v1555, %v1507
    %v1564 = vld [vmem:[%s9] sm:$0xf]
    %1566 = vrot.lane.b32.xlu0 %v670, 120
    %v1567 = vpop.permute.xlu0 %1566
    %1568 = vrot.lane.b32.xlu0 %v678, 88
    %v1569 = vpop.permute.xlu0 %1568
    %v1571 = vsel %vm689, %v1567, 0
    %v1574 = vsel %vm689, %v1569, 0
    %1576 = vmatprep.subr.bf16.mxu0 0
    %1577 = vmatpush1.bf16.xpose.msra.mxu0 %v1574
    %1578 = vmatprep.subr.bf16.mxu0 0
    %1579 = vmatpush1.bf16.xpose.msra.mxu0 0
    %1580 = vmatprep.subr.bf16.mxu0 0
    %1581 = vmatpush1.bf16.xpose.msra.mxu0 0
    %1582 = vmatprep.subr.bf16.mxu0 0
    %1583 = vmatpush1.bf16.xpose.msra.mxu0 0
    %1584 = vmatprep.subr.bf16.mxu0 0
    %1585 = vmatpush1.bf16.xpose.msra.mxu0 0
    %1586 = vmatprep.subr.bf16.mxu0 0
    %1587 = vmatpush1.bf16.xpose.msra.mxu0 0
    %1588 = vmatprep.subr.bf16.mxu0 0
    %1589 = vmatpush1.bf16.xpose.msra.mxu0 0
    %1590 = vmatprep.subr.bf16.mxu0 0
    %1591 = vmatpush1.bf16.xpose.msra.mxu0 0
    %1592 = vmatprep.subr.bf16.mxu0 0
    %1593 = vmatpush1.bf16.xpose.msra.mxu0 0
    %1594 = vmatprep.subr.bf16.mxu0 0
    %1595 = vmatpush1.bf16.xpose.msra.mxu0 0
    %1596 = vmatprep.subr.bf16.mxu0 0
    %1597 = vmatpush1.bf16.xpose.msra.mxu0 0
    %1598 = vmatprep.subr.bf16.mxu0 0
    %1599 = vmatpush1.bf16.xpose.msra.mxu0 0
    %1600 = vmatprep.subr.bf16.mxu0 0
    %1601 = vmatpush1.bf16.xpose.msra.mxu0 0
    %1602 = vmatprep.subr.bf16.mxu0 0
    %1603 = vmatpush1.bf16.xpose.msra.mxu0 0
    %1604 = vmatprep.subr.bf16.mxu0 0
    %1605 = vmatpush1.bf16.xpose.msra.mxu0 0
    %1606 = vmatprep.subr.bf16.mxu0 0
    %1607 = vmatpush1.bf16.xpose.msra.mxu0 0
    %1608 = vmatprep.mubr.bf16.mxu0 0
    %1609 = vmatmul.mubr.bf16.gmra.mrb[0].mxu0 %v1571
    %v1610 = vpop.f32.mrb[0].mxu0
    %v1611 = vadd.f32 %v423, %v1610
    %v1612 = vpop.f32.mrb[0].mxu0
    %v1613 = vpop.f32.mrb[0].mxu0
    %v1614 = vpop.f32.mrb[0].mxu0
    %1615 = vdwg.mxu0
    %1617 = vrot.lane.b32.xlu0 %v671, 120
    %v1618 = vpop.permute.xlu0 %1617
    %1619 = vrot.lane.b32.xlu0 %v679, 88
    %v1620 = vpop.permute.xlu0 %1619
    %v1622 = vsel %vm689, %v1618, 0
    %v1625 = vsel %vm689, %v1620, 0
    %1627 = vmatprep.subr.bf16.mxu0 0
    %1628 = vmatpush1.bf16.xpose.msra.mxu0 %v1625
    %1629 = vmatprep.subr.bf16.mxu0 0
    %1630 = vmatpush1.bf16.xpose.msra.mxu0 0
    %1631 = vmatprep.subr.bf16.mxu0 0
    %1632 = vmatpush1.bf16.xpose.msra.mxu0 0
    %1633 = vmatprep.subr.bf16.mxu0 0
    %1634 = vmatpush1.bf16.xpose.msra.mxu0 0
    %1635 = vmatprep.subr.bf16.mxu0 0
    %1636 = vmatpush1.bf16.xpose.msra.mxu0 0
    %1637 = vmatprep.subr.bf16.mxu0 0
    %1638 = vmatpush1.bf16.xpose.msra.mxu0 0
    %1639 = vmatprep.subr.bf16.mxu0 0
    %1640 = vmatpush1.bf16.xpose.msra.mxu0 0
    %1641 = vmatprep.subr.bf16.mxu0 0
    %1642 = vmatpush1.bf16.xpose.msra.mxu0 0
    %1643 = vmatprep.subr.bf16.mxu0 0
    %1644 = vmatpush1.bf16.xpose.msra.mxu0 0
    %1645 = vmatprep.subr.bf16.mxu0 0
    %1646 = vmatpush1.bf16.xpose.msra.mxu0 0
    %1647 = vmatprep.subr.bf16.mxu0 0
    %1648 = vmatpush1.bf16.xpose.msra.mxu0 0
    %1649 = vmatprep.subr.bf16.mxu0 0
    %1650 = vmatpush1.bf16.xpose.msra.mxu0 0
    %1651 = vmatprep.subr.bf16.mxu0 0
    %1652 = vmatpush1.bf16.xpose.msra.mxu0 0
    %1653 = vmatprep.subr.bf16.mxu0 0
    %1654 = vmatpush1.bf16.xpose.msra.mxu0 0
    %1655 = vmatprep.subr.bf16.mxu0 0
    %1656 = vmatpush1.bf16.xpose.msra.mxu0 0
    %1657 = vmatprep.subr.bf16.mxu0 0
    %1658 = vmatpush1.bf16.xpose.msra.mxu0 0
    %1659 = vmatprep.mubr.bf16.mxu0 0
    %1660 = vmatmul.mubr.bf16.gmra.mrb[0].mxu0 %v1622
    %v1661 = vpop.f32.mrb[0].mxu0
    %v1662 = vadd.f32 %v423, %v1661
    %v1663 = vpop.f32.mrb[0].mxu0
    %v1664 = vpop.f32.mrb[0].mxu0
    %v1665 = vpop.f32.mrb[0].mxu0
    %1666 = vdwg.mxu0
    %1668 = vrot.lane.b32.xlu0 %v672, 120
    %v1669 = vpop.permute.xlu0 %1668
    %1670 = vrot.lane.b32.xlu0 %v680, 88
    %v1671 = vpop.permute.xlu0 %1670
    %v1673 = vsel %vm689, %v1669, 0
    %v1676 = vsel %vm689, %v1671, 0
    %1678 = vmatprep.subr.bf16.mxu0 0
    %1679 = vmatpush1.bf16.xpose.msra.mxu0 %v1676
    %1680 = vmatprep.subr.bf16.mxu0 0
    %1681 = vmatpush1.bf16.xpose.msra.mxu0 0
    %1682 = vmatprep.subr.bf16.mxu0 0
    %1683 = vmatpush1.bf16.xpose.msra.mxu0 0
    %1684 = vmatprep.subr.bf16.mxu0 0
    %1685 = vmatpush1.bf16.xpose.msra.mxu0 0
    %1686 = vmatprep.subr.bf16.mxu0 0
    %1687 = vmatpush1.bf16.xpose.msra.mxu0 0
    %1688 = vmatprep.subr.bf16.mxu0 0
    %1689 = vmatpush1.bf16.xpose.msra.mxu0 0
    %1690 = vmatprep.subr.bf16.mxu0 0
    %1691 = vmatpush1.bf16.xpose.msra.mxu0 0
    %1692 = vmatprep.subr.bf16.mxu0 0
    %1693 = vmatpush1.bf16.xpose.msra.mxu0 0
    %1694 = vmatprep.subr.bf16.mxu0 0
    %1695 = vmatpush1.bf16.xpose.msra.mxu0 0
    %1696 = vmatprep.subr.bf16.mxu0 0
    %1697 = vmatpush1.bf16.xpose.msra.mxu0 0
    %1698 = vmatprep.subr.bf16.mxu0 0
    %1699 = vmatpush1.bf16.xpose.msra.mxu0 0
    %1700 = vmatprep.subr.bf16.mxu0 0
    %1701 = vmatpush1.bf16.xpose.msra.mxu0 0
    %1702 = vmatprep.subr.bf16.mxu0 0
    %1703 = vmatpush1.bf16.xpose.msra.mxu0 0
    %1704 = vmatprep.subr.bf16.mxu0 0
    %1705 = vmatpush1.bf16.xpose.msra.mxu0 0
    %1706 = vmatprep.subr.bf16.mxu0 0
    %1707 = vmatpush1.bf16.xpose.msra.mxu0 0
    %1708 = vmatprep.subr.bf16.mxu0 0
    %1709 = vmatpush1.bf16.xpose.msra.mxu0 0
    %1710 = vmatprep.mubr.bf16.mxu0 0
    %1711 = vmatmul.mubr.bf16.gmra.mrb[0].mxu0 %v1673
    %v1712 = vpop.f32.mrb[0].mxu0
    %v1713 = vadd.f32 %v423, %v1712
    %v1714 = vpop.f32.mrb[0].mxu0
    %v1715 = vpop.f32.mrb[0].mxu0
    %v1716 = vpop.f32.mrb[0].mxu0
    %1717 = vdwg.mxu0
    %1719 = vrot.lane.b32.xlu0 %v673, 120
    %v1720 = vpop.permute.xlu0 %1719
    %1721 = vrot.lane.b32.xlu0 %v681, 88
    %v1722 = vpop.permute.xlu0 %1721
    %v1724 = vsel %vm689, %v1720, 0
    %v1727 = vsel %vm689, %v1722, 0
    %1729 = vmatprep.subr.bf16.mxu0 0
    %1730 = vmatpush1.bf16.xpose.msra.mxu0 %v1727
    %1731 = vmatprep.subr.bf16.mxu0 0
    %1732 = vmatpush1.bf16.xpose.msra.mxu0 0
    %1733 = vmatprep.subr.bf16.mxu0 0
    %1734 = vmatpush1.bf16.xpose.msra.mxu0 0
    %1735 = vmatprep.subr.bf16.mxu0 0
    %1736 = vmatpush1.bf16.xpose.msra.mxu0 0
    %1737 = vmatprep.subr.bf16.mxu0 0
    %1738 = vmatpush1.bf16.xpose.msra.mxu0 0
    %1739 = vmatprep.subr.bf16.mxu0 0
    %1740 = vmatpush1.bf16.xpose.msra.mxu0 0
    %1741 = vmatprep.subr.bf16.mxu0 0
    %1742 = vmatpush1.bf16.xpose.msra.mxu0 0
    %1743 = vmatprep.subr.bf16.mxu0 0
    %1744 = vmatpush1.bf16.xpose.msra.mxu0 0
    %1745 = vmatprep.subr.bf16.mxu0 0
    %1746 = vmatpush1.bf16.xpose.msra.mxu0 0
    %1747 = vmatprep.subr.bf16.mxu0 0
    %1748 = vmatpush1.bf16.xpose.msra.mxu0 0
    %1749 = vmatprep.subr.bf16.mxu0 0
    %1750 = vmatpush1.bf16.xpose.msra.mxu0 0
    %1751 = vmatprep.subr.bf16.mxu0 0
    %1752 = vmatpush1.bf16.xpose.msra.mxu0 0
    %1753 = vmatprep.subr.bf16.mxu0 0
    %1754 = vmatpush1.bf16.xpose.msra.mxu0 0
    %1755 = vmatprep.subr.bf16.mxu0 0
    %1756 = vmatpush1.bf16.xpose.msra.mxu0 0
    %1757 = vmatprep.subr.bf16.mxu0 0
    %1758 = vmatpush1.bf16.xpose.msra.mxu0 0
    %1759 = vmatprep.subr.bf16.mxu0 0
    %1760 = vmatpush1.bf16.xpose.msra.mxu0 0
    %1761 = vmatprep.mubr.bf16.mxu0 0
    %1762 = vmatmul.mubr.bf16.gmra.mrb[0].mxu0 %v1724
    %v1763 = vpop.f32.mrb[0].mxu0
    %v1764 = vadd.f32 %v423, %v1763
    %v1765 = vpop.f32.mrb[0].mxu0
    %v1766 = vpop.f32.mrb[0].mxu0
    %v1767 = vpop.f32.mrb[0].mxu0
    %1768 = vdwg.mxu0
    %1770 = vrot.lane.b32.xlu0 %v674, 120
    %v1771 = vpop.permute.xlu0 %1770
    %1772 = vrot.lane.b32.xlu0 %v682, 88
    %v1773 = vpop.permute.xlu0 %1772
    %v1775 = vsel %vm689, %v1771, 0
    %v1778 = vsel %vm689, %v1773, 0
    %1780 = vmatprep.subr.bf16.mxu0 0
    %1781 = vmatpush1.bf16.xpose.msra.mxu0 %v1778
    %1782 = vmatprep.subr.bf16.mxu0 0
    %1783 = vmatpush1.bf16.xpose.msra.mxu0 0
    %1784 = vmatprep.subr.bf16.mxu0 0
    %1785 = vmatpush1.bf16.xpose.msra.mxu0 0
    %1786 = vmatprep.subr.bf16.mxu0 0
    %1787 = vmatpush1.bf16.xpose.msra.mxu0 0
    %1788 = vmatprep.subr.bf16.mxu0 0
    %1789 = vmatpush1.bf16.xpose.msra.mxu0 0
    %1790 = vmatprep.subr.bf16.mxu0 0
    %1791 = vmatpush1.bf16.xpose.msra.mxu0 0
    %1792 = vmatprep.subr.bf16.mxu0 0
    %1793 = vmatpush1.bf16.xpose.msra.mxu0 0
    %1794 = vmatprep.subr.bf16.mxu0 0
    %1795 = vmatpush1.bf16.xpose.msra.mxu0 0
    %1796 = vmatprep.subr.bf16.mxu0 0
    %1797 = vmatpush1.bf16.xpose.msra.mxu0 0
    %1798 = vmatprep.subr.bf16.mxu0 0
    %1799 = vmatpush1.bf16.xpose.msra.mxu0 0
    %1800 = vmatprep.subr.bf16.mxu0 0
    %1801 = vmatpush1.bf16.xpose.msra.mxu0 0
    %1802 = vmatprep.subr.bf16.mxu0 0
    %1803 = vmatpush1.bf16.xpose.msra.mxu0 0
    %1804 = vmatprep.subr.bf16.mxu0 0
    %1805 = vmatpush1.bf16.xpose.msra.mxu0 0
    %1806 = vmatprep.subr.bf16.mxu0 0
    %1807 = vmatpush1.bf16.xpose.msra.mxu0 0
    %1808 = vmatprep.subr.bf16.mxu0 0
    %1809 = vmatpush1.bf16.xpose.msra.mxu0 0
    %1810 = vmatprep.subr.bf16.mxu0 0
    %1811 = vmatpush1.bf16.xpose.msra.mxu0 0
    %1812 = vmatprep.mubr.bf16.mxu0 0
    %1813 = vmatmul.mubr.bf16.gmra.mrb[0].mxu0 %v1775
    %v1814 = vpop.f32.mrb[0].mxu0
    %v1815 = vadd.f32 %v423, %v1814
    %v1816 = vpop.f32.mrb[0].mxu0
    %v1817 = vpop.f32.mrb[0].mxu0
    %v1818 = vpop.f32.mrb[0].mxu0
    %1819 = vdwg.mxu0
    %1821 = vrot.lane.b32.xlu0 %v675, 120
    %v1822 = vpop.permute.xlu0 %1821
    %1823 = vrot.lane.b32.xlu0 %v683, 88
    %v1824 = vpop.permute.xlu0 %1823
    %v1826 = vsel %vm689, %v1822, 0
    %v1829 = vsel %vm689, %v1824, 0
    %1831 = vmatprep.subr.bf16.mxu0 0
    %1832 = vmatpush1.bf16.xpose.msra.mxu0 %v1829
    %1833 = vmatprep.subr.bf16.mxu0 0
    %1834 = vmatpush1.bf16.xpose.msra.mxu0 0
    %1835 = vmatprep.subr.bf16.mxu0 0
    %1836 = vmatpush1.bf16.xpose.msra.mxu0 0
    %1837 = vmatprep.subr.bf16.mxu0 0
    %1838 = vmatpush1.bf16.xpose.msra.mxu0 0
    %1839 = vmatprep.subr.bf16.mxu0 0
    %1840 = vmatpush1.bf16.xpose.msra.mxu0 0
    %1841 = vmatprep.subr.bf16.mxu0 0
    %1842 = vmatpush1.bf16.xpose.msra.mxu0 0
    %1843 = vmatprep.subr.bf16.mxu0 0
    %1844 = vmatpush1.bf16.xpose.msra.mxu0 0
    %1845 = vmatprep.subr.bf16.mxu0 0
    %1846 = vmatpush1.bf16.xpose.msra.mxu0 0
    %1847 = vmatprep.subr.bf16.mxu0 0
    %1848 = vmatpush1.bf16.xpose.msra.mxu0 0
    %1849 = vmatprep.subr.bf16.mxu0 0
    %1850 = vmatpush1.bf16.xpose.msra.mxu0 0
    %1851 = vmatprep.subr.bf16.mxu0 0
    %1852 = vmatpush1.bf16.xpose.msra.mxu0 0
    %1853 = vmatprep.subr.bf16.mxu0 0
    %1854 = vmatpush1.bf16.xpose.msra.mxu0 0
    %1855 = vmatprep.subr.bf16.mxu0 0
    %1856 = vmatpush1.bf16.xpose.msra.mxu0 0
    %1857 = vmatprep.subr.bf16.mxu0 0
    %1858 = vmatpush1.bf16.xpose.msra.mxu0 0
    %1859 = vmatprep.subr.bf16.mxu0 0
    %1860 = vmatpush1.bf16.xpose.msra.mxu0 0
    %1861 = vmatprep.subr.bf16.mxu0 0
    %1862 = vmatpush1.bf16.xpose.msra.mxu0 0
    %1863 = vmatprep.mubr.bf16.mxu0 0
    %1864 = vmatmul.mubr.bf16.gmra.mrb[0].mxu0 %v1826
    %v1865 = vpop.f32.mrb[0].mxu0
    %v1866 = vadd.f32 %v423, %v1865
    %v1867 = vpop.f32.mrb[0].mxu0
    %v1868 = vpop.f32.mrb[0].mxu0
    %v1869 = vpop.f32.mrb[0].mxu0
    %1870 = vdwg.mxu0
    %1872 = vrot.lane.b32.xlu0 %v676, 120
    %v1873 = vpop.permute.xlu0 %1872
    %1874 = vrot.lane.b32.xlu0 %v684, 88
    %v1875 = vpop.permute.xlu0 %1874
    %v1877 = vsel %vm689, %v1873, 0
    %v1880 = vsel %vm689, %v1875, 0
    %1882 = vmatprep.subr.bf16.mxu0 0
    %1883 = vmatpush1.bf16.xpose.msra.mxu0 %v1880
    %1884 = vmatprep.subr.bf16.mxu0 0
    %1885 = vmatpush1.bf16.xpose.msra.mxu0 0
    %1886 = vmatprep.subr.bf16.mxu0 0
    %1887 = vmatpush1.bf16.xpose.msra.mxu0 0
    %1888 = vmatprep.subr.bf16.mxu0 0
    %1889 = vmatpush1.bf16.xpose.msra.mxu0 0
    %1890 = vmatprep.subr.bf16.mxu0 0
    %1891 = vmatpush1.bf16.xpose.msra.mxu0 0
    %1892 = vmatprep.subr.bf16.mxu0 0
    %1893 = vmatpush1.bf16.xpose.msra.mxu0 0
    %1894 = vmatprep.subr.bf16.mxu0 0
    %1895 = vmatpush1.bf16.xpose.msra.mxu0 0
    %1896 = vmatprep.subr.bf16.mxu0 0
    %1897 = vmatpush1.bf16.xpose.msra.mxu0 0
    %1898 = vmatprep.subr.bf16.mxu0 0
    %1899 = vmatpush1.bf16.xpose.msra.mxu0 0
    %1900 = vmatprep.subr.bf16.mxu0 0
    %1901 = vmatpush1.bf16.xpose.msra.mxu0 0
    %1902 = vmatprep.subr.bf16.mxu0 0
    %1903 = vmatpush1.bf16.xpose.msra.mxu0 0
    %1904 = vmatprep.subr.bf16.mxu0 0
    %1905 = vmatpush1.bf16.xpose.msra.mxu0 0
    %1906 = vmatprep.subr.bf16.mxu0 0
    %1907 = vmatpush1.bf16.xpose.msra.mxu0 0
    %1908 = vmatprep.subr.bf16.mxu0 0
    %1909 = vmatpush1.bf16.xpose.msra.mxu0 0
    %1910 = vmatprep.subr.bf16.mxu0 0
    %1911 = vmatpush1.bf16.xpose.msra.mxu0 0
    %1912 = vmatprep.subr.bf16.mxu0 0
    %1913 = vmatpush1.bf16.xpose.msra.mxu0 0
    %1914 = vmatprep.mubr.bf16.mxu0 0
    %1915 = vmatmul.mubr.bf16.gmra.mrb[0].mxu0 %v1877
    %v1916 = vpop.f32.mrb[0].mxu0
    %v1917 = vadd.f32 %v423, %v1916
    %v1918 = vpop.f32.mrb[0].mxu0
    %v1919 = vpop.f32.mrb[0].mxu0
    %v1920 = vpop.f32.mrb[0].mxu0
    %1921 = vdwg.mxu0
    %1923 = vrot.lane.b32.xlu0 %v677, 120
    %v1924 = vpop.permute.xlu0 %1923
    %1925 = vrot.lane.b32.xlu0 %v685, 88
    %v1926 = vpop.permute.xlu0 %1925
    %v1928 = vsel %vm689, %v1924, 0
    %v1931 = vsel %vm689, %v1926, 0
    %1933 = vmatprep.subr.bf16.mxu0 0
    %1934 = vmatpush1.bf16.xpose.msra.mxu0 %v1931
    %1935 = vmatprep.subr.bf16.mxu0 0
    %1936 = vmatpush1.bf16.xpose.msra.mxu0 0
    %1937 = vmatprep.subr.bf16.mxu0 0
    %1938 = vmatpush1.bf16.xpose.msra.mxu0 0
    %1939 = vmatprep.subr.bf16.mxu0 0
    %1940 = vmatpush1.bf16.xpose.msra.mxu0 0
    %1941 = vmatprep.subr.bf16.mxu0 0
    %1942 = vmatpush1.bf16.xpose.msra.mxu0 0
    %1943 = vmatprep.subr.bf16.mxu0 0
    %1944 = vmatpush1.bf16.xpose.msra.mxu0 0
    %1945 = vmatprep.subr.bf16.mxu0 0
    %1946 = vmatpush1.bf16.xpose.msra.mxu0 0
    %1947 = vmatprep.subr.bf16.mxu0 0
    %1948 = vmatpush1.bf16.xpose.msra.mxu0 0
    %1949 = vmatprep.subr.bf16.mxu0 0
    %1950 = vmatpush1.bf16.xpose.msra.mxu0 0
    %1951 = vmatprep.subr.bf16.mxu0 0
    %1952 = vmatpush1.bf16.xpose.msra.mxu0 0
    %1953 = vmatprep.subr.bf16.mxu0 0
    %1954 = vmatpush1.bf16.xpose.msra.mxu0 0
    %1955 = vmatprep.subr.bf16.mxu0 0
    %1956 = vmatpush1.bf16.xpose.msra.mxu0 0
    %1957 = vmatprep.subr.bf16.mxu0 0
    %1958 = vmatpush1.bf16.xpose.msra.mxu0 0
    %1959 = vmatprep.subr.bf16.mxu0 0
    %1960 = vmatpush1.bf16.xpose.msra.mxu0 0
    %1961 = vmatprep.subr.bf16.mxu0 0
    %1962 = vmatpush1.bf16.xpose.msra.mxu0 0
    %1963 = vmatprep.subr.bf16.mxu0 0
    %1964 = vmatpush1.bf16.xpose.msra.mxu0 0
    %1965 = vmatprep.mubr.bf16.mxu0 0
    %1966 = vmatmul.mubr.bf16.gmra.mrb[0].mxu0 %v1928
    %v1967 = vpop.f32.mrb[0].mxu0
    %v1968 = vadd.f32 %v423, %v1967
    %v1969 = vpop.f32.mrb[0].mxu0
    %v1970 = vpop.f32.mrb[0].mxu0
    %v1971 = vpop.f32.mrb[0].mxu0
    %1972 = vdwg.mxu0
    %v1973 = vsel %vm689, %v1611, -inf
    %1974 = vmax.xlane.f32.xlu0 %v1973
    %v1975 = vpop.xlane.xlu0 %1974
    %v1976 = vsel %vm689, %v1662, -inf
    %1977 = vmax.xlane.f32.xlu0 %v1976
    %v1978 = vpop.xlane.xlu0 %1977
    %v1979 = vsel %vm689, %v1713, -inf
    %1980 = vmax.xlane.f32.xlu0 %v1979
    %v1981 = vpop.xlane.xlu0 %1980
    %v1982 = vsel %vm689, %v1764, -inf
    %1983 = vmax.xlane.f32.xlu0 %v1982
    %v1984 = vpop.xlane.xlu0 %1983
    %v1985 = vsel %vm689, %v1815, -inf
    %1986 = vmax.xlane.f32.xlu0 %v1985
    %v1987 = vpop.xlane.xlu0 %1986
    %v1988 = vsel %vm689, %v1866, -inf
    %1989 = vmax.xlane.f32.xlu0 %v1988
    %v1990 = vpop.xlane.xlu0 %1989
    %v1991 = vsel %vm689, %v1917, -inf
    %1992 = vmax.xlane.f32.xlu0 %v1991
    %v1993 = vpop.xlane.xlu0 %1992
    %v1994 = vsel %vm689, %v1968, -inf
    %1995 = vmax.xlane.f32.xlu0 %v1994
    %v1996 = vpop.xlane.xlu0 %1995
    %v1997 = vsub.f32 %v1611, %v1975
    %v1998 = vsub.f32 %v1662, %v1978
    %v1999 = vsub.f32 %v1713, %v1981
    %v2000 = vsub.f32 %v1764, %v1984
    %v2001 = vsub.f32 %v1815, %v1987
    %v2002 = vsub.f32 %v1866, %v1990
    %v2003 = vsub.f32 %v1917, %v1993
    %v2004 = vsub.f32 %v1968, %v1996
    %v2005 = vmul.f32 %v1997, 1.442695
    %v2006 = vpow.pop %v2005
    %v2007 = vmul.f32 %v1998, 1.442695
    %v2008 = vpow.pop %v2007
    %v2009 = vmul.f32 %v1999, 1.442695
    %v2010 = vpow.pop %v2009
    %v2011 = vmul.f32 %v2000, 1.442695
    %v2012 = vpow.pop %v2011
    %v2013 = vmul.f32 %v2001, 1.442695
    %v2014 = vpow.pop %v2013
    %v2015 = vmul.f32 %v2002, 1.442695
    %v2016 = vpow.pop %v2015
    %v2017 = vmul.f32 %v2003, 1.442695
    %v2018 = vpow.pop %v2017
    %v2019 = vmul.f32 %v2004, 1.442695
    %v2020 = vpow.pop %v2019
    %v2021 = vsel %vm689, %v2006, 0.0
    %2022 = vadd.xlane.f32.xlu0 %v2021
    %v2023 = vpop.xlane.xlu0 %2022
    %v2024 = vsel %vm689, %v2008, 0.0
    %2025 = vadd.xlane.f32.xlu0 %v2024
    %v2026 = vpop.xlane.xlu0 %2025
    %v2027 = vsel %vm689, %v2010, 0.0
    %2028 = vadd.xlane.f32.xlu0 %v2027
    %v2029 = vpop.xlane.xlu0 %2028
    %v2030 = vsel %vm689, %v2012, 0.0
    %2031 = vadd.xlane.f32.xlu0 %v2030
    %v2032 = vpop.xlane.xlu0 %2031
    %v2033 = vsel %vm689, %v2014, 0.0
    %2034 = vadd.xlane.f32.xlu0 %v2033
    %v2035 = vpop.xlane.xlu0 %2034
    %v2036 = vsel %vm689, %v2016, 0.0
    %2037 = vadd.xlane.f32.xlu0 %v2036
    %v2038 = vpop.xlane.xlu0 %2037
    %v2039 = vsel %vm689, %v2018, 0.0
    %2040 = vadd.xlane.f32.xlu0 %v2039
    %v2041 = vpop.xlane.xlu0 %2040
    %v2042 = vsel %vm689, %v2020, 0.0
    %2043 = vadd.xlane.f32.xlu0 %v2042
    %v2044 = vpop.xlane.xlu0 %2043
    %v2045 = vrcp.pop %v2023
    %v2046 = vrcp.pop %v2026
    %v2047 = vrcp.pop %v2029
    %v2048 = vrcp.pop %v2032
    %v2049 = vrcp.pop %v2035
    %v2050 = vrcp.pop %v2038
    %v2051 = vrcp.pop %v2041
    %v2052 = vrcp.pop %v2044
    %v2053 = vmul.f32 %v2006, %v2045
    %v2054 = vmul.f32 %v2008, %v2046
    %v2055 = vmul.f32 %v2010, %v2047
    %v2056 = vmul.f32 %v2012, %v2048
    %v2057 = vmul.f32 %v2014, %v2049
    %v2058 = vmul.f32 %v2016, %v2050
    %v2059 = vmul.f32 %v2018, %v2051
    %v2060 = vmul.f32 %v2020, %v2052
    %v2061 = vpack.c.bf16 %v2053, %v2053
    %v2062 = vpack.c.bf16 %v2054, %v2054
    %v2063 = vpack.c.bf16 %v2055, %v2055
    %v2064 = vpack.c.bf16 %v2056, %v2056
    %v2065 = vpack.c.bf16 %v2057, %v2057
    %v2066 = vpack.c.bf16 %v2058, %v2058
    %v2067 = vpack.c.bf16 %v2059, %v2059
    %v2068 = vpack.c.bf16 %v2060, %v2060
    %2069 = vrot.lane.b32.xlu0 %v678, 56
    %v2070 = vpop.permute.xlu0 %2069
    %v2072 = vsel %vm689, %v2061, 0
    %v2075 = vsel %vm1180, %v2070, 0
    %2077 = vmatprep.subr.bf16.mxu0 0
    %2078 = vmatpush1.bf16.msra.mxu0 %v2075
    %2079 = vmatprep.subr.bf16.mxu0 0
    %2080 = vmatpush1.bf16.msra.mxu0 0
    %2081 = vmatprep.subr.bf16.mxu0 0
    %2082 = vmatpush1.bf16.msra.mxu0 0
    %2083 = vmatprep.subr.bf16.mxu0 0
    %2084 = vmatpush1.bf16.msra.mxu0 0
    %2085 = vmatprep.subr.bf16.mxu0 0
    %2086 = vmatpush1.bf16.msra.mxu0 0
    %2087 = vmatprep.subr.bf16.mxu0 0
    %2088 = vmatpush1.bf16.msra.mxu0 0
    %2089 = vmatprep.subr.bf16.mxu0 0
    %2090 = vmatpush1.bf16.msra.mxu0 0
    %2091 = vmatprep.subr.bf16.mxu0 0
    %2092 = vmatpush1.bf16.msra.mxu0 0
    %2093 = vmatprep.subr.bf16.mxu0 0
    %2094 = vmatpush1.bf16.msra.mxu0 0
    %2095 = vmatprep.subr.bf16.mxu0 0
    %2096 = vmatpush1.bf16.msra.mxu0 0
    %2097 = vmatprep.subr.bf16.mxu0 0
    %2098 = vmatpush1.bf16.msra.mxu0 0
    %2099 = vmatprep.subr.bf16.mxu0 0
    %2100 = vmatpush1.bf16.msra.mxu0 0
    %2101 = vmatprep.subr.bf16.mxu0 0
    %2102 = vmatpush1.bf16.msra.mxu0 0
    %2103 = vmatprep.subr.bf16.mxu0 0
    %2104 = vmatpush1.bf16.msra.mxu0 0
    %2105 = vmatprep.subr.bf16.mxu0 0
    %2106 = vmatpush1.bf16.msra.mxu0 0
    %2107 = vmatprep.subr.bf16.mxu0 0
    %2108 = vmatpush1.bf16.msra.mxu0 0
    %2109 = vmatprep.mubr.bf16.mxu0 0
    %2110 = vmatmul.mubr.bf16.gmra.mrb[0].mxu0 %v2072
    %v2111 = vpop.f32.mrb[0].mxu0
    %v2112 = vadd.f32 0.0, %v2111
    %v2113 = vpop.f32.mrb[0].mxu0
    %v2114 = vpop.f32.mrb[0].mxu0
    %v2115 = vpop.f32.mrb[0].mxu0
    %2116 = vdwg.mxu0
    %2117 = vrot.lane.b32.xlu0 %v679, 56
    %v2118 = vpop.permute.xlu0 %2117
    %v2120 = vsel %vm689, %v2062, 0
    %v2123 = vsel %vm1180, %v2118, 0
    %2125 = vmatprep.subr.bf16.mxu0 0
    %2126 = vmatpush1.bf16.msra.mxu0 %v2123
    %2127 = vmatprep.subr.bf16.mxu0 0
    %2128 = vmatpush1.bf16.msra.mxu0 0
    %2129 = vmatprep.subr.bf16.mxu0 0
    %2130 = vmatpush1.bf16.msra.mxu0 0
    %2131 = vmatprep.subr.bf16.mxu0 0
    %2132 = vmatpush1.bf16.msra.mxu0 0
    %2133 = vmatprep.subr.bf16.mxu0 0
    %2134 = vmatpush1.bf16.msra.mxu0 0
    %2135 = vmatprep.subr.bf16.mxu0 0
    %2136 = vmatpush1.bf16.msra.mxu0 0
    %2137 = vmatprep.subr.bf16.mxu0 0
    %2138 = vmatpush1.bf16.msra.mxu0 0
    %2139 = vmatprep.subr.bf16.mxu0 0
    %2140 = vmatpush1.bf16.msra.mxu0 0
    %2141 = vmatprep.subr.bf16.mxu0 0
    %2142 = vmatpush1.bf16.msra.mxu0 0
    %2143 = vmatprep.subr.bf16.mxu0 0
    %2144 = vmatpush1.bf16.msra.mxu0 0
    %2145 = vmatprep.subr.bf16.mxu0 0
    %2146 = vmatpush1.bf16.msra.mxu0 0
    %2147 = vmatprep.subr.bf16.mxu0 0
    %2148 = vmatpush1.bf16.msra.mxu0 0
    %2149 = vmatprep.subr.bf16.mxu0 0
    %2150 = vmatpush1.bf16.msra.mxu0 0
    %2151 = vmatprep.subr.bf16.mxu0 0
    %2152 = vmatpush1.bf16.msra.mxu0 0
    %2153 = vmatprep.subr.bf16.mxu0 0
    %2154 = vmatpush1.bf16.msra.mxu0 0
    %2155 = vmatprep.subr.bf16.mxu0 0
    %2156 = vmatpush1.bf16.msra.mxu0 0
    %2157 = vmatprep.mubr.bf16.mxu0 0
    %2158 = vmatmul.mubr.bf16.gmra.mrb[0].mxu0 %v2120
    %v2159 = vpop.f32.mrb[0].mxu0
    %v2160 = vadd.f32 0.0, %v2159
    %v2161 = vpop.f32.mrb[0].mxu0
    %v2162 = vpop.f32.mrb[0].mxu0
    %v2163 = vpop.f32.mrb[0].mxu0
    %2164 = vdwg.mxu0
    %2165 = vrot.lane.b32.xlu0 %v680, 56
    %v2166 = vpop.permute.xlu0 %2165
    %v2168 = vsel %vm689, %v2063, 0
    %v2171 = vsel %vm1180, %v2166, 0
    %2173 = vmatprep.subr.bf16.mxu0 0
    %2174 = vmatpush1.bf16.msra.mxu0 %v2171
    %2175 = vmatprep.subr.bf16.mxu0 0
    %2176 = vmatpush1.bf16.msra.mxu0 0
    %2177 = vmatprep.subr.bf16.mxu0 0
    %2178 = vmatpush1.bf16.msra.mxu0 0
    %2179 = vmatprep.subr.bf16.mxu0 0
    %2180 = vmatpush1.bf16.msra.mxu0 0
    %2181 = vmatprep.subr.bf16.mxu0 0
    %2182 = vmatpush1.bf16.msra.mxu0 0
    %2183 = vmatprep.subr.bf16.mxu0 0
    %2184 = vmatpush1.bf16.msra.mxu0 0
    %2185 = vmatprep.subr.bf16.mxu0 0
    %2186 = vmatpush1.bf16.msra.mxu0 0
    %2187 = vmatprep.subr.bf16.mxu0 0
    %2188 = vmatpush1.bf16.msra.mxu0 0
    %2189 = vmatprep.subr.bf16.mxu0 0
    %2190 = vmatpush1.bf16.msra.mxu0 0
    %2191 = vmatprep.subr.bf16.mxu0 0
    %2192 = vmatpush1.bf16.msra.mxu0 0
    %2193 = vmatprep.subr.bf16.mxu0 0
    %2194 = vmatpush1.bf16.msra.mxu0 0
    %2195 = vmatprep.subr.bf16.mxu0 0
    %2196 = vmatpush1.bf16.msra.mxu0 0
    %2197 = vmatprep.subr.bf16.mxu0 0
    %2198 = vmatpush1.bf16.msra.mxu0 0
    %2199 = vmatprep.subr.bf16.mxu0 0
    %2200 = vmatpush1.bf16.msra.mxu0 0
    %2201 = vmatprep.subr.bf16.mxu0 0
    %2202 = vmatpush1.bf16.msra.mxu0 0
    %2203 = vmatprep.subr.bf16.mxu0 0
    %2204 = vmatpush1.bf16.msra.mxu0 0
    %2205 = vmatprep.mubr.bf16.mxu0 0
    %2206 = vmatmul.mubr.bf16.gmra.mrb[0].mxu0 %v2168
    %v2207 = vpop.f32.mrb[0].mxu0
    %v2208 = vadd.f32 0.0, %v2207
    %v2209 = vpop.f32.mrb[0].mxu0
    %v2210 = vpop.f32.mrb[0].mxu0
    %v2211 = vpop.f32.mrb[0].mxu0
    %2212 = vdwg.mxu0
    %2213 = vrot.lane.b32.xlu0 %v681, 56
    %v2214 = vpop.permute.xlu0 %2213
    %v2216 = vsel %vm689, %v2064, 0
    %v2219 = vsel %vm1180, %v2214, 0
    %2221 = vmatprep.subr.bf16.mxu0 0
    %2222 = vmatpush1.bf16.msra.mxu0 %v2219
    %2223 = vmatprep.subr.bf16.mxu0 0
    %2224 = vmatpush1.bf16.msra.mxu0 0
    %2225 = vmatprep.subr.bf16.mxu0 0
    %2226 = vmatpush1.bf16.msra.mxu0 0
    %2227 = vmatprep.subr.bf16.mxu0 0
    %2228 = vmatpush1.bf16.msra.mxu0 0
    %2229 = vmatprep.subr.bf16.mxu0 0
    %2230 = vmatpush1.bf16.msra.mxu0 0
    %2231 = vmatprep.subr.bf16.mxu0 0
    %2232 = vmatpush1.bf16.msra.mxu0 0
    %2233 = vmatprep.subr.bf16.mxu0 0
    %2234 = vmatpush1.bf16.msra.mxu0 0
    %2235 = vmatprep.subr.bf16.mxu0 0
    %2236 = vmatpush1.bf16.msra.mxu0 0
    %2237 = vmatprep.subr.bf16.mxu0 0
    %2238 = vmatpush1.bf16.msra.mxu0 0
    %2239 = vmatprep.subr.bf16.mxu0 0
    %2240 = vmatpush1.bf16.msra.mxu0 0
    %2241 = vmatprep.subr.bf16.mxu0 0
    %2242 = vmatpush1.bf16.msra.mxu0 0
    %2243 = vmatprep.subr.bf16.mxu0 0
    %2244 = vmatpush1.bf16.msra.mxu0 0
    %2245 = vmatprep.subr.bf16.mxu0 0
    %2246 = vmatpush1.bf16.msra.mxu0 0
    %2247 = vmatprep.subr.bf16.mxu0 0
    %2248 = vmatpush1.bf16.msra.mxu0 0
    %2249 = vmatprep.subr.bf16.mxu0 0
    %2250 = vmatpush1.bf16.msra.mxu0 0
    %2251 = vmatprep.subr.bf16.mxu0 0
    %2252 = vmatpush1.bf16.msra.mxu0 0
    %2253 = vmatprep.mubr.bf16.mxu0 0
    %2254 = vmatmul.mubr.bf16.gmra.mrb[0].mxu0 %v2216
    %v2255 = vpop.f32.mrb[0].mxu0
    %v2256 = vadd.f32 0.0, %v2255
    %v2257 = vpop.f32.mrb[0].mxu0
    %v2258 = vpop.f32.mrb[0].mxu0
    %v2259 = vpop.f32.mrb[0].mxu0
    %2260 = vdwg.mxu0
    %2261 = vrot.lane.b32.xlu0 %v682, 56
    %v2262 = vpop.permute.xlu0 %2261
    %v2264 = vsel %vm689, %v2065, 0
    %v2267 = vsel %vm1180, %v2262, 0
    %2269 = vmatprep.subr.bf16.mxu0 0
    %2270 = vmatpush1.bf16.msra.mxu0 %v2267
    %2271 = vmatprep.subr.bf16.mxu0 0
    %2272 = vmatpush1.bf16.msra.mxu0 0
    %2273 = vmatprep.subr.bf16.mxu0 0
    %2274 = vmatpush1.bf16.msra.mxu0 0
    %2275 = vmatprep.subr.bf16.mxu0 0
    %2276 = vmatpush1.bf16.msra.mxu0 0
    %2277 = vmatprep.subr.bf16.mxu0 0
    %2278 = vmatpush1.bf16.msra.mxu0 0
    %2279 = vmatprep.subr.bf16.mxu0 0
    %2280 = vmatpush1.bf16.msra.mxu0 0
    %2281 = vmatprep.subr.bf16.mxu0 0
    %2282 = vmatpush1.bf16.msra.mxu0 0
    %2283 = vmatprep.subr.bf16.mxu0 0
    %2284 = vmatpush1.bf16.msra.mxu0 0
    %2285 = vmatprep.subr.bf16.mxu0 0
    %2286 = vmatpush1.bf16.msra.mxu0 0
    %2287 = vmatprep.subr.bf16.mxu0 0
    %2288 = vmatpush1.bf16.msra.mxu0 0
    %2289 = vmatprep.subr.bf16.mxu0 0
    %2290 = vmatpush1.bf16.msra.mxu0 0
    %2291 = vmatprep.subr.bf16.mxu0 0
    %2292 = vmatpush1.bf16.msra.mxu0 0
    %2293 = vmatprep.subr.bf16.mxu0 0
    %2294 = vmatpush1.bf16.msra.mxu0 0
    %2295 = vmatprep.subr.bf16.mxu0 0
    %2296 = vmatpush1.bf16.msra.mxu0 0
    %2297 = vmatprep.subr.bf16.mxu0 0
    %2298 = vmatpush1.bf16.msra.mxu0 0
    %2299 = vmatprep.subr.bf16.mxu0 0
    %2300 = vmatpush1.bf16.msra.mxu0 0
    %2301 = vmatprep.mubr.bf16.mxu0 0
    %2302 = vmatmul.mubr.bf16.gmra.mrb[0].mxu0 %v2264
    %v2303 = vpop.f32.mrb[0].mxu0
    %v2304 = vadd.f32 0.0, %v2303
    %v2305 = vpop.f32.mrb[0].mxu0
    %v2306 = vpop.f32.mrb[0].mxu0
    %v2307 = vpop.f32.mrb[0].mxu0
    %2308 = vdwg.mxu0
    %2309 = vrot.lane.b32.xlu0 %v683, 56
    %v2310 = vpop.permute.xlu0 %2309
    %v2312 = vsel %vm689, %v2066, 0
    %v2315 = vsel %vm1180, %v2310, 0
    %2317 = vmatprep.subr.bf16.mxu0 0
    %2318 = vmatpush1.bf16.msra.mxu0 %v2315
    %2319 = vmatprep.subr.bf16.mxu0 0
    %2320 = vmatpush1.bf16.msra.mxu0 0
    %2321 = vmatprep.subr.bf16.mxu0 0
    %2322 = vmatpush1.bf16.msra.mxu0 0
    %2323 = vmatprep.subr.bf16.mxu0 0
    %2324 = vmatpush1.bf16.msra.mxu0 0
    %2325 = vmatprep.subr.bf16.mxu0 0
    %2326 = vmatpush1.bf16.msra.mxu0 0
    %2327 = vmatprep.subr.bf16.mxu0 0
    %2328 = vmatpush1.bf16.msra.mxu0 0
    %2329 = vmatprep.subr.bf16.mxu0 0
    %2330 = vmatpush1.bf16.msra.mxu0 0
    %2331 = vmatprep.subr.bf16.mxu0 0
    %2332 = vmatpush1.bf16.msra.mxu0 0
    %2333 = vmatprep.subr.bf16.mxu0 0
    %2334 = vmatpush1.bf16.msra.mxu0 0
    %2335 = vmatprep.subr.bf16.mxu0 0
    %2336 = vmatpush1.bf16.msra.mxu0 0
    %2337 = vmatprep.subr.bf16.mxu0 0
    %2338 = vmatpush1.bf16.msra.mxu0 0
    %2339 = vmatprep.subr.bf16.mxu0 0
    %2340 = vmatpush1.bf16.msra.mxu0 0
    %2341 = vmatprep.subr.bf16.mxu0 0
    %2342 = vmatpush1.bf16.msra.mxu0 0
    %2343 = vmatprep.subr.bf16.mxu0 0
    %2344 = vmatpush1.bf16.msra.mxu0 0
    %2345 = vmatprep.subr.bf16.mxu0 0
    %2346 = vmatpush1.bf16.msra.mxu0 0
    %2347 = vmatprep.subr.bf16.mxu0 0
    %2348 = vmatpush1.bf16.msra.mxu0 0
    %2349 = vmatprep.mubr.bf16.mxu0 0
    %2350 = vmatmul.mubr.bf16.gmra.mrb[0].mxu0 %v2312
    %v2351 = vpop.f32.mrb[0].mxu0
    %v2352 = vadd.f32 0.0, %v2351
    %v2353 = vpop.f32.mrb[0].mxu0
    %v2354 = vpop.f32.mrb[0].mxu0
    %v2355 = vpop.f32.mrb[0].mxu0
    %2356 = vdwg.mxu0
    %2357 = vrot.lane.b32.xlu0 %v684, 56
    %v2358 = vpop.permute.xlu0 %2357
    %v2360 = vsel %vm689, %v2067, 0
    %v2363 = vsel %vm1180, %v2358, 0
    %2365 = vmatprep.subr.bf16.mxu0 0
    %2366 = vmatpush1.bf16.msra.mxu0 %v2363
    %2367 = vmatprep.subr.bf16.mxu0 0
    %2368 = vmatpush1.bf16.msra.mxu0 0
    %2369 = vmatprep.subr.bf16.mxu0 0
    %2370 = vmatpush1.bf16.msra.mxu0 0
    %2371 = vmatprep.subr.bf16.mxu0 0
    %2372 = vmatpush1.bf16.msra.mxu0 0
    %2373 = vmatprep.subr.bf16.mxu0 0
    %2374 = vmatpush1.bf16.msra.mxu0 0
    %2375 = vmatprep.subr.bf16.mxu0 0
    %2376 = vmatpush1.bf16.msra.mxu0 0
    %2377 = vmatprep.subr.bf16.mxu0 0
    %2378 = vmatpush1.bf16.msra.mxu0 0
    %2379 = vmatprep.subr.bf16.mxu0 0
    %2380 = vmatpush1.bf16.msra.mxu0 0
    %2381 = vmatprep.subr.bf16.mxu0 0
    %2382 = vmatpush1.bf16.msra.mxu0 0
    %2383 = vmatprep.subr.bf16.mxu0 0
    %2384 = vmatpush1.bf16.msra.mxu0 0
    %2385 = vmatprep.subr.bf16.mxu0 0
    %2386 = vmatpush1.bf16.msra.mxu0 0
    %2387 = vmatprep.subr.bf16.mxu0 0
    %2388 = vmatpush1.bf16.msra.mxu0 0
    %2389 = vmatprep.subr.bf16.mxu0 0
    %2390 = vmatpush1.bf16.msra.mxu0 0
    %2391 = vmatprep.subr.bf16.mxu0 0
    %2392 = vmatpush1.bf16.msra.mxu0 0
    %2393 = vmatprep.subr.bf16.mxu0 0
    %2394 = vmatpush1.bf16.msra.mxu0 0
    %2395 = vmatprep.subr.bf16.mxu0 0
    %2396 = vmatpush1.bf16.msra.mxu0 0
    %2397 = vmatprep.mubr.bf16.mxu0 0
    %2398 = vmatmul.mubr.bf16.gmra.mrb[0].mxu0 %v2360
    %v2399 = vpop.f32.mrb[0].mxu0
    %v2400 = vadd.f32 0.0, %v2399
    %v2401 = vpop.f32.mrb[0].mxu0
    %v2402 = vpop.f32.mrb[0].mxu0
    %v2403 = vpop.f32.mrb[0].mxu0
    %2404 = vdwg.mxu0
    %2405 = vrot.lane.b32.xlu0 %v685, 56
    %v2406 = vpop.permute.xlu0 %2405
    %v2408 = vsel %vm689, %v2068, 0
    %v2411 = vsel %vm1180, %v2406, 0
    %2413 = vmatprep.subr.bf16.mxu0 0
    %2414 = vmatpush1.bf16.msra.mxu0 %v2411
    %2415 = vmatprep.subr.bf16.mxu0 0
    %2416 = vmatpush1.bf16.msra.mxu0 0
    %2417 = vmatprep.subr.bf16.mxu0 0
    %2418 = vmatpush1.bf16.msra.mxu0 0
    %2419 = vmatprep.subr.bf16.mxu0 0
    %2420 = vmatpush1.bf16.msra.mxu0 0
    %2421 = vmatprep.subr.bf16.mxu0 0
    %2422 = vmatpush1.bf16.msra.mxu0 0
    %2423 = vmatprep.subr.bf16.mxu0 0
    %2424 = vmatpush1.bf16.msra.mxu0 0
    %2425 = vmatprep.subr.bf16.mxu0 0
    %2426 = vmatpush1.bf16.msra.mxu0 0
    %2427 = vmatprep.subr.bf16.mxu0 0
    %2428 = vmatpush1.bf16.msra.mxu0 0
    %2429 = vmatprep.subr.bf16.mxu0 0
    %2430 = vmatpush1.bf16.msra.mxu0 0
    %2431 = vmatprep.subr.bf16.mxu0 0
    %2432 = vmatpush1.bf16.msra.mxu0 0
    %2433 = vmatprep.subr.bf16.mxu0 0
    %2434 = vmatpush1.bf16.msra.mxu0 0
    %2435 = vmatprep.subr.bf16.mxu0 0
    %2436 = vmatpush1.bf16.msra.mxu0 0
    %2437 = vmatprep.subr.bf16.mxu0 0
    %2438 = vmatpush1.bf16.msra.mxu0 0
    %2439 = vmatprep.subr.bf16.mxu0 0
    %2440 = vmatpush1.bf16.msra.mxu0 0
    %2441 = vmatprep.subr.bf16.mxu0 0
    %2442 = vmatpush1.bf16.msra.mxu0 0
    %2443 = vmatprep.subr.bf16.mxu0 0
    %2444 = vmatpush1.bf16.msra.mxu0 0
    %2445 = vmatprep.mubr.bf16.mxu0 0
    %2446 = vmatmul.mubr.bf16.gmra.mrb[0].mxu0 %v2408
    %v2447 = vpop.f32.mrb[0].mxu0
    %v2448 = vadd.f32 0.0, %v2447
    %v2449 = vpop.f32.mrb[0].mxu0
    %v2450 = vpop.f32.mrb[0].mxu0
    %v2451 = vpop.f32.mrb[0].mxu0
    %2452 = vdwg.mxu0
    %v2453 = vpack.c.bf16 %v2160, %v2112
    %v2454 = vpack.c.bf16 %v2256, %v2208
    %v2455 = vpack.c.bf16 %v2352, %v2304
    %v2456 = vpack.c.bf16 %v2448, %v2400
    %v2457 = vld [vmem:[%s9 + $0x4] sm:$0xf]
    %v2459 = vsel %vm689, %v2453, 0
    %v2462 = vsel %vm689, %v2454, 0
    %v2465 = vsel %vm689, %v2455, 0
    %v2468 = vsel %vm689, %v2456, 0
    %v2471 = vsel %vm1180, %v2457, 0
    %2473 = vmatprep.subr.bf16.mxu0 0
    %2474 = vmatpush1.bf16.msra.mxu0 %v2471
    %2475 = vmatprep.subr.bf16.mxu0 0
    %2476 = vmatpush1.bf16.msra.mxu0 0
    %2477 = vmatprep.subr.bf16.mxu0 0
    %2478 = vmatpush1.bf16.msra.mxu0 0
    %2479 = vmatprep.subr.bf16.mxu0 0
    %2480 = vmatpush1.bf16.msra.mxu0 0
    %2481 = vmatprep.subr.bf16.mxu0 0
    %2482 = vmatpush1.bf16.msra.mxu0 0
    %2483 = vmatprep.subr.bf16.mxu0 0
    %2484 = vmatpush1.bf16.msra.mxu0 0
    %2485 = vmatprep.subr.bf16.mxu0 0
    %2486 = vmatpush1.bf16.msra.mxu0 0
    %2487 = vmatprep.subr.bf16.mxu0 0
    %2488 = vmatpush1.bf16.msra.mxu0 0
    %2489 = vmatprep.subr.bf16.mxu0 0
    %2490 = vmatpush1.bf16.msra.mxu0 0
    %2491 = vmatprep.subr.bf16.mxu0 0
    %2492 = vmatpush1.bf16.msra.mxu0 0
    %2493 = vmatprep.subr.bf16.mxu0 0
    %2494 = vmatpush1.bf16.msra.mxu0 0
    %2495 = vmatprep.subr.bf16.mxu0 0
    %2496 = vmatpush1.bf16.msra.mxu0 0
    %2497 = vmatprep.subr.bf16.mxu0 0
    %2498 = vmatpush1.bf16.msra.mxu0 0
    %2499 = vmatprep.subr.bf16.mxu0 0
    %2500 = vmatpush1.bf16.msra.mxu0 0
    %2501 = vmatprep.subr.bf16.mxu0 0
    %2502 = vmatpush1.bf16.msra.mxu0 0
    %2503 = vmatprep.subr.bf16.mxu0 0
    %2504 = vmatpush1.bf16.msra.mxu0 0
    %2505 = vmatprep.mubr.bf16.mxu0 0
    %2506 = vmatmul.mubr.bf16.gmra.mrb[0].mxu0 %v2459
    %v2507 = vpop.f32.mrb[0].mxu0
    %v2508 = vadd.f32 0.0, %v2507
    %v2509 = vpop.f32.mrb[0].mxu0
    %v2510 = vpop.f32.mrb[0].mxu0
    %v2511 = vadd.f32 0.0, %v2510
    %v2512 = vpop.f32.mrb[0].mxu0
    %2513 = vmatprep.mubr.bf16.mxu0 0
    %2514 = vmatmul.mubr.bf16.gmra.mrb[0].mxu0 %v2462
    %v2515 = vpop.f32.mrb[0].mxu0
    %v2516 = vadd.f32 0.0, %v2515
    %v2517 = vpop.f32.mrb[0].mxu0
    %v2518 = vpop.f32.mrb[0].mxu0
    %v2519 = vadd.f32 0.0, %v2518
    %v2520 = vpop.f32.mrb[0].mxu0
    %2521 = vmatprep.mubr.bf16.mxu0 0
    %2522 = vmatmul.mubr.bf16.gmra.mrb[0].mxu0 %v2465
    %v2523 = vpop.f32.mrb[0].mxu0
    %v2524 = vadd.f32 0.0, %v2523
    %v2525 = vpop.f32.mrb[0].mxu0
    %v2526 = vpop.f32.mrb[0].mxu0
    %v2527 = vadd.f32 0.0, %v2526
    %v2528 = vpop.f32.mrb[0].mxu0
    %2529 = vmatprep.mubr.bf16.mxu0 0
    %2530 = vmatmul.mubr.bf16.gmra.mrb[0].mxu0 %v2468
    %v2531 = vpop.f32.mrb[0].mxu0
    %v2532 = vadd.f32 0.0, %v2531
    %v2533 = vpop.f32.mrb[0].mxu0
    %v2534 = vpop.f32.mrb[0].mxu0
    %v2535 = vadd.f32 0.0, %v2534
    %v2536 = vpop.f32.mrb[0].mxu0
    %2537 = vdwg.mxu0
    %v2539 = vsel %vm689, %v1560, 0
    %v2542 = vsel %vm689, %v1561, 0
    %v2545 = vsel %vm689, %v1562, 0
    %v2548 = vsel %vm689, %v1563, 0
    %v2551 = vsel %vm1180, %v1564, 0
    %2553 = vmatprep.subr.bf16.mxu0 0
    %2554 = vmatpush1.bf16.msra.mxu0 %v2551
    %2555 = vmatprep.subr.bf16.mxu0 0
    %2556 = vmatpush1.bf16.msra.mxu0 0
    %2557 = vmatprep.subr.bf16.mxu0 0
    %2558 = vmatpush1.bf16.msra.mxu0 0
    %2559 = vmatprep.subr.bf16.mxu0 0
    %2560 = vmatpush1.bf16.msra.mxu0 0
    %2561 = vmatprep.subr.bf16.mxu0 0
    %2562 = vmatpush1.bf16.msra.mxu0 0
    %2563 = vmatprep.subr.bf16.mxu0 0
    %2564 = vmatpush1.bf16.msra.mxu0 0
    %2565 = vmatprep.subr.bf16.mxu0 0
    %2566 = vmatpush1.bf16.msra.mxu0 0
    %2567 = vmatprep.subr.bf16.mxu0 0
    %2568 = vmatpush1.bf16.msra.mxu0 0
    %2569 = vmatprep.subr.bf16.mxu0 0
    %2570 = vmatpush1.bf16.msra.mxu0 0
    %2571 = vmatprep.subr.bf16.mxu0 0
    %2572 = vmatpush1.bf16.msra.mxu0 0
    %2573 = vmatprep.subr.bf16.mxu0 0
    %2574 = vmatpush1.bf16.msra.mxu0 0
    %2575 = vmatprep.subr.bf16.mxu0 0
    %2576 = vmatpush1.bf16.msra.mxu0 0
    %2577 = vmatprep.subr.bf16.mxu0 0
    %2578 = vmatpush1.bf16.msra.mxu0 0
    %2579 = vmatprep.subr.bf16.mxu0 0
    %2580 = vmatpush1.bf16.msra.mxu0 0
    %2581 = vmatprep.subr.bf16.mxu0 0
    %2582 = vmatpush1.bf16.msra.mxu0 0
    %2583 = vmatprep.subr.bf16.mxu0 0
    %2584 = vmatpush1.bf16.msra.mxu0 0
    %2585 = vmatprep.mubr.bf16.mxu0 0
    %2586 = vmatmul.mubr.bf16.gmra.mrb[0].mxu0 %v2539
    %v2587 = vpop.f32.mrb[0].mxu0
    %v2588 = vadd.f32 %v2508, %v2587
    %v2589 = vpop.f32.mrb[0].mxu0
    %v2590 = vpop.f32.mrb[0].mxu0
    %v2591 = vadd.f32 %v2511, %v2590
    %v2592 = vpop.f32.mrb[0].mxu0
    %2593 = vmatprep.mubr.bf16.mxu0 0
    %2594 = vmatmul.mubr.bf16.gmra.mrb[0].mxu0 %v2542
    %v2595 = vpop.f32.mrb[0].mxu0
    %v2596 = vadd.f32 %v2516, %v2595
    %v2597 = vpop.f32.mrb[0].mxu0
    %v2598 = vpop.f32.mrb[0].mxu0
    %v2599 = vadd.f32 %v2519, %v2598
    %v2600 = vpop.f32.mrb[0].mxu0
    %2601 = vmatprep.mubr.bf16.mxu0 0
    %2602 = vmatmul.mubr.bf16.gmra.mrb[0].mxu0 %v2545
    %v2603 = vpop.f32.mrb[0].mxu0
    %v2604 = vadd.f32 %v2524, %v2603
    %v2605 = vpop.f32.mrb[0].mxu0
    %v2606 = vpop.f32.mrb[0].mxu0
    %v2607 = vadd.f32 %v2527, %v2606
    %v2608 = vpop.f32.mrb[0].mxu0
    %2609 = vmatprep.mubr.bf16.mxu0 0
    %2610 = vmatmul.mubr.bf16.gmra.mrb[0].mxu0 %v2548
    %v2611 = vpop.f32.mrb[0].mxu0
    %v2612 = vadd.f32 %v2532, %v2611
    %v2613 = vpop.f32.mrb[0].mxu0
    %v2614 = vpop.f32.mrb[0].mxu0
    %v2615 = vadd.f32 %v2535, %v2614
    %v2616 = vpop.f32.mrb[0].mxu0
    %2617 = vdwg.mxu0
    %2618 = vrot.lane.b32.xlu0 %v670, 112
    %v2619 = vpop.permute.xlu0 %2618
    %2620 = vrot.lane.b32.xlu0 %v678, 80
    %v2621 = vpop.permute.xlu0 %2620
    %v2623 = vsel %vm689, %v2619, 0
    %v2626 = vsel %vm689, %v2621, 0
    %2628 = vmatprep.subr.bf16.mxu0 0
    %2629 = vmatpush1.bf16.xpose.msra.mxu0 %v2626
    %2630 = vmatprep.subr.bf16.mxu0 0
    %2631 = vmatpush1.bf16.xpose.msra.mxu0 0
    %2632 = vmatprep.subr.bf16.mxu0 0
    %2633 = vmatpush1.bf16.xpose.msra.mxu0 0
    %2634 = vmatprep.subr.bf16.mxu0 0
    %2635 = vmatpush1.bf16.xpose.msra.mxu0 0
    %2636 = vmatprep.subr.bf16.mxu0 0
    %2637 = vmatpush1.bf16.xpose.msra.mxu0 0
    %2638 = vmatprep.subr.bf16.mxu0 0
    %2639 = vmatpush1.bf16.xpose.msra.mxu0 0
    %2640 = vmatprep.subr.bf16.mxu0 0
    %2641 = vmatpush1.bf16.xpose.msra.mxu0 0
    %2642 = vmatprep.subr.bf16.mxu0 0
    %2643 = vmatpush1.bf16.xpose.msra.mxu0 0
    %2644 = vmatprep.subr.bf16.mxu0 0
    %2645 = vmatpush1.bf16.xpose.msra.mxu0 0
    %2646 = vmatprep.subr.bf16.mxu0 0
    %2647 = vmatpush1.bf16.xpose.msra.mxu0 0
    %2648 = vmatprep.subr.bf16.mxu0 0
    %2649 = vmatpush1.bf16.xpose.msra.mxu0 0
    %2650 = vmatprep.subr.bf16.mxu0 0
    %2651 = vmatpush1.bf16.xpose.msra.mxu0 0
    %2652 = vmatprep.subr.bf16.mxu0 0
    %2653 = vmatpush1.bf16.xpose.msra.mxu0 0
    %2654 = vmatprep.subr.bf16.mxu0 0
    %2655 = vmatpush1.bf16.xpose.msra.mxu0 0
    %2656 = vmatprep.subr.bf16.mxu0 0
    %2657 = vmatpush1.bf16.xpose.msra.mxu0 0
    %2658 = vmatprep.subr.bf16.mxu0 0
    %2659 = vmatpush1.bf16.xpose.msra.mxu0 0
    %2660 = vmatprep.mubr.bf16.mxu0 0
    %2661 = vmatmul.mubr.bf16.gmra.mrb[0].mxu0 %v2623
    %v2662 = vpop.f32.mrb[0].mxu0
    %v2663 = vadd.f32 %v423, %v2662
    %v2664 = vpop.f32.mrb[0].mxu0
    %v2665 = vpop.f32.mrb[0].mxu0
    %v2666 = vpop.f32.mrb[0].mxu0
    %2667 = vdwg.mxu0
    %2668 = vrot.lane.b32.xlu0 %v671, 112
    %v2669 = vpop.permute.xlu0 %2668
    %2670 = vrot.lane.b32.xlu0 %v679, 80
    %v2671 = vpop.permute.xlu0 %2670
    %v2673 = vsel %vm689, %v2669, 0
    %v2676 = vsel %vm689, %v2671, 0
    %2678 = vmatprep.subr.bf16.mxu0 0
    %2679 = vmatpush1.bf16.xpose.msra.mxu0 %v2676
    %2680 = vmatprep.subr.bf16.mxu0 0
    %2681 = vmatpush1.bf16.xpose.msra.mxu0 0
    %2682 = vmatprep.subr.bf16.mxu0 0
    %2683 = vmatpush1.bf16.xpose.msra.mxu0 0
    %2684 = vmatprep.subr.bf16.mxu0 0
    %2685 = vmatpush1.bf16.xpose.msra.mxu0 0
    %2686 = vmatprep.subr.bf16.mxu0 0
    %2687 = vmatpush1.bf16.xpose.msra.mxu0 0
    %2688 = vmatprep.subr.bf16.mxu0 0
    %2689 = vmatpush1.bf16.xpose.msra.mxu0 0
    %2690 = vmatprep.subr.bf16.mxu0 0
    %2691 = vmatpush1.bf16.xpose.msra.mxu0 0
    %2692 = vmatprep.subr.bf16.mxu0 0
    %2693 = vmatpush1.bf16.xpose.msra.mxu0 0
    %2694 = vmatprep.subr.bf16.mxu0 0
    %2695 = vmatpush1.bf16.xpose.msra.mxu0 0
    %2696 = vmatprep.subr.bf16.mxu0 0
    %2697 = vmatpush1.bf16.xpose.msra.mxu0 0
    %2698 = vmatprep.subr.bf16.mxu0 0
    %2699 = vmatpush1.bf16.xpose.msra.mxu0 0
    %2700 = vmatprep.subr.bf16.mxu0 0
    %2701 = vmatpush1.bf16.xpose.msra.mxu0 0
    %2702 = vmatprep.subr.bf16.mxu0 0
    %2703 = vmatpush1.bf16.xpose.msra.mxu0 0
    %2704 = vmatprep.subr.bf16.mxu0 0
    %2705 = vmatpush1.bf16.xpose.msra.mxu0 0
    %2706 = vmatprep.subr.bf16.mxu0 0
    %2707 = vmatpush1.bf16.xpose.msra.mxu0 0
    %2708 = vmatprep.subr.bf16.mxu0 0
    %2709 = vmatpush1.bf16.xpose.msra.mxu0 0
    %2710 = vmatprep.mubr.bf16.mxu0 0
    %2711 = vmatmul.mubr.bf16.gmra.mrb[0].mxu0 %v2673
    %v2712 = vpop.f32.mrb[0].mxu0
    %v2713 = vadd.f32 %v423, %v2712
    %v2714 = vpop.f32.mrb[0].mxu0
    %v2715 = vpop.f32.mrb[0].mxu0
    %v2716 = vpop.f32.mrb[0].mxu0
    %2717 = vdwg.mxu0
    %2718 = vrot.lane.b32.xlu0 %v672, 112
    %v2719 = vpop.permute.xlu0 %2718
    %2720 = vrot.lane.b32.xlu0 %v680, 80
    %v2721 = vpop.permute.xlu0 %2720
    %v2723 = vsel %vm689, %v2719, 0
    %v2726 = vsel %vm689, %v2721, 0
    %2728 = vmatprep.subr.bf16.mxu0 0
    %2729 = vmatpush1.bf16.xpose.msra.mxu0 %v2726
    %2730 = vmatprep.subr.bf16.mxu0 0
    %2731 = vmatpush1.bf16.xpose.msra.mxu0 0
    %2732 = vmatprep.subr.bf16.mxu0 0
    %2733 = vmatpush1.bf16.xpose.msra.mxu0 0
    %2734 = vmatprep.subr.bf16.mxu0 0
    %2735 = vmatpush1.bf16.xpose.msra.mxu0 0
    %2736 = vmatprep.subr.bf16.mxu0 0
    %2737 = vmatpush1.bf16.xpose.msra.mxu0 0
    %2738 = vmatprep.subr.bf16.mxu0 0
    %2739 = vmatpush1.bf16.xpose.msra.mxu0 0
    %2740 = vmatprep.subr.bf16.mxu0 0
    %2741 = vmatpush1.bf16.xpose.msra.mxu0 0
    %2742 = vmatprep.subr.bf16.mxu0 0
    %2743 = vmatpush1.bf16.xpose.msra.mxu0 0
    %2744 = vmatprep.subr.bf16.mxu0 0
    %2745 = vmatpush1.bf16.xpose.msra.mxu0 0
    %2746 = vmatprep.subr.bf16.mxu0 0
    %2747 = vmatpush1.bf16.xpose.msra.mxu0 0
    %2748 = vmatprep.subr.bf16.mxu0 0
    %2749 = vmatpush1.bf16.xpose.msra.mxu0 0
    %2750 = vmatprep.subr.bf16.mxu0 0
    %2751 = vmatpush1.bf16.xpose.msra.mxu0 0
    %2752 = vmatprep.subr.bf16.mxu0 0
    %2753 = vmatpush1.bf16.xpose.msra.mxu0 0
    %2754 = vmatprep.subr.bf16.mxu0 0
    %2755 = vmatpush1.bf16.xpose.msra.mxu0 0
    %2756 = vmatprep.subr.bf16.mxu0 0
    %2757 = vmatpush1.bf16.xpose.msra.mxu0 0
    %2758 = vmatprep.subr.bf16.mxu0 0
    %2759 = vmatpush1.bf16.xpose.msra.mxu0 0
    %2760 = vmatprep.mubr.bf16.mxu0 0
    %2761 = vmatmul.mubr.bf16.gmra.mrb[0].mxu0 %v2723
    %v2762 = vpop.f32.mrb[0].mxu0
    %v2763 = vadd.f32 %v423, %v2762
    %v2764 = vpop.f32.mrb[0].mxu0
    %v2765 = vpop.f32.mrb[0].mxu0
    %v2766 = vpop.f32.mrb[0].mxu0
    %2767 = vdwg.mxu0
    %2768 = vrot.lane.b32.xlu0 %v673, 112
    %v2769 = vpop.permute.xlu0 %2768
    %2770 = vrot.lane.b32.xlu0 %v681, 80
    %v2771 = vpop.permute.xlu0 %2770
    %v2773 = vsel %vm689, %v2769, 0
    %v2776 = vsel %vm689, %v2771, 0
    %2778 = vmatprep.subr.bf16.mxu0 0
    %2779 = vmatpush1.bf16.xpose.msra.mxu0 %v2776
    %2780 = vmatprep.subr.bf16.mxu0 0
    %2781 = vmatpush1.bf16.xpose.msra.mxu0 0
    %2782 = vmatprep.subr.bf16.mxu0 0
    %2783 = vmatpush1.bf16.xpose.msra.mxu0 0
    %2784 = vmatprep.subr.bf16.mxu0 0
    %2785 = vmatpush1.bf16.xpose.msra.mxu0 0
    %2786 = vmatprep.subr.bf16.mxu0 0
    %2787 = vmatpush1.bf16.xpose.msra.mxu0 0
    %2788 = vmatprep.subr.bf16.mxu0 0
    %2789 = vmatpush1.bf16.xpose.msra.mxu0 0
    %2790 = vmatprep.subr.bf16.mxu0 0
    %2791 = vmatpush1.bf16.xpose.msra.mxu0 0
    %2792 = vmatprep.subr.bf16.mxu0 0
    %2793 = vmatpush1.bf16.xpose.msra.mxu0 0
    %2794 = vmatprep.subr.bf16.mxu0 0
    %2795 = vmatpush1.bf16.xpose.msra.mxu0 0
    %2796 = vmatprep.subr.bf16.mxu0 0
    %2797 = vmatpush1.bf16.xpose.msra.mxu0 0
    %2798 = vmatprep.subr.bf16.mxu0 0
    %2799 = vmatpush1.bf16.xpose.msra.mxu0 0
    %2800 = vmatprep.subr.bf16.mxu0 0
    %2801 = vmatpush1.bf16.xpose.msra.mxu0 0
    %2802 = vmatprep.subr.bf16.mxu0 0
    %2803 = vmatpush1.bf16.xpose.msra.mxu0 0
    %2804 = vmatprep.subr.bf16.mxu0 0
    %2805 = vmatpush1.bf16.xpose.msra.mxu0 0
    %2806 = vmatprep.subr.bf16.mxu0 0
    %2807 = vmatpush1.bf16.xpose.msra.mxu0 0
    %2808 = vmatprep.subr.bf16.mxu0 0
    %2809 = vmatpush1.bf16.xpose.msra.mxu0 0
    %2810 = vmatprep.mubr.bf16.mxu0 0
    %2811 = vmatmul.mubr.bf16.gmra.mrb[0].mxu0 %v2773
    %v2812 = vpop.f32.mrb[0].mxu0
    %v2813 = vadd.f32 %v423, %v2812
    %v2814 = vpop.f32.mrb[0].mxu0
    %v2815 = vpop.f32.mrb[0].mxu0
    %v2816 = vpop.f32.mrb[0].mxu0
    %2817 = vdwg.mxu0
    %2818 = vrot.lane.b32.xlu0 %v674, 112
    %v2819 = vpop.permute.xlu0 %2818
    %2820 = vrot.lane.b32.xlu0 %v682, 80
    %v2821 = vpop.permute.xlu0 %2820
    %v2823 = vsel %vm689, %v2819, 0
    %v2826 = vsel %vm689, %v2821, 0
    %2828 = vmatprep.subr.bf16.mxu0 0
    %2829 = vmatpush1.bf16.xpose.msra.mxu0 %v2826
    %2830 = vmatprep.subr.bf16.mxu0 0
    %2831 = vmatpush1.bf16.xpose.msra.mxu0 0
    %2832 = vmatprep.subr.bf16.mxu0 0
    %2833 = vmatpush1.bf16.xpose.msra.mxu0 0
    %2834 = vmatprep.subr.bf16.mxu0 0
    %2835 = vmatpush1.bf16.xpose.msra.mxu0 0
    %2836 = vmatprep.subr.bf16.mxu0 0
    %2837 = vmatpush1.bf16.xpose.msra.mxu0 0
    %2838 = vmatprep.subr.bf16.mxu0 0
    %2839 = vmatpush1.bf16.xpose.msra.mxu0 0
    %2840 = vmatprep.subr.bf16.mxu0 0
    %2841 = vmatpush1.bf16.xpose.msra.mxu0 0
    %2842 = vmatprep.subr.bf16.mxu0 0
    %2843 = vmatpush1.bf16.xpose.msra.mxu0 0
    %2844 = vmatprep.subr.bf16.mxu0 0
    %2845 = vmatpush1.bf16.xpose.msra.mxu0 0
    %2846 = vmatprep.subr.bf16.mxu0 0
    %2847 = vmatpush1.bf16.xpose.msra.mxu0 0
    %2848 = vmatprep.subr.bf16.mxu0 0
    %2849 = vmatpush1.bf16.xpose.msra.mxu0 0
    %2850 = vmatprep.subr.bf16.mxu0 0
    %2851 = vmatpush1.bf16.xpose.msra.mxu0 0
    %2852 = vmatprep.subr.bf16.mxu0 0
    %2853 = vmatpush1.bf16.xpose.msra.mxu0 0
    %2854 = vmatprep.subr.bf16.mxu0 0
    %2855 = vmatpush1.bf16.xpose.msra.mxu0 0
    %2856 = vmatprep.subr.bf16.mxu0 0
    %2857 = vmatpush1.bf16.xpose.msra.mxu0 0
    %2858 = vmatprep.subr.bf16.mxu0 0
    %2859 = vmatpush1.bf16.xpose.msra.mxu0 0
    %2860 = vmatprep.mubr.bf16.mxu0 0
    %2861 = vmatmul.mubr.bf16.gmra.mrb[0].mxu0 %v2823
    %v2862 = vpop.f32.mrb[0].mxu0
    %v2863 = vadd.f32 %v423, %v2862
    %v2864 = vpop.f32.mrb[0].mxu0
    %v2865 = vpop.f32.mrb[0].mxu0
    %v2866 = vpop.f32.mrb[0].mxu0
    %2867 = vdwg.mxu0
    %2868 = vrot.lane.b32.xlu0 %v675, 112
    %v2869 = vpop.permute.xlu0 %2868
    %2870 = vrot.lane.b32.xlu0 %v683, 80
    %v2871 = vpop.permute.xlu0 %2870
    %v2873 = vsel %vm689, %v2869, 0
    %v2876 = vsel %vm689, %v2871, 0
    %2878 = vmatprep.subr.bf16.mxu0 0
    %2879 = vmatpush1.bf16.xpose.msra.mxu0 %v2876
    %2880 = vmatprep.subr.bf16.mxu0 0
    %2881 = vmatpush1.bf16.xpose.msra.mxu0 0
    %2882 = vmatprep.subr.bf16.mxu0 0
    %2883 = vmatpush1.bf16.xpose.msra.mxu0 0
    %2884 = vmatprep.subr.bf16.mxu0 0
    %2885 = vmatpush1.bf16.xpose.msra.mxu0 0
    %2886 = vmatprep.subr.bf16.mxu0 0
    %2887 = vmatpush1.bf16.xpose.msra.mxu0 0
    %2888 = vmatprep.subr.bf16.mxu0 0
    %2889 = vmatpush1.bf16.xpose.msra.mxu0 0
    %2890 = vmatprep.subr.bf16.mxu0 0
    %2891 = vmatpush1.bf16.xpose.msra.mxu0 0
    %2892 = vmatprep.subr.bf16.mxu0 0
    %2893 = vmatpush1.bf16.xpose.msra.mxu0 0
    %2894 = vmatprep.subr.bf16.mxu0 0
    %2895 = vmatpush1.bf16.xpose.msra.mxu0 0
    %2896 = vmatprep.subr.bf16.mxu0 0
    %2897 = vmatpush1.bf16.xpose.msra.mxu0 0
    %2898 = vmatprep.subr.bf16.mxu0 0
    %2899 = vmatpush1.bf16.xpose.msra.mxu0 0
    %2900 = vmatprep.subr.bf16.mxu0 0
    %2901 = vmatpush1.bf16.xpose.msra.mxu0 0
    %2902 = vmatprep.subr.bf16.mxu0 0
    %2903 = vmatpush1.bf16.xpose.msra.mxu0 0
    %2904 = vmatprep.subr.bf16.mxu0 0
    %2905 = vmatpush1.bf16.xpose.msra.mxu0 0
    %2906 = vmatprep.subr.bf16.mxu0 0
    %2907 = vmatpush1.bf16.xpose.msra.mxu0 0
    %2908 = vmatprep.subr.bf16.mxu0 0
    %2909 = vmatpush1.bf16.xpose.msra.mxu0 0
    %2910 = vmatprep.mubr.bf16.mxu0 0
    %2911 = vmatmul.mubr.bf16.gmra.mrb[0].mxu0 %v2873
    %v2912 = vpop.f32.mrb[0].mxu0
    %v2913 = vadd.f32 %v423, %v2912
    %v2914 = vpop.f32.mrb[0].mxu0
    %v2915 = vpop.f32.mrb[0].mxu0
    %v2916 = vpop.f32.mrb[0].mxu0
    %2917 = vdwg.mxu0
    %2918 = vrot.lane.b32.xlu0 %v676, 112
    %v2919 = vpop.permute.xlu0 %2918
    %2920 = vrot.lane.b32.xlu0 %v684, 80
    %v2921 = vpop.permute.xlu0 %2920
    %v2923 = vsel %vm689, %v2919, 0
    %v2926 = vsel %vm689, %v2921, 0
    %2928 = vmatprep.subr.bf16.mxu0 0
    %2929 = vmatpush1.bf16.xpose.msra.mxu0 %v2926
    %2930 = vmatprep.subr.bf16.mxu0 0
    %2931 = vmatpush1.bf16.xpose.msra.mxu0 0
    %2932 = vmatprep.subr.bf16.mxu0 0
    %2933 = vmatpush1.bf16.xpose.msra.mxu0 0
    %2934 = vmatprep.subr.bf16.mxu0 0
    %2935 = vmatpush1.bf16.xpose.msra.mxu0 0
    %2936 = vmatprep.subr.bf16.mxu0 0
    %2937 = vmatpush1.bf16.xpose.msra.mxu0 0
    %2938 = vmatprep.subr.bf16.mxu0 0
    %2939 = vmatpush1.bf16.xpose.msra.mxu0 0
    %2940 = vmatprep.subr.bf16.mxu0 0
    %2941 = vmatpush1.bf16.xpose.msra.mxu0 0
    %2942 = vmatprep.subr.bf16.mxu0 0
    %2943 = vmatpush1.bf16.xpose.msra.mxu0 0
    %2944 = vmatprep.subr.bf16.mxu0 0
    %2945 = vmatpush1.bf16.xpose.msra.mxu0 0
    %2946 = vmatprep.subr.bf16.mxu0 0
    %2947 = vmatpush1.bf16.xpose.msra.mxu0 0
    %2948 = vmatprep.subr.bf16.mxu0 0
    %2949 = vmatpush1.bf16.xpose.msra.mxu0 0
    %2950 = vmatprep.subr.bf16.mxu0 0
    %2951 = vmatpush1.bf16.xpose.msra.mxu0 0
    %2952 = vmatprep.subr.bf16.mxu0 0
    %2953 = vmatpush1.bf16.xpose.msra.mxu0 0
    %2954 = vmatprep.subr.bf16.mxu0 0
    %2955 = vmatpush1.bf16.xpose.msra.mxu0 0
    %2956 = vmatprep.subr.bf16.mxu0 0
    %2957 = vmatpush1.bf16.xpose.msra.mxu0 0
    %2958 = vmatprep.subr.bf16.mxu0 0
    %2959 = vmatpush1.bf16.xpose.msra.mxu0 0
    %2960 = vmatprep.mubr.bf16.mxu0 0
    %2961 = vmatmul.mubr.bf16.gmra.mrb[0].mxu0 %v2923
    %v2962 = vpop.f32.mrb[0].mxu0
    %v2963 = vadd.f32 %v423, %v2962
    %v2964 = vpop.f32.mrb[0].mxu0
    %v2965 = vpop.f32.mrb[0].mxu0
    %v2966 = vpop.f32.mrb[0].mxu0
    %2967 = vdwg.mxu0
    %2968 = vrot.lane.b32.xlu0 %v677, 112
    %v2969 = vpop.permute.xlu0 %2968
    %2970 = vrot.lane.b32.xlu0 %v685, 80
    %v2971 = vpop.permute.xlu0 %2970
    %v2973 = vsel %vm689, %v2969, 0
    %v2976 = vsel %vm689, %v2971, 0
    %2978 = vmatprep.subr.bf16.mxu0 0
    %2979 = vmatpush1.bf16.xpose.msra.mxu0 %v2976
    %2980 = vmatprep.subr.bf16.mxu0 0
    %2981 = vmatpush1.bf16.xpose.msra.mxu0 0
    %2982 = vmatprep.subr.bf16.mxu0 0
    %2983 = vmatpush1.bf16.xpose.msra.mxu0 0
    %2984 = vmatprep.subr.bf16.mxu0 0
    %2985 = vmatpush1.bf16.xpose.msra.mxu0 0
    %2986 = vmatprep.subr.bf16.mxu0 0
    %2987 = vmatpush1.bf16.xpose.msra.mxu0 0
    %2988 = vmatprep.subr.bf16.mxu0 0
    %2989 = vmatpush1.bf16.xpose.msra.mxu0 0
    %2990 = vmatprep.subr.bf16.mxu0 0
    %2991 = vmatpush1.bf16.xpose.msra.mxu0 0
    %2992 = vmatprep.subr.bf16.mxu0 0
    %2993 = vmatpush1.bf16.xpose.msra.mxu0 0
    %2994 = vmatprep.subr.bf16.mxu0 0
    %2995 = vmatpush1.bf16.xpose.msra.mxu0 0
    %2996 = vmatprep.subr.bf16.mxu0 0
    %2997 = vmatpush1.bf16.xpose.msra.mxu0 0
    %2998 = vmatprep.subr.bf16.mxu0 0
    %2999 = vmatpush1.bf16.xpose.msra.mxu0 0
    %3000 = vmatprep.subr.bf16.mxu0 0
    %3001 = vmatpush1.bf16.xpose.msra.mxu0 0
    %3002 = vmatprep.subr.bf16.mxu0 0
    %3003 = vmatpush1.bf16.xpose.msra.mxu0 0
    %3004 = vmatprep.subr.bf16.mxu0 0
    %3005 = vmatpush1.bf16.xpose.msra.mxu0 0
    %3006 = vmatprep.subr.bf16.mxu0 0
    %3007 = vmatpush1.bf16.xpose.msra.mxu0 0
    %3008 = vmatprep.subr.bf16.mxu0 0
    %3009 = vmatpush1.bf16.xpose.msra.mxu0 0
    %3010 = vmatprep.mubr.bf16.mxu0 0
    %3011 = vmatmul.mubr.bf16.gmra.mrb[0].mxu0 %v2973
    %v3012 = vpop.f32.mrb[0].mxu0
    %v3013 = vadd.f32 %v423, %v3012
    %v3014 = vpop.f32.mrb[0].mxu0
    %v3015 = vpop.f32.mrb[0].mxu0
    %v3016 = vpop.f32.mrb[0].mxu0
    %3017 = vdwg.mxu0
    %v3018 = vsel %vm689, %v2663, -inf
    %3019 = vmax.xlane.f32.xlu0 %v3018
    %v3020 = vpop.xlane.xlu0 %3019
    %v3021 = vsel %vm689, %v2713, -inf
    %3022 = vmax.xlane.f32.xlu0 %v3021
    %v3023 = vpop.xlane.xlu0 %3022
    %v3024 = vsel %vm689, %v2763, -inf
    %3025 = vmax.xlane.f32.xlu0 %v3024
    %v3026 = vpop.xlane.xlu0 %3025
    %v3027 = vsel %vm689, %v2813, -inf
    %3028 = vmax.xlane.f32.xlu0 %v3027
    %v3029 = vpop.xlane.xlu0 %3028
    %v3030 = vsel %vm689, %v2863, -inf
    %3031 = vmax.xlane.f32.xlu0 %v3030
    %v3032 = vpop.xlane.xlu0 %3031
    %v3033 = vsel %vm689, %v2913, -inf
    %3034 = vmax.xlane.f32.xlu0 %v3033
    %v3035 = vpop.xlane.xlu0 %3034
    %v3036 = vsel %vm689, %v2963, -inf
    %3037 = vmax.xlane.f32.xlu0 %v3036
    %v3038 = vpop.xlane.xlu0 %3037
    %v3039 = vsel %vm689, %v3013, -inf
    %3040 = vmax.xlane.f32.xlu0 %v3039
    %v3041 = vpop.xlane.xlu0 %3040
    %v3042 = vsub.f32 %v2663, %v3020
    %v3043 = vsub.f32 %v2713, %v3023
    %v3044 = vsub.f32 %v2763, %v3026
    %v3045 = vsub.f32 %v2813, %v3029
    %v3046 = vsub.f32 %v2863, %v3032
    %v3047 = vsub.f32 %v2913, %v3035
    %v3048 = vsub.f32 %v2963, %v3038
    %v3049 = vsub.f32 %v3013, %v3041
    %v3050 = vmul.f32 %v3042, 1.442695
    %v3051 = vpow.pop %v3050
    %v3052 = vmul.f32 %v3043, 1.442695
    %v3053 = vpow.pop %v3052
    %v3054 = vmul.f32 %v3044, 1.442695
    %v3055 = vpow.pop %v3054
    %v3056 = vmul.f32 %v3045, 1.442695
    %v3057 = vpow.pop %v3056
    %v3058 = vmul.f32 %v3046, 1.442695
    %v3059 = vpow.pop %v3058
    %v3060 = vmul.f32 %v3047, 1.442695
    %v3061 = vpow.pop %v3060
    %v3062 = vmul.f32 %v3048, 1.442695
    %v3063 = vpow.pop %v3062
    %v3064 = vmul.f32 %v3049, 1.442695
    %v3065 = vpow.pop %v3064
    %v3066 = vsel %vm689, %v3051, 0.0
    %3067 = vadd.xlane.f32.xlu0 %v3066
    %v3068 = vpop.xlane.xlu0 %3067
    %v3069 = vsel %vm689, %v3053, 0.0
    %3070 = vadd.xlane.f32.xlu0 %v3069
    %v3071 = vpop.xlane.xlu0 %3070
    %v3072 = vsel %vm689, %v3055, 0.0
    %3073 = vadd.xlane.f32.xlu0 %v3072
    %v3074 = vpop.xlane.xlu0 %3073
    %v3075 = vsel %vm689, %v3057, 0.0
    %3076 = vadd.xlane.f32.xlu0 %v3075
    %v3077 = vpop.xlane.xlu0 %3076
    %v3078 = vsel %vm689, %v3059, 0.0
    %3079 = vadd.xlane.f32.xlu0 %v3078
    %v3080 = vpop.xlane.xlu0 %3079
    %v3081 = vsel %vm689, %v3061, 0.0
    %3082 = vadd.xlane.f32.xlu0 %v3081
    %v3083 = vpop.xlane.xlu0 %3082
    %v3084 = vsel %vm689, %v3063, 0.0
    %3085 = vadd.xlane.f32.xlu0 %v3084
    %v3086 = vpop.xlane.xlu0 %3085
    %v3087 = vsel %vm689, %v3065, 0.0
    %3088 = vadd.xlane.f32.xlu0 %v3087
    %v3089 = vpop.xlane.xlu0 %3088
    %v3090 = vrcp.pop %v3068
    %v3091 = vrcp.pop %v3071
    %v3092 = vrcp.pop %v3074
    %v3093 = vrcp.pop %v3077
    %v3094 = vrcp.pop %v3080
    %v3095 = vrcp.pop %v3083
    %v3096 = vrcp.pop %v3086
    %v3097 = vrcp.pop %v3089
    %v3098 = vmul.f32 %v3051, %v3090
    %v3099 = vmul.f32 %v3053, %v3091
    %v3100 = vmul.f32 %v3055, %v3092
    %v3101 = vmul.f32 %v3057, %v3093
    %v3102 = vmul.f32 %v3059, %v3094
    %v3103 = vmul.f32 %v3061, %v3095
    %v3104 = vmul.f32 %v3063, %v3096
    %v3105 = vmul.f32 %v3065, %v3097
    %v3106 = vpack.c.bf16 %v3098, %v3098
    %v3107 = vpack.c.bf16 %v3099, %v3099
    %v3108 = vpack.c.bf16 %v3100, %v3100
    %v3109 = vpack.c.bf16 %v3101, %v3101
    %v3110 = vpack.c.bf16 %v3102, %v3102
    %v3111 = vpack.c.bf16 %v3103, %v3103
    %v3112 = vpack.c.bf16 %v3104, %v3104
    %v3113 = vpack.c.bf16 %v3105, %v3105
    %3114 = vrot.lane.b32.xlu0 %v678, 48
    %v3115 = vpop.permute.xlu0 %3114
    %v3117 = vsel %vm689, %v3106, 0
    %v3120 = vsel %vm1180, %v3115, 0
    %3122 = vmatprep.subr.bf16.mxu0 0
    %3123 = vmatpush1.bf16.msra.mxu0 %v3120
    %3124 = vmatprep.subr.bf16.mxu0 0
    %3125 = vmatpush1.bf16.msra.mxu0 0
    %3126 = vmatprep.subr.bf16.mxu0 0
    %3127 = vmatpush1.bf16.msra.mxu0 0
    %3128 = vmatprep.subr.bf16.mxu0 0
    %3129 = vmatpush1.bf16.msra.mxu0 0
    %3130 = vmatprep.subr.bf16.mxu0 0
    %3131 = vmatpush1.bf16.msra.mxu0 0
    %3132 = vmatprep.subr.bf16.mxu0 0
    %3133 = vmatpush1.bf16.msra.mxu0 0
    %3134 = vmatprep.subr.bf16.mxu0 0
    %3135 = vmatpush1.bf16.msra.mxu0 0
    %3136 = vmatprep.subr.bf16.mxu0 0
    %3137 = vmatpush1.bf16.msra.mxu0 0
    %3138 = vmatprep.subr.bf16.mxu0 0
    %3139 = vmatpush1.bf16.msra.mxu0 0
    %3140 = vmatprep.subr.bf16.mxu0 0
    %3141 = vmatpush1.bf16.msra.mxu0 0
    %3142 = vmatprep.subr.bf16.mxu0 0
    %3143 = vmatpush1.bf16.msra.mxu0 0
    %3144 = vmatprep.subr.bf16.mxu0 0
    %3145 = vmatpush1.bf16.msra.mxu0 0
    %3146 = vmatprep.subr.bf16.mxu0 0
    %3147 = vmatpush1.bf16.msra.mxu0 0
    %3148 = vmatprep.subr.bf16.mxu0 0
    %3149 = vmatpush1.bf16.msra.mxu0 0
    %3150 = vmatprep.subr.bf16.mxu0 0
    %3151 = vmatpush1.bf16.msra.mxu0 0
    %3152 = vmatprep.subr.bf16.mxu0 0
    %3153 = vmatpush1.bf16.msra.mxu0 0
    %3154 = vmatprep.mubr.bf16.mxu0 0
    %3155 = vmatmul.mubr.bf16.gmra.mrb[0].mxu0 %v3117
    %v3156 = vpop.f32.mrb[0].mxu0
    %v3157 = vadd.f32 0.0, %v3156
    %v3158 = vpop.f32.mrb[0].mxu0
    %v3159 = vpop.f32.mrb[0].mxu0
    %v3160 = vpop.f32.mrb[0].mxu0
    %3161 = vdwg.mxu0
    %3162 = vrot.lane.b32.xlu0 %v679, 48
    %v3163 = vpop.permute.xlu0 %3162
    %v3165 = vsel %vm689, %v3107, 0
    %v3168 = vsel %vm1180, %v3163, 0
    %3170 = vmatprep.subr.bf16.mxu0 0
    %3171 = vmatpush1.bf16.msra.mxu0 %v3168
    %3172 = vmatprep.subr.bf16.mxu0 0
    %3173 = vmatpush1.bf16.msra.mxu0 0
    %3174 = vmatprep.subr.bf16.mxu0 0
    %3175 = vmatpush1.bf16.msra.mxu0 0
    %3176 = vmatprep.subr.bf16.mxu0 0
    %3177 = vmatpush1.bf16.msra.mxu0 0
    %3178 = vmatprep.subr.bf16.mxu0 0
    %3179 = vmatpush1.bf16.msra.mxu0 0
    %3180 = vmatprep.subr.bf16.mxu0 0
    %3181 = vmatpush1.bf16.msra.mxu0 0
    %3182 = vmatprep.subr.bf16.mxu0 0
    %3183 = vmatpush1.bf16.msra.mxu0 0
    %3184 = vmatprep.subr.bf16.mxu0 0
    %3185 = vmatpush1.bf16.msra.mxu0 0
    %3186 = vmatprep.subr.bf16.mxu0 0
    %3187 = vmatpush1.bf16.msra.mxu0 0
    %3188 = vmatprep.subr.bf16.mxu0 0
    %3189 = vmatpush1.bf16.msra.mxu0 0
    %3190 = vmatprep.subr.bf16.mxu0 0
    %3191 = vmatpush1.bf16.msra.mxu0 0
    %3192 = vmatprep.subr.bf16.mxu0 0
    %3193 = vmatpush1.bf16.msra.mxu0 0
    %3194 = vmatprep.subr.bf16.mxu0 0
    %3195 = vmatpush1.bf16.msra.mxu0 0
    %3196 = vmatprep.subr.bf16.mxu0 0
    %3197 = vmatpush1.bf16.msra.mxu0 0
    %3198 = vmatprep.subr.bf16.mxu0 0
    %3199 = vmatpush1.bf16.msra.mxu0 0
    %3200 = vmatprep.subr.bf16.mxu0 0
    %3201 = vmatpush1.bf16.msra.mxu0 0
    %3202 = vmatprep.mubr.bf16.mxu0 0
    %3203 = vmatmul.mubr.bf16.gmra.mrb[0].mxu0 %v3165
    %v3204 = vpop.f32.mrb[0].mxu0
    %v3205 = vadd.f32 0.0, %v3204
    %v3206 = vpop.f32.mrb[0].mxu0
    %v3207 = vpop.f32.mrb[0].mxu0
    %v3208 = vpop.f32.mrb[0].mxu0
    %3209 = vdwg.mxu0
    %3210 = vrot.lane.b32.xlu0 %v680, 48
    %v3211 = vpop.permute.xlu0 %3210
    %v3213 = vsel %vm689, %v3108, 0
    %v3216 = vsel %vm1180, %v3211, 0
    %3218 = vmatprep.subr.bf16.mxu0 0
    %3219 = vmatpush1.bf16.msra.mxu0 %v3216
    %3220 = vmatprep.subr.bf16.mxu0 0
    %3221 = vmatpush1.bf16.msra.mxu0 0
    %3222 = vmatprep.subr.bf16.mxu0 0
    %3223 = vmatpush1.bf16.msra.mxu0 0
    %3224 = vmatprep.subr.bf16.mxu0 0
    %3225 = vmatpush1.bf16.msra.mxu0 0
    %3226 = vmatprep.subr.bf16.mxu0 0
    %3227 = vmatpush1.bf16.msra.mxu0 0
    %3228 = vmatprep.subr.bf16.mxu0 0
    %3229 = vmatpush1.bf16.msra.mxu0 0
    %3230 = vmatprep.subr.bf16.mxu0 0
    %3231 = vmatpush1.bf16.msra.mxu0 0
    %3232 = vmatprep.subr.bf16.mxu0 0
    %3233 = vmatpush1.bf16.msra.mxu0 0
    %3234 = vmatprep.subr.bf16.mxu0 0
    %3235 = vmatpush1.bf16.msra.mxu0 0
    %3236 = vmatprep.subr.bf16.mxu0 0
    %3237 = vmatpush1.bf16.msra.mxu0 0
    %3238 = vmatprep.subr.bf16.mxu0 0
    %3239 = vmatpush1.bf16.msra.mxu0 0
    %3240 = vmatprep.subr.bf16.mxu0 0
    %3241 = vmatpush1.bf16.msra.mxu0 0
    %3242 = vmatprep.subr.bf16.mxu0 0
    %3243 = vmatpush1.bf16.msra.mxu0 0
    %3244 = vmatprep.subr.bf16.mxu0 0
    %3245 = vmatpush1.bf16.msra.mxu0 0
    %3246 = vmatprep.subr.bf16.mxu0 0
    %3247 = vmatpush1.bf16.msra.mxu0 0
    %3248 = vmatprep.subr.bf16.mxu0 0
    %3249 = vmatpush1.bf16.msra.mxu0 0
    %3250 = vmatprep.mubr.bf16.mxu0 0
    %3251 = vmatmul.mubr.bf16.gmra.mrb[0].mxu0 %v3213
    %v3252 = vpop.f32.mrb[0].mxu0
    %v3253 = vadd.f32 0.0, %v3252
    %v3254 = vpop.f32.mrb[0].mxu0
    %v3255 = vpop.f32.mrb[0].mxu0
    %v3256 = vpop.f32.mrb[0].mxu0
    %3257 = vdwg.mxu0
    %3258 = vrot.lane.b32.xlu0 %v681, 48
    %v3259 = vpop.permute.xlu0 %3258
    %v3261 = vsel %vm689, %v3109, 0
    %v3264 = vsel %vm1180, %v3259, 0
    %3266 = vmatprep.subr.bf16.mxu0 0
    %3267 = vmatpush1.bf16.msra.mxu0 %v3264
    %3268 = vmatprep.subr.bf16.mxu0 0
    %3269 = vmatpush1.bf16.msra.mxu0 0
    %3270 = vmatprep.subr.bf16.mxu0 0
    %3271 = vmatpush1.bf16.msra.mxu0 0
    %3272 = vmatprep.subr.bf16.mxu0 0
    %3273 = vmatpush1.bf16.msra.mxu0 0
    %3274 = vmatprep.subr.bf16.mxu0 0
    %3275 = vmatpush1.bf16.msra.mxu0 0
    %3276 = vmatprep.subr.bf16.mxu0 0
    %3277 = vmatpush1.bf16.msra.mxu0 0
    %3278 = vmatprep.subr.bf16.mxu0 0
    %3279 = vmatpush1.bf16.msra.mxu0 0
    %3280 = vmatprep.subr.bf16.mxu0 0
    %3281 = vmatpush1.bf16.msra.mxu0 0
    %3282 = vmatprep.subr.bf16.mxu0 0
    %3283 = vmatpush1.bf16.msra.mxu0 0
    %3284 = vmatprep.subr.bf16.mxu0 0
    %3285 = vmatpush1.bf16.msra.mxu0 0
    %3286 = vmatprep.subr.bf16.mxu0 0
    %3287 = vmatpush1.bf16.msra.mxu0 0
    %3288 = vmatprep.subr.bf16.mxu0 0
    %3289 = vmatpush1.bf16.msra.mxu0 0
    %3290 = vmatprep.subr.bf16.mxu0 0
    %3291 = vmatpush1.bf16.msra.mxu0 0
    %3292 = vmatprep.subr.bf16.mxu0 0
    %3293 = vmatpush1.bf16.msra.mxu0 0
    %3294 = vmatprep.subr.bf16.mxu0 0
    %3295 = vmatpush1.bf16.msra.mxu0 0
    %3296 = vmatprep.subr.bf16.mxu0 0
    %3297 = vmatpush1.bf16.msra.mxu0 0
    %3298 = vmatprep.mubr.bf16.mxu0 0
    %3299 = vmatmul.mubr.bf16.gmra.mrb[0].mxu0 %v3261
    %v3300 = vpop.f32.mrb[0].mxu0
    %v3301 = vadd.f32 0.0, %v3300
    %v3302 = vpop.f32.mrb[0].mxu0
    %v3303 = vpop.f32.mrb[0].mxu0
    %v3304 = vpop.f32.mrb[0].mxu0
    %3305 = vdwg.mxu0
    %3306 = vrot.lane.b32.xlu0 %v682, 48
    %v3307 = vpop.permute.xlu0 %3306
    %v3309 = vsel %vm689, %v3110, 0
    %v3312 = vsel %vm1180, %v3307, 0
    %3314 = vmatprep.subr.bf16.mxu0 0
    %3315 = vmatpush1.bf16.msra.mxu0 %v3312
    %3316 = vmatprep.subr.bf16.mxu0 0
    %3317 = vmatpush1.bf16.msra.mxu0 0
    %3318 = vmatprep.subr.bf16.mxu0 0
    %3319 = vmatpush1.bf16.msra.mxu0 0
    %3320 = vmatprep.subr.bf16.mxu0 0
    %3321 = vmatpush1.bf16.msra.mxu0 0
    %3322 = vmatprep.subr.bf16.mxu0 0
    %3323 = vmatpush1.bf16.msra.mxu0 0
    %3324 = vmatprep.subr.bf16.mxu0 0
    %3325 = vmatpush1.bf16.msra.mxu0 0
    %3326 = vmatprep.subr.bf16.mxu0 0
    %3327 = vmatpush1.bf16.msra.mxu0 0
    %3328 = vmatprep.subr.bf16.mxu0 0
    %3329 = vmatpush1.bf16.msra.mxu0 0
    %3330 = vmatprep.subr.bf16.mxu0 0
    %3331 = vmatpush1.bf16.msra.mxu0 0
    %3332 = vmatprep.subr.bf16.mxu0 0
    %3333 = vmatpush1.bf16.msra.mxu0 0
    %3334 = vmatprep.subr.bf16.mxu0 0
    %3335 = vmatpush1.bf16.msra.mxu0 0
    %3336 = vmatprep.subr.bf16.mxu0 0
    %3337 = vmatpush1.bf16.msra.mxu0 0
    %3338 = vmatprep.subr.bf16.mxu0 0
    %3339 = vmatpush1.bf16.msra.mxu0 0
    %3340 = vmatprep.subr.bf16.mxu0 0
    %3341 = vmatpush1.bf16.msra.mxu0 0
    %3342 = vmatprep.subr.bf16.mxu0 0
    %3343 = vmatpush1.bf16.msra.mxu0 0
    %3344 = vmatprep.subr.bf16.mxu0 0
    %3345 = vmatpush1.bf16.msra.mxu0 0
    %3346 = vmatprep.mubr.bf16.mxu0 0
    %3347 = vmatmul.mubr.bf16.gmra.mrb[0].mxu0 %v3309
    %v3348 = vpop.f32.mrb[0].mxu0
    %v3349 = vadd.f32 0.0, %v3348
    %v3350 = vpop.f32.mrb[0].mxu0
    %v3351 = vpop.f32.mrb[0].mxu0
    %v3352 = vpop.f32.mrb[0].mxu0
    %3353 = vdwg.mxu0
    %3354 = vrot.lane.b32.xlu0 %v683, 48
    %v3355 = vpop.permute.xlu0 %3354
    %v3357 = vsel %vm689, %v3111, 0
    %v3360 = vsel %vm1180, %v3355, 0
    %3362 = vmatprep.subr.bf16.mxu0 0
    %3363 = vmatpush1.bf16.msra.mxu0 %v3360
    %3364 = vmatprep.subr.bf16.mxu0 0
    %3365 = vmatpush1.bf16.msra.mxu0 0
    %3366 = vmatprep.subr.bf16.mxu0 0
    %3367 = vmatpush1.bf16.msra.mxu0 0
    %3368 = vmatprep.subr.bf16.mxu0 0
    %3369 = vmatpush1.bf16.msra.mxu0 0
    %3370 = vmatprep.subr.bf16.mxu0 0
    %3371 = vmatpush1.bf16.msra.mxu0 0
    %3372 = vmatprep.subr.bf16.mxu0 0
    %3373 = vmatpush1.bf16.msra.mxu0 0
    %3374 = vmatprep.subr.bf16.mxu0 0
    %3375 = vmatpush1.bf16.msra.mxu0 0
    %3376 = vmatprep.subr.bf16.mxu0 0
    %3377 = vmatpush1.bf16.msra.mxu0 0
    %3378 = vmatprep.subr.bf16.mxu0 0
    %3379 = vmatpush1.bf16.msra.mxu0 0
    %3380 = vmatprep.subr.bf16.mxu0 0
    %3381 = vmatpush1.bf16.msra.mxu0 0
    %3382 = vmatprep.subr.bf16.mxu0 0
    %3383 = vmatpush1.bf16.msra.mxu0 0
    %3384 = vmatprep.subr.bf16.mxu0 0
    %3385 = vmatpush1.bf16.msra.mxu0 0
    %3386 = vmatprep.subr.bf16.mxu0 0
    %3387 = vmatpush1.bf16.msra.mxu0 0
    %3388 = vmatprep.subr.bf16.mxu0 0
    %3389 = vmatpush1.bf16.msra.mxu0 0
    %3390 = vmatprep.subr.bf16.mxu0 0
    %3391 = vmatpush1.bf16.msra.mxu0 0
    %3392 = vmatprep.subr.bf16.mxu0 0
    %3393 = vmatpush1.bf16.msra.mxu0 0
    %3394 = vmatprep.mubr.bf16.mxu0 0
    %3395 = vmatmul.mubr.bf16.gmra.mrb[0].mxu0 %v3357
    %v3396 = vpop.f32.mrb[0].mxu0
    %v3397 = vadd.f32 0.0, %v3396
    %v3398 = vpop.f32.mrb[0].mxu0
    %v3399 = vpop.f32.mrb[0].mxu0
    %v3400 = vpop.f32.mrb[0].mxu0
    %3401 = vdwg.mxu0
    %3402 = vrot.lane.b32.xlu0 %v684, 48
    %v3403 = vpop.permute.xlu0 %3402
    %v3405 = vsel %vm689, %v3112, 0
    %v3408 = vsel %vm1180, %v3403, 0
    %3410 = vmatprep.subr.bf16.mxu0 0
    %3411 = vmatpush1.bf16.msra.mxu0 %v3408
    %3412 = vmatprep.subr.bf16.mxu0 0
    %3413 = vmatpush1.bf16.msra.mxu0 0
    %3414 = vmatprep.subr.bf16.mxu0 0
    %3415 = vmatpush1.bf16.msra.mxu0 0
    %3416 = vmatprep.subr.bf16.mxu0 0
    %3417 = vmatpush1.bf16.msra.mxu0 0
    %3418 = vmatprep.subr.bf16.mxu0 0
    %3419 = vmatpush1.bf16.msra.mxu0 0
    %3420 = vmatprep.subr.bf16.mxu0 0
    %3421 = vmatpush1.bf16.msra.mxu0 0
    %3422 = vmatprep.subr.bf16.mxu0 0
    %3423 = vmatpush1.bf16.msra.mxu0 0
    %3424 = vmatprep.subr.bf16.mxu0 0
    %3425 = vmatpush1.bf16.msra.mxu0 0
    %3426 = vmatprep.subr.bf16.mxu0 0
    %3427 = vmatpush1.bf16.msra.mxu0 0
    %3428 = vmatprep.subr.bf16.mxu0 0
    %3429 = vmatpush1.bf16.msra.mxu0 0
    %3430 = vmatprep.subr.bf16.mxu0 0
    %3431 = vmatpush1.bf16.msra.mxu0 0
    %3432 = vmatprep.subr.bf16.mxu0 0
    %3433 = vmatpush1.bf16.msra.mxu0 0
    %3434 = vmatprep.subr.bf16.mxu0 0
    %3435 = vmatpush1.bf16.msra.mxu0 0
    %3436 = vmatprep.subr.bf16.mxu0 0
    %3437 = vmatpush1.bf16.msra.mxu0 0
    %3438 = vmatprep.subr.bf16.mxu0 0
    %3439 = vmatpush1.bf16.msra.mxu0 0
    %3440 = vmatprep.subr.bf16.mxu0 0
    %3441 = vmatpush1.bf16.msra.mxu0 0
    %3442 = vmatprep.mubr.bf16.mxu0 0
    %3443 = vmatmul.mubr.bf16.gmra.mrb[0].mxu0 %v3405
    %v3444 = vpop.f32.mrb[0].mxu0
    %v3445 = vadd.f32 0.0, %v3444
    %v3446 = vpop.f32.mrb[0].mxu0
    %v3447 = vpop.f32.mrb[0].mxu0
    %v3448 = vpop.f32.mrb[0].mxu0
    %3449 = vdwg.mxu0
    %3450 = vrot.lane.b32.xlu0 %v685, 48
    %v3451 = vpop.permute.xlu0 %3450
    %v3453 = vsel %vm689, %v3113, 0
    %v3456 = vsel %vm1180, %v3451, 0
    %3458 = vmatprep.subr.bf16.mxu0 0
    %3459 = vmatpush1.bf16.msra.mxu0 %v3456
    %3460 = vmatprep.subr.bf16.mxu0 0
    %3461 = vmatpush1.bf16.msra.mxu0 0
    %3462 = vmatprep.subr.bf16.mxu0 0
    %3463 = vmatpush1.bf16.msra.mxu0 0
    %3464 = vmatprep.subr.bf16.mxu0 0
    %3465 = vmatpush1.bf16.msra.mxu0 0
    %3466 = vmatprep.subr.bf16.mxu0 0
    %3467 = vmatpush1.bf16.msra.mxu0 0
    %3468 = vmatprep.subr.bf16.mxu0 0
    %3469 = vmatpush1.bf16.msra.mxu0 0
    %3470 = vmatprep.subr.bf16.mxu0 0
    %3471 = vmatpush1.bf16.msra.mxu0 0
    %3472 = vmatprep.subr.bf16.mxu0 0
    %3473 = vmatpush1.bf16.msra.mxu0 0
    %3474 = vmatprep.subr.bf16.mxu0 0
    %3475 = vmatpush1.bf16.msra.mxu0 0
    %3476 = vmatprep.subr.bf16.mxu0 0
    %3477 = vmatpush1.bf16.msra.mxu0 0
    %3478 = vmatprep.subr.bf16.mxu0 0
    %3479 = vmatpush1.bf16.msra.mxu0 0
    %3480 = vmatprep.subr.bf16.mxu0 0
    %3481 = vmatpush1.bf16.msra.mxu0 0
    %3482 = vmatprep.subr.bf16.mxu0 0
    %3483 = vmatpush1.bf16.msra.mxu0 0
    %3484 = vmatprep.subr.bf16.mxu0 0
    %3485 = vmatpush1.bf16.msra.mxu0 0
    %3486 = vmatprep.subr.bf16.mxu0 0
    %3487 = vmatpush1.bf16.msra.mxu0 0
    %3488 = vmatprep.subr.bf16.mxu0 0
    %3489 = vmatpush1.bf16.msra.mxu0 0
    %3490 = vmatprep.mubr.bf16.mxu0 0
    %3491 = vmatmul.mubr.bf16.gmra.mrb[0].mxu0 %v3453
    %v3492 = vpop.f32.mrb[0].mxu0
    %v3493 = vadd.f32 0.0, %v3492
    %v3494 = vpop.f32.mrb[0].mxu0
    %v3495 = vpop.f32.mrb[0].mxu0
    %v3496 = vpop.f32.mrb[0].mxu0
    %3497 = vdwg.mxu0
    %v3498 = vpack.c.bf16 %v3205, %v3157
    %v3499 = vpack.c.bf16 %v3301, %v3253
    %v3500 = vpack.c.bf16 %v3397, %v3349
    %v3501 = vpack.c.bf16 %v3493, %v3445
    %v3502 = vld [vmem:[%s9 + $0x8] sm:$0xf]
    %v3504 = vsel %vm689, %v3498, 0
    %v3507 = vsel %vm689, %v3499, 0
    %v3510 = vsel %vm689, %v3500, 0
    %v3513 = vsel %vm689, %v3501, 0
    %v3516 = vsel %vm1180, %v3502, 0
    %3518 = vmatprep.subr.bf16.mxu0 0
    %3519 = vmatpush1.bf16.msra.mxu0 %v3516
    %3520 = vmatprep.subr.bf16.mxu0 0
    %3521 = vmatpush1.bf16.msra.mxu0 0
    %3522 = vmatprep.subr.bf16.mxu0 0
    %3523 = vmatpush1.bf16.msra.mxu0 0
    %3524 = vmatprep.subr.bf16.mxu0 0
    %3525 = vmatpush1.bf16.msra.mxu0 0
    %3526 = vmatprep.subr.bf16.mxu0 0
    %3527 = vmatpush1.bf16.msra.mxu0 0
    %3528 = vmatprep.subr.bf16.mxu0 0
    %3529 = vmatpush1.bf16.msra.mxu0 0
    %3530 = vmatprep.subr.bf16.mxu0 0
    %3531 = vmatpush1.bf16.msra.mxu0 0
    %3532 = vmatprep.subr.bf16.mxu0 0
    %3533 = vmatpush1.bf16.msra.mxu0 0
    %3534 = vmatprep.subr.bf16.mxu0 0
    %3535 = vmatpush1.bf16.msra.mxu0 0
    %3536 = vmatprep.subr.bf16.mxu0 0
    %3537 = vmatpush1.bf16.msra.mxu0 0
    %3538 = vmatprep.subr.bf16.mxu0 0
    %3539 = vmatpush1.bf16.msra.mxu0 0
    %3540 = vmatprep.subr.bf16.mxu0 0
    %3541 = vmatpush1.bf16.msra.mxu0 0
    %3542 = vmatprep.subr.bf16.mxu0 0
    %3543 = vmatpush1.bf16.msra.mxu0 0
    %3544 = vmatprep.subr.bf16.mxu0 0
    %3545 = vmatpush1.bf16.msra.mxu0 0
    %3546 = vmatprep.subr.bf16.mxu0 0
    %3547 = vmatpush1.bf16.msra.mxu0 0
    %3548 = vmatprep.subr.bf16.mxu0 0
    %3549 = vmatpush1.bf16.msra.mxu0 0
    %3550 = vmatprep.mubr.bf16.mxu0 0
    %3551 = vmatmul.mubr.bf16.gmra.mrb[0].mxu0 %v3504
    %v3552 = vpop.f32.mrb[0].mxu0
    %v3553 = vadd.f32 0.0, %v3552
    %v3554 = vpop.f32.mrb[0].mxu0
    %v3555 = vpop.f32.mrb[0].mxu0
    %v3556 = vadd.f32 0.0, %v3555
    %v3557 = vpop.f32.mrb[0].mxu0
    %3558 = vmatprep.mubr.bf16.mxu0 0
    %3559 = vmatmul.mubr.bf16.gmra.mrb[0].mxu0 %v3507
    %v3560 = vpop.f32.mrb[0].mxu0
    %v3561 = vadd.f32 0.0, %v3560
    %v3562 = vpop.f32.mrb[0].mxu0
    %v3563 = vpop.f32.mrb[0].mxu0
    %v3564 = vadd.f32 0.0, %v3563
    %v3565 = vpop.f32.mrb[0].mxu0
    %3566 = vmatprep.mubr.bf16.mxu0 0
    %3567 = vmatmul.mubr.bf16.gmra.mrb[0].mxu0 %v3510
    %v3568 = vpop.f32.mrb[0].mxu0
    %v3569 = vadd.f32 0.0, %v3568
    %v3570 = vpop.f32.mrb[0].mxu0
    %v3571 = vpop.f32.mrb[0].mxu0
    %v3572 = vadd.f32 0.0, %v3571
    %v3573 = vpop.f32.mrb[0].mxu0
    %3574 = vmatprep.mubr.bf16.mxu0 0
    %3575 = vmatmul.mubr.bf16.gmra.mrb[0].mxu0 %v3513
    %v3576 = vpop.f32.mrb[0].mxu0
    %v3577 = vadd.f32 0.0, %v3576
    %v3578 = vpop.f32.mrb[0].mxu0
    %v3579 = vpop.f32.mrb[0].mxu0
    %v3580 = vadd.f32 0.0, %v3579
    %v3581 = vpop.f32.mrb[0].mxu0
    %3582 = vdwg.mxu0
    %v3583 = vadd.f32 %v2588, %v3553
    %v3584 = vadd.f32 %v2591, %v3556
    %v3585 = vadd.f32 %v2596, %v3561
    %v3586 = vadd.f32 %v2599, %v3564
    %v3587 = vadd.f32 %v2604, %v3569
    %v3588 = vadd.f32 %v2607, %v3572
    %v3589 = vadd.f32 %v2612, %v3577
    %v3590 = vadd.f32 %v2615, %v3580
    %3591 = vrot.lane.b32.xlu0 %v670, 104
    %v3592 = vpop.permute.xlu0 %3591
    %3593 = vrot.lane.b32.xlu0 %v678, 72
    %v3594 = vpop.permute.xlu0 %3593
    %v3596 = vsel %vm689, %v3592, 0
    %v3599 = vsel %vm689, %v3594, 0
    %3601 = vmatprep.subr.bf16.mxu0 0
    %3602 = vmatpush1.bf16.xpose.msra.mxu0 %v3599
    %3603 = vmatprep.subr.bf16.mxu0 0
    %3604 = vmatpush1.bf16.xpose.msra.mxu0 0
    %3605 = vmatprep.subr.bf16.mxu0 0
    %3606 = vmatpush1.bf16.xpose.msra.mxu0 0
    %3607 = vmatprep.subr.bf16.mxu0 0
    %3608 = vmatpush1.bf16.xpose.msra.mxu0 0
    %3609 = vmatprep.subr.bf16.mxu0 0
    %3610 = vmatpush1.bf16.xpose.msra.mxu0 0
    %3611 = vmatprep.subr.bf16.mxu0 0
    %3612 = vmatpush1.bf16.xpose.msra.mxu0 0
    %3613 = vmatprep.subr.bf16.mxu0 0
    %3614 = vmatpush1.bf16.xpose.msra.mxu0 0
    %3615 = vmatprep.subr.bf16.mxu0 0
    %3616 = vmatpush1.bf16.xpose.msra.mxu0 0
    %3617 = vmatprep.subr.bf16.mxu0 0
    %3618 = vmatpush1.bf16.xpose.msra.mxu0 0
    %3619 = vmatprep.subr.bf16.mxu0 0
    %3620 = vmatpush1.bf16.xpose.msra.mxu0 0
    %3621 = vmatprep.subr.bf16.mxu0 0
    %3622 = vmatpush1.bf16.xpose.msra.mxu0 0
    %3623 = vmatprep.subr.bf16.mxu0 0
    %3624 = vmatpush1.bf16.xpose.msra.mxu0 0
    %3625 = vmatprep.subr.bf16.mxu0 0
    %3626 = vmatpush1.bf16.xpose.msra.mxu0 0
    %3627 = vmatprep.subr.bf16.mxu0 0
    %3628 = vmatpush1.bf16.xpose.msra.mxu0 0
    %3629 = vmatprep.subr.bf16.mxu0 0
    %3630 = vmatpush1.bf16.xpose.msra.mxu0 0
    %3631 = vmatprep.subr.bf16.mxu0 0
    %3632 = vmatpush1.bf16.xpose.msra.mxu0 0
    %3633 = vmatprep.mubr.bf16.mxu0 0
    %3634 = vmatmul.mubr.bf16.gmra.mrb[0].mxu0 %v3596
    %v3635 = vpop.f32.mrb[0].mxu0
    %v3636 = vadd.f32 %v423, %v3635
    %v3637 = vpop.f32.mrb[0].mxu0
    %v3638 = vpop.f32.mrb[0].mxu0
    %v3639 = vpop.f32.mrb[0].mxu0
    %3640 = vdwg.mxu0
    %3641 = vrot.lane.b32.xlu0 %v671, 104
    %v3642 = vpop.permute.xlu0 %3641
    %3643 = vrot.lane.b32.xlu0 %v679, 72
    %v3644 = vpop.permute.xlu0 %3643
    %v3646 = vsel %vm689, %v3642, 0
    %v3649 = vsel %vm689, %v3644, 0
    %3651 = vmatprep.subr.bf16.mxu0 0
    %3652 = vmatpush1.bf16.xpose.msra.mxu0 %v3649
    %3653 = vmatprep.subr.bf16.mxu0 0
    %3654 = vmatpush1.bf16.xpose.msra.mxu0 0
    %3655 = vmatprep.subr.bf16.mxu0 0
    %3656 = vmatpush1.bf16.xpose.msra.mxu0 0
    %3657 = vmatprep.subr.bf16.mxu0 0
    %3658 = vmatpush1.bf16.xpose.msra.mxu0 0
    %3659 = vmatprep.subr.bf16.mxu0 0
    %3660 = vmatpush1.bf16.xpose.msra.mxu0 0
    %3661 = vmatprep.subr.bf16.mxu0 0
    %3662 = vmatpush1.bf16.xpose.msra.mxu0 0
    %3663 = vmatprep.subr.bf16.mxu0 0
    %3664 = vmatpush1.bf16.xpose.msra.mxu0 0
    %3665 = vmatprep.subr.bf16.mxu0 0
    %3666 = vmatpush1.bf16.xpose.msra.mxu0 0
    %3667 = vmatprep.subr.bf16.mxu0 0
    %3668 = vmatpush1.bf16.xpose.msra.mxu0 0
    %3669 = vmatprep.subr.bf16.mxu0 0
    %3670 = vmatpush1.bf16.xpose.msra.mxu0 0
    %3671 = vmatprep.subr.bf16.mxu0 0
    %3672 = vmatpush1.bf16.xpose.msra.mxu0 0
    %3673 = vmatprep.subr.bf16.mxu0 0
    %3674 = vmatpush1.bf16.xpose.msra.mxu0 0
    %3675 = vmatprep.subr.bf16.mxu0 0
    %3676 = vmatpush1.bf16.xpose.msra.mxu0 0
    %3677 = vmatprep.subr.bf16.mxu0 0
    %3678 = vmatpush1.bf16.xpose.msra.mxu0 0
    %3679 = vmatprep.subr.bf16.mxu0 0
    %3680 = vmatpush1.bf16.xpose.msra.mxu0 0
    %3681 = vmatprep.subr.bf16.mxu0 0
    %3682 = vmatpush1.bf16.xpose.msra.mxu0 0
    %3683 = vmatprep.mubr.bf16.mxu0 0
    %3684 = vmatmul.mubr.bf16.gmra.mrb[0].mxu0 %v3646
    %v3685 = vpop.f32.mrb[0].mxu0
    %v3686 = vadd.f32 %v423, %v3685
    %v3687 = vpop.f32.mrb[0].mxu0
    %v3688 = vpop.f32.mrb[0].mxu0
    %v3689 = vpop.f32.mrb[0].mxu0
    %3690 = vdwg.mxu0
    %3691 = vrot.lane.b32.xlu0 %v672, 104
    %v3692 = vpop.permute.xlu0 %3691
    %3693 = vrot.lane.b32.xlu0 %v680, 72
    %v3694 = vpop.permute.xlu0 %3693
    %v3696 = vsel %vm689, %v3692, 0
    %v3699 = vsel %vm689, %v3694, 0
    %3701 = vmatprep.subr.bf16.mxu0 0
    %3702 = vmatpush1.bf16.xpose.msra.mxu0 %v3699
    %3703 = vmatprep.subr.bf16.mxu0 0
    %3704 = vmatpush1.bf16.xpose.msra.mxu0 0
    %3705 = vmatprep.subr.bf16.mxu0 0
    %3706 = vmatpush1.bf16.xpose.msra.mxu0 0
    %3707 = vmatprep.subr.bf16.mxu0 0
    %3708 = vmatpush1.bf16.xpose.msra.mxu0 0
    %3709 = vmatprep.subr.bf16.mxu0 0
    %3710 = vmatpush1.bf16.xpose.msra.mxu0 0
    %3711 = vmatprep.subr.bf16.mxu0 0
    %3712 = vmatpush1.bf16.xpose.msra.mxu0 0
    %3713 = vmatprep.subr.bf16.mxu0 0
    %3714 = vmatpush1.bf16.xpose.msra.mxu0 0
    %3715 = vmatprep.subr.bf16.mxu0 0
    %3716 = vmatpush1.bf16.xpose.msra.mxu0 0
    %3717 = vmatprep.subr.bf16.mxu0 0
    %3718 = vmatpush1.bf16.xpose.msra.mxu0 0
    %3719 = vmatprep.subr.bf16.mxu0 0
    %3720 = vmatpush1.bf16.xpose.msra.mxu0 0
    %3721 = vmatprep.subr.bf16.mxu0 0
    %3722 = vmatpush1.bf16.xpose.msra.mxu0 0
    %3723 = vmatprep.subr.bf16.mxu0 0
    %3724 = vmatpush1.bf16.xpose.msra.mxu0 0
    %3725 = vmatprep.subr.bf16.mxu0 0
    %3726 = vmatpush1.bf16.xpose.msra.mxu0 0
    %3727 = vmatprep.subr.bf16.mxu0 0
    %3728 = vmatpush1.bf16.xpose.msra.mxu0 0
    %3729 = vmatprep.subr.bf16.mxu0 0
    %3730 = vmatpush1.bf16.xpose.msra.mxu0 0
    %3731 = vmatprep.subr.bf16.mxu0 0
    %3732 = vmatpush1.bf16.xpose.msra.mxu0 0
    %3733 = vmatprep.mubr.bf16.mxu0 0
    %3734 = vmatmul.mubr.bf16.gmra.mrb[0].mxu0 %v3696
    %v3735 = vpop.f32.mrb[0].mxu0
    %v3736 = vadd.f32 %v423, %v3735
    %v3737 = vpop.f32.mrb[0].mxu0
    %v3738 = vpop.f32.mrb[0].mxu0
    %v3739 = vpop.f32.mrb[0].mxu0
    %3740 = vdwg.mxu0
    %3741 = vrot.lane.b32.xlu0 %v673, 104
    %v3742 = vpop.permute.xlu0 %3741
    %3743 = vrot.lane.b32.xlu0 %v681, 72
    %v3744 = vpop.permute.xlu0 %3743
    %v3746 = vsel %vm689, %v3742, 0
    %v3749 = vsel %vm689, %v3744, 0
    %3751 = vmatprep.subr.bf16.mxu0 0
    %3752 = vmatpush1.bf16.xpose.msra.mxu0 %v3749
    %3753 = vmatprep.subr.bf16.mxu0 0
    %3754 = vmatpush1.bf16.xpose.msra.mxu0 0
    %3755 = vmatprep.subr.bf16.mxu0 0
    %3756 = vmatpush1.bf16.xpose.msra.mxu0 0
    %3757 = vmatprep.subr.bf16.mxu0 0
    %3758 = vmatpush1.bf16.xpose.msra.mxu0 0
    %3759 = vmatprep.subr.bf16.mxu0 0
    %3760 = vmatpush1.bf16.xpose.msra.mxu0 0
    %3761 = vmatprep.subr.bf16.mxu0 0
    %3762 = vmatpush1.bf16.xpose.msra.mxu0 0
    %3763 = vmatprep.subr.bf16.mxu0 0
    %3764 = vmatpush1.bf16.xpose.msra.mxu0 0
    %3765 = vmatprep.subr.bf16.mxu0 0
    %3766 = vmatpush1.bf16.xpose.msra.mxu0 0
    %3767 = vmatprep.subr.bf16.mxu0 0
    %3768 = vmatpush1.bf16.xpose.msra.mxu0 0
    %3769 = vmatprep.subr.bf16.mxu0 0
    %3770 = vmatpush1.bf16.xpose.msra.mxu0 0
    %3771 = vmatprep.subr.bf16.mxu0 0
    %3772 = vmatpush1.bf16.xpose.msra.mxu0 0
    %3773 = vmatprep.subr.bf16.mxu0 0
    %3774 = vmatpush1.bf16.xpose.msra.mxu0 0
    %3775 = vmatprep.subr.bf16.mxu0 0
    %3776 = vmatpush1.bf16.xpose.msra.mxu0 0
    %3777 = vmatprep.subr.bf16.mxu0 0
    %3778 = vmatpush1.bf16.xpose.msra.mxu0 0
    %3779 = vmatprep.subr.bf16.mxu0 0
    %3780 = vmatpush1.bf16.xpose.msra.mxu0 0
    %3781 = vmatprep.subr.bf16.mxu0 0
    %3782 = vmatpush1.bf16.xpose.msra.mxu0 0
    %3783 = vmatprep.mubr.bf16.mxu0 0
    %3784 = vmatmul.mubr.bf16.gmra.mrb[0].mxu0 %v3746
    %v3785 = vpop.f32.mrb[0].mxu0
    %v3786 = vadd.f32 %v423, %v3785
    %v3787 = vpop.f32.mrb[0].mxu0
    %v3788 = vpop.f32.mrb[0].mxu0
    %v3789 = vpop.f32.mrb[0].mxu0
    %3790 = vdwg.mxu0
    %3791 = vrot.lane.b32.xlu0 %v674, 104
    %v3792 = vpop.permute.xlu0 %3791
    %3793 = vrot.lane.b32.xlu0 %v682, 72
    %v3794 = vpop.permute.xlu0 %3793
    %v3796 = vsel %vm689, %v3792, 0
    %v3799 = vsel %vm689, %v3794, 0
    %3801 = vmatprep.subr.bf16.mxu0 0
    %3802 = vmatpush1.bf16.xpose.msra.mxu0 %v3799
    %3803 = vmatprep.subr.bf16.mxu0 0
    %3804 = vmatpush1.bf16.xpose.msra.mxu0 0
    %3805 = vmatprep.subr.bf16.mxu0 0
    %3806 = vmatpush1.bf16.xpose.msra.mxu0 0
    %3807 = vmatprep.subr.bf16.mxu0 0
    %3808 = vmatpush1.bf16.xpose.msra.mxu0 0
    %3809 = vmatprep.subr.bf16.mxu0 0
    %3810 = vmatpush1.bf16.xpose.msra.mxu0 0
    %3811 = vmatprep.subr.bf16.mxu0 0
    %3812 = vmatpush1.bf16.xpose.msra.mxu0 0
    %3813 = vmatprep.subr.bf16.mxu0 0
    %3814 = vmatpush1.bf16.xpose.msra.mxu0 0
    %3815 = vmatprep.subr.bf16.mxu0 0
    %3816 = vmatpush1.bf16.xpose.msra.mxu0 0
    %3817 = vmatprep.subr.bf16.mxu0 0
    %3818 = vmatpush1.bf16.xpose.msra.mxu0 0
    %3819 = vmatprep.subr.bf16.mxu0 0
    %3820 = vmatpush1.bf16.xpose.msra.mxu0 0
    %3821 = vmatprep.subr.bf16.mxu0 0
    %3822 = vmatpush1.bf16.xpose.msra.mxu0 0
    %3823 = vmatprep.subr.bf16.mxu0 0
    %3824 = vmatpush1.bf16.xpose.msra.mxu0 0
    %3825 = vmatprep.subr.bf16.mxu0 0
    %3826 = vmatpush1.bf16.xpose.msra.mxu0 0
    %3827 = vmatprep.subr.bf16.mxu0 0
    %3828 = vmatpush1.bf16.xpose.msra.mxu0 0
    %3829 = vmatprep.subr.bf16.mxu0 0
    %3830 = vmatpush1.bf16.xpose.msra.mxu0 0
    %3831 = vmatprep.subr.bf16.mxu0 0
    %3832 = vmatpush1.bf16.xpose.msra.mxu0 0
    %3833 = vmatprep.mubr.bf16.mxu0 0
    %3834 = vmatmul.mubr.bf16.gmra.mrb[0].mxu0 %v3796
    %v3835 = vpop.f32.mrb[0].mxu0
    %v3836 = vadd.f32 %v423, %v3835
    %v3837 = vpop.f32.mrb[0].mxu0
    %v3838 = vpop.f32.mrb[0].mxu0
    %v3839 = vpop.f32.mrb[0].mxu0
    %3840 = vdwg.mxu0
    %3841 = vrot.lane.b32.xlu0 %v675, 104
    %v3842 = vpop.permute.xlu0 %3841
    %3843 = vrot.lane.b32.xlu0 %v683, 72
    %v3844 = vpop.permute.xlu0 %3843
    %v3846 = vsel %vm689, %v3842, 0
    %v3849 = vsel %vm689, %v3844, 0
    %3851 = vmatprep.subr.bf16.mxu0 0
    %3852 = vmatpush1.bf16.xpose.msra.mxu0 %v3849
    %3853 = vmatprep.subr.bf16.mxu0 0
    %3854 = vmatpush1.bf16.xpose.msra.mxu0 0
    %3855 = vmatprep.subr.bf16.mxu0 0
    %3856 = vmatpush1.bf16.xpose.msra.mxu0 0
    %3857 = vmatprep.subr.bf16.mxu0 0
    %3858 = vmatpush1.bf16.xpose.msra.mxu0 0
    %3859 = vmatprep.subr.bf16.mxu0 0
    %3860 = vmatpush1.bf16.xpose.msra.mxu0 0
    %3861 = vmatprep.subr.bf16.mxu0 0
    %3862 = vmatpush1.bf16.xpose.msra.mxu0 0
    %3863 = vmatprep.subr.bf16.mxu0 0
    %3864 = vmatpush1.bf16.xpose.msra.mxu0 0
    %3865 = vmatprep.subr.bf16.mxu0 0
    %3866 = vmatpush1.bf16.xpose.msra.mxu0 0
    %3867 = vmatprep.subr.bf16.mxu0 0
    %3868 = vmatpush1.bf16.xpose.msra.mxu0 0
    %3869 = vmatprep.subr.bf16.mxu0 0
    %3870 = vmatpush1.bf16.xpose.msra.mxu0 0
    %3871 = vmatprep.subr.bf16.mxu0 0
    %3872 = vmatpush1.bf16.xpose.msra.mxu0 0
    %3873 = vmatprep.subr.bf16.mxu0 0
    %3874 = vmatpush1.bf16.xpose.msra.mxu0 0
    %3875 = vmatprep.subr.bf16.mxu0 0
    %3876 = vmatpush1.bf16.xpose.msra.mxu0 0
    %3877 = vmatprep.subr.bf16.mxu0 0
    %3878 = vmatpush1.bf16.xpose.msra.mxu0 0
    %3879 = vmatprep.subr.bf16.mxu0 0
    %3880 = vmatpush1.bf16.xpose.msra.mxu0 0
    %3881 = vmatprep.subr.bf16.mxu0 0
    %3882 = vmatpush1.bf16.xpose.msra.mxu0 0
    %3883 = vmatprep.mubr.bf16.mxu0 0
    %3884 = vmatmul.mubr.bf16.gmra.mrb[0].mxu0 %v3846
    %v3885 = vpop.f32.mrb[0].mxu0
    %v3886 = vadd.f32 %v423, %v3885
    %v3887 = vpop.f32.mrb[0].mxu0
    %v3888 = vpop.f32.mrb[0].mxu0
    %v3889 = vpop.f32.mrb[0].mxu0
    %3890 = vdwg.mxu0
    %3891 = vrot.lane.b32.xlu0 %v676, 104
    %v3892 = vpop.permute.xlu0 %3891
    %3893 = vrot.lane.b32.xlu0 %v684, 72
    %v3894 = vpop.permute.xlu0 %3893
    %v3896 = vsel %vm689, %v3892, 0
    %v3899 = vsel %vm689, %v3894, 0
    %3901 = vmatprep.subr.bf16.mxu0 0
    %3902 = vmatpush1.bf16.xpose.msra.mxu0 %v3899
    %3903 = vmatprep.subr.bf16.mxu0 0
    %3904 = vmatpush1.bf16.xpose.msra.mxu0 0
    %3905 = vmatprep.subr.bf16.mxu0 0
    %3906 = vmatpush1.bf16.xpose.msra.mxu0 0
    %3907 = vmatprep.subr.bf16.mxu0 0
    %3908 = vmatpush1.bf16.xpose.msra.mxu0 0
    %3909 = vmatprep.subr.bf16.mxu0 0
    %3910 = vmatpush1.bf16.xpose.msra.mxu0 0
    %3911 = vmatprep.subr.bf16.mxu0 0
    %3912 = vmatpush1.bf16.xpose.msra.mxu0 0
    %3913 = vmatprep.subr.bf16.mxu0 0
    %3914 = vmatpush1.bf16.xpose.msra.mxu0 0
    %3915 = vmatprep.subr.bf16.mxu0 0
    %3916 = vmatpush1.bf16.xpose.msra.mxu0 0
    %3917 = vmatprep.subr.bf16.mxu0 0
    %3918 = vmatpush1.bf16.xpose.msra.mxu0 0
    %3919 = vmatprep.subr.bf16.mxu0 0
    %3920 = vmatpush1.bf16.xpose.msra.mxu0 0
    %3921 = vmatprep.subr.bf16.mxu0 0
    %3922 = vmatpush1.bf16.xpose.msra.mxu0 0
    %3923 = vmatprep.subr.bf16.mxu0 0
    %3924 = vmatpush1.bf16.xpose.msra.mxu0 0
    %3925 = vmatprep.subr.bf16.mxu0 0
    %3926 = vmatpush1.bf16.xpose.msra.mxu0 0
    %3927 = vmatprep.subr.bf16.mxu0 0
    %3928 = vmatpush1.bf16.xpose.msra.mxu0 0
    %3929 = vmatprep.subr.bf16.mxu0 0
    %3930 = vmatpush1.bf16.xpose.msra.mxu0 0
    %3931 = vmatprep.subr.bf16.mxu0 0
    %3932 = vmatpush1.bf16.xpose.msra.mxu0 0
    %3933 = vmatprep.mubr.bf16.mxu0 0
    %3934 = vmatmul.mubr.bf16.gmra.mrb[0].mxu0 %v3896
    %v3935 = vpop.f32.mrb[0].mxu0
    %v3936 = vadd.f32 %v423, %v3935
    %v3937 = vpop.f32.mrb[0].mxu0
    %v3938 = vpop.f32.mrb[0].mxu0
    %v3939 = vpop.f32.mrb[0].mxu0
    %3940 = vdwg.mxu0
    %3941 = vrot.lane.b32.xlu0 %v677, 104
    %v3942 = vpop.permute.xlu0 %3941
    %3943 = vrot.lane.b32.xlu0 %v685, 72
    %v3944 = vpop.permute.xlu0 %3943
    %v3946 = vsel %vm689, %v3942, 0
    %v3949 = vsel %vm689, %v3944, 0
    %3951 = vmatprep.subr.bf16.mxu0 0
    %3952 = vmatpush1.bf16.xpose.msra.mxu0 %v3949
    %3953 = vmatprep.subr.bf16.mxu0 0
    %3954 = vmatpush1.bf16.xpose.msra.mxu0 0
    %3955 = vmatprep.subr.bf16.mxu0 0
    %3956 = vmatpush1.bf16.xpose.msra.mxu0 0
    %3957 = vmatprep.subr.bf16.mxu0 0
    %3958 = vmatpush1.bf16.xpose.msra.mxu0 0
    %3959 = vmatprep.subr.bf16.mxu0 0
    %3960 = vmatpush1.bf16.xpose.msra.mxu0 0
    %3961 = vmatprep.subr.bf16.mxu0 0
    %3962 = vmatpush1.bf16.xpose.msra.mxu0 0
    %3963 = vmatprep.subr.bf16.mxu0 0
    %3964 = vmatpush1.bf16.xpose.msra.mxu0 0
    %3965 = vmatprep.subr.bf16.mxu0 0
    %3966 = vmatpush1.bf16.xpose.msra.mxu0 0
    %3967 = vmatprep.subr.bf16.mxu0 0
    %3968 = vmatpush1.bf16.xpose.msra.mxu0 0
    %3969 = vmatprep.subr.bf16.mxu0 0
    %3970 = vmatpush1.bf16.xpose.msra.mxu0 0
    %3971 = vmatprep.subr.bf16.mxu0 0
    %3972 = vmatpush1.bf16.xpose.msra.mxu0 0
    %3973 = vmatprep.subr.bf16.mxu0 0
    %3974 = vmatpush1.bf16.xpose.msra.mxu0 0
    %3975 = vmatprep.subr.bf16.mxu0 0
    %3976 = vmatpush1.bf16.xpose.msra.mxu0 0
    %3977 = vmatprep.subr.bf16.mxu0 0
    %3978 = vmatpush1.bf16.xpose.msra.mxu0 0
    %3979 = vmatprep.subr.bf16.mxu0 0
    %3980 = vmatpush1.bf16.xpose.msra.mxu0 0
    %3981 = vmatprep.subr.bf16.mxu0 0
    %3982 = vmatpush1.bf16.xpose.msra.mxu0 0
    %3983 = vmatprep.mubr.bf16.mxu0 0
    %3984 = vmatmul.mubr.bf16.gmra.mrb[0].mxu0 %v3946
    %v3985 = vpop.f32.mrb[0].mxu0
    %v3986 = vadd.f32 %v423, %v3985
    %v3987 = vpop.f32.mrb[0].mxu0
    %v3988 = vpop.f32.mrb[0].mxu0
    %v3989 = vpop.f32.mrb[0].mxu0
    %3990 = vdwg.mxu0
    %v3991 = vsel %vm689, %v3636, -inf
    %3992 = vmax.xlane.f32.xlu0 %v3991
    %v3993 = vpop.xlane.xlu0 %3992
    %v3994 = vsel %vm689, %v3686, -inf
    %3995 = vmax.xlane.f32.xlu0 %v3994
    %v3996 = vpop.xlane.xlu0 %3995
    %v3997 = vsel %vm689, %v3736, -inf
    %3998 = vmax.xlane.f32.xlu0 %v3997
    %v3999 = vpop.xlane.xlu0 %3998
    %v4000 = vsel %vm689, %v3786, -inf
    %4001 = vmax.xlane.f32.xlu0 %v4000
    %v4002 = vpop.xlane.xlu0 %4001
    %v4003 = vsel %vm689, %v3836, -inf
    %4004 = vmax.xlane.f32.xlu0 %v4003
    %v4005 = vpop.xlane.xlu0 %4004
    %v4006 = vsel %vm689, %v3886, -inf
    %4007 = vmax.xlane.f32.xlu0 %v4006
    %v4008 = vpop.xlane.xlu0 %4007
    %v4009 = vsel %vm689, %v3936, -inf
    %4010 = vmax.xlane.f32.xlu0 %v4009
    %v4011 = vpop.xlane.xlu0 %4010
    %v4012 = vsel %vm689, %v3986, -inf
    %4013 = vmax.xlane.f32.xlu0 %v4012
    %v4014 = vpop.xlane.xlu0 %4013
    %v4015 = vsub.f32 %v3636, %v3993
    %v4016 = vsub.f32 %v3686, %v3996
    %v4017 = vsub.f32 %v3736, %v3999
    %v4018 = vsub.f32 %v3786, %v4002
    %v4019 = vsub.f32 %v3836, %v4005
    %v4020 = vsub.f32 %v3886, %v4008
    %v4021 = vsub.f32 %v3936, %v4011
    %v4022 = vsub.f32 %v3986, %v4014
    %v4023 = vmul.f32 %v4015, 1.442695
    %v4024 = vpow.pop %v4023
    %v4025 = vmul.f32 %v4016, 1.442695
    %v4026 = vpow.pop %v4025
    %v4027 = vmul.f32 %v4017, 1.442695
    %v4028 = vpow.pop %v4027
    %v4029 = vmul.f32 %v4018, 1.442695
    %v4030 = vpow.pop %v4029
    %v4031 = vmul.f32 %v4019, 1.442695
    %v4032 = vpow.pop %v4031
    %v4033 = vmul.f32 %v4020, 1.442695
    %v4034 = vpow.pop %v4033
    %v4035 = vmul.f32 %v4021, 1.442695
    %v4036 = vpow.pop %v4035
    %v4037 = vmul.f32 %v4022, 1.442695
    %v4038 = vpow.pop %v4037
    %v4039 = vsel %vm689, %v4024, 0.0
    %4040 = vadd.xlane.f32.xlu0 %v4039
    %v4041 = vpop.xlane.xlu0 %4040
    %v4042 = vsel %vm689, %v4026, 0.0
    %4043 = vadd.xlane.f32.xlu0 %v4042
    %v4044 = vpop.xlane.xlu0 %4043
    %v4045 = vsel %vm689, %v4028, 0.0
    %4046 = vadd.xlane.f32.xlu0 %v4045
    %v4047 = vpop.xlane.xlu0 %4046
    %v4048 = vsel %vm689, %v4030, 0.0
    %4049 = vadd.xlane.f32.xlu0 %v4048
    %v4050 = vpop.xlane.xlu0 %4049
    %v4051 = vsel %vm689, %v4032, 0.0
    %4052 = vadd.xlane.f32.xlu0 %v4051
    %v4053 = vpop.xlane.xlu0 %4052
    %v4054 = vsel %vm689, %v4034, 0.0
    %4055 = vadd.xlane.f32.xlu0 %v4054
    %v4056 = vpop.xlane.xlu0 %4055
    %v4057 = vsel %vm689, %v4036, 0.0
    %4058 = vadd.xlane.f32.xlu0 %v4057
    %v4059 = vpop.xlane.xlu0 %4058
    %v4060 = vsel %vm689, %v4038, 0.0
    %4061 = vadd.xlane.f32.xlu0 %v4060
    %v4062 = vpop.xlane.xlu0 %4061
    %v4063 = vrcp.pop %v4041
    %v4064 = vrcp.pop %v4044
    %v4065 = vrcp.pop %v4047
    %v4066 = vrcp.pop %v4050
    %v4067 = vrcp.pop %v4053
    %v4068 = vrcp.pop %v4056
    %v4069 = vrcp.pop %v4059
    %v4070 = vrcp.pop %v4062
    %v4071 = vmul.f32 %v4024, %v4063
    %v4072 = vmul.f32 %v4026, %v4064
    %v4073 = vmul.f32 %v4028, %v4065
    %v4074 = vmul.f32 %v4030, %v4066
    %v4075 = vmul.f32 %v4032, %v4067
    %v4076 = vmul.f32 %v4034, %v4068
    %v4077 = vmul.f32 %v4036, %v4069
    %v4078 = vmul.f32 %v4038, %v4070
    %v4079 = vpack.c.bf16 %v4071, %v4071
    %v4080 = vpack.c.bf16 %v4072, %v4072
    %v4081 = vpack.c.bf16 %v4073, %v4073
    %v4082 = vpack.c.bf16 %v4074, %v4074
    %v4083 = vpack.c.bf16 %v4075, %v4075
    %v4084 = vpack.c.bf16 %v4076, %v4076
    %v4085 = vpack.c.bf16 %v4077, %v4077
    %v4086 = vpack.c.bf16 %v4078, %v4078
    %4087 = vrot.lane.b32.xlu0 %v678, 40
    %v4088 = vpop.permute.xlu0 %4087
    %v4090 = vsel %vm689, %v4079, 0
    %v4093 = vsel %vm1180, %v4088, 0
    %4095 = vmatprep.subr.bf16.mxu0 0
    %4096 = vmatpush1.bf16.msra.mxu0 %v4093
    %4097 = vmatprep.subr.bf16.mxu0 0
    %4098 = vmatpush1.bf16.msra.mxu0 0
    %4099 = vmatprep.subr.bf16.mxu0 0
    %4100 = vmatpush1.bf16.msra.mxu0 0
    %4101 = vmatprep.subr.bf16.mxu0 0
    %4102 = vmatpush1.bf16.msra.mxu0 0
    %4103 = vmatprep.subr.bf16.mxu0 0
    %4104 = vmatpush1.bf16.msra.mxu0 0
    %4105 = vmatprep.subr.bf16.mxu0 0
    %4106 = vmatpush1.bf16.msra.mxu0 0
    %4107 = vmatprep.subr.bf16.mxu0 0
    %4108 = vmatpush1.bf16.msra.mxu0 0
    %4109 = vmatprep.subr.bf16.mxu0 0
    %4110 = vmatpush1.bf16.msra.mxu0 0
    %4111 = vmatprep.subr.bf16.mxu0 0
    %4112 = vmatpush1.bf16.msra.mxu0 0
    %4113 = vmatprep.subr.bf16.mxu0 0
    %4114 = vmatpush1.bf16.msra.mxu0 0
    %4115 = vmatprep.subr.bf16.mxu0 0
    %4116 = vmatpush1.bf16.msra.mxu0 0
    %4117 = vmatprep.subr.bf16.mxu0 0
    %4118 = vmatpush1.bf16.msra.mxu0 0
    %4119 = vmatprep.subr.bf16.mxu0 0
    %4120 = vmatpush1.bf16.msra.mxu0 0
    %4121 = vmatprep.subr.bf16.mxu0 0
    %4122 = vmatpush1.bf16.msra.mxu0 0
    %4123 = vmatprep.subr.bf16.mxu0 0
    %4124 = vmatpush1.bf16.msra.mxu0 0
    %4125 = vmatprep.subr.bf16.mxu0 0
    %4126 = vmatpush1.bf16.msra.mxu0 0
    %4127 = vmatprep.mubr.bf16.mxu0 0
    %4128 = vmatmul.mubr.bf16.gmra.mrb[0].mxu0 %v4090
    %v4129 = vpop.f32.mrb[0].mxu0
    %v4130 = vadd.f32 0.0, %v4129
    %v4131 = vpop.f32.mrb[0].mxu0
    %v4132 = vpop.f32.mrb[0].mxu0
    %v4133 = vpop.f32.mrb[0].mxu0
    %4134 = vdwg.mxu0
    %4135 = vrot.lane.b32.xlu0 %v679, 40
    %v4136 = vpop.permute.xlu0 %4135
    %v4138 = vsel %vm689, %v4080, 0
    %v4141 = vsel %vm1180, %v4136, 0
    %4143 = vmatprep.subr.bf16.mxu0 0
    %4144 = vmatpush1.bf16.msra.mxu0 %v4141
    %4145 = vmatprep.subr.bf16.mxu0 0
    %4146 = vmatpush1.bf16.msra.mxu0 0
    %4147 = vmatprep.subr.bf16.mxu0 0
    %4148 = vmatpush1.bf16.msra.mxu0 0
    %4149 = vmatprep.subr.bf16.mxu0 0
    %4150 = vmatpush1.bf16.msra.mxu0 0
    %4151 = vmatprep.subr.bf16.mxu0 0
    %4152 = vmatpush1.bf16.msra.mxu0 0
    %4153 = vmatprep.subr.bf16.mxu0 0
    %4154 = vmatpush1.bf16.msra.mxu0 0
    %4155 = vmatprep.subr.bf16.mxu0 0
    %4156 = vmatpush1.bf16.msra.mxu0 0
    %4157 = vmatprep.subr.bf16.mxu0 0
    %4158 = vmatpush1.bf16.msra.mxu0 0
    %4159 = vmatprep.subr.bf16.mxu0 0
    %4160 = vmatpush1.bf16.msra.mxu0 0
    %4161 = vmatprep.subr.bf16.mxu0 0
    %4162 = vmatpush1.bf16.msra.mxu0 0
    %4163 = vmatprep.subr.bf16.mxu0 0
    %4164 = vmatpush1.bf16.msra.mxu0 0
    %4165 = vmatprep.subr.bf16.mxu0 0
    %4166 = vmatpush1.bf16.msra.mxu0 0
    %4167 = vmatprep.subr.bf16.mxu0 0
    %4168 = vmatpush1.bf16.msra.mxu0 0
    %4169 = vmatprep.subr.bf16.mxu0 0
    %4170 = vmatpush1.bf16.msra.mxu0 0
    %4171 = vmatprep.subr.bf16.mxu0 0
    %4172 = vmatpush1.bf16.msra.mxu0 0
    %4173 = vmatprep.subr.bf16.mxu0 0
    %4174 = vmatpush1.bf16.msra.mxu0 0
    %4175 = vmatprep.mubr.bf16.mxu0 0
    %4176 = vmatmul.mubr.bf16.gmra.mrb[0].mxu0 %v4138
    %v4177 = vpop.f32.mrb[0].mxu0
    %v4178 = vadd.f32 0.0, %v4177
    %v4179 = vpop.f32.mrb[0].mxu0
    %v4180 = vpop.f32.mrb[0].mxu0
    %v4181 = vpop.f32.mrb[0].mxu0
    %4182 = vdwg.mxu0
    %4183 = vrot.lane.b32.xlu0 %v680, 40
    %v4184 = vpop.permute.xlu0 %4183
    %v4186 = vsel %vm689, %v4081, 0
    %v4189 = vsel %vm1180, %v4184, 0
    %4191 = vmatprep.subr.bf16.mxu0 0
    %4192 = vmatpush1.bf16.msra.mxu0 %v4189
    %4193 = vmatprep.subr.bf16.mxu0 0
    %4194 = vmatpush1.bf16.msra.mxu0 0
    %4195 = vmatprep.subr.bf16.mxu0 0
    %4196 = vmatpush1.bf16.msra.mxu0 0
    %4197 = vmatprep.subr.bf16.mxu0 0
    %4198 = vmatpush1.bf16.msra.mxu0 0
    %4199 = vmatprep.subr.bf16.mxu0 0
    %4200 = vmatpush1.bf16.msra.mxu0 0
    %4201 = vmatprep.subr.bf16.mxu0 0
    %4202 = vmatpush1.bf16.msra.mxu0 0
    %4203 = vmatprep.subr.bf16.mxu0 0
    %4204 = vmatpush1.bf16.msra.mxu0 0
    %4205 = vmatprep.subr.bf16.mxu0 0
    %4206 = vmatpush1.bf16.msra.mxu0 0
    %4207 = vmatprep.subr.bf16.mxu0 0
    %4208 = vmatpush1.bf16.msra.mxu0 0
    %4209 = vmatprep.subr.bf16.mxu0 0
    %4210 = vmatpush1.bf16.msra.mxu0 0
    %4211 = vmatprep.subr.bf16.mxu0 0
    %4212 = vmatpush1.bf16.msra.mxu0 0
    %4213 = vmatprep.subr.bf16.mxu0 0
    %4214 = vmatpush1.bf16.msra.mxu0 0
    %4215 = vmatprep.subr.bf16.mxu0 0
    %4216 = vmatpush1.bf16.msra.mxu0 0
    %4217 = vmatprep.subr.bf16.mxu0 0
    %4218 = vmatpush1.bf16.msra.mxu0 0
    %4219 = vmatprep.subr.bf16.mxu0 0
    %4220 = vmatpush1.bf16.msra.mxu0 0
    %4221 = vmatprep.subr.bf16.mxu0 0
    %4222 = vmatpush1.bf16.msra.mxu0 0
    %4223 = vmatprep.mubr.bf16.mxu0 0
    %4224 = vmatmul.mubr.bf16.gmra.mrb[0].mxu0 %v4186
    %v4225 = vpop.f32.mrb[0].mxu0
    %v4226 = vadd.f32 0.0, %v4225
    %v4227 = vpop.f32.mrb[0].mxu0
    %v4228 = vpop.f32.mrb[0].mxu0
    %v4229 = vpop.f32.mrb[0].mxu0
    %4230 = vdwg.mxu0
    %4231 = vrot.lane.b32.xlu0 %v681, 40
    %v4232 = vpop.permute.xlu0 %4231
    %v4234 = vsel %vm689, %v4082, 0
    %v4237 = vsel %vm1180, %v4232, 0
    %4239 = vmatprep.subr.bf16.mxu0 0
    %4240 = vmatpush1.bf16.msra.mxu0 %v4237
    %4241 = vmatprep.subr.bf16.mxu0 0
    %4242 = vmatpush1.bf16.msra.mxu0 0
    %4243 = vmatprep.subr.bf16.mxu0 0
    %4244 = vmatpush1.bf16.msra.mxu0 0
    %4245 = vmatprep.subr.bf16.mxu0 0
    %4246 = vmatpush1.bf16.msra.mxu0 0
    %4247 = vmatprep.subr.bf16.mxu0 0
    %4248 = vmatpush1.bf16.msra.mxu0 0
    %4249 = vmatprep.subr.bf16.mxu0 0
    %4250 = vmatpush1.bf16.msra.mxu0 0
    %4251 = vmatprep.subr.bf16.mxu0 0
    %4252 = vmatpush1.bf16.msra.mxu0 0
    %4253 = vmatprep.subr.bf16.mxu0 0
    %4254 = vmatpush1.bf16.msra.mxu0 0
    %4255 = vmatprep.subr.bf16.mxu0 0
    %4256 = vmatpush1.bf16.msra.mxu0 0
    %4257 = vmatprep.subr.bf16.mxu0 0
    %4258 = vmatpush1.bf16.msra.mxu0 0
    %4259 = vmatprep.subr.bf16.mxu0 0
    %4260 = vmatpush1.bf16.msra.mxu0 0
    %4261 = vmatprep.subr.bf16.mxu0 0
    %4262 = vmatpush1.bf16.msra.mxu0 0
    %4263 = vmatprep.subr.bf16.mxu0 0
    %4264 = vmatpush1.bf16.msra.mxu0 0
    %4265 = vmatprep.subr.bf16.mxu0 0
    %4266 = vmatpush1.bf16.msra.mxu0 0
    %4267 = vmatprep.subr.bf16.mxu0 0
    %4268 = vmatpush1.bf16.msra.mxu0 0
    %4269 = vmatprep.subr.bf16.mxu0 0
    %4270 = vmatpush1.bf16.msra.mxu0 0
    %4271 = vmatprep.mubr.bf16.mxu0 0
    %4272 = vmatmul.mubr.bf16.gmra.mrb[0].mxu0 %v4234
    %v4273 = vpop.f32.mrb[0].mxu0
    %v4274 = vadd.f32 0.0, %v4273
    %v4275 = vpop.f32.mrb[0].mxu0
    %v4276 = vpop.f32.mrb[0].mxu0
    %v4277 = vpop.f32.mrb[0].mxu0
    %4278 = vdwg.mxu0
    %4279 = vrot.lane.b32.xlu0 %v682, 40
    %v4280 = vpop.permute.xlu0 %4279
    %v4282 = vsel %vm689, %v4083, 0
    %v4285 = vsel %vm1180, %v4280, 0
    %4287 = vmatprep.subr.bf16.mxu0 0
    %4288 = vmatpush1.bf16.msra.mxu0 %v4285
    %4289 = vmatprep.subr.bf16.mxu0 0
    %4290 = vmatpush1.bf16.msra.mxu0 0
    %4291 = vmatprep.subr.bf16.mxu0 0
    %4292 = vmatpush1.bf16.msra.mxu0 0
    %4293 = vmatprep.subr.bf16.mxu0 0
    %4294 = vmatpush1.bf16.msra.mxu0 0
    %4295 = vmatprep.subr.bf16.mxu0 0
    %4296 = vmatpush1.bf16.msra.mxu0 0
    %4297 = vmatprep.subr.bf16.mxu0 0
    %4298 = vmatpush1.bf16.msra.mxu0 0
    %4299 = vmatprep.subr.bf16.mxu0 0
    %4300 = vmatpush1.bf16.msra.mxu0 0
    %4301 = vmatprep.subr.bf16.mxu0 0
    %4302 = vmatpush1.bf16.msra.mxu0 0
    %4303 = vmatprep.subr.bf16.mxu0 0
    %4304 = vmatpush1.bf16.msra.mxu0 0
    %4305 = vmatprep.subr.bf16.mxu0 0
    %4306 = vmatpush1.bf16.msra.mxu0 0
    %4307 = vmatprep.subr.bf16.mxu0 0
    %4308 = vmatpush1.bf16.msra.mxu0 0
    %4309 = vmatprep.subr.bf16.mxu0 0
    %4310 = vmatpush1.bf16.msra.mxu0 0
    %4311 = vmatprep.subr.bf16.mxu0 0
    %4312 = vmatpush1.bf16.msra.mxu0 0
    %4313 = vmatprep.subr.bf16.mxu0 0
    %4314 = vmatpush1.bf16.msra.mxu0 0
    %4315 = vmatprep.subr.bf16.mxu0 0
    %4316 = vmatpush1.bf16.msra.mxu0 0
    %4317 = vmatprep.subr.bf16.mxu0 0
    %4318 = vmatpush1.bf16.msra.mxu0 0
    %4319 = vmatprep.mubr.bf16.mxu0 0
    %4320 = vmatmul.mubr.bf16.gmra.mrb[0].mxu0 %v4282
    %v4321 = vpop.f32.mrb[0].mxu0
    %v4322 = vadd.f32 0.0, %v4321
    %v4323 = vpop.f32.mrb[0].mxu0
    %v4324 = vpop.f32.mrb[0].mxu0
    %v4325 = vpop.f32.mrb[0].mxu0
    %4326 = vdwg.mxu0
    %4327 = vrot.lane.b32.xlu0 %v683, 40
    %v4328 = vpop.permute.xlu0 %4327
    %v4330 = vsel %vm689, %v4084, 0
    %v4333 = vsel %vm1180, %v4328, 0
    %4335 = vmatprep.subr.bf16.mxu0 0
    %4336 = vmatpush1.bf16.msra.mxu0 %v4333
    %4337 = vmatprep.subr.bf16.mxu0 0
    %4338 = vmatpush1.bf16.msra.mxu0 0
    %4339 = vmatprep.subr.bf16.mxu0 0
    %4340 = vmatpush1.bf16.msra.mxu0 0
    %4341 = vmatprep.subr.bf16.mxu0 0
    %4342 = vmatpush1.bf16.msra.mxu0 0
    %4343 = vmatprep.subr.bf16.mxu0 0
    %4344 = vmatpush1.bf16.msra.mxu0 0
    %4345 = vmatprep.subr.bf16.mxu0 0
    %4346 = vmatpush1.bf16.msra.mxu0 0
    %4347 = vmatprep.subr.bf16.mxu0 0
    %4348 = vmatpush1.bf16.msra.mxu0 0
    %4349 = vmatprep.subr.bf16.mxu0 0
    %4350 = vmatpush1.bf16.msra.mxu0 0
    %4351 = vmatprep.subr.bf16.mxu0 0
    %4352 = vmatpush1.bf16.msra.mxu0 0
    %4353 = vmatprep.subr.bf16.mxu0 0
    %4354 = vmatpush1.bf16.msra.mxu0 0
    %4355 = vmatprep.subr.bf16.mxu0 0
    %4356 = vmatpush1.bf16.msra.mxu0 0
    %4357 = vmatprep.subr.bf16.mxu0 0
    %4358 = vmatpush1.bf16.msra.mxu0 0
    %4359 = vmatprep.subr.bf16.mxu0 0
    %4360 = vmatpush1.bf16.msra.mxu0 0
    %4361 = vmatprep.subr.bf16.mxu0 0
    %4362 = vmatpush1.bf16.msra.mxu0 0
    %4363 = vmatprep.subr.bf16.mxu0 0
    %4364 = vmatpush1.bf16.msra.mxu0 0
    %4365 = vmatprep.subr.bf16.mxu0 0
    %4366 = vmatpush1.bf16.msra.mxu0 0
    %4367 = vmatprep.mubr.bf16.mxu0 0
    %4368 = vmatmul.mubr.bf16.gmra.mrb[0].mxu0 %v4330
    %v4369 = vpop.f32.mrb[0].mxu0
    %v4370 = vadd.f32 0.0, %v4369
    %v4371 = vpop.f32.mrb[0].mxu0
    %v4372 = vpop.f32.mrb[0].mxu0
    %v4373 = vpop.f32.mrb[0].mxu0
    %4374 = vdwg.mxu0
    %4375 = vrot.lane.b32.xlu0 %v684, 40
    %v4376 = vpop.permute.xlu0 %4375
    %v4378 = vsel %vm689, %v4085, 0
    %v4381 = vsel %vm1180, %v4376, 0
    %4383 = vmatprep.subr.bf16.mxu0 0
    %4384 = vmatpush1.bf16.msra.mxu0 %v4381
    %4385 = vmatprep.subr.bf16.mxu0 0
    %4386 = vmatpush1.bf16.msra.mxu0 0
    %4387 = vmatprep.subr.bf16.mxu0 0
    %4388 = vmatpush1.bf16.msra.mxu0 0
    %4389 = vmatprep.subr.bf16.mxu0 0
    %4390 = vmatpush1.bf16.msra.mxu0 0
    %4391 = vmatprep.subr.bf16.mxu0 0
    %4392 = vmatpush1.bf16.msra.mxu0 0
    %4393 = vmatprep.subr.bf16.mxu0 0
    %4394 = vmatpush1.bf16.msra.mxu0 0
    %4395 = vmatprep.subr.bf16.mxu0 0
    %4396 = vmatpush1.bf16.msra.mxu0 0
    %4397 = vmatprep.subr.bf16.mxu0 0
    %4398 = vmatpush1.bf16.msra.mxu0 0
    %4399 = vmatprep.subr.bf16.mxu0 0
    %4400 = vmatpush1.bf16.msra.mxu0 0
    %4401 = vmatprep.subr.bf16.mxu0 0
    %4402 = vmatpush1.bf16.msra.mxu0 0
    %4403 = vmatprep.subr.bf16.mxu0 0
    %4404 = vmatpush1.bf16.msra.mxu0 0
    %4405 = vmatprep.subr.bf16.mxu0 0
    %4406 = vmatpush1.bf16.msra.mxu0 0
    %4407 = vmatprep.subr.bf16.mxu0 0
    %4408 = vmatpush1.bf16.msra.mxu0 0
    %4409 = vmatprep.subr.bf16.mxu0 0
    %4410 = vmatpush1.bf16.msra.mxu0 0
    %4411 = vmatprep.subr.bf16.mxu0 0
    %4412 = vmatpush1.bf16.msra.mxu0 0
    %4413 = vmatprep.subr.bf16.mxu0 0
    %4414 = vmatpush1.bf16.msra.mxu0 0
    %4415 = vmatprep.mubr.bf16.mxu0 0
    %4416 = vmatmul.mubr.bf16.gmra.mrb[0].mxu0 %v4378
    %v4417 = vpop.f32.mrb[0].mxu0
    %v4418 = vadd.f32 0.0, %v4417
    %v4419 = vpop.f32.mrb[0].mxu0
    %v4420 = vpop.f32.mrb[0].mxu0
    %v4421 = vpop.f32.mrb[0].mxu0
    %4422 = vdwg.mxu0
    %4423 = vrot.lane.b32.xlu0 %v685, 40
    %v4424 = vpop.permute.xlu0 %4423
    %v4426 = vsel %vm689, %v4086, 0
    %v4429 = vsel %vm1180, %v4424, 0
    %4431 = vmatprep.subr.bf16.mxu0 0
    %4432 = vmatpush1.bf16.msra.mxu0 %v4429
    %4433 = vmatprep.subr.bf16.mxu0 0
    %4434 = vmatpush1.bf16.msra.mxu0 0
    %4435 = vmatprep.subr.bf16.mxu0 0
    %4436 = vmatpush1.bf16.msra.mxu0 0
    %4437 = vmatprep.subr.bf16.mxu0 0
    %4438 = vmatpush1.bf16.msra.mxu0 0
    %4439 = vmatprep.subr.bf16.mxu0 0
    %4440 = vmatpush1.bf16.msra.mxu0 0
    %4441 = vmatprep.subr.bf16.mxu0 0
    %4442 = vmatpush1.bf16.msra.mxu0 0
    %4443 = vmatprep.subr.bf16.mxu0 0
    %4444 = vmatpush1.bf16.msra.mxu0 0
    %4445 = vmatprep.subr.bf16.mxu0 0
    %4446 = vmatpush1.bf16.msra.mxu0 0
    %4447 = vmatprep.subr.bf16.mxu0 0
    %4448 = vmatpush1.bf16.msra.mxu0 0
    %4449 = vmatprep.subr.bf16.mxu0 0
    %4450 = vmatpush1.bf16.msra.mxu0 0
    %4451 = vmatprep.subr.bf16.mxu0 0
    %4452 = vmatpush1.bf16.msra.mxu0 0
    %4453 = vmatprep.subr.bf16.mxu0 0
    %4454 = vmatpush1.bf16.msra.mxu0 0
    %4455 = vmatprep.subr.bf16.mxu0 0
    %4456 = vmatpush1.bf16.msra.mxu0 0
    %4457 = vmatprep.subr.bf16.mxu0 0
    %4458 = vmatpush1.bf16.msra.mxu0 0
    %4459 = vmatprep.subr.bf16.mxu0 0
    %4460 = vmatpush1.bf16.msra.mxu0 0
    %4461 = vmatprep.subr.bf16.mxu0 0
    %4462 = vmatpush1.bf16.msra.mxu0 0
    %4463 = vmatprep.mubr.bf16.mxu0 0
    %4464 = vmatmul.mubr.bf16.gmra.mrb[0].mxu0 %v4426
    %v4465 = vpop.f32.mrb[0].mxu0
    %v4466 = vadd.f32 0.0, %v4465
    %v4467 = vpop.f32.mrb[0].mxu0
    %v4468 = vpop.f32.mrb[0].mxu0
    %v4469 = vpop.f32.mrb[0].mxu0
    %4470 = vdwg.mxu0
    %v4471 = vpack.c.bf16 %v4178, %v4130
    %v4472 = vpack.c.bf16 %v4274, %v4226
    %v4473 = vpack.c.bf16 %v4370, %v4322
    %v4474 = vpack.c.bf16 %v4466, %v4418
    %v4475 = vld [vmem:[%s9 + $0xc] sm:$0xf]
    %v4477 = vsel %vm689, %v4471, 0
    %v4480 = vsel %vm689, %v4472, 0
    %v4483 = vsel %vm689, %v4473, 0
    %v4486 = vsel %vm689, %v4474, 0
    %v4489 = vsel %vm1180, %v4475, 0
    %4491 = vmatprep.subr.bf16.mxu0 0
    %4492 = vmatpush1.bf16.msra.mxu0 %v4489
    %4493 = vmatprep.subr.bf16.mxu0 0
    %4494 = vmatpush1.bf16.msra.mxu0 0
    %4495 = vmatprep.subr.bf16.mxu0 0
    %4496 = vmatpush1.bf16.msra.mxu0 0
    %4497 = vmatprep.subr.bf16.mxu0 0
    %4498 = vmatpush1.bf16.msra.mxu0 0
    %4499 = vmatprep.subr.bf16.mxu0 0
    %4500 = vmatpush1.bf16.msra.mxu0 0
    %4501 = vmatprep.subr.bf16.mxu0 0
    %4502 = vmatpush1.bf16.msra.mxu0 0
    %4503 = vmatprep.subr.bf16.mxu0 0
    %4504 = vmatpush1.bf16.msra.mxu0 0
    %4505 = vmatprep.subr.bf16.mxu0 0
    %4506 = vmatpush1.bf16.msra.mxu0 0
    %4507 = vmatprep.subr.bf16.mxu0 0
    %4508 = vmatpush1.bf16.msra.mxu0 0
    %4509 = vmatprep.subr.bf16.mxu0 0
    %4510 = vmatpush1.bf16.msra.mxu0 0
    %4511 = vmatprep.subr.bf16.mxu0 0
    %4512 = vmatpush1.bf16.msra.mxu0 0
    %4513 = vmatprep.subr.bf16.mxu0 0
    %4514 = vmatpush1.bf16.msra.mxu0 0
    %4515 = vmatprep.subr.bf16.mxu0 0
    %4516 = vmatpush1.bf16.msra.mxu0 0
    %4517 = vmatprep.subr.bf16.mxu0 0
    %4518 = vmatpush1.bf16.msra.mxu0 0
    %4519 = vmatprep.subr.bf16.mxu0 0
    %4520 = vmatpush1.bf16.msra.mxu0 0
    %4521 = vmatprep.subr.bf16.mxu0 0
    %4522 = vmatpush1.bf16.msra.mxu0 0
    %4523 = vmatprep.mubr.bf16.mxu0 0
    %4524 = vmatmul.mubr.bf16.gmra.mrb[0].mxu0 %v4477
    %v4525 = vpop.f32.mrb[0].mxu0
    %v4526 = vadd.f32 0.0, %v4525
    %v4527 = vpop.f32.mrb[0].mxu0
    %v4528 = vpop.f32.mrb[0].mxu0
    %v4529 = vadd.f32 0.0, %v4528
    %v4530 = vpop.f32.mrb[0].mxu0
    %4531 = vmatprep.mubr.bf16.mxu0 0
    %4532 = vmatmul.mubr.bf16.gmra.mrb[0].mxu0 %v4480
    %v4533 = vpop.f32.mrb[0].mxu0
    %v4534 = vadd.f32 0.0, %v4533
    %v4535 = vpop.f32.mrb[0].mxu0
    %v4536 = vpop.f32.mrb[0].mxu0
    %v4537 = vadd.f32 0.0, %v4536
    %v4538 = vpop.f32.mrb[0].mxu0
    %4539 = vmatprep.mubr.bf16.mxu0 0
    %4540 = vmatmul.mubr.bf16.gmra.mrb[0].mxu0 %v4483
    %v4541 = vpop.f32.mrb[0].mxu0
    %v4542 = vadd.f32 0.0, %v4541
    %v4543 = vpop.f32.mrb[0].mxu0
    %v4544 = vpop.f32.mrb[0].mxu0
    %v4545 = vadd.f32 0.0, %v4544
    %v4546 = vpop.f32.mrb[0].mxu0
    %4547 = vmatprep.mubr.bf16.mxu0 0
    %4548 = vmatmul.mubr.bf16.gmra.mrb[0].mxu0 %v4486
    %v4549 = vpop.f32.mrb[0].mxu0
    %v4550 = vadd.f32 0.0, %v4549
    %v4551 = vpop.f32.mrb[0].mxu0
    %v4552 = vpop.f32.mrb[0].mxu0
    %v4553 = vadd.f32 0.0, %v4552
    %v4554 = vpop.f32.mrb[0].mxu0
    %4555 = vdwg.mxu0
    %v4556 = vadd.f32 %v3583, %v4526
    %v4557 = vadd.f32 %v3584, %v4529
    %v4558 = vadd.f32 %v3585, %v4534
    %v4559 = vadd.f32 %v3586, %v4537
    %v4560 = vadd.f32 %v3587, %v4542
    %v4561 = vadd.f32 %v3588, %v4545
    %v4562 = vadd.f32 %v3589, %v4550
    %v4563 = vadd.f32 %v3590, %v4553
    %v4564 = vadd.f32 %v412, %v4556
    %v4565 = vadd.f32 %v413, %v4557
    %v4566 = vadd.f32 %v414, %v4558
    %v4567 = vadd.f32 %v415, %v4559
    %v4568 = vadd.f32 %v416, %v4560
    %v4569 = vadd.f32 %v417, %v4561
    %v4570 = vadd.f32 %v418, %v4562
    %v4571 = vadd.f32 %v419, %v4563
    %v4572 = vld [vmem:[%s10] sm:$0x1]
    %v4574 = vlaneseq
    %v4575 = vshrl.u32 %v4574, 7
    %v4576 = vsub.s32 0, %v4575
    %v4577 = vrot.slane %v4572, %v4576
    %v4579 = vadd.f32 %v4564, %v4577
    %v4580 = vadd.f32 %v4565, %v4577
    %v4581 = vadd.f32 %v4566, %v4577
    %v4582 = vadd.f32 %v4567, %v4577
    %v4583 = vadd.f32 %v4568, %v4577
    %v4584 = vadd.f32 %v4569, %v4577
    %v4585 = vadd.f32 %v4570, %v4577
    %v4586 = vadd.f32 %v4571, %v4577
    %v4587 = vld [vmem:[%s11] sm:$0x1]
    %v4588 = vld [vmem:[%s12] sm:$0x1]
    %v4589 = vsel %vm286, %v4579, 0.0
    %4590 = vadd.xlane.f32.xlu0 %v4589
    %v4591 = vpop.xlane.xlu0 %4590
    %v4592 = vsel %vm286, %v4580, 0.0
    %4593 = vadd.xlane.f32.xlu0 %v4592
    %v4594 = vpop.xlane.xlu0 %4593
    %v4595 = vsel %vm286, %v4581, 0.0
    %4596 = vadd.xlane.f32.xlu0 %v4595
    %v4597 = vpop.xlane.xlu0 %4596
    %v4598 = vsel %vm286, %v4582, 0.0
    %4599 = vadd.xlane.f32.xlu0 %v4598
    %v4600 = vpop.xlane.xlu0 %4599
    %v4601 = vsel %vm286, %v4583, 0.0
    %4602 = vadd.xlane.f32.xlu0 %v4601
    %v4603 = vpop.xlane.xlu0 %4602
    %v4604 = vsel %vm286, %v4584, 0.0
    %4605 = vadd.xlane.f32.xlu0 %v4604
    %v4606 = vpop.xlane.xlu0 %4605
    %v4607 = vsel %vm286, %v4585, 0.0
    %4608 = vadd.xlane.f32.xlu0 %v4607
    %v4609 = vpop.xlane.xlu0 %4608
    %v4610 = vsel %vm286, %v4586, 0.0
    %4611 = vadd.xlane.f32.xlu0 %v4610
    %v4612 = vpop.xlane.xlu0 %4611
    %v4613 = vmul.f32 %v4591, %v311
    %v4614 = vmul.f32 %v4594, %v311
    %v4615 = vmul.f32 %v4597, %v311
    %v4616 = vmul.f32 %v4600, %v311
    %v4617 = vmul.f32 %v4603, %v311
    %v4618 = vmul.f32 %v4606, %v311
    %v4619 = vmul.f32 %v4609, %v311
    %v4620 = vmul.f32 %v4612, %v311
    %v4621 = vsub.f32 %v4579, %v4613
    %v4622 = vsub.f32 %v4580, %v4614
    %v4623 = vsub.f32 %v4581, %v4615
    %v4624 = vsub.f32 %v4582, %v4616
    %v4625 = vsub.f32 %v4583, %v4617
    %v4626 = vsub.f32 %v4584, %v4618
    %v4627 = vsub.f32 %v4585, %v4619
    %v4628 = vsub.f32 %v4586, %v4620
    %v4629 = vmul.f32 %v4621, %v4621
    %v4630 = vmul.f32 %v4622, %v4622
    %v4631 = vmul.f32 %v4623, %v4623
    %v4632 = vmul.f32 %v4624, %v4624
    %v4633 = vmul.f32 %v4625, %v4625
    %v4634 = vmul.f32 %v4626, %v4626
    %v4635 = vmul.f32 %v4627, %v4627
    %v4636 = vmul.f32 %v4628, %v4628
    %v4637 = vsel %vm286, %v4629, 0.0
    %4638 = vadd.xlane.f32.xlu0 %v4637
    %v4639 = vpop.xlane.xlu0 %4638
    %v4640 = vsel %vm286, %v4630, 0.0
    %4641 = vadd.xlane.f32.xlu0 %v4640
    %v4642 = vpop.xlane.xlu0 %4641
    %v4643 = vsel %vm286, %v4631, 0.0
    %4644 = vadd.xlane.f32.xlu0 %v4643
    %v4645 = vpop.xlane.xlu0 %4644
    %v4646 = vsel %vm286, %v4632, 0.0
    %4647 = vadd.xlane.f32.xlu0 %v4646
    %v4648 = vpop.xlane.xlu0 %4647
    %v4649 = vsel %vm286, %v4633, 0.0
    %4650 = vadd.xlane.f32.xlu0 %v4649
    %v4651 = vpop.xlane.xlu0 %4650
    %v4652 = vsel %vm286, %v4634, 0.0
    %4653 = vadd.xlane.f32.xlu0 %v4652
    %v4654 = vpop.xlane.xlu0 %4653
    %v4655 = vsel %vm286, %v4635, 0.0
    %4656 = vadd.xlane.f32.xlu0 %v4655
    %v4657 = vpop.xlane.xlu0 %4656
    %v4658 = vsel %vm286, %v4636, 0.0
    %4659 = vadd.xlane.f32.xlu0 %v4658
    %v4660 = vpop.xlane.xlu0 %4659
    %v4661 = vmul.f32 %v4639, %v311
    %v4662 = vmul.f32 %v4642, %v311
    %v4663 = vmul.f32 %v4645, %v311
    %v4664 = vmul.f32 %v4648, %v311
    %v4665 = vmul.f32 %v4651, %v311
    %v4666 = vmul.f32 %v4654, %v311
    %v4667 = vmul.f32 %v4657, %v311
    %v4668 = vmul.f32 %v4660, %v311
    %v4669 = vadd.f32 %v4661, 1e-05
    %v4670 = vadd.f32 %v4662, 1e-05
    %v4671 = vadd.f32 %v4663, 1e-05
    %v4672 = vadd.f32 %v4664, 1e-05
    %v4673 = vadd.f32 %v4665, 1e-05
    %v4674 = vadd.f32 %v4666, 1e-05
    %v4675 = vadd.f32 %v4667, 1e-05
    %v4676 = vadd.f32 %v4668, 1e-05
    %v4677 = vrsqrt.pop %v4669
    %v4678 = vrsqrt.pop %v4670
    %v4679 = vrsqrt.pop %v4671
    %v4680 = vrsqrt.pop %v4672
    %v4681 = vrsqrt.pop %v4673
    %v4682 = vrsqrt.pop %v4674
    %v4683 = vrsqrt.pop %v4675
    %v4684 = vrsqrt.pop %v4676
    %v4685 = vmul.f32 %v4621, %v4677
    %v4686 = vmul.f32 %v4622, %v4678
    %v4687 = vmul.f32 %v4623, %v4679
    %v4688 = vmul.f32 %v4624, %v4680
    %v4689 = vmul.f32 %v4625, %v4681
    %v4690 = vmul.f32 %v4626, %v4682
    %v4691 = vmul.f32 %v4627, %v4683
    %v4692 = vmul.f32 %v4628, %v4684
    %v4694 = vlaneseq
    %v4695 = vshrl.u32 %v4694, 7
    %v4696 = vsub.s32 0, %v4695
    %v4697 = vrot.slane %v4587, %v4696
    %v4699 = vmul.f32 %v4685, %v4697
    %v4700 = vmul.f32 %v4686, %v4697
    %v4701 = vmul.f32 %v4687, %v4697
    %v4702 = vmul.f32 %v4688, %v4697
    %v4703 = vmul.f32 %v4689, %v4697
    %v4704 = vmul.f32 %v4690, %v4697
    %v4705 = vmul.f32 %v4691, %v4697
    %v4706 = vmul.f32 %v4692, %v4697
    %v4708 = vlaneseq
    %v4709 = vshrl.u32 %v4708, 7
    %v4710 = vsub.s32 0, %v4709
    %v4711 = vrot.slane %v4588, %v4710
    %v4713 = vadd.f32 %v4699, %v4711
    %v4714 = vadd.f32 %v4700, %v4711
    %v4715 = vadd.f32 %v4701, %v4711
    %v4716 = vadd.f32 %v4702, %v4711
    %v4717 = vadd.f32 %v4703, %v4711
    %v4718 = vadd.f32 %v4704, %v4711
    %v4719 = vadd.f32 %v4705, %v4711
    %v4720 = vadd.f32 %v4706, %v4711
    %v4721 = vpack.c.bf16 %v4714, %v4713
    %v4722 = vpack.c.bf16 %v4716, %v4715
    %v4723 = vpack.c.bf16 %v4718, %v4717
    %v4724 = vpack.c.bf16 %v4720, %v4719
    %v4725 = vld [vmem:[%s13] sm:$0xf]
    %v4726 = vld [vmem:[%s13 + $0x4] sm:$0xf]
    %v4727 = vld [vmem:[%s13 + $0x8] sm:$0xf]
    %v4728 = vld [vmem:[%s13 + $0xc] sm:$0xf]
    %v4729 = vld [vmem:[%s14] sm:$0x1]
    %v4731 = vlaneseq
    %v4732 = vshrl.u32 %v4731, 7
    %v4733 = vsub.s32 0, %v4732
    %v4734 = vrot.slane %v4729, %v4733
    %v4740 = vunpack.c.l.b16 %v4725
    %v4741 = vunpack.c.l.b16 %v4726
    %v4742 = vunpack.c.l.b16 %v4727
    %v4743 = vunpack.c.l.b16 %v4728
    %v4744 = vpack.c.b16 %v4741, %v4740
    %v4745 = vpack.c.b16 %v4743, %v4742
    %v4749 = vsel %vm286, %v4721, 0
    %v4752 = vsel %vm286, %v4722, 0
    %v4755 = vsel %vm286, %v4723, 0
    %v4758 = vsel %vm286, %v4724, 0
    %4760 = vmatprep.subr.bf16.mxu0 0
    %4761 = vmatpush1.bf16.msra.mxu0 %v4744
    %4762 = vmatprep.subr.bf16.mxu0 0
    %4763 = vmatpush1.bf16.msra.mxu0 %v4745
    %4764 = vmatprep.subr.bf16.mxu0 0
    %4765 = vmatpush1.bf16.msra.mxu0 0
    %4766 = vmatprep.subr.bf16.mxu0 0
    %4767 = vmatpush1.bf16.msra.mxu0 0
    %4768 = vmatprep.subr.bf16.mxu0 0
    %4769 = vmatpush1.bf16.msra.mxu0 0
    %4770 = vmatprep.subr.bf16.mxu0 0
    %4771 = vmatpush1.bf16.msra.mxu0 0
    %4772 = vmatprep.subr.bf16.mxu0 0
    %4773 = vmatpush1.bf16.msra.mxu0 0
    %4774 = vmatprep.subr.bf16.mxu0 0
    %4775 = vmatpush1.bf16.msra.mxu0 0
    %4776 = vmatprep.subr.bf16.mxu0 0
    %4777 = vmatpush1.bf16.msra.mxu0 0
    %4778 = vmatprep.subr.bf16.mxu0 0
    %4779 = vmatpush1.bf16.msra.mxu0 0
    %4780 = vmatprep.subr.bf16.mxu0 0
    %4781 = vmatpush1.bf16.msra.mxu0 0
    %4782 = vmatprep.subr.bf16.mxu0 0
    %4783 = vmatpush1.bf16.msra.mxu0 0
    %4784 = vmatprep.subr.bf16.mxu0 0
    %4785 = vmatpush1.bf16.msra.mxu0 0
    %4786 = vmatprep.subr.bf16.mxu0 0
    %4787 = vmatpush1.bf16.msra.mxu0 0
    %4788 = vmatprep.subr.bf16.mxu0 0
    %4789 = vmatpush1.bf16.msra.mxu0 0
    %4790 = vmatprep.subr.bf16.mxu0 0
    %4791 = vmatpush1.bf16.msra.mxu0 0
    %4792 = vmatprep.mubr.bf16.mxu0 0
    %4793 = vmatmul.mubr.bf16.gmra.mrb[0].mxu0 %v4749
    %v4794 = vpop.f32.mrb[0].mxu0
    %v4795 = vadd.f32 %v4734, %v4794
    %v4796 = vpop.f32.mrb[0].mxu0
    %v4797 = vpop.f32.mrb[0].mxu0
    %v4798 = vadd.f32 %v4734, %v4797
    %v4799 = vpop.f32.mrb[0].mxu0
    %4800 = vmatprep.mubr.bf16.mxu0 0
    %4801 = vmatmul.mubr.bf16.gmra.mrb[0].mxu0 %v4752
    %v4802 = vpop.f32.mrb[0].mxu0
    %v4803 = vadd.f32 %v4734, %v4802
    %v4804 = vpop.f32.mrb[0].mxu0
    %v4805 = vpop.f32.mrb[0].mxu0
    %v4806 = vadd.f32 %v4734, %v4805
    %v4807 = vpop.f32.mrb[0].mxu0
    %4808 = vmatprep.mubr.bf16.mxu0 0
    %4809 = vmatmul.mubr.bf16.gmra.mrb[0].mxu0 %v4755
    %v4810 = vpop.f32.mrb[0].mxu0
    %v4811 = vadd.f32 %v4734, %v4810
    %v4812 = vpop.f32.mrb[0].mxu0
    %v4813 = vpop.f32.mrb[0].mxu0
    %v4814 = vadd.f32 %v4734, %v4813
    %v4815 = vpop.f32.mrb[0].mxu0
    %4816 = vmatprep.mubr.bf16.mxu0 0
    %4817 = vmatmul.mubr.bf16.gmra.mrb[0].mxu0 %v4758
    %v4818 = vpop.f32.mrb[0].mxu0
    %v4819 = vadd.f32 %v4734, %v4818
    %v4820 = vpop.f32.mrb[0].mxu0
    %v4821 = vpop.f32.mrb[0].mxu0
    %v4822 = vadd.f32 %v4734, %v4821
    %v4823 = vpop.f32.mrb[0].mxu0
    %4824 = vdwg.mxu0
    %v4825 = vmul.f32 %v4795, 1.702
    %v4826 = vmul.f32 %v4798, 1.702
    %v4827 = vmul.f32 %v4803, 1.702
    %v4828 = vmul.f32 %v4806, 1.702
    %v4829 = vmul.f32 %v4811, 1.702
    %v4830 = vmul.f32 %v4814, 1.702
    %v4831 = vmul.f32 %v4819, 1.702
    %v4832 = vmul.f32 %v4822, 1.702
    %v4833 = vxor.u32 %v4825, 2147483648
    %v4834 = vxor.u32 %v4826, 2147483648
    %v4835 = vxor.u32 %v4827, 2147483648
    %v4836 = vxor.u32 %v4828, 2147483648
    %v4837 = vxor.u32 %v4829, 2147483648
    %v4838 = vxor.u32 %v4830, 2147483648
    %v4839 = vxor.u32 %v4831, 2147483648
    %v4840 = vxor.u32 %v4832, 2147483648
    %v4841 = vmul.f32 %v4833, 1.442695
    %v4842 = vpow.pop %v4841
    %v4843 = vmul.f32 %v4834, 1.442695
    %v4844 = vpow.pop %v4843
    %v4845 = vmul.f32 %v4835, 1.442695
    %v4846 = vpow.pop %v4845
    %v4847 = vmul.f32 %v4836, 1.442695
    %v4848 = vpow.pop %v4847
    %v4849 = vmul.f32 %v4837, 1.442695
    %v4850 = vpow.pop %v4849
    %v4851 = vmul.f32 %v4838, 1.442695
    %v4852 = vpow.pop %v4851
    %v4853 = vmul.f32 %v4839, 1.442695
    %v4854 = vpow.pop %v4853
    %v4855 = vmul.f32 %v4840, 1.442695
    %v4856 = vpow.pop %v4855
    %v4857 = vadd.f32 %v4842, 1.0
    %v4858 = vadd.f32 %v4844, 1.0
    %v4859 = vadd.f32 %v4846, 1.0
    %v4860 = vadd.f32 %v4848, 1.0
    %v4861 = vadd.f32 %v4850, 1.0
    %v4862 = vadd.f32 %v4852, 1.0
    %v4863 = vadd.f32 %v4854, 1.0
    %v4864 = vadd.f32 %v4856, 1.0
    %v4865 = vrcp.pop %v4857
    %v4866 = vmul.f32 1.0, %v4865
    %v4867 = vrcp.pop %v4858
    %v4868 = vmul.f32 1.0, %v4867
    %v4869 = vrcp.pop %v4859
    %v4870 = vmul.f32 1.0, %v4869
    %v4871 = vrcp.pop %v4860
    %v4872 = vmul.f32 1.0, %v4871
    %v4873 = vrcp.pop %v4861
    %v4874 = vmul.f32 1.0, %v4873
    %v4875 = vrcp.pop %v4862
    %v4876 = vmul.f32 1.0, %v4875
    %v4877 = vrcp.pop %v4863
    %v4878 = vmul.f32 1.0, %v4877
    %v4879 = vrcp.pop %v4864
    %v4880 = vmul.f32 1.0, %v4879
    %v4881 = vmul.f32 %v4795, %v4866
    %v4882 = vmul.f32 %v4798, %v4868
    %v4883 = vmul.f32 %v4803, %v4870
    %v4884 = vmul.f32 %v4806, %v4872
    %v4885 = vmul.f32 %v4811, %v4874
    %v4886 = vmul.f32 %v4814, %v4876
    %v4887 = vmul.f32 %v4819, %v4878
    %v4888 = vmul.f32 %v4822, %v4880
    %v4889 = vpack.c.bf16 %v4882, %v4881
    %v4890 = vpack.c.bf16 %v4884, %v4883
    %v4891 = vpack.c.bf16 %v4886, %v4885
    %v4892 = vpack.c.bf16 %v4888, %v4887
    %v4893 = vld [vmem:[%s15] sm:$0xf]
    %v4894 = vld [vmem:[%s15 + $0x4] sm:$0xf]
    %v4895 = vld [vmem:[%s15 + $0x8] sm:$0xf]
    %v4896 = vld [vmem:[%s15 + $0xc] sm:$0xf]
    %v4897 = vld [vmem:[%s15 + $0x10] sm:$0xf]
    %v4898 = vld [vmem:[%s15 + $0x14] sm:$0xf]
    %v4899 = vld [vmem:[%s15 + $0x18] sm:$0xf]
    %v4900 = vld [vmem:[%s15 + $0x1c] sm:$0xf]
    %v4901 = vld [vmem:[%s16] sm:$0x1]
    %v4903 = vlaneseq
    %v4904 = vshrl.u32 %v4903, 7
    %v4905 = vsub.s32 0, %v4904
    %v4906 = vrot.slane %v4901, %v4905
    %v4916 = vunpack.c.l.b16 %v4893
    %v4917 = vunpack.c.l.b16 %v4894
    %v4918 = vunpack.c.l.b16 %v4895
    %v4919 = vunpack.c.l.b16 %v4896
    %v4920 = vunpack.c.l.b16 %v4897
    %v4921 = vunpack.c.l.b16 %v4898
    %v4922 = vunpack.c.l.b16 %v4899
    %v4923 = vunpack.c.l.b16 %v4900
    %v4924 = vpack.c.b16 %v4917, %v4916
    %v4925 = vpack.c.b16 %v4919, %v4918
    %v4926 = vpack.c.b16 %v4921, %v4920
    %v4927 = vpack.c.b16 %v4923, %v4922
    %v4933 = vsel %vm206, %v4889, 0
    %v4936 = vsel %vm206, %v4890, 0
    %v4939 = vsel %vm206, %v4891, 0
    %v4942 = vsel %vm206, %v4892, 0
    %4944 = vmatprep.subr.bf16.mxu0 0
    %4945 = vmatpush1.bf16.msra.mxu0 %v4924
    %4946 = vmatprep.subr.bf16.mxu0 0
    %4947 = vmatpush1.bf16.msra.mxu0 %v4925
    %4948 = vmatprep.subr.bf16.mxu0 0
    %4949 = vmatpush1.bf16.msra.mxu0 %v4926
    %4950 = vmatprep.subr.bf16.mxu0 0
    %4951 = vmatpush1.bf16.msra.mxu0 %v4927
    %4952 = vmatprep.subr.bf16.mxu0 0
    %4953 = vmatpush1.bf16.msra.mxu0 0
    %4954 = vmatprep.subr.bf16.mxu0 0
    %4955 = vmatpush1.bf16.msra.mxu0 0
    %4956 = vmatprep.subr.bf16.mxu0 0
    %4957 = vmatpush1.bf16.msra.mxu0 0
    %4958 = vmatprep.subr.bf16.mxu0 0
    %4959 = vmatpush1.bf16.msra.mxu0 0
    %4960 = vmatprep.subr.bf16.mxu0 0
    %4961 = vmatpush1.bf16.msra.mxu0 0
    %4962 = vmatprep.subr.bf16.mxu0 0
    %4963 = vmatpush1.bf16.msra.mxu0 0
    %4964 = vmatprep.subr.bf16.mxu0 0
    %4965 = vmatpush1.bf16.msra.mxu0 0
    %4966 = vmatprep.subr.bf16.mxu0 0
    %4967 = vmatpush1.bf16.msra.mxu0 0
    %4968 = vmatprep.subr.bf16.mxu0 0
    %4969 = vmatpush1.bf16.msra.mxu0 0
    %4970 = vmatprep.subr.bf16.mxu0 0
    %4971 = vmatpush1.bf16.msra.mxu0 0
    %4972 = vmatprep.subr.bf16.mxu0 0
    %4973 = vmatpush1.bf16.msra.mxu0 0
    %4974 = vmatprep.subr.bf16.mxu0 0
    %4975 = vmatpush1.bf16.msra.mxu0 0
    %4976 = vmatprep.mubr.bf16.mxu0 0
    %4977 = vmatmul.mubr.bf16.gmra.mrb[0].mxu0 %v4933
    %v4978 = vpop.f32.mrb[0].mxu0
    %v4979 = vadd.f32 %v4906, %v4978
    %v4980 = vpop.f32.mrb[0].mxu0
    %v4981 = vpop.f32.mrb[0].mxu0
    %v4982 = vadd.f32 %v4906, %v4981
    %v4983 = vpop.f32.mrb[0].mxu0
    %4984 = vmatprep.mubr.bf16.mxu0 0
    %4985 = vmatmul.mubr.bf16.gmra.mrb[0].mxu0 %v4936
    %v4986 = vpop.f32.mrb[0].mxu0
    %v4987 = vadd.f32 %v4906, %v4986
    %v4988 = vpop.f32.mrb[0].mxu0
    %v4989 = vpop.f32.mrb[0].mxu0
    %v4990 = vadd.f32 %v4906, %v4989
    %v4991 = vpop.f32.mrb[0].mxu0
    %4992 = vmatprep.mubr.bf16.mxu0 0
    %4993 = vmatmul.mubr.bf16.gmra.mrb[0].mxu0 %v4939
    %v4994 = vpop.f32.mrb[0].mxu0
    %v4995 = vadd.f32 %v4906, %v4994
    %v4996 = vpop.f32.mrb[0].mxu0
    %v4997 = vpop.f32.mrb[0].mxu0
    %v4998 = vadd.f32 %v4906, %v4997
    %v4999 = vpop.f32.mrb[0].mxu0
    %5000 = vmatprep.mubr.bf16.mxu0 0
    %5001 = vmatmul.mubr.bf16.gmra.mrb[0].mxu0 %v4942
    %v5002 = vpop.f32.mrb[0].mxu0
    %v5003 = vadd.f32 %v4906, %v5002
    %v5004 = vpop.f32.mrb[0].mxu0
    %v5005 = vpop.f32.mrb[0].mxu0
    %v5006 = vadd.f32 %v4906, %v5005
    %v5007 = vpop.f32.mrb[0].mxu0
    %5008 = vdwg.mxu0
    %v5009 = vadd.f32 %v4579, %v4979
    %v5010 = vadd.f32 %v4580, %v4982
    %v5011 = vadd.f32 %v4581, %v4987
    %v5012 = vadd.f32 %v4582, %v4990
    %v5013 = vadd.f32 %v4583, %v4995
    %v5014 = vadd.f32 %v4584, %v4998
    %v5015 = vadd.f32 %v4585, %v5003
    %v5016 = vadd.f32 %v4586, %v5006
    %s5017 = scalar_lea.vmem %s5, 1
    %v5018 = vld [vmem:[%s5017] sm:$0x1]
    %s5019 = scalar_lea.vmem %s6, 1
    %v5020 = vld [vmem:[%s5019] sm:$0x1]
    %v5021 = vsel %vm286, %v5009, 0.0
    %5022 = vadd.xlane.f32.xlu0 %v5021
    %v5023 = vpop.xlane.xlu0 %5022
    %v5024 = vsel %vm286, %v5010, 0.0
    %5025 = vadd.xlane.f32.xlu0 %v5024
    %v5026 = vpop.xlane.xlu0 %5025
    %v5027 = vsel %vm286, %v5011, 0.0
    %5028 = vadd.xlane.f32.xlu0 %v5027
    %v5029 = vpop.xlane.xlu0 %5028
    %v5030 = vsel %vm286, %v5012, 0.0
    %5031 = vadd.xlane.f32.xlu0 %v5030
    %v5032 = vpop.xlane.xlu0 %5031
    %v5033 = vsel %vm286, %v5013, 0.0
    %5034 = vadd.xlane.f32.xlu0 %v5033
    %v5035 = vpop.xlane.xlu0 %5034
    %v5036 = vsel %vm286, %v5014, 0.0
    %5037 = vadd.xlane.f32.xlu0 %v5036
    %v5038 = vpop.xlane.xlu0 %5037
    %v5039 = vsel %vm286, %v5015, 0.0
    %5040 = vadd.xlane.f32.xlu0 %v5039
    %v5041 = vpop.xlane.xlu0 %5040
    %v5042 = vsel %vm286, %v5016, 0.0
    %5043 = vadd.xlane.f32.xlu0 %v5042
    %v5044 = vpop.xlane.xlu0 %5043
    %v5045 = vmul.f32 %v5023, %v311
    %v5046 = vmul.f32 %v5026, %v311
    %v5047 = vmul.f32 %v5029, %v311
    %v5048 = vmul.f32 %v5032, %v311
    %v5049 = vmul.f32 %v5035, %v311
    %v5050 = vmul.f32 %v5038, %v311
    %v5051 = vmul.f32 %v5041, %v311
    %v5052 = vmul.f32 %v5044, %v311
    %v5053 = vsub.f32 %v5009, %v5045
    %v5054 = vsub.f32 %v5010, %v5046
    %v5055 = vsub.f32 %v5011, %v5047
    %v5056 = vsub.f32 %v5012, %v5048
    %v5057 = vsub.f32 %v5013, %v5049
    %v5058 = vsub.f32 %v5014, %v5050
    %v5059 = vsub.f32 %v5015, %v5051
    %v5060 = vsub.f32 %v5016, %v5052
    %v5061 = vmul.f32 %v5053, %v5053
    %v5062 = vmul.f32 %v5054, %v5054
    %v5063 = vmul.f32 %v5055, %v5055
    %v5064 = vmul.f32 %v5056, %v5056
    %v5065 = vmul.f32 %v5057, %v5057
    %v5066 = vmul.f32 %v5058, %v5058
    %v5067 = vmul.f32 %v5059, %v5059
    %v5068 = vmul.f32 %v5060, %v5060
    %v5069 = vsel %vm286, %v5061, 0.0
    %5070 = vadd.xlane.f32.xlu0 %v5069
    %v5071 = vpop.xlane.xlu0 %5070
    %v5072 = vsel %vm286, %v5062, 0.0
    %5073 = vadd.xlane.f32.xlu0 %v5072
    %v5074 = vpop.xlane.xlu0 %5073
    %v5075 = vsel %vm286, %v5063, 0.0
    %5076 = vadd.xlane.f32.xlu0 %v5075
    %v5077 = vpop.xlane.xlu0 %5076
    %v5078 = vsel %vm286, %v5064, 0.0
    %5079 = vadd.xlane.f32.xlu0 %v5078
    %v5080 = vpop.xlane.xlu0 %5079
    %v5081 = vsel %vm286, %v5065, 0.0
    %5082 = vadd.xlane.f32.xlu0 %v5081
    %v5083 = vpop.xlane.xlu0 %5082
    %v5084 = vsel %vm286, %v5066, 0.0
    %5085 = vadd.xlane.f32.xlu0 %v5084
    %v5086 = vpop.xlane.xlu0 %5085
    %v5087 = vsel %vm286, %v5067, 0.0
    %5088 = vadd.xlane.f32.xlu0 %v5087
    %v5089 = vpop.xlane.xlu0 %5088
    %v5090 = vsel %vm286, %v5068, 0.0
    %5091 = vadd.xlane.f32.xlu0 %v5090
    %v5092 = vpop.xlane.xlu0 %5091
    %v5093 = vmul.f32 %v5071, %v311
    %v5094 = vmul.f32 %v5074, %v311
    %v5095 = vmul.f32 %v5077, %v311
    %v5096 = vmul.f32 %v5080, %v311
    %v5097 = vmul.f32 %v5083, %v311
    %v5098 = vmul.f32 %v5086, %v311
    %v5099 = vmul.f32 %v5089, %v311
    %v5100 = vmul.f32 %v5092, %v311
    %v5101 = vadd.f32 %v5093, 1e-05
    %v5102 = vadd.f32 %v5094, 1e-05
    %v5103 = vadd.f32 %v5095, 1e-05
    %v5104 = vadd.f32 %v5096, 1e-05
    %v5105 = vadd.f32 %v5097, 1e-05
    %v5106 = vadd.f32 %v5098, 1e-05
    %v5107 = vadd.f32 %v5099, 1e-05
    %v5108 = vadd.f32 %v5100, 1e-05
    %v5109 = vrsqrt.pop %v5101
    %v5110 = vrsqrt.pop %v5102
    %v5111 = vrsqrt.pop %v5103
    %v5112 = vrsqrt.pop %v5104
    %v5113 = vrsqrt.pop %v5105
    %v5114 = vrsqrt.pop %v5106
    %v5115 = vrsqrt.pop %v5107
    %v5116 = vrsqrt.pop %v5108
    %v5117 = vmul.f32 %v5053, %v5109
    %v5118 = vmul.f32 %v5054, %v5110
    %v5119 = vmul.f32 %v5055, %v5111
    %v5120 = vmul.f32 %v5056, %v5112
    %v5121 = vmul.f32 %v5057, %v5113
    %v5122 = vmul.f32 %v5058, %v5114
    %v5123 = vmul.f32 %v5059, %v5115
    %v5124 = vmul.f32 %v5060, %v5116
    %v5126 = vlaneseq
    %v5127 = vshrl.u32 %v5126, 7
    %v5128 = vsub.s32 0, %v5127
    %v5129 = vrot.slane %v5018, %v5128
    %v5131 = vmul.f32 %v5117, %v5129
    %v5132 = vmul.f32 %v5118, %v5129
    %v5133 = vmul.f32 %v5119, %v5129
    %v5134 = vmul.f32 %v5120, %v5129
    %v5135 = vmul.f32 %v5121, %v5129
    %v5136 = vmul.f32 %v5122, %v5129
    %v5137 = vmul.f32 %v5123, %v5129
    %v5138 = vmul.f32 %v5124, %v5129
    %v5140 = vlaneseq
    %v5141 = vshrl.u32 %v5140, 7
    %v5142 = vsub.s32 0, %v5141
    %v5143 = vrot.slane %v5020, %v5142
    %v5145 = vadd.f32 %v5131, %v5143
    %v5146 = vadd.f32 %v5132, %v5143
    %v5147 = vadd.f32 %v5133, %v5143
    %v5148 = vadd.f32 %v5134, %v5143
    %v5149 = vadd.f32 %v5135, %v5143
    %v5150 = vadd.f32 %v5136, %v5143
    %v5151 = vadd.f32 %v5137, %v5143
    %v5152 = vadd.f32 %v5138, %v5143
    %v5153 = vpack.c.bf16 %v5146, %v5145
    %v5154 = vpack.c.bf16 %v5148, %v5147
    %v5155 = vpack.c.bf16 %v5150, %v5149
    %v5156 = vpack.c.bf16 %v5152, %v5151
    %s5157 = scalar_lea.vmem %s7, 16
    %v5158 = vld [vmem:[%s5157] sm:$0xf]
    %v5159 = vld [vmem:[%s5157 + $0x4] sm:$0xf]
    %v5160 = vld [vmem:[%s5157 + $0x8] sm:$0xf]
    %v5161 = vld [vmem:[%s5157 + $0xc] sm:$0xf]
    %s5162 = scalar_lea.vmem %s8, 1
    %v5163 = vld [vmem:[%s5162] sm:$0x1]
    %v5165 = vlaneseq
    %v5166 = vshrl.u32 %v5165, 7
    %v5167 = vsub.s32 0, %v5166
    %v5168 = vrot.slane %v5163, %v5167
    %v5174 = vunpack.c.l.b16 %v5158
    %v5175 = vunpack.c.l.b16 %v5159
    %v5176 = vunpack.c.l.b16 %v5160
    %v5177 = vunpack.c.l.b16 %v5161
    %v5178 = vpack.c.b16 %v5175, %v5174
    %v5179 = vpack.c.b16 %v5177, %v5176
    %v5183 = vsel %vm286, %v5153, 0
    %v5186 = vsel %vm286, %v5154, 0
    %v5189 = vsel %vm286, %v5155, 0
    %v5192 = vsel %vm286, %v5156, 0
    %5194 = vmatprep.subr.bf16.mxu0 0
    %5195 = vmatpush1.bf16.msra.mxu0 %v5178
    %5196 = vmatprep.subr.bf16.mxu0 0
    %5197 = vmatpush1.bf16.msra.mxu0 %v5179
    %5198 = vmatprep.subr.bf16.mxu0 0
    %5199 = vmatpush1.bf16.msra.mxu0 0
    %5200 = vmatprep.subr.bf16.mxu0 0
    %5201 = vmatpush1.bf16.msra.mxu0 0
    %5202 = vmatprep.subr.bf16.mxu0 0
    %5203 = vmatpush1.bf16.msra.mxu0 0
    %5204 = vmatprep.subr.bf16.mxu0 0
    %5205 = vmatpush1.bf16.msra.mxu0 0
    %5206 = vmatprep.subr.bf16.mxu0 0
    %5207 = vmatpush1.bf16.msra.mxu0 0
    %5208 = vmatprep.subr.bf16.mxu0 0
    %5209 = vmatpush1.bf16.msra.mxu0 0
    %5210 = vmatprep.subr.bf16.mxu0 0
    %5211 = vmatpush1.bf16.msra.mxu0 0
    %5212 = vmatprep.subr.bf16.mxu0 0
    %5213 = vmatpush1.bf16.msra.mxu0 0
    %5214 = vmatprep.subr.bf16.mxu0 0
    %5215 = vmatpush1.bf16.msra.mxu0 0
    %5216 = vmatprep.subr.bf16.mxu0 0
    %5217 = vmatpush1.bf16.msra.mxu0 0
    %5218 = vmatprep.subr.bf16.mxu0 0
    %5219 = vmatpush1.bf16.msra.mxu0 0
    %5220 = vmatprep.subr.bf16.mxu0 0
    %5221 = vmatpush1.bf16.msra.mxu0 0
    %5222 = vmatprep.subr.bf16.mxu0 0
    %5223 = vmatpush1.bf16.msra.mxu0 0
    %5224 = vmatprep.subr.bf16.mxu0 0
    %5225 = vmatpush1.bf16.msra.mxu0 0
    %5226 = vmatprep.mubr.bf16.mxu0 0
    %5227 = vmatmul.mubr.bf16.gmra.mrb[0].mxu0 %v5183
    %v5228 = vpop.f32.mrb[0].mxu0
    %v5229 = vadd.f32 %v5168, %v5228
    %v5230 = vpop.f32.mrb[0].mxu0
    %v5231 = vpop.f32.mrb[0].mxu0
    %v5232 = vadd.f32 %v5168, %v5231
    %v5233 = vpop.f32.mrb[0].mxu0
    %5234 = vmatprep.mubr.bf16.mxu0 0
    %5235 = vmatmul.mubr.bf16.gmra.mrb[0].mxu0 %v5186
    %v5236 = vpop.f32.mrb[0].mxu0
    %v5237 = vadd.f32 %v5168, %v5236
    %v5238 = vpop.f32.mrb[0].mxu0
    %v5239 = vpop.f32.mrb[0].mxu0
    %v5240 = vadd.f32 %v5168, %v5239
    %v5241 = vpop.f32.mrb[0].mxu0
    %5242 = vmatprep.mubr.bf16.mxu0 0
    %5243 = vmatmul.mubr.bf16.gmra.mrb[0].mxu0 %v5189
    %v5244 = vpop.f32.mrb[0].mxu0
    %v5245 = vadd.f32 %v5168, %v5244
    %v5246 = vpop.f32.mrb[0].mxu0
    %v5247 = vpop.f32.mrb[0].mxu0
    %v5248 = vadd.f32 %v5168, %v5247
    %v5249 = vpop.f32.mrb[0].mxu0
    %5250 = vmatprep.mubr.bf16.mxu0 0
    %5251 = vmatmul.mubr.bf16.gmra.mrb[0].mxu0 %v5192
    %v5252 = vpop.f32.mrb[0].mxu0
    %v5253 = vadd.f32 %v5168, %v5252
    %v5254 = vpop.f32.mrb[0].mxu0
    %v5255 = vpop.f32.mrb[0].mxu0
    %v5256 = vadd.f32 %v5168, %v5255
    %v5257 = vpop.f32.mrb[0].mxu0
    %5258 = vdwg.mxu0
    %v5259 = vmul.f32 %v5229, 0.35355338
    %v5260 = vmul.f32 %v5232, 0.35355338
    %v5261 = vmul.f32 %v5237, 0.35355338
    %v5262 = vmul.f32 %v5240, 0.35355338
    %v5263 = vmul.f32 %v5245, 0.35355338
    %v5264 = vmul.f32 %v5248, 0.35355338
    %v5265 = vmul.f32 %v5253, 0.35355338
    %v5266 = vmul.f32 %v5256, 0.35355338
    %v5267 = vpack.c.bf16 %v5259, %v5259
    %v5268 = vpack.c.bf16 %v5260, %v5260
    %v5269 = vpack.c.bf16 %v5261, %v5261
    %v5270 = vpack.c.bf16 %v5262, %v5262
    %v5271 = vpack.c.bf16 %v5263, %v5263
    %v5272 = vpack.c.bf16 %v5264, %v5264
    %v5273 = vpack.c.bf16 %v5265, %v5265
    %v5274 = vpack.c.bf16 %v5266, %v5266
    %v5275 = vpack.c.bf16 %v5229, %v5229
    %v5276 = vpack.c.bf16 %v5232, %v5232
    %v5277 = vpack.c.bf16 %v5237, %v5237
    %v5278 = vpack.c.bf16 %v5240, %v5240
    %v5279 = vpack.c.bf16 %v5245, %v5245
    %v5280 = vpack.c.bf16 %v5248, %v5248
    %v5281 = vpack.c.bf16 %v5253, %v5253
    %v5282 = vpack.c.bf16 %v5256, %v5256
    %5284 = vrot.lane.b32.xlu0 %v5275, 96
    %v5285 = vpop.permute.xlu0 %5284
    %v5287 = vsel %vm689, %v5267, 0
    %v5290 = vsel %vm689, %v5285, 0
    %5292 = vmatprep.subr.bf16.mxu0 0
    %5293 = vmatpush1.bf16.xpose.msra.mxu0 %v5290
    %5294 = vmatprep.subr.bf16.mxu0 0
    %5295 = vmatpush1.bf16.xpose.msra.mxu0 0
    %5296 = vmatprep.subr.bf16.mxu0 0
    %5297 = vmatpush1.bf16.xpose.msra.mxu0 0
    %5298 = vmatprep.subr.bf16.mxu0 0
    %5299 = vmatpush1.bf16.xpose.msra.mxu0 0
    %5300 = vmatprep.subr.bf16.mxu0 0
    %5301 = vmatpush1.bf16.xpose.msra.mxu0 0
    %5302 = vmatprep.subr.bf16.mxu0 0
    %5303 = vmatpush1.bf16.xpose.msra.mxu0 0
    %5304 = vmatprep.subr.bf16.mxu0 0
    %5305 = vmatpush1.bf16.xpose.msra.mxu0 0
    %5306 = vmatprep.subr.bf16.mxu0 0
    %5307 = vmatpush1.bf16.xpose.msra.mxu0 0
    %5308 = vmatprep.subr.bf16.mxu0 0
    %5309 = vmatpush1.bf16.xpose.msra.mxu0 0
    %5310 = vmatprep.subr.bf16.mxu0 0
    %5311 = vmatpush1.bf16.xpose.msra.mxu0 0
    %5312 = vmatprep.subr.bf16.mxu0 0
    %5313 = vmatpush1.bf16.xpose.msra.mxu0 0
    %5314 = vmatprep.subr.bf16.mxu0 0
    %5315 = vmatpush1.bf16.xpose.msra.mxu0 0
    %5316 = vmatprep.subr.bf16.mxu0 0
    %5317 = vmatpush1.bf16.xpose.msra.mxu0 0
    %5318 = vmatprep.subr.bf16.mxu0 0
    %5319 = vmatpush1.bf16.xpose.msra.mxu0 0
    %5320 = vmatprep.subr.bf16.mxu0 0
    %5321 = vmatpush1.bf16.xpose.msra.mxu0 0
    %5322 = vmatprep.subr.bf16.mxu0 0
    %5323 = vmatpush1.bf16.xpose.msra.mxu0 0
    %5324 = vmatprep.mubr.bf16.mxu0 0
    %5325 = vmatmul.mubr.bf16.gmra.mrb[0].mxu0 %v5287
    %v5326 = vpop.f32.mrb[0].mxu0
    %v5327 = vadd.f32 %v423, %v5326
    %v5328 = vpop.f32.mrb[0].mxu0
    %v5329 = vpop.f32.mrb[0].mxu0
    %v5330 = vpop.f32.mrb[0].mxu0
    %5331 = vdwg.mxu0
    %5333 = vrot.lane.b32.xlu0 %v5276, 96
    %v5334 = vpop.permute.xlu0 %5333
    %v5336 = vsel %vm689, %v5268, 0
    %v5339 = vsel %vm689, %v5334, 0
    %5341 = vmatprep.subr.bf16.mxu0 0
    %5342 = vmatpush1.bf16.xpose.msra.mxu0 %v5339
    %5343 = vmatprep.subr.bf16.mxu0 0
    %5344 = vmatpush1.bf16.xpose.msra.mxu0 0
    %5345 = vmatprep.subr.bf16.mxu0 0
    %5346 = vmatpush1.bf16.xpose.msra.mxu0 0
    %5347 = vmatprep.subr.bf16.mxu0 0
    %5348 = vmatpush1.bf16.xpose.msra.mxu0 0
    %5349 = vmatprep.subr.bf16.mxu0 0
    %5350 = vmatpush1.bf16.xpose.msra.mxu0 0
    %5351 = vmatprep.subr.bf16.mxu0 0
    %5352 = vmatpush1.bf16.xpose.msra.mxu0 0
    %5353 = vmatprep.subr.bf16.mxu0 0
    %5354 = vmatpush1.bf16.xpose.msra.mxu0 0
    %5355 = vmatprep.subr.bf16.mxu0 0
    %5356 = vmatpush1.bf16.xpose.msra.mxu0 0
    %5357 = vmatprep.subr.bf16.mxu0 0
    %5358 = vmatpush1.bf16.xpose.msra.mxu0 0
    %5359 = vmatprep.subr.bf16.mxu0 0
    %5360 = vmatpush1.bf16.xpose.msra.mxu0 0
    %5361 = vmatprep.subr.bf16.mxu0 0
    %5362 = vmatpush1.bf16.xpose.msra.mxu0 0
    %5363 = vmatprep.subr.bf16.mxu0 0
    %5364 = vmatpush1.bf16.xpose.msra.mxu0 0
    %5365 = vmatprep.subr.bf16.mxu0 0
    %5366 = vmatpush1.bf16.xpose.msra.mxu0 0
    %5367 = vmatprep.subr.bf16.mxu0 0
    %5368 = vmatpush1.bf16.xpose.msra.mxu0 0
    %5369 = vmatprep.subr.bf16.mxu0 0
    %5370 = vmatpush1.bf16.xpose.msra.mxu0 0
    %5371 = vmatprep.subr.bf16.mxu0 0
    %5372 = vmatpush1.bf16.xpose.msra.mxu0 0
    %5373 = vmatprep.mubr.bf16.mxu0 0
    %5374 = vmatmul.mubr.bf16.gmra.mrb[0].mxu0 %v5336
    %v5375 = vpop.f32.mrb[0].mxu0
    %v5376 = vadd.f32 %v423, %v5375
    %v5377 = vpop.f32.mrb[0].mxu0
    %v5378 = vpop.f32.mrb[0].mxu0
    %v5379 = vpop.f32.mrb[0].mxu0
    %5380 = vdwg.mxu0
    %5382 = vrot.lane.b32.xlu0 %v5277, 96
    %v5383 = vpop.permute.xlu0 %5382
    %v5385 = vsel %vm689, %v5269, 0
    %v5388 = vsel %vm689, %v5383, 0
    %5390 = vmatprep.subr.bf16.mxu0 0
    %5391 = vmatpush1.bf16.xpose.msra.mxu0 %v5388
    %5392 = vmatprep.subr.bf16.mxu0 0
    %5393 = vmatpush1.bf16.xpose.msra.mxu0 0
    %5394 = vmatprep.subr.bf16.mxu0 0
    %5395 = vmatpush1.bf16.xpose.msra.mxu0 0
    %5396 = vmatprep.subr.bf16.mxu0 0
    %5397 = vmatpush1.bf16.xpose.msra.mxu0 0
    %5398 = vmatprep.subr.bf16.mxu0 0
    %5399 = vmatpush1.bf16.xpose.msra.mxu0 0
    %5400 = vmatprep.subr.bf16.mxu0 0
    %5401 = vmatpush1.bf16.xpose.msra.mxu0 0
    %5402 = vmatprep.subr.bf16.mxu0 0
    %5403 = vmatpush1.bf16.xpose.msra.mxu0 0
    %5404 = vmatprep.subr.bf16.mxu0 0
    %5405 = vmatpush1.bf16.xpose.msra.mxu0 0
    %5406 = vmatprep.subr.bf16.mxu0 0
    %5407 = vmatpush1.bf16.xpose.msra.mxu0 0
    %5408 = vmatprep.subr.bf16.mxu0 0
    %5409 = vmatpush1.bf16.xpose.msra.mxu0 0
    %5410 = vmatprep.subr.bf16.mxu0 0
    %5411 = vmatpush1.bf16.xpose.msra.mxu0 0
    %5412 = vmatprep.subr.bf16.mxu0 0
    %5413 = vmatpush1.bf16.xpose.msra.mxu0 0
    %5414 = vmatprep.subr.bf16.mxu0 0
    %5415 = vmatpush1.bf16.xpose.msra.mxu0 0
    %5416 = vmatprep.subr.bf16.mxu0 0
    %5417 = vmatpush1.bf16.xpose.msra.mxu0 0
    %5418 = vmatprep.subr.bf16.mxu0 0
    %5419 = vmatpush1.bf16.xpose.msra.mxu0 0
    %5420 = vmatprep.subr.bf16.mxu0 0
    %5421 = vmatpush1.bf16.xpose.msra.mxu0 0
    %5422 = vmatprep.mubr.bf16.mxu0 0
    %5423 = vmatmul.mubr.bf16.gmra.mrb[0].mxu0 %v5385
    %v5424 = vpop.f32.mrb[0].mxu0
    %v5425 = vadd.f32 %v423, %v5424
    %v5426 = vpop.f32.mrb[0].mxu0
    %v5427 = vpop.f32.mrb[0].mxu0
    %v5428 = vpop.f32.mrb[0].mxu0
    %5429 = vdwg.mxu0
    %5431 = vrot.lane.b32.xlu0 %v5278, 96
    %v5432 = vpop.permute.xlu0 %5431
    %v5434 = vsel %vm689, %v5270, 0
    %v5437 = vsel %vm689, %v5432, 0
    %5439 = vmatprep.subr.bf16.mxu0 0
    %5440 = vmatpush1.bf16.xpose.msra.mxu0 %v5437
    %5441 = vmatprep.subr.bf16.mxu0 0
    %5442 = vmatpush1.bf16.xpose.msra.mxu0 0
    %5443 = vmatprep.subr.bf16.mxu0 0
    %5444 = vmatpush1.bf16.xpose.msra.mxu0 0
    %5445 = vmatprep.subr.bf16.mxu0 0
    %5446 = vmatpush1.bf16.xpose.msra.mxu0 0
    %5447 = vmatprep.subr.bf16.mxu0 0
    %5448 = vmatpush1.bf16.xpose.msra.mxu0 0
    %5449 = vmatprep.subr.bf16.mxu0 0
    %5450 = vmatpush1.bf16.xpose.msra.mxu0 0
    %5451 = vmatprep.subr.bf16.mxu0 0
    %5452 = vmatpush1.bf16.xpose.msra.mxu0 0
    %5453 = vmatprep.subr.bf16.mxu0 0
    %5454 = vmatpush1.bf16.xpose.msra.mxu0 0
    %5455 = vmatprep.subr.bf16.mxu0 0
    %5456 = vmatpush1.bf16.xpose.msra.mxu0 0
    %5457 = vmatprep.subr.bf16.mxu0 0
    %5458 = vmatpush1.bf16.xpose.msra.mxu0 0
    %5459 = vmatprep.subr.bf16.mxu0 0
    %5460 = vmatpush1.bf16.xpose.msra.mxu0 0
    %5461 = vmatprep.subr.bf16.mxu0 0
    %5462 = vmatpush1.bf16.xpose.msra.mxu0 0
    %5463 = vmatprep.subr.bf16.mxu0 0
    %5464 = vmatpush1.bf16.xpose.msra.mxu0 0
    %5465 = vmatprep.subr.bf16.mxu0 0
    %5466 = vmatpush1.bf16.xpose.msra.mxu0 0
    %5467 = vmatprep.subr.bf16.mxu0 0
    %5468 = vmatpush1.bf16.xpose.msra.mxu0 0
    %5469 = vmatprep.subr.bf16.mxu0 0
    %5470 = vmatpush1.bf16.xpose.msra.mxu0 0
    %5471 = vmatprep.mubr.bf16.mxu0 0
    %5472 = vmatmul.mubr.bf16.gmra.mrb[0].mxu0 %v5434
    %v5473 = vpop.f32.mrb[0].mxu0
    %v5474 = vadd.f32 %v423, %v5473
    %v5475 = vpop.f32.mrb[0].mxu0
    %v5476 = vpop.f32.mrb[0].mxu0
    %v5477 = vpop.f32.mrb[0].mxu0
    %5478 = vdwg.mxu0
    %5480 = vrot.lane.b32.xlu0 %v5279, 96
    %v5481 = vpop.permute.xlu0 %5480
    %v5483 = vsel %vm689, %v5271, 0
    %v5486 = vsel %vm689, %v5481, 0
    %5488 = vmatprep.subr.bf16.mxu0 0
    %5489 = vmatpush1.bf16.xpose.msra.mxu0 %v5486
    %5490 = vmatprep.subr.bf16.mxu0 0
    %5491 = vmatpush1.bf16.xpose.msra.mxu0 0
    %5492 = vmatprep.subr.bf16.mxu0 0
    %5493 = vmatpush1.bf16.xpose.msra.mxu0 0
    %5494 = vmatprep.subr.bf16.mxu0 0
    %5495 = vmatpush1.bf16.xpose.msra.mxu0 0
    %5496 = vmatprep.subr.bf16.mxu0 0
    %5497 = vmatpush1.bf16.xpose.msra.mxu0 0
    %5498 = vmatprep.subr.bf16.mxu0 0
    %5499 = vmatpush1.bf16.xpose.msra.mxu0 0
    %5500 = vmatprep.subr.bf16.mxu0 0
    %5501 = vmatpush1.bf16.xpose.msra.mxu0 0
    %5502 = vmatprep.subr.bf16.mxu0 0
    %5503 = vmatpush1.bf16.xpose.msra.mxu0 0
    %5504 = vmatprep.subr.bf16.mxu0 0
    %5505 = vmatpush1.bf16.xpose.msra.mxu0 0
    %5506 = vmatprep.subr.bf16.mxu0 0
    %5507 = vmatpush1.bf16.xpose.msra.mxu0 0
    %5508 = vmatprep.subr.bf16.mxu0 0
    %5509 = vmatpush1.bf16.xpose.msra.mxu0 0
    %5510 = vmatprep.subr.bf16.mxu0 0
    %5511 = vmatpush1.bf16.xpose.msra.mxu0 0
    %5512 = vmatprep.subr.bf16.mxu0 0
    %5513 = vmatpush1.bf16.xpose.msra.mxu0 0
    %5514 = vmatprep.subr.bf16.mxu0 0
    %5515 = vmatpush1.bf16.xpose.msra.mxu0 0
    %5516 = vmatprep.subr.bf16.mxu0 0
    %5517 = vmatpush1.bf16.xpose.msra.mxu0 0
    %5518 = vmatprep.subr.bf16.mxu0 0
    %5519 = vmatpush1.bf16.xpose.msra.mxu0 0
    %5520 = vmatprep.mubr.bf16.mxu0 0
    %5521 = vmatmul.mubr.bf16.gmra.mrb[0].mxu0 %v5483
    %v5522 = vpop.f32.mrb[0].mxu0
    %v5523 = vadd.f32 %v423, %v5522
    %v5524 = vpop.f32.mrb[0].mxu0
    %v5525 = vpop.f32.mrb[0].mxu0
    %v5526 = vpop.f32.mrb[0].mxu0
    %5527 = vdwg.mxu0
    %5529 = vrot.lane.b32.xlu0 %v5280, 96
    %v5530 = vpop.permute.xlu0 %5529
    %v5532 = vsel %vm689, %v5272, 0
    %v5535 = vsel %vm689, %v5530, 0
    %5537 = vmatprep.subr.bf16.mxu0 0
    %5538 = vmatpush1.bf16.xpose.msra.mxu0 %v5535
    %5539 = vmatprep.subr.bf16.mxu0 0
    %5540 = vmatpush1.bf16.xpose.msra.mxu0 0
    %5541 = vmatprep.subr.bf16.mxu0 0
    %5542 = vmatpush1.bf16.xpose.msra.mxu0 0
    %5543 = vmatprep.subr.bf16.mxu0 0
    %5544 = vmatpush1.bf16.xpose.msra.mxu0 0
    %5545 = vmatprep.subr.bf16.mxu0 0
    %5546 = vmatpush1.bf16.xpose.msra.mxu0 0
    %5547 = vmatprep.subr.bf16.mxu0 0
    %5548 = vmatpush1.bf16.xpose.msra.mxu0 0
    %5549 = vmatprep.subr.bf16.mxu0 0
    %5550 = vmatpush1.bf16.xpose.msra.mxu0 0
    %5551 = vmatprep.subr.bf16.mxu0 0
    %5552 = vmatpush1.bf16.xpose.msra.mxu0 0
    %5553 = vmatprep.subr.bf16.mxu0 0
    %5554 = vmatpush1.bf16.xpose.msra.mxu0 0
    %5555 = vmatprep.subr.bf16.mxu0 0
    %5556 = vmatpush1.bf16.xpose.msra.mxu0 0
    %5557 = vmatprep.subr.bf16.mxu0 0
    %5558 = vmatpush1.bf16.xpose.msra.mxu0 0
    %5559 = vmatprep.subr.bf16.mxu0 0
    %5560 = vmatpush1.bf16.xpose.msra.mxu0 0
    %5561 = vmatprep.subr.bf16.mxu0 0
    %5562 = vmatpush1.bf16.xpose.msra.mxu0 0
    %5563 = vmatprep.subr.bf16.mxu0 0
    %5564 = vmatpush1.bf16.xpose.msra.mxu0 0
    %5565 = vmatprep.subr.bf16.mxu0 0
    %5566 = vmatpush1.bf16.xpose.msra.mxu0 0
    %5567 = vmatprep.subr.bf16.mxu0 0
    %5568 = vmatpush1.bf16.xpose.msra.mxu0 0
    %5569 = vmatprep.mubr.bf16.mxu0 0
    %5570 = vmatmul.mubr.bf16.gmra.mrb[0].mxu0 %v5532
    %v5571 = vpop.f32.mrb[0].mxu0
    %v5572 = vadd.f32 %v423, %v5571
    %v5573 = vpop.f32.mrb[0].mxu0
    %v5574 = vpop.f32.mrb[0].mxu0
    %v5575 = vpop.f32.mrb[0].mxu0
    %5576 = vdwg.mxu0
    %5578 = vrot.lane.b32.xlu0 %v5281, 96
    %v5579 = vpop.permute.xlu0 %5578
    %v5581 = vsel %vm689, %v5273, 0
    %v5584 = vsel %vm689, %v5579, 0
    %5586 = vmatprep.subr.bf16.mxu0 0
    %5587 = vmatpush1.bf16.xpose.msra.mxu0 %v5584
    %5588 = vmatprep.subr.bf16.mxu0 0
    %5589 = vmatpush1.bf16.xpose.msra.mxu0 0
    %5590 = vmatprep.subr.bf16.mxu0 0
    %5591 = vmatpush1.bf16.xpose.msra.mxu0 0
    %5592 = vmatprep.subr.bf16.mxu0 0
    %5593 = vmatpush1.bf16.xpose.msra.mxu0 0
    %5594 = vmatprep.subr.bf16.mxu0 0
    %5595 = vmatpush1.bf16.xpose.msra.mxu0 0
    %5596 = vmatprep.subr.bf16.mxu0 0
    %5597 = vmatpush1.bf16.xpose.msra.mxu0 0
    %5598 = vmatprep.subr.bf16.mxu0 0
    %5599 = vmatpush1.bf16.xpose.msra.mxu0 0
    %5600 = vmatprep.subr.bf16.mxu0 0
    %5601 = vmatpush1.bf16.xpose.msra.mxu0 0
    %5602 = vmatprep.subr.bf16.mxu0 0
    %5603 = vmatpush1.bf16.xpose.msra.mxu0 0
    %5604 = vmatprep.subr.bf16.mxu0 0
    %5605 = vmatpush1.bf16.xpose.msra.mxu0 0
    %5606 = vmatprep.subr.bf16.mxu0 0
    %5607 = vmatpush1.bf16.xpose.msra.mxu0 0
    %5608 = vmatprep.subr.bf16.mxu0 0
    %5609 = vmatpush1.bf16.xpose.msra.mxu0 0
    %5610 = vmatprep.subr.bf16.mxu0 0
    %5611 = vmatpush1.bf16.xpose.msra.mxu0 0
    %5612 = vmatprep.subr.bf16.mxu0 0
    %5613 = vmatpush1.bf16.xpose.msra.mxu0 0
    %5614 = vmatprep.subr.bf16.mxu0 0
    %5615 = vmatpush1.bf16.xpose.msra.mxu0 0
    %5616 = vmatprep.subr.bf16.mxu0 0
    %5617 = vmatpush1.bf16.xpose.msra.mxu0 0
    %5618 = vmatprep.mubr.bf16.mxu0 0
    %5619 = vmatmul.mubr.bf16.gmra.mrb[0].mxu0 %v5581
    %v5620 = vpop.f32.mrb[0].mxu0
    %v5621 = vadd.f32 %v423, %v5620
    %v5622 = vpop.f32.mrb[0].mxu0
    %v5623 = vpop.f32.mrb[0].mxu0
    %v5624 = vpop.f32.mrb[0].mxu0
    %5625 = vdwg.mxu0
    %5627 = vrot.lane.b32.xlu0 %v5282, 96
    %v5628 = vpop.permute.xlu0 %5627
    %v5630 = vsel %vm689, %v5274, 0
    %v5633 = vsel %vm689, %v5628, 0
    %5635 = vmatprep.subr.bf16.mxu0 0
    %5636 = vmatpush1.bf16.xpose.msra.mxu0 %v5633
    %5637 = vmatprep.subr.bf16.mxu0 0
    %5638 = vmatpush1.bf16.xpose.msra.mxu0 0
    %5639 = vmatprep.subr.bf16.mxu0 0
    %5640 = vmatpush1.bf16.xpose.msra.mxu0 0
    %5641 = vmatprep.subr.bf16.mxu0 0
    %5642 = vmatpush1.bf16.xpose.msra.mxu0 0
    %5643 = vmatprep.subr.bf16.mxu0 0
    %5644 = vmatpush1.bf16.xpose.msra.mxu0 0
    %5645 = vmatprep.subr.bf16.mxu0 0
    %5646 = vmatpush1.bf16.xpose.msra.mxu0 0
    %5647 = vmatprep.subr.bf16.mxu0 0
    %5648 = vmatpush1.bf16.xpose.msra.mxu0 0
    %5649 = vmatprep.subr.bf16.mxu0 0
    %5650 = vmatpush1.bf16.xpose.msra.mxu0 0
    %5651 = vmatprep.subr.bf16.mxu0 0
    %5652 = vmatpush1.bf16.xpose.msra.mxu0 0
    %5653 = vmatprep.subr.bf16.mxu0 0
    %5654 = vmatpush1.bf16.xpose.msra.mxu0 0
    %5655 = vmatprep.subr.bf16.mxu0 0
    %5656 = vmatpush1.bf16.xpose.msra.mxu0 0
    %5657 = vmatprep.subr.bf16.mxu0 0
    %5658 = vmatpush1.bf16.xpose.msra.mxu0 0
    %5659 = vmatprep.subr.bf16.mxu0 0
    %5660 = vmatpush1.bf16.xpose.msra.mxu0 0
    %5661 = vmatprep.subr.bf16.mxu0 0
    %5662 = vmatpush1.bf16.xpose.msra.mxu0 0
    %5663 = vmatprep.subr.bf16.mxu0 0
    %5664 = vmatpush1.bf16.xpose.msra.mxu0 0
    %5665 = vmatprep.subr.bf16.mxu0 0
    %5666 = vmatpush1.bf16.xpose.msra.mxu0 0
    %5667 = vmatprep.mubr.bf16.mxu0 0
    %5668 = vmatmul.mubr.bf16.gmra.mrb[0].mxu0 %v5630
    %v5669 = vpop.f32.mrb[0].mxu0
    %v5670 = vadd.f32 %v423, %v5669
    %v5671 = vpop.f32.mrb[0].mxu0
    %v5672 = vpop.f32.mrb[0].mxu0
    %v5673 = vpop.f32.mrb[0].mxu0
    %5674 = vdwg.mxu0
    %v5675 = vsel %vm689, %v5327, -inf
    %5676 = vmax.xlane.f32.xlu0 %v5675
    %v5677 = vpop.xlane.xlu0 %5676
    %v5678 = vsel %vm689, %v5376, -inf
    %5679 = vmax.xlane.f32.xlu0 %v5678
    %v5680 = vpop.xlane.xlu0 %5679
    %v5681 = vsel %vm689, %v5425, -inf
    %5682 = vmax.xlane.f32.xlu0 %v5681
    %v5683 = vpop.xlane.xlu0 %5682
    %v5684 = vsel %vm689, %v5474, -inf
    %5685 = vmax.xlane.f32.xlu0 %v5684
    %v5686 = vpop.xlane.xlu0 %5685
    %v5687 = vsel %vm689, %v5523, -inf
    %5688 = vmax.xlane.f32.xlu0 %v5687
    %v5689 = vpop.xlane.xlu0 %5688
    %v5690 = vsel %vm689, %v5572, -inf
    %5691 = vmax.xlane.f32.xlu0 %v5690
    %v5692 = vpop.xlane.xlu0 %5691
    %v5693 = vsel %vm689, %v5621, -inf
    %5694 = vmax.xlane.f32.xlu0 %v5693
    %v5695 = vpop.xlane.xlu0 %5694
    %v5696 = vsel %vm689, %v5670, -inf
    %5697 = vmax.xlane.f32.xlu0 %v5696
    %v5698 = vpop.xlane.xlu0 %5697
    %v5699 = vsub.f32 %v5327, %v5677
    %v5700 = vsub.f32 %v5376, %v5680
    %v5701 = vsub.f32 %v5425, %v5683
    %v5702 = vsub.f32 %v5474, %v5686
    %v5703 = vsub.f32 %v5523, %v5689
    %v5704 = vsub.f32 %v5572, %v5692
    %v5705 = vsub.f32 %v5621, %v5695
    %v5706 = vsub.f32 %v5670, %v5698
    %v5707 = vmul.f32 %v5699, 1.442695
    %v5708 = vpow.pop %v5707
    %v5709 = vmul.f32 %v5700, 1.442695
    %v5710 = vpow.pop %v5709
    %v5711 = vmul.f32 %v5701, 1.442695
    %v5712 = vpow.pop %v5711
    %v5713 = vmul.f32 %v5702, 1.442695
    %v5714 = vpow.pop %v5713
    %v5715 = vmul.f32 %v5703, 1.442695
    %v5716 = vpow.pop %v5715
    %v5717 = vmul.f32 %v5704, 1.442695
    %v5718 = vpow.pop %v5717
    %v5719 = vmul.f32 %v5705, 1.442695
    %v5720 = vpow.pop %v5719
    %v5721 = vmul.f32 %v5706, 1.442695
    %v5722 = vpow.pop %v5721
    %v5723 = vsel %vm689, %v5708, 0.0
    %5724 = vadd.xlane.f32.xlu0 %v5723
    %v5725 = vpop.xlane.xlu0 %5724
    %v5726 = vsel %vm689, %v5710, 0.0
    %5727 = vadd.xlane.f32.xlu0 %v5726
    %v5728 = vpop.xlane.xlu0 %5727
    %v5729 = vsel %vm689, %v5712, 0.0
    %5730 = vadd.xlane.f32.xlu0 %v5729
    %v5731 = vpop.xlane.xlu0 %5730
    %v5732 = vsel %vm689, %v5714, 0.0
    %5733 = vadd.xlane.f32.xlu0 %v5732
    %v5734 = vpop.xlane.xlu0 %5733
    %v5735 = vsel %vm689, %v5716, 0.0
    %5736 = vadd.xlane.f32.xlu0 %v5735
    %v5737 = vpop.xlane.xlu0 %5736
    %v5738 = vsel %vm689, %v5718, 0.0
    %5739 = vadd.xlane.f32.xlu0 %v5738
    %v5740 = vpop.xlane.xlu0 %5739
    %v5741 = vsel %vm689, %v5720, 0.0
    %5742 = vadd.xlane.f32.xlu0 %v5741
    %v5743 = vpop.xlane.xlu0 %5742
    %v5744 = vsel %vm689, %v5722, 0.0
    %5745 = vadd.xlane.f32.xlu0 %v5744
    %v5746 = vpop.xlane.xlu0 %5745
    %v5747 = vrcp.pop %v5725
    %v5748 = vrcp.pop %v5728
    %v5749 = vrcp.pop %v5731
    %v5750 = vrcp.pop %v5734
    %v5751 = vrcp.pop %v5737
    %v5752 = vrcp.pop %v5740
    %v5753 = vrcp.pop %v5743
    %v5754 = vrcp.pop %v5746
    %v5755 = vmul.f32 %v5708, %v5747
    %v5756 = vmul.f32 %v5710, %v5748
    %v5757 = vmul.f32 %v5712, %v5749
    %v5758 = vmul.f32 %v5714, %v5750
    %v5759 = vmul.f32 %v5716, %v5751
    %v5760 = vmul.f32 %v5718, %v5752
    %v5761 = vmul.f32 %v5720, %v5753
    %v5762 = vmul.f32 %v5722, %v5754
    %v5763 = vpack.c.bf16 %v5755, %v5755
    %v5764 = vpack.c.bf16 %v5756, %v5756
    %v5765 = vpack.c.bf16 %v5757, %v5757
    %v5766 = vpack.c.bf16 %v5758, %v5758
    %v5767 = vpack.c.bf16 %v5759, %v5759
    %v5768 = vpack.c.bf16 %v5760, %v5760
    %v5769 = vpack.c.bf16 %v5761, %v5761
    %v5770 = vpack.c.bf16 %v5762, %v5762
    %5771 = vrot.lane.b32.xlu0 %v5275, 64
    %v5772 = vpop.permute.xlu0 %5771
    %v5774 = vsel %vm689, %v5763, 0
    %v5777 = vsel %vm1180, %v5772, 0
    %5779 = vmatprep.subr.bf16.mxu0 0
    %5780 = vmatpush1.bf16.msra.mxu0 %v5777
    %5781 = vmatprep.subr.bf16.mxu0 0
    %5782 = vmatpush1.bf16.msra.mxu0 0
    %5783 = vmatprep.subr.bf16.mxu0 0
    %5784 = vmatpush1.bf16.msra.mxu0 0
    %5785 = vmatprep.subr.bf16.mxu0 0
    %5786 = vmatpush1.bf16.msra.mxu0 0
    %5787 = vmatprep.subr.bf16.mxu0 0
    %5788 = vmatpush1.bf16.msra.mxu0 0
    %5789 = vmatprep.subr.bf16.mxu0 0
    %5790 = vmatpush1.bf16.msra.mxu0 0
    %5791 = vmatprep.subr.bf16.mxu0 0
    %5792 = vmatpush1.bf16.msra.mxu0 0
    %5793 = vmatprep.subr.bf16.mxu0 0
    %5794 = vmatpush1.bf16.msra.mxu0 0
    %5795 = vmatprep.subr.bf16.mxu0 0
    %5796 = vmatpush1.bf16.msra.mxu0 0
    %5797 = vmatprep.subr.bf16.mxu0 0
    %5798 = vmatpush1.bf16.msra.mxu0 0
    %5799 = vmatprep.subr.bf16.mxu0 0
    %5800 = vmatpush1.bf16.msra.mxu0 0
    %5801 = vmatprep.subr.bf16.mxu0 0
    %5802 = vmatpush1.bf16.msra.mxu0 0
    %5803 = vmatprep.subr.bf16.mxu0 0
    %5804 = vmatpush1.bf16.msra.mxu0 0
    %5805 = vmatprep.subr.bf16.mxu0 0
    %5806 = vmatpush1.bf16.msra.mxu0 0
    %5807 = vmatprep.subr.bf16.mxu0 0
    %5808 = vmatpush1.bf16.msra.mxu0 0
    %5809 = vmatprep.subr.bf16.mxu0 0
    %5810 = vmatpush1.bf16.msra.mxu0 0
    %5811 = vmatprep.mubr.bf16.mxu0 0
    %5812 = vmatmul.mubr.bf16.gmra.mrb[0].mxu0 %v5774
    %v5813 = vpop.f32.mrb[0].mxu0
    %v5814 = vadd.f32 0.0, %v5813
    %v5815 = vpop.f32.mrb[0].mxu0
    %v5816 = vpop.f32.mrb[0].mxu0
    %v5817 = vpop.f32.mrb[0].mxu0
    %5818 = vdwg.mxu0
    %5819 = vrot.lane.b32.xlu0 %v5276, 64
    %v5820 = vpop.permute.xlu0 %5819
    %v5822 = vsel %vm689, %v5764, 0
    %v5825 = vsel %vm1180, %v5820, 0
    %5827 = vmatprep.subr.bf16.mxu0 0
    %5828 = vmatpush1.bf16.msra.mxu0 %v5825
    %5829 = vmatprep.subr.bf16.mxu0 0
    %5830 = vmatpush1.bf16.msra.mxu0 0
    %5831 = vmatprep.subr.bf16.mxu0 0
    %5832 = vmatpush1.bf16.msra.mxu0 0
    %5833 = vmatprep.subr.bf16.mxu0 0
    %5834 = vmatpush1.bf16.msra.mxu0 0
    %5835 = vmatprep.subr.bf16.mxu0 0
    %5836 = vmatpush1.bf16.msra.mxu0 0
    %5837 = vmatprep.subr.bf16.mxu0 0
    %5838 = vmatpush1.bf16.msra.mxu0 0
    %5839 = vmatprep.subr.bf16.mxu0 0
    %5840 = vmatpush1.bf16.msra.mxu0 0
    %5841 = vmatprep.subr.bf16.mxu0 0
    %5842 = vmatpush1.bf16.msra.mxu0 0
    %5843 = vmatprep.subr.bf16.mxu0 0
    %5844 = vmatpush1.bf16.msra.mxu0 0
    %5845 = vmatprep.subr.bf16.mxu0 0
    %5846 = vmatpush1.bf16.msra.mxu0 0
    %5847 = vmatprep.subr.bf16.mxu0 0
    %5848 = vmatpush1.bf16.msra.mxu0 0
    %5849 = vmatprep.subr.bf16.mxu0 0
    %5850 = vmatpush1.bf16.msra.mxu0 0
    %5851 = vmatprep.subr.bf16.mxu0 0
    %5852 = vmatpush1.bf16.msra.mxu0 0
    %5853 = vmatprep.subr.bf16.mxu0 0
    %5854 = vmatpush1.bf16.msra.mxu0 0
    %5855 = vmatprep.subr.bf16.mxu0 0
    %5856 = vmatpush1.bf16.msra.mxu0 0
    %5857 = vmatprep.subr.bf16.mxu0 0
    %5858 = vmatpush1.bf16.msra.mxu0 0
    %5859 = vmatprep.mubr.bf16.mxu0 0
    %5860 = vmatmul.mubr.bf16.gmra.mrb[0].mxu0 %v5822
    %v5861 = vpop.f32.mrb[0].mxu0
    %v5862 = vadd.f32 0.0, %v5861
    %v5863 = vpop.f32.mrb[0].mxu0
    %v5864 = vpop.f32.mrb[0].mxu0
    %v5865 = vpop.f32.mrb[0].mxu0
    %5866 = vdwg.mxu0
    %5867 = vrot.lane.b32.xlu0 %v5277, 64
    %v5868 = vpop.permute.xlu0 %5867
    %v5870 = vsel %vm689, %v5765, 0
    %v5873 = vsel %vm1180, %v5868, 0
    %5875 = vmatprep.subr.bf16.mxu0 0
    %5876 = vmatpush1.bf16.msra.mxu0 %v5873
    %5877 = vmatprep.subr.bf16.mxu0 0
    %5878 = vmatpush1.bf16.msra.mxu0 0
    %5879 = vmatprep.subr.bf16.mxu0 0
    %5880 = vmatpush1.bf16.msra.mxu0 0
    %5881 = vmatprep.subr.bf16.mxu0 0
    %5882 = vmatpush1.bf16.msra.mxu0 0
    %5883 = vmatprep.subr.bf16.mxu0 0
    %5884 = vmatpush1.bf16.msra.mxu0 0
    %5885 = vmatprep.subr.bf16.mxu0 0
    %5886 = vmatpush1.bf16.msra.mxu0 0
    %5887 = vmatprep.subr.bf16.mxu0 0
    %5888 = vmatpush1.bf16.msra.mxu0 0
    %5889 = vmatprep.subr.bf16.mxu0 0
    %5890 = vmatpush1.bf16.msra.mxu0 0
    %5891 = vmatprep.subr.bf16.mxu0 0
    %5892 = vmatpush1.bf16.msra.mxu0 0
    %5893 = vmatprep.subr.bf16.mxu0 0
    %5894 = vmatpush1.bf16.msra.mxu0 0
    %5895 = vmatprep.subr.bf16.mxu0 0
    %5896 = vmatpush1.bf16.msra.mxu0 0
    %5897 = vmatprep.subr.bf16.mxu0 0
    %5898 = vmatpush1.bf16.msra.mxu0 0
    %5899 = vmatprep.subr.bf16.mxu0 0
    %5900 = vmatpush1.bf16.msra.mxu0 0
    %5901 = vmatprep.subr.bf16.mxu0 0
    %5902 = vmatpush1.bf16.msra.mxu0 0
    %5903 = vmatprep.subr.bf16.mxu0 0
    %5904 = vmatpush1.bf16.msra.mxu0 0
    %5905 = vmatprep.subr.bf16.mxu0 0
    %5906 = vmatpush1.bf16.msra.mxu0 0
    %5907 = vmatprep.mubr.bf16.mxu0 0
    %5908 = vmatmul.mubr.bf16.gmra.mrb[0].mxu0 %v5870
    %v5909 = vpop.f32.mrb[0].mxu0
    %v5910 = vadd.f32 0.0, %v5909
    %v5911 = vpop.f32.mrb[0].mxu0
    %v5912 = vpop.f32.mrb[0].mxu0
    %v5913 = vpop.f32.mrb[0].mxu0
    %5914 = vdwg.mxu0
    %5915 = vrot.lane.b32.xlu0 %v5278, 64
    %v5916 = vpop.permute.xlu0 %5915
    %v5918 = vsel %vm689, %v5766, 0
    %v5921 = vsel %vm1180, %v5916, 0
    %5923 = vmatprep.subr.bf16.mxu0 0
    %5924 = vmatpush1.bf16.msra.mxu0 %v5921
    %5925 = vmatprep.subr.bf16.mxu0 0
    %5926 = vmatpush1.bf16.msra.mxu0 0
    %5927 = vmatprep.subr.bf16.mxu0 0
    %5928 = vmatpush1.bf16.msra.mxu0 0
    %5929 = vmatprep.subr.bf16.mxu0 0
    %5930 = vmatpush1.bf16.msra.mxu0 0
    %5931 = vmatprep.subr.bf16.mxu0 0
    %5932 = vmatpush1.bf16.msra.mxu0 0
    %5933 = vmatprep.subr.bf16.mxu0 0
    %5934 = vmatpush1.bf16.msra.mxu0 0
    %5935 = vmatprep.subr.bf16.mxu0 0
    %5936 = vmatpush1.bf16.msra.mxu0 0
    %5937 = vmatprep.subr.bf16.mxu0 0
    %5938 = vmatpush1.bf16.msra.mxu0 0
    %5939 = vmatprep.subr.bf16.mxu0 0
    %5940 = vmatpush1.bf16.msra.mxu0 0
    %5941 = vmatprep.subr.bf16.mxu0 0
    %5942 = vmatpush1.bf16.msra.mxu0 0
    %5943 = vmatprep.subr.bf16.mxu0 0
    %5944 = vmatpush1.bf16.msra.mxu0 0
    %5945 = vmatprep.subr.bf16.mxu0 0
    %5946 = vmatpush1.bf16.msra.mxu0 0
    %5947 = vmatprep.subr.bf16.mxu0 0
    %5948 = vmatpush1.bf16.msra.mxu0 0
    %5949 = vmatprep.subr.bf16.mxu0 0
    %5950 = vmatpush1.bf16.msra.mxu0 0
    %5951 = vmatprep.subr.bf16.mxu0 0
    %5952 = vmatpush1.bf16.msra.mxu0 0
    %5953 = vmatprep.subr.bf16.mxu0 0
    %5954 = vmatpush1.bf16.msra.mxu0 0
    %5955 = vmatprep.mubr.bf16.mxu0 0
    %5956 = vmatmul.mubr.bf16.gmra.mrb[0].mxu0 %v5918
    %v5957 = vpop.f32.mrb[0].mxu0
    %v5958 = vadd.f32 0.0, %v5957
    %v5959 = vpop.f32.mrb[0].mxu0
    %v5960 = vpop.f32.mrb[0].mxu0
    %v5961 = vpop.f32.mrb[0].mxu0
    %5962 = vdwg.mxu0
    %5963 = vrot.lane.b32.xlu0 %v5279, 64
    %v5964 = vpop.permute.xlu0 %5963
    %v5966 = vsel %vm689, %v5767, 0
    %v5969 = vsel %vm1180, %v5964, 0
    %5971 = vmatprep.subr.bf16.mxu0 0
    %5972 = vmatpush1.bf16.msra.mxu0 %v5969
    %5973 = vmatprep.subr.bf16.mxu0 0
    %5974 = vmatpush1.bf16.msra.mxu0 0
    %5975 = vmatprep.subr.bf16.mxu0 0
    %5976 = vmatpush1.bf16.msra.mxu0 0
    %5977 = vmatprep.subr.bf16.mxu0 0
    %5978 = vmatpush1.bf16.msra.mxu0 0
    %5979 = vmatprep.subr.bf16.mxu0 0
    %5980 = vmatpush1.bf16.msra.mxu0 0
    %5981 = vmatprep.subr.bf16.mxu0 0
    %5982 = vmatpush1.bf16.msra.mxu0 0
    %5983 = vmatprep.subr.bf16.mxu0 0
    %5984 = vmatpush1.bf16.msra.mxu0 0
    %5985 = vmatprep.subr.bf16.mxu0 0
    %5986 = vmatpush1.bf16.msra.mxu0 0
    %5987 = vmatprep.subr.bf16.mxu0 0
    %5988 = vmatpush1.bf16.msra.mxu0 0
    %5989 = vmatprep.subr.bf16.mxu0 0
    %5990 = vmatpush1.bf16.msra.mxu0 0
    %5991 = vmatprep.subr.bf16.mxu0 0
    %5992 = vmatpush1.bf16.msra.mxu0 0
    %5993 = vmatprep.subr.bf16.mxu0 0
    %5994 = vmatpush1.bf16.msra.mxu0 0
    %5995 = vmatprep.subr.bf16.mxu0 0
    %5996 = vmatpush1.bf16.msra.mxu0 0
    %5997 = vmatprep.subr.bf16.mxu0 0
    %5998 = vmatpush1.bf16.msra.mxu0 0
    %5999 = vmatprep.subr.bf16.mxu0 0
    %6000 = vmatpush1.bf16.msra.mxu0 0
    %6001 = vmatprep.subr.bf16.mxu0 0
    %6002 = vmatpush1.bf16.msra.mxu0 0
    %6003 = vmatprep.mubr.bf16.mxu0 0
    %6004 = vmatmul.mubr.bf16.gmra.mrb[0].mxu0 %v5966
    %v6005 = vpop.f32.mrb[0].mxu0
    %v6006 = vadd.f32 0.0, %v6005
    %v6007 = vpop.f32.mrb[0].mxu0
    %v6008 = vpop.f32.mrb[0].mxu0
    %v6009 = vpop.f32.mrb[0].mxu0
    %6010 = vdwg.mxu0
    %6011 = vrot.lane.b32.xlu0 %v5280, 64
    %v6012 = vpop.permute.xlu0 %6011
    %v6014 = vsel %vm689, %v5768, 0
    %v6017 = vsel %vm1180, %v6012, 0
    %6019 = vmatprep.subr.bf16.mxu0 0
    %6020 = vmatpush1.bf16.msra.mxu0 %v6017
    %6021 = vmatprep.subr.bf16.mxu0 0
    %6022 = vmatpush1.bf16.msra.mxu0 0
    %6023 = vmatprep.subr.bf16.mxu0 0
    %6024 = vmatpush1.bf16.msra.mxu0 0
    %6025 = vmatprep.subr.bf16.mxu0 0
    %6026 = vmatpush1.bf16.msra.mxu0 0
    %6027 = vmatprep.subr.bf16.mxu0 0
    %6028 = vmatpush1.bf16.msra.mxu0 0
    %6029 = vmatprep.subr.bf16.mxu0 0
    %6030 = vmatpush1.bf16.msra.mxu0 0
    %6031 = vmatprep.subr.bf16.mxu0 0
    %6032 = vmatpush1.bf16.msra.mxu0 0
    %6033 = vmatprep.subr.bf16.mxu0 0
    %6034 = vmatpush1.bf16.msra.mxu0 0
    %6035 = vmatprep.subr.bf16.mxu0 0
    %6036 = vmatpush1.bf16.msra.mxu0 0
    %6037 = vmatprep.subr.bf16.mxu0 0
    %6038 = vmatpush1.bf16.msra.mxu0 0
    %6039 = vmatprep.subr.bf16.mxu0 0
    %6040 = vmatpush1.bf16.msra.mxu0 0
    %6041 = vmatprep.subr.bf16.mxu0 0
    %6042 = vmatpush1.bf16.msra.mxu0 0
    %6043 = vmatprep.subr.bf16.mxu0 0
    %6044 = vmatpush1.bf16.msra.mxu0 0
    %6045 = vmatprep.subr.bf16.mxu0 0
    %6046 = vmatpush1.bf16.msra.mxu0 0
    %6047 = vmatprep.subr.bf16.mxu0 0
    %6048 = vmatpush1.bf16.msra.mxu0 0
    %6049 = vmatprep.subr.bf16.mxu0 0
    %6050 = vmatpush1.bf16.msra.mxu0 0
    %6051 = vmatprep.mubr.bf16.mxu0 0
    %6052 = vmatmul.mubr.bf16.gmra.mrb[0].mxu0 %v6014
    %v6053 = vpop.f32.mrb[0].mxu0
    %v6054 = vadd.f32 0.0, %v6053
    %v6055 = vpop.f32.mrb[0].mxu0
    %v6056 = vpop.f32.mrb[0].mxu0
    %v6057 = vpop.f32.mrb[0].mxu0
    %6058 = vdwg.mxu0
    %6059 = vrot.lane.b32.xlu0 %v5281, 64
    %v6060 = vpop.permute.xlu0 %6059
    %v6062 = vsel %vm689, %v5769, 0
    %v6065 = vsel %vm1180, %v6060, 0
    %6067 = vmatprep.subr.bf16.mxu0 0
    %6068 = vmatpush1.bf16.msra.mxu0 %v6065
    %6069 = vmatprep.subr.bf16.mxu0 0
    %6070 = vmatpush1.bf16.msra.mxu0 0
    %6071 = vmatprep.subr.bf16.mxu0 0
    %6072 = vmatpush1.bf16.msra.mxu0 0
    %6073 = vmatprep.subr.bf16.mxu0 0
    %6074 = vmatpush1.bf16.msra.mxu0 0
    %6075 = vmatprep.subr.bf16.mxu0 0
    %6076 = vmatpush1.bf16.msra.mxu0 0
    %6077 = vmatprep.subr.bf16.mxu0 0
    %6078 = vmatpush1.bf16.msra.mxu0 0
    %6079 = vmatprep.subr.bf16.mxu0 0
    %6080 = vmatpush1.bf16.msra.mxu0 0
    %6081 = vmatprep.subr.bf16.mxu0 0
    %6082 = vmatpush1.bf16.msra.mxu0 0
    %6083 = vmatprep.subr.bf16.mxu0 0
    %6084 = vmatpush1.bf16.msra.mxu0 0
    %6085 = vmatprep.subr.bf16.mxu0 0
    %6086 = vmatpush1.bf16.msra.mxu0 0
    %6087 = vmatprep.subr.bf16.mxu0 0
    %6088 = vmatpush1.bf16.msra.mxu0 0
    %6089 = vmatprep.subr.bf16.mxu0 0
    %6090 = vmatpush1.bf16.msra.mxu0 0
    %6091 = vmatprep.subr.bf16.mxu0 0
    %6092 = vmatpush1.bf16.msra.mxu0 0
    %6093 = vmatprep.subr.bf16.mxu0 0
    %6094 = vmatpush1.bf16.msra.mxu0 0
    %6095 = vmatprep.subr.bf16.mxu0 0
    %6096 = vmatpush1.bf16.msra.mxu0 0
    %6097 = vmatprep.subr.bf16.mxu0 0
    %6098 = vmatpush1.bf16.msra.mxu0 0
    %6099 = vmatprep.mubr.bf16.mxu0 0
    %6100 = vmatmul.mubr.bf16.gmra.mrb[0].mxu0 %v6062
    %v6101 = vpop.f32.mrb[0].mxu0
    %v6102 = vadd.f32 0.0, %v6101
    %v6103 = vpop.f32.mrb[0].mxu0
    %v6104 = vpop.f32.mrb[0].mxu0
    %v6105 = vpop.f32.mrb[0].mxu0
    %6106 = vdwg.mxu0
    %6107 = vrot.lane.b32.xlu0 %v5282, 64
    %v6108 = vpop.permute.xlu0 %6107
    %v6110 = vsel %vm689, %v5770, 0
    %v6113 = vsel %vm1180, %v6108, 0
    %6115 = vmatprep.subr.bf16.mxu0 0
    %6116 = vmatpush1.bf16.msra.mxu0 %v6113
    %6117 = vmatprep.subr.bf16.mxu0 0
    %6118 = vmatpush1.bf16.msra.mxu0 0
    %6119 = vmatprep.subr.bf16.mxu0 0
    %6120 = vmatpush1.bf16.msra.mxu0 0
    %6121 = vmatprep.subr.bf16.mxu0 0
    %6122 = vmatpush1.bf16.msra.mxu0 0
    %6123 = vmatprep.subr.bf16.mxu0 0
    %6124 = vmatpush1.bf16.msra.mxu0 0
    %6125 = vmatprep.subr.bf16.mxu0 0
    %6126 = vmatpush1.bf16.msra.mxu0 0
    %6127 = vmatprep.subr.bf16.mxu0 0
    %6128 = vmatpush1.bf16.msra.mxu0 0
    %6129 = vmatprep.subr.bf16.mxu0 0
    %6130 = vmatpush1.bf16.msra.mxu0 0
    %6131 = vmatprep.subr.bf16.mxu0 0
    %6132 = vmatpush1.bf16.msra.mxu0 0
    %6133 = vmatprep.subr.bf16.mxu0 0
    %6134 = vmatpush1.bf16.msra.mxu0 0
    %6135 = vmatprep.subr.bf16.mxu0 0
    %6136 = vmatpush1.bf16.msra.mxu0 0
    %6137 = vmatprep.subr.bf16.mxu0 0
    %6138 = vmatpush1.bf16.msra.mxu0 0
    %6139 = vmatprep.subr.bf16.mxu0 0
    %6140 = vmatpush1.bf16.msra.mxu0 0
    %6141 = vmatprep.subr.bf16.mxu0 0
    %6142 = vmatpush1.bf16.msra.mxu0 0
    %6143 = vmatprep.subr.bf16.mxu0 0
    %6144 = vmatpush1.bf16.msra.mxu0 0
    %6145 = vmatprep.subr.bf16.mxu0 0
    %6146 = vmatpush1.bf16.msra.mxu0 0
    %6147 = vmatprep.mubr.bf16.mxu0 0
    %6148 = vmatmul.mubr.bf16.gmra.mrb[0].mxu0 %v6110
    %v6149 = vpop.f32.mrb[0].mxu0
    %v6150 = vadd.f32 0.0, %v6149
    %v6151 = vpop.f32.mrb[0].mxu0
    %v6152 = vpop.f32.mrb[0].mxu0
    %v6153 = vpop.f32.mrb[0].mxu0
    %6154 = vdwg.mxu0
    %v6155 = vpack.c.bf16 %v5862, %v5814
    %v6156 = vpack.c.bf16 %v5958, %v5910
    %v6157 = vpack.c.bf16 %v6054, %v6006
    %v6158 = vpack.c.bf16 %v6150, %v6102
    %s6159 = scalar_lea.vmem %s9, 16
    %v6160 = vld [vmem:[%s6159] sm:$0xf]
    %6162 = vrot.lane.b32.xlu0 %v5267, 120
    %v6163 = vpop.permute.xlu0 %6162
    %6164 = vrot.lane.b32.xlu0 %v5275, 88
    %v6165 = vpop.permute.xlu0 %6164
    %v6167 = vsel %vm689, %v6163, 0
    %v6170 = vsel %vm689, %v6165, 0
    %6172 = vmatprep.subr.bf16.mxu0 0
    %6173 = vmatpush1.bf16.xpose.msra.mxu0 %v6170
    %6174 = vmatprep.subr.bf16.mxu0 0
    %6175 = vmatpush1.bf16.xpose.msra.mxu0 0
    %6176 = vmatprep.subr.bf16.mxu0 0
    %6177 = vmatpush1.bf16.xpose.msra.mxu0 0
    %6178 = vmatprep.subr.bf16.mxu0 0
    %6179 = vmatpush1.bf16.xpose.msra.mxu0 0
    %6180 = vmatprep.subr.bf16.mxu0 0
    %6181 = vmatpush1.bf16.xpose.msra.mxu0 0
    %6182 = vmatprep.subr.bf16.mxu0 0
    %6183 = vmatpush1.bf16.xpose.msra.mxu0 0
    %6184 = vmatprep.subr.bf16.mxu0 0
    %6185 = vmatpush1.bf16.xpose.msra.mxu0 0
    %6186 = vmatprep.subr.bf16.mxu0 0
    %6187 = vmatpush1.bf16.xpose.msra.mxu0 0
    %6188 = vmatprep.subr.bf16.mxu0 0
    %6189 = vmatpush1.bf16.xpose.msra.mxu0 0
    %6190 = vmatprep.subr.bf16.mxu0 0
    %6191 = vmatpush1.bf16.xpose.msra.mxu0 0
    %6192 = vmatprep.subr.bf16.mxu0 0
    %6193 = vmatpush1.bf16.xpose.msra.mxu0 0
    %6194 = vmatprep.subr.bf16.mxu0 0
    %6195 = vmatpush1.bf16.xpose.msra.mxu0 0
    %6196 = vmatprep.subr.bf16.mxu0 0
    %6197 = vmatpush1.bf16.xpose.msra.mxu0 0
    %6198 = vmatprep.subr.bf16.mxu0 0
    %6199 = vmatpush1.bf16.xpose.msra.mxu0 0
    %6200 = vmatprep.subr.bf16.mxu0 0
    %6201 = vmatpush1.bf16.xpose.msra.mxu0 0
    %6202 = vmatprep.subr.bf16.mxu0 0
    %6203 = vmatpush1.bf16.xpose.msra.mxu0 0
    %6204 = vmatprep.mubr.bf16.mxu0 0
    %6205 = vmatmul.mubr.bf16.gmra.mrb[0].mxu0 %v6167
    %v6206 = vpop.f32.mrb[0].mxu0
    %v6207 = vadd.f32 %v423, %v6206
    %v6208 = vpop.f32.mrb[0].mxu0
    %v6209 = vpop.f32.mrb[0].mxu0
    %v6210 = vpop.f32.mrb[0].mxu0
    %6211 = vdwg.mxu0
    %6213 = vrot.lane.b32.xlu0 %v5268, 120
    %v6214 = vpop.permute.xlu0 %6213
    %6215 = vrot.lane.b32.xlu0 %v5276, 88
    %v6216 = vpop.permute.xlu0 %6215
    %v6218 = vsel %vm689, %v6214, 0
    %v6221 = vsel %vm689, %v6216, 0
    %6223 = vmatprep.subr.bf16.mxu0 0
    %6224 = vmatpush1.bf16.xpose.msra.mxu0 %v6221
    %6225 = vmatprep.subr.bf16.mxu0 0
    %6226 = vmatpush1.bf16.xpose.msra.mxu0 0
    %6227 = vmatprep.subr.bf16.mxu0 0
    %6228 = vmatpush1.bf16.xpose.msra.mxu0 0
    %6229 = vmatprep.subr.bf16.mxu0 0
    %6230 = vmatpush1.bf16.xpose.msra.mxu0 0
    %6231 = vmatprep.subr.bf16.mxu0 0
    %6232 = vmatpush1.bf16.xpose.msra.mxu0 0
    %6233 = vmatprep.subr.bf16.mxu0 0
    %6234 = vmatpush1.bf16.xpose.msra.mxu0 0
    %6235 = vmatprep.subr.bf16.mxu0 0
    %6236 = vmatpush1.bf16.xpose.msra.mxu0 0
    %6237 = vmatprep.subr.bf16.mxu0 0
    %6238 = vmatpush1.bf16.xpose.msra.mxu0 0
    %6239 = vmatprep.subr.bf16.mxu0 0
    %6240 = vmatpush1.bf16.xpose.msra.mxu0 0
    %6241 = vmatprep.subr.bf16.mxu0 0
    %6242 = vmatpush1.bf16.xpose.msra.mxu0 0
    %6243 = vmatprep.subr.bf16.mxu0 0
    %6244 = vmatpush1.bf16.xpose.msra.mxu0 0
    %6245 = vmatprep.subr.bf16.mxu0 0
    %6246 = vmatpush1.bf16.xpose.msra.mxu0 0
    %6247 = vmatprep.subr.bf16.mxu0 0
    %6248 = vmatpush1.bf16.xpose.msra.mxu0 0
    %6249 = vmatprep.subr.bf16.mxu0 0
    %6250 = vmatpush1.bf16.xpose.msra.mxu0 0
    %6251 = vmatprep.subr.bf16.mxu0 0
    %6252 = vmatpush1.bf16.xpose.msra.mxu0 0
    %6253 = vmatprep.subr.bf16.mxu0 0
    %6254 = vmatpush1.bf16.xpose.msra.mxu0 0
    %6255 = vmatprep.mubr.bf16.mxu0 0
    %6256 = vmatmul.mubr.bf16.gmra.mrb[0].mxu0 %v6218
    %v6257 = vpop.f32.mrb[0].mxu0
    %v6258 = vadd.f32 %v423, %v6257
    %v6259 = vpop.f32.mrb[0].mxu0
    %v6260 = vpop.f32.mrb[0].mxu0
    %v6261 = vpop.f32.mrb[0].mxu0
    %6262 = vdwg.mxu0
    %6264 = vrot.lane.b32.xlu0 %v5269, 120
    %v6265 = vpop.permute.xlu0 %6264
    %6266 = vrot.lane.b32.xlu0 %v5277, 88
    %v6267 = vpop.permute.xlu0 %6266
    %v6269 = vsel %vm689, %v6265, 0
    %v6272 = vsel %vm689, %v6267, 0
    %6274 = vmatprep.subr.bf16.mxu0 0
    %6275 = vmatpush1.bf16.xpose.msra.mxu0 %v6272
    %6276 = vmatprep.subr.bf16.mxu0 0
    %6277 = vmatpush1.bf16.xpose.msra.mxu0 0
    %6278 = vmatprep.subr.bf16.mxu0 0
    %6279 = vmatpush1.bf16.xpose.msra.mxu0 0
    %6280 = vmatprep.subr.bf16.mxu0 0
    %6281 = vmatpush1.bf16.xpose.msra.mxu0 0
    %6282 = vmatprep.subr.bf16.mxu0 0
    %6283 = vmatpush1.bf16.xpose.msra.mxu0 0
    %6284 = vmatprep.subr.bf16.mxu0 0
    %6285 = vmatpush1.bf16.xpose.msra.mxu0 0
    %6286 = vmatprep.subr.bf16.mxu0 0
    %6287 = vmatpush1.bf16.xpose.msra.mxu0 0
    %6288 = vmatprep.subr.bf16.mxu0 0
    %6289 = vmatpush1.bf16.xpose.msra.mxu0 0
    %6290 = vmatprep.subr.bf16.mxu0 0
    %6291 = vmatpush1.bf16.xpose.msra.mxu0 0
    %6292 = vmatprep.subr.bf16.mxu0 0
    %6293 = vmatpush1.bf16.xpose.msra.mxu0 0
    %6294 = vmatprep.subr.bf16.mxu0 0
    %6295 = vmatpush1.bf16.xpose.msra.mxu0 0
    %6296 = vmatprep.subr.bf16.mxu0 0
    %6297 = vmatpush1.bf16.xpose.msra.mxu0 0
    %6298 = vmatprep.subr.bf16.mxu0 0
    %6299 = vmatpush1.bf16.xpose.msra.mxu0 0
    %6300 = vmatprep.subr.bf16.mxu0 0
    %6301 = vmatpush1.bf16.xpose.msra.mxu0 0
    %6302 = vmatprep.subr.bf16.mxu0 0
    %6303 = vmatpush1.bf16.xpose.msra.mxu0 0
    %6304 = vmatprep.subr.bf16.mxu0 0
    %6305 = vmatpush1.bf16.xpose.msra.mxu0 0
    %6306 = vmatprep.mubr.bf16.mxu0 0
    %6307 = vmatmul.mubr.bf16.gmra.mrb[0].mxu0 %v6269
    %v6308 = vpop.f32.mrb[0].mxu0
    %v6309 = vadd.f32 %v423, %v6308
    %v6310 = vpop.f32.mrb[0].mxu0
    %v6311 = vpop.f32.mrb[0].mxu0
    %v6312 = vpop.f32.mrb[0].mxu0
    %6313 = vdwg.mxu0
    %6315 = vrot.lane.b32.xlu0 %v5270, 120
    %v6316 = vpop.permute.xlu0 %6315
    %6317 = vrot.lane.b32.xlu0 %v5278, 88
    %v6318 = vpop.permute.xlu0 %6317
    %v6320 = vsel %vm689, %v6316, 0
    %v6323 = vsel %vm689, %v6318, 0
    %6325 = vmatprep.subr.bf16.mxu0 0
    %6326 = vmatpush1.bf16.xpose.msra.mxu0 %v6323
    %6327 = vmatprep.subr.bf16.mxu0 0
    %6328 = vmatpush1.bf16.xpose.msra.mxu0 0
    %6329 = vmatprep.subr.bf16.mxu0 0
    %6330 = vmatpush1.bf16.xpose.msra.mxu0 0
    %6331 = vmatprep.subr.bf16.mxu0 0
    %6332 = vmatpush1.bf16.xpose.msra.mxu0 0
    %6333 = vmatprep.subr.bf16.mxu0 0
    %6334 = vmatpush1.bf16.xpose.msra.mxu0 0
    %6335 = vmatprep.subr.bf16.mxu0 0
    %6336 = vmatpush1.bf16.xpose.msra.mxu0 0
    %6337 = vmatprep.subr.bf16.mxu0 0
    %6338 = vmatpush1.bf16.xpose.msra.mxu0 0
    %6339 = vmatprep.subr.bf16.mxu0 0
    %6340 = vmatpush1.bf16.xpose.msra.mxu0 0
    %6341 = vmatprep.subr.bf16.mxu0 0
    %6342 = vmatpush1.bf16.xpose.msra.mxu0 0
    %6343 = vmatprep.subr.bf16.mxu0 0
    %6344 = vmatpush1.bf16.xpose.msra.mxu0 0
    %6345 = vmatprep.subr.bf16.mxu0 0
    %6346 = vmatpush1.bf16.xpose.msra.mxu0 0
    %6347 = vmatprep.subr.bf16.mxu0 0
    %6348 = vmatpush1.bf16.xpose.msra.mxu0 0
    %6349 = vmatprep.subr.bf16.mxu0 0
    %6350 = vmatpush1.bf16.xpose.msra.mxu0 0
    %6351 = vmatprep.subr.bf16.mxu0 0
    %6352 = vmatpush1.bf16.xpose.msra.mxu0 0
    %6353 = vmatprep.subr.bf16.mxu0 0
    %6354 = vmatpush1.bf16.xpose.msra.mxu0 0
    %6355 = vmatprep.subr.bf16.mxu0 0
    %6356 = vmatpush1.bf16.xpose.msra.mxu0 0
    %6357 = vmatprep.mubr.bf16.mxu0 0
    %6358 = vmatmul.mubr.bf16.gmra.mrb[0].mxu0 %v6320
    %v6359 = vpop.f32.mrb[0].mxu0
    %v6360 = vadd.f32 %v423, %v6359
    %v6361 = vpop.f32.mrb[0].mxu0
    %v6362 = vpop.f32.mrb[0].mxu0
    %v6363 = vpop.f32.mrb[0].mxu0
    %6364 = vdwg.mxu0
    %6366 = vrot.lane.b32.xlu0 %v5271, 120
    %v6367 = vpop.permute.xlu0 %6366
    %6368 = vrot.lane.b32.xlu0 %v5279, 88
    %v6369 = vpop.permute.xlu0 %6368
    %v6371 = vsel %vm689, %v6367, 0
    %v6374 = vsel %vm689, %v6369, 0
    %6376 = vmatprep.subr.bf16.mxu0 0
    %6377 = vmatpush1.bf16.xpose.msra.mxu0 %v6374
    %6378 = vmatprep.subr.bf16.mxu0 0
    %6379 = vmatpush1.bf16.xpose.msra.mxu0 0
    %6380 = vmatprep.subr.bf16.mxu0 0
    %6381 = vmatpush1.bf16.xpose.msra.mxu0 0
    %6382 = vmatprep.subr.bf16.mxu0 0
    %6383 = vmatpush1.bf16.xpose.msra.mxu0 0
    %6384 = vmatprep.subr.bf16.mxu0 0
    %6385 = vmatpush1.bf16.xpose.msra.mxu0 0
    %6386 = vmatprep.subr.bf16.mxu0 0
    %6387 = vmatpush1.bf16.xpose.msra.mxu0 0
    %6388 = vmatprep.subr.bf16.mxu0 0
    %6389 = vmatpush1.bf16.xpose.msra.mxu0 0
    %6390 = vmatprep.subr.bf16.mxu0 0
    %6391 = vmatpush1.bf16.xpose.msra.mxu0 0
    %6392 = vmatprep.subr.bf16.mxu0 0
    %6393 = vmatpush1.bf16.xpose.msra.mxu0 0
    %6394 = vmatprep.subr.bf16.mxu0 0
    %6395 = vmatpush1.bf16.xpose.msra.mxu0 0
    %6396 = vmatprep.subr.bf16.mxu0 0
    %6397 = vmatpush1.bf16.xpose.msra.mxu0 0
    %6398 = vmatprep.subr.bf16.mxu0 0
    %6399 = vmatpush1.bf16.xpose.msra.mxu0 0
    %6400 = vmatprep.subr.bf16.mxu0 0
    %6401 = vmatpush1.bf16.xpose.msra.mxu0 0
    %6402 = vmatprep.subr.bf16.mxu0 0
    %6403 = vmatpush1.bf16.xpose.msra.mxu0 0
    %6404 = vmatprep.subr.bf16.mxu0 0
    %6405 = vmatpush1.bf16.xpose.msra.mxu0 0
    %6406 = vmatprep.subr.bf16.mxu0 0
    %6407 = vmatpush1.bf16.xpose.msra.mxu0 0
    %6408 = vmatprep.mubr.bf16.mxu0 0
    %6409 = vmatmul.mubr.bf16.gmra.mrb[0].mxu0 %v6371
    %v6410 = vpop.f32.mrb[0].mxu0
    %v6411 = vadd.f32 %v423, %v6410
    %v6412 = vpop.f32.mrb[0].mxu0
    %v6413 = vpop.f32.mrb[0].mxu0
    %v6414 = vpop.f32.mrb[0].mxu0
    %6415 = vdwg.mxu0
    %6417 = vrot.lane.b32.xlu0 %v5272, 120
    %v6418 = vpop.permute.xlu0 %6417
    %6419 = vrot.lane.b32.xlu0 %v5280, 88
    %v6420 = vpop.permute.xlu0 %6419
    %v6422 = vsel %vm689, %v6418, 0
    %v6425 = vsel %vm689, %v6420, 0
    %6427 = vmatprep.subr.bf16.mxu0 0
    %6428 = vmatpush1.bf16.xpose.msra.mxu0 %v6425
    %6429 = vmatprep.subr.bf16.mxu0 0
    %6430 = vmatpush1.bf16.xpose.msra.mxu0 0
    %6431 = vmatprep.subr.bf16.mxu0 0
    %6432 = vmatpush1.bf16.xpose.msra.mxu0 0
    %6433 = vmatprep.subr.bf16.mxu0 0
    %6434 = vmatpush1.bf16.xpose.msra.mxu0 0
    %6435 = vmatprep.subr.bf16.mxu0 0
    %6436 = vmatpush1.bf16.xpose.msra.mxu0 0
    %6437 = vmatprep.subr.bf16.mxu0 0
    %6438 = vmatpush1.bf16.xpose.msra.mxu0 0
    %6439 = vmatprep.subr.bf16.mxu0 0
    %6440 = vmatpush1.bf16.xpose.msra.mxu0 0
    %6441 = vmatprep.subr.bf16.mxu0 0
    %6442 = vmatpush1.bf16.xpose.msra.mxu0 0
    %6443 = vmatprep.subr.bf16.mxu0 0
    %6444 = vmatpush1.bf16.xpose.msra.mxu0 0
    %6445 = vmatprep.subr.bf16.mxu0 0
    %6446 = vmatpush1.bf16.xpose.msra.mxu0 0
    %6447 = vmatprep.subr.bf16.mxu0 0
    %6448 = vmatpush1.bf16.xpose.msra.mxu0 0
    %6449 = vmatprep.subr.bf16.mxu0 0
    %6450 = vmatpush1.bf16.xpose.msra.mxu0 0
    %6451 = vmatprep.subr.bf16.mxu0 0
    %6452 = vmatpush1.bf16.xpose.msra.mxu0 0
    %6453 = vmatprep.subr.bf16.mxu0 0
    %6454 = vmatpush1.bf16.xpose.msra.mxu0 0
    %6455 = vmatprep.subr.bf16.mxu0 0
    %6456 = vmatpush1.bf16.xpose.msra.mxu0 0
    %6457 = vmatprep.subr.bf16.mxu0 0
    %6458 = vmatpush1.bf16.xpose.msra.mxu0 0
    %6459 = vmatprep.mubr.bf16.mxu0 0
    %6460 = vmatmul.mubr.bf16.gmra.mrb[0].mxu0 %v6422
    %v6461 = vpop.f32.mrb[0].mxu0
    %v6462 = vadd.f32 %v423, %v6461
    %v6463 = vpop.f32.mrb[0].mxu0
    %v6464 = vpop.f32.mrb[0].mxu0
    %v6465 = vpop.f32.mrb[0].mxu0
    %6466 = vdwg.mxu0
    %6468 = vrot.lane.b32.xlu0 %v5273, 120
    %v6469 = vpop.permute.xlu0 %6468
    %6470 = vrot.lane.b32.xlu0 %v5281, 88
    %v6471 = vpop.permute.xlu0 %6470
    %v6473 = vsel %vm689, %v6469, 0
    %v6476 = vsel %vm689, %v6471, 0
    %6478 = vmatprep.subr.bf16.mxu0 0
    %6479 = vmatpush1.bf16.xpose.msra.mxu0 %v6476
    %6480 = vmatprep.subr.bf16.mxu0 0
    %6481 = vmatpush1.bf16.xpose.msra.mxu0 0
    %6482 = vmatprep.subr.bf16.mxu0 0
    %6483 = vmatpush1.bf16.xpose.msra.mxu0 0
    %6484 = vmatprep.subr.bf16.mxu0 0
    %6485 = vmatpush1.bf16.xpose.msra.mxu0 0
    %6486 = vmatprep.subr.bf16.mxu0 0
    %6487 = vmatpush1.bf16.xpose.msra.mxu0 0
    %6488 = vmatprep.subr.bf16.mxu0 0
    %6489 = vmatpush1.bf16.xpose.msra.mxu0 0
    %6490 = vmatprep.subr.bf16.mxu0 0
    %6491 = vmatpush1.bf16.xpose.msra.mxu0 0
    %6492 = vmatprep.subr.bf16.mxu0 0
    %6493 = vmatpush1.bf16.xpose.msra.mxu0 0
    %6494 = vmatprep.subr.bf16.mxu0 0
    %6495 = vmatpush1.bf16.xpose.msra.mxu0 0
    %6496 = vmatprep.subr.bf16.mxu0 0
    %6497 = vmatpush1.bf16.xpose.msra.mxu0 0
    %6498 = vmatprep.subr.bf16.mxu0 0
    %6499 = vmatpush1.bf16.xpose.msra.mxu0 0
    %6500 = vmatprep.subr.bf16.mxu0 0
    %6501 = vmatpush1.bf16.xpose.msra.mxu0 0
    %6502 = vmatprep.subr.bf16.mxu0 0
    %6503 = vmatpush1.bf16.xpose.msra.mxu0 0
    %6504 = vmatprep.subr.bf16.mxu0 0
    %6505 = vmatpush1.bf16.xpose.msra.mxu0 0
    %6506 = vmatprep.subr.bf16.mxu0 0
    %6507 = vmatpush1.bf16.xpose.msra.mxu0 0
    %6508 = vmatprep.subr.bf16.mxu0 0
    %6509 = vmatpush1.bf16.xpose.msra.mxu0 0
    %6510 = vmatprep.mubr.bf16.mxu0 0
    %6511 = vmatmul.mubr.bf16.gmra.mrb[0].mxu0 %v6473
    %v6512 = vpop.f32.mrb[0].mxu0
    %v6513 = vadd.f32 %v423, %v6512
    %v6514 = vpop.f32.mrb[0].mxu0
    %v6515 = vpop.f32.mrb[0].mxu0
    %v6516 = vpop.f32.mrb[0].mxu0
    %6517 = vdwg.mxu0
    %6519 = vrot.lane.b32.xlu0 %v5274, 120
    %v6520 = vpop.permute.xlu0 %6519
    %6521 = vrot.lane.b32.xlu0 %v5282, 88
    %v6522 = vpop.permute.xlu0 %6521
    %v6524 = vsel %vm689, %v6520, 0
    %v6527 = vsel %vm689, %v6522, 0
    %6529 = vmatprep.subr.bf16.mxu0 0
    %6530 = vmatpush1.bf16.xpose.msra.mxu0 %v6527
    %6531 = vmatprep.subr.bf16.mxu0 0
    %6532 = vmatpush1.bf16.xpose.msra.mxu0 0
    %6533 = vmatprep.subr.bf16.mxu0 0
    %6534 = vmatpush1.bf16.xpose.msra.mxu0 0
    %6535 = vmatprep.subr.bf16.mxu0 0
    %6536 = vmatpush1.bf16.xpose.msra.mxu0 0
    %6537 = vmatprep.subr.bf16.mxu0 0
    %6538 = vmatpush1.bf16.xpose.msra.mxu0 0
    %6539 = vmatprep.subr.bf16.mxu0 0
    %6540 = vmatpush1.bf16.xpose.msra.mxu0 0
    %6541 = vmatprep.subr.bf16.mxu0 0
    %6542 = vmatpush1.bf16.xpose.msra.mxu0 0
    %6543 = vmatprep.subr.bf16.mxu0 0
    %6544 = vmatpush1.bf16.xpose.msra.mxu0 0
    %6545 = vmatprep.subr.bf16.mxu0 0
    %6546 = vmatpush1.bf16.xpose.msra.mxu0 0
    %6547 = vmatprep.subr.bf16.mxu0 0
    %6548 = vmatpush1.bf16.xpose.msra.mxu0 0
    %6549 = vmatprep.subr.bf16.mxu0 0
    %6550 = vmatpush1.bf16.xpose.msra.mxu0 0
    %6551 = vmatprep.subr.bf16.mxu0 0
    %6552 = vmatpush1.bf16.xpose.msra.mxu0 0
    %6553 = vmatprep.subr.bf16.mxu0 0
    %6554 = vmatpush1.bf16.xpose.msra.mxu0 0
    %6555 = vmatprep.subr.bf16.mxu0 0
    %6556 = vmatpush1.bf16.xpose.msra.mxu0 0
    %6557 = vmatprep.subr.bf16.mxu0 0
    %6558 = vmatpush1.bf16.xpose.msra.mxu0 0
    %6559 = vmatprep.subr.bf16.mxu0 0
    %6560 = vmatpush1.bf16.xpose.msra.mxu0 0
    %6561 = vmatprep.mubr.bf16.mxu0 0
    %6562 = vmatmul.mubr.bf16.gmra.mrb[0].mxu0 %v6524
    %v6563 = vpop.f32.mrb[0].mxu0
    %v6564 = vadd.f32 %v423, %v6563
    %v6565 = vpop.f32.mrb[0].mxu0
    %v6566 = vpop.f32.mrb[0].mxu0
    %v6567 = vpop.f32.mrb[0].mxu0
    %6568 = vdwg.mxu0
    %v6569 = vsel %vm689, %v6207, -inf
    %6570 = vmax.xlane.f32.xlu0 %v6569
    %v6571 = vpop.xlane.xlu0 %6570
    %v6572 = vsel %vm689, %v6258, -inf
    %6573 = vmax.xlane.f32.xlu0 %v6572
    %v6574 = vpop.xlane.xlu0 %6573
    %v6575 = vsel %vm689, %v6309, -inf
    %6576 = vmax.xlane.f32.xlu0 %v6575
    %v6577 = vpop.xlane.xlu0 %6576
    %v6578 = vsel %vm689, %v6360, -inf
    %6579 = vmax.xlane.f32.xlu0 %v6578
    %v6580 = vpop.xlane.xlu0 %6579
    %v6581 = vsel %vm689, %v6411, -inf
    %6582 = vmax.xlane.f32.xlu0 %v6581
    %v6583 = vpop.xlane.xlu0 %6582
    %v6584 = vsel %vm689, %v6462, -inf
    %6585 = vmax.xlane.f32.xlu0 %v6584
    %v6586 = vpop.xlane.xlu0 %6585
    %v6587 = vsel %vm689, %v6513, -inf
    %6588 = vmax.xlane.f32.xlu0 %v6587
    %v6589 = vpop.xlane.xlu0 %6588
    %v6590 = vsel %vm689, %v6564, -inf
    %6591 = vmax.xlane.f32.xlu0 %v6590
    %v6592 = vpop.xlane.xlu0 %6591
    %v6593 = vsub.f32 %v6207, %v6571
    %v6594 = vsub.f32 %v6258, %v6574
    %v6595 = vsub.f32 %v6309, %v6577
    %v6596 = vsub.f32 %v6360, %v6580
    %v6597 = vsub.f32 %v6411, %v6583
    %v6598 = vsub.f32 %v6462, %v6586
    %v6599 = vsub.f32 %v6513, %v6589
    %v6600 = vsub.f32 %v6564, %v6592
    %v6601 = vmul.f32 %v6593, 1.442695
    %v6602 = vpow.pop %v6601
    %v6603 = vmul.f32 %v6594, 1.442695
    %v6604 = vpow.pop %v6603
    %v6605 = vmul.f32 %v6595, 1.442695
    %v6606 = vpow.pop %v6605
    %v6607 = vmul.f32 %v6596, 1.442695
    %v6608 = vpow.pop %v6607
    %v6609 = vmul.f32 %v6597, 1.442695
    %v6610 = vpow.pop %v6609
    %v6611 = vmul.f32 %v6598, 1.442695
    %v6612 = vpow.pop %v6611
    %v6613 = vmul.f32 %v6599, 1.442695
    %v6614 = vpow.pop %v6613
    %v6615 = vmul.f32 %v6600, 1.442695
    %v6616 = vpow.pop %v6615
    %v6617 = vsel %vm689, %v6602, 0.0
    %6618 = vadd.xlane.f32.xlu0 %v6617
    %v6619 = vpop.xlane.xlu0 %6618
    %v6620 = vsel %vm689, %v6604, 0.0
    %6621 = vadd.xlane.f32.xlu0 %v6620
    %v6622 = vpop.xlane.xlu0 %6621
    %v6623 = vsel %vm689, %v6606, 0.0
    %6624 = vadd.xlane.f32.xlu0 %v6623
    %v6625 = vpop.xlane.xlu0 %6624
    %v6626 = vsel %vm689, %v6608, 0.0
    %6627 = vadd.xlane.f32.xlu0 %v6626
    %v6628 = vpop.xlane.xlu0 %6627
    %v6629 = vsel %vm689, %v6610, 0.0
    %6630 = vadd.xlane.f32.xlu0 %v6629
    %v6631 = vpop.xlane.xlu0 %6630
    %v6632 = vsel %vm689, %v6612, 0.0
    %6633 = vadd.xlane.f32.xlu0 %v6632
    %v6634 = vpop.xlane.xlu0 %6633
    %v6635 = vsel %vm689, %v6614, 0.0
    %6636 = vadd.xlane.f32.xlu0 %v6635
    %v6637 = vpop.xlane.xlu0 %6636
    %v6638 = vsel %vm689, %v6616, 0.0
    %6639 = vadd.xlane.f32.xlu0 %v6638
    %v6640 = vpop.xlane.xlu0 %6639
    %v6641 = vrcp.pop %v6619
    %v6642 = vrcp.pop %v6622
    %v6643 = vrcp.pop %v6625
    %v6644 = vrcp.pop %v6628
    %v6645 = vrcp.pop %v6631
    %v6646 = vrcp.pop %v6634
    %v6647 = vrcp.pop %v6637
    %v6648 = vrcp.pop %v6640
    %v6649 = vmul.f32 %v6602, %v6641
    %v6650 = vmul.f32 %v6604, %v6642
    %v6651 = vmul.f32 %v6606, %v6643
    %v6652 = vmul.f32 %v6608, %v6644
    %v6653 = vmul.f32 %v6610, %v6645
    %v6654 = vmul.f32 %v6612, %v6646
    %v6655 = vmul.f32 %v6614, %v6647
    %v6656 = vmul.f32 %v6616, %v6648
    %v6657 = vpack.c.bf16 %v6649, %v6649
    %v6658 = vpack.c.bf16 %v6650, %v6650
    %v6659 = vpack.c.bf16 %v6651, %v6651
    %v6660 = vpack.c.bf16 %v6652, %v6652
    %v6661 = vpack.c.bf16 %v6653, %v6653
    %v6662 = vpack.c.bf16 %v6654, %v6654
    %v6663 = vpack.c.bf16 %v6655, %v6655
    %v6664 = vpack.c.bf16 %v6656, %v6656
    %6665 = vrot.lane.b32.xlu0 %v5275, 56
    %v6666 = vpop.permute.xlu0 %6665
    %v6668 = vsel %vm689, %v6657, 0
    %v6671 = vsel %vm1180, %v6666, 0
    %6673 = vmatprep.subr.bf16.mxu0 0
    %6674 = vmatpush1.bf16.msra.mxu0 %v6671
    %6675 = vmatprep.subr.bf16.mxu0 0
    %6676 = vmatpush1.bf16.msra.mxu0 0
    %6677 = vmatprep.subr.bf16.mxu0 0
    %6678 = vmatpush1.bf16.msra.mxu0 0
    %6679 = vmatprep.subr.bf16.mxu0 0
    %6680 = vmatpush1.bf16.msra.mxu0 0
    %6681 = vmatprep.subr.bf16.mxu0 0
    %6682 = vmatpush1.bf16.msra.mxu0 0
    %6683 = vmatprep.subr.bf16.mxu0 0
    %6684 = vmatpush1.bf16.msra.mxu0 0
    %6685 = vmatprep.subr.bf16.mxu0 0
    %6686 = vmatpush1.bf16.msra.mxu0 0
    %6687 = vmatprep.subr.bf16.mxu0 0
    %6688 = vmatpush1.bf16.msra.mxu0 0
    %6689 = vmatprep.subr.bf16.mxu0 0
    %6690 = vmatpush1.bf16.msra.mxu0 0
    %6691 = vmatprep.subr.bf16.mxu0 0
    %6692 = vmatpush1.bf16.msra.mxu0 0
    %6693 = vmatprep.subr.bf16.mxu0 0
    %6694 = vmatpush1.bf16.msra.mxu0 0
    %6695 = vmatprep.subr.bf16.mxu0 0
    %6696 = vmatpush1.bf16.msra.mxu0 0
    %6697 = vmatprep.subr.bf16.mxu0 0
    %6698 = vmatpush1.bf16.msra.mxu0 0
    %6699 = vmatprep.subr.bf16.mxu0 0
    %6700 = vmatpush1.bf16.msra.mxu0 0
    %6701 = vmatprep.subr.bf16.mxu0 0
    %6702 = vmatpush1.bf16.msra.mxu0 0
    %6703 = vmatprep.subr.bf16.mxu0 0
    %6704 = vmatpush1.bf16.msra.mxu0 0
    %6705 = vmatprep.mubr.bf16.mxu0 0
    %6706 = vmatmul.mubr.bf16.gmra.mrb[0].mxu0 %v6668
    %v6707 = vpop.f32.mrb[0].mxu0
    %v6708 = vadd.f32 0.0, %v6707
    %v6709 = vpop.f32.mrb[0].mxu0
    %v6710 = vpop.f32.mrb[0].mxu0
    %v6711 = vpop.f32.mrb[0].mxu0
    %6712 = vdwg.mxu0
    %6713 = vrot.lane.b32.xlu0 %v5276, 56
    %v6714 = vpop.permute.xlu0 %6713
    %v6716 = vsel %vm689, %v6658, 0
    %v6719 = vsel %vm1180, %v6714, 0
    %6721 = vmatprep.subr.bf16.mxu0 0
    %6722 = vmatpush1.bf16.msra.mxu0 %v6719
    %6723 = vmatprep.subr.bf16.mxu0 0
    %6724 = vmatpush1.bf16.msra.mxu0 0
    %6725 = vmatprep.subr.bf16.mxu0 0
    %6726 = vmatpush1.bf16.msra.mxu0 0
    %6727 = vmatprep.subr.bf16.mxu0 0
    %6728 = vmatpush1.bf16.msra.mxu0 0
    %6729 = vmatprep.subr.bf16.mxu0 0
    %6730 = vmatpush1.bf16.msra.mxu0 0
    %6731 = vmatprep.subr.bf16.mxu0 0
    %6732 = vmatpush1.bf16.msra.mxu0 0
    %6733 = vmatprep.subr.bf16.mxu0 0
    %6734 = vmatpush1.bf16.msra.mxu0 0
    %6735 = vmatprep.subr.bf16.mxu0 0
    %6736 = vmatpush1.bf16.msra.mxu0 0
    %6737 = vmatprep.subr.bf16.mxu0 0
    %6738 = vmatpush1.bf16.msra.mxu0 0
    %6739 = vmatprep.subr.bf16.mxu0 0
    %6740 = vmatpush1.bf16.msra.mxu0 0
    %6741 = vmatprep.subr.bf16.mxu0 0
    %6742 = vmatpush1.bf16.msra.mxu0 0
    %6743 = vmatprep.subr.bf16.mxu0 0
    %6744 = vmatpush1.bf16.msra.mxu0 0
    %6745 = vmatprep.subr.bf16.mxu0 0
    %6746 = vmatpush1.bf16.msra.mxu0 0
    %6747 = vmatprep.subr.bf16.mxu0 0
    %6748 = vmatpush1.bf16.msra.mxu0 0
    %6749 = vmatprep.subr.bf16.mxu0 0
    %6750 = vmatpush1.bf16.msra.mxu0 0
    %6751 = vmatprep.subr.bf16.mxu0 0
    %6752 = vmatpush1.bf16.msra.mxu0 0
    %6753 = vmatprep.mubr.bf16.mxu0 0
    %6754 = vmatmul.mubr.bf16.gmra.mrb[0].mxu0 %v6716
    %v6755 = vpop.f32.mrb[0].mxu0
    %v6756 = vadd.f32 0.0, %v6755
    %v6757 = vpop.f32.mrb[0].mxu0
    %v6758 = vpop.f32.mrb[0].mxu0
    %v6759 = vpop.f32.mrb[0].mxu0
    %6760 = vdwg.mxu0
    %6761 = vrot.lane.b32.xlu0 %v5277, 56
    %v6762 = vpop.permute.xlu0 %6761
    %v6764 = vsel %vm689, %v6659, 0
    %v6767 = vsel %vm1180, %v6762, 0
    %6769 = vmatprep.subr.bf16.mxu0 0
    %6770 = vmatpush1.bf16.msra.mxu0 %v6767
    %6771 = vmatprep.subr.bf16.mxu0 0
    %6772 = vmatpush1.bf16.msra.mxu0 0
    %6773 = vmatprep.subr.bf16.mxu0 0
    %6774 = vmatpush1.bf16.msra.mxu0 0
    %6775 = vmatprep.subr.bf16.mxu0 0
    %6776 = vmatpush1.bf16.msra.mxu0 0
    %6777 = vmatprep.subr.bf16.mxu0 0
    %6778 = vmatpush1.bf16.msra.mxu0 0
    %6779 = vmatprep.subr.bf16.mxu0 0
    %6780 = vmatpush1.bf16.msra.mxu0 0
    %6781 = vmatprep.subr.bf16.mxu0 0
    %6782 = vmatpush1.bf16.msra.mxu0 0
    %6783 = vmatprep.subr.bf16.mxu0 0
    %6784 = vmatpush1.bf16.msra.mxu0 0
    %6785 = vmatprep.subr.bf16.mxu0 0
    %6786 = vmatpush1.bf16.msra.mxu0 0
    %6787 = vmatprep.subr.bf16.mxu0 0
    %6788 = vmatpush1.bf16.msra.mxu0 0
    %6789 = vmatprep.subr.bf16.mxu0 0
    %6790 = vmatpush1.bf16.msra.mxu0 0
    %6791 = vmatprep.subr.bf16.mxu0 0
    %6792 = vmatpush1.bf16.msra.mxu0 0
    %6793 = vmatprep.subr.bf16.mxu0 0
    %6794 = vmatpush1.bf16.msra.mxu0 0
    %6795 = vmatprep.subr.bf16.mxu0 0
    %6796 = vmatpush1.bf16.msra.mxu0 0
    %6797 = vmatprep.subr.bf16.mxu0 0
    %6798 = vmatpush1.bf16.msra.mxu0 0
    %6799 = vmatprep.subr.bf16.mxu0 0
    %6800 = vmatpush1.bf16.msra.mxu0 0
    %6801 = vmatprep.mubr.bf16.mxu0 0
    %6802 = vmatmul.mubr.bf16.gmra.mrb[0].mxu0 %v6764
    %v6803 = vpop.f32.mrb[0].mxu0
    %v6804 = vadd.f32 0.0, %v6803
    %v6805 = vpop.f32.mrb[0].mxu0
    %v6806 = vpop.f32.mrb[0].mxu0
    %v6807 = vpop.f32.mrb[0].mxu0
    %6808 = vdwg.mxu0
    %6809 = vrot.lane.b32.xlu0 %v5278, 56
    %v6810 = vpop.permute.xlu0 %6809
    %v6812 = vsel %vm689, %v6660, 0
    %v6815 = vsel %vm1180, %v6810, 0
    %6817 = vmatprep.subr.bf16.mxu0 0
    %6818 = vmatpush1.bf16.msra.mxu0 %v6815
    %6819 = vmatprep.subr.bf16.mxu0 0
    %6820 = vmatpush1.bf16.msra.mxu0 0
    %6821 = vmatprep.subr.bf16.mxu0 0
    %6822 = vmatpush1.bf16.msra.mxu0 0
    %6823 = vmatprep.subr.bf16.mxu0 0
    %6824 = vmatpush1.bf16.msra.mxu0 0
    %6825 = vmatprep.subr.bf16.mxu0 0
    %6826 = vmatpush1.bf16.msra.mxu0 0
    %6827 = vmatprep.subr.bf16.mxu0 0
    %6828 = vmatpush1.bf16.msra.mxu0 0
    %6829 = vmatprep.subr.bf16.mxu0 0
    %6830 = vmatpush1.bf16.msra.mxu0 0
    %6831 = vmatprep.subr.bf16.mxu0 0
    %6832 = vmatpush1.bf16.msra.mxu0 0
    %6833 = vmatprep.subr.bf16.mxu0 0
    %6834 = vmatpush1.bf16.msra.mxu0 0
    %6835 = vmatprep.subr.bf16.mxu0 0
    %6836 = vmatpush1.bf16.msra.mxu0 0
    %6837 = vmatprep.subr.bf16.mxu0 0
    %6838 = vmatpush1.bf16.msra.mxu0 0
    %6839 = vmatprep.subr.bf16.mxu0 0
    %6840 = vmatpush1.bf16.msra.mxu0 0
    %6841 = vmatprep.subr.bf16.mxu0 0
    %6842 = vmatpush1.bf16.msra.mxu0 0
    %6843 = vmatprep.subr.bf16.mxu0 0
    %6844 = vmatpush1.bf16.msra.mxu0 0
    %6845 = vmatprep.subr.bf16.mxu0 0
    %6846 = vmatpush1.bf16.msra.mxu0 0
    %6847 = vmatprep.subr.bf16.mxu0 0
    %6848 = vmatpush1.bf16.msra.mxu0 0
    %6849 = vmatprep.mubr.bf16.mxu0 0
    %6850 = vmatmul.mubr.bf16.gmra.mrb[0].mxu0 %v6812
    %v6851 = vpop.f32.mrb[0].mxu0
    %v6852 = vadd.f32 0.0, %v6851
    %v6853 = vpop.f32.mrb[0].mxu0
    %v6854 = vpop.f32.mrb[0].mxu0
    %v6855 = vpop.f32.mrb[0].mxu0
    %6856 = vdwg.mxu0
    %6857 = vrot.lane.b32.xlu0 %v5279, 56
    %v6858 = vpop.permute.xlu0 %6857
    %v6860 = vsel %vm689, %v6661, 0
    %v6863 = vsel %vm1180, %v6858, 0
    %6865 = vmatprep.subr.bf16.mxu0 0
    %6866 = vmatpush1.bf16.msra.mxu0 %v6863
    %6867 = vmatprep.subr.bf16.mxu0 0
    %6868 = vmatpush1.bf16.msra.mxu0 0
    %6869 = vmatprep.subr.bf16.mxu0 0
    %6870 = vmatpush1.bf16.msra.mxu0 0
    %6871 = vmatprep.subr.bf16.mxu0 0
    %6872 = vmatpush1.bf16.msra.mxu0 0
    %6873 = vmatprep.subr.bf16.mxu0 0
    %6874 = vmatpush1.bf16.msra.mxu0 0
    %6875 = vmatprep.subr.bf16.mxu0 0
    %6876 = vmatpush1.bf16.msra.mxu0 0
    %6877 = vmatprep.subr.bf16.mxu0 0
    %6878 = vmatpush1.bf16.msra.mxu0 0
    %6879 = vmatprep.subr.bf16.mxu0 0
    %6880 = vmatpush1.bf16.msra.mxu0 0
    %6881 = vmatprep.subr.bf16.mxu0 0
    %6882 = vmatpush1.bf16.msra.mxu0 0
    %6883 = vmatprep.subr.bf16.mxu0 0
    %6884 = vmatpush1.bf16.msra.mxu0 0
    %6885 = vmatprep.subr.bf16.mxu0 0
    %6886 = vmatpush1.bf16.msra.mxu0 0
    %6887 = vmatprep.subr.bf16.mxu0 0
    %6888 = vmatpush1.bf16.msra.mxu0 0
    %6889 = vmatprep.subr.bf16.mxu0 0
    %6890 = vmatpush1.bf16.msra.mxu0 0
    %6891 = vmatprep.subr.bf16.mxu0 0
    %6892 = vmatpush1.bf16.msra.mxu0 0
    %6893 = vmatprep.subr.bf16.mxu0 0
    %6894 = vmatpush1.bf16.msra.mxu0 0
    %6895 = vmatprep.subr.bf16.mxu0 0
    %6896 = vmatpush1.bf16.msra.mxu0 0
    %6897 = vmatprep.mubr.bf16.mxu0 0
    %6898 = vmatmul.mubr.bf16.gmra.mrb[0].mxu0 %v6860
    %v6899 = vpop.f32.mrb[0].mxu0
    %v6900 = vadd.f32 0.0, %v6899
    %v6901 = vpop.f32.mrb[0].mxu0
    %v6902 = vpop.f32.mrb[0].mxu0
    %v6903 = vpop.f32.mrb[0].mxu0
    %6904 = vdwg.mxu0
    %6905 = vrot.lane.b32.xlu0 %v5280, 56
    %v6906 = vpop.permute.xlu0 %6905
    %v6908 = vsel %vm689, %v6662, 0
    %v6911 = vsel %vm1180, %v6906, 0
    %6913 = vmatprep.subr.bf16.mxu0 0
    %6914 = vmatpush1.bf16.msra.mxu0 %v6911
    %6915 = vmatprep.subr.bf16.mxu0 0
    %6916 = vmatpush1.bf16.msra.mxu0 0
    %6917 = vmatprep.subr.bf16.mxu0 0
    %6918 = vmatpush1.bf16.msra.mxu0 0
    %6919 = vmatprep.subr.bf16.mxu0 0
    %6920 = vmatpush1.bf16.msra.mxu0 0
    %6921 = vmatprep.subr.bf16.mxu0 0
    %6922 = vmatpush1.bf16.msra.mxu0 0
    %6923 = vmatprep.subr.bf16.mxu0 0
    %6924 = vmatpush1.bf16.msra.mxu0 0
    %6925 = vmatprep.subr.bf16.mxu0 0
    %6926 = vmatpush1.bf16.msra.mxu0 0
    %6927 = vmatprep.subr.bf16.mxu0 0
    %6928 = vmatpush1.bf16.msra.mxu0 0
    %6929 = vmatprep.subr.bf16.mxu0 0
    %6930 = vmatpush1.bf16.msra.mxu0 0
    %6931 = vmatprep.subr.bf16.mxu0 0
    %6932 = vmatpush1.bf16.msra.mxu0 0
    %6933 = vmatprep.subr.bf16.mxu0 0
    %6934 = vmatpush1.bf16.msra.mxu0 0
    %6935 = vmatprep.subr.bf16.mxu0 0
    %6936 = vmatpush1.bf16.msra.mxu0 0
    %6937 = vmatprep.subr.bf16.mxu0 0
    %6938 = vmatpush1.bf16.msra.mxu0 0
    %6939 = vmatprep.subr.bf16.mxu0 0
    %6940 = vmatpush1.bf16.msra.mxu0 0
    %6941 = vmatprep.subr.bf16.mxu0 0
    %6942 = vmatpush1.bf16.msra.mxu0 0
    %6943 = vmatprep.subr.bf16.mxu0 0
    %6944 = vmatpush1.bf16.msra.mxu0 0
    %6945 = vmatprep.mubr.bf16.mxu0 0
    %6946 = vmatmul.mubr.bf16.gmra.mrb[0].mxu0 %v6908
    %v6947 = vpop.f32.mrb[0].mxu0
    %v6948 = vadd.f32 0.0, %v6947
    %v6949 = vpop.f32.mrb[0].mxu0
    %v6950 = vpop.f32.mrb[0].mxu0
    %v6951 = vpop.f32.mrb[0].mxu0
    %6952 = vdwg.mxu0
    %6953 = vrot.lane.b32.xlu0 %v5281, 56
    %v6954 = vpop.permute.xlu0 %6953
    %v6956 = vsel %vm689, %v6663, 0
    %v6959 = vsel %vm1180, %v6954, 0
    %6961 = vmatprep.subr.bf16.mxu0 0
    %6962 = vmatpush1.bf16.msra.mxu0 %v6959
    %6963 = vmatprep.subr.bf16.mxu0 0
    %6964 = vmatpush1.bf16.msra.mxu0 0
    %6965 = vmatprep.subr.bf16.mxu0 0
    %6966 = vmatpush1.bf16.msra.mxu0 0
    %6967 = vmatprep.subr.bf16.mxu0 0
    %6968 = vmatpush1.bf16.msra.mxu0 0
    %6969 = vmatprep.subr.bf16.mxu0 0
    %6970 = vmatpush1.bf16.msra.mxu0 0
    %6971 = vmatprep.subr.bf16.mxu0 0
    %6972 = vmatpush1.bf16.msra.mxu0 0
    %6973 = vmatprep.subr.bf16.mxu0 0
    %6974 = vmatpush1.bf16.msra.mxu0 0
    %6975 = vmatprep.subr.bf16.mxu0 0
    %6976 = vmatpush1.bf16.msra.mxu0 0
    %6977 = vmatprep.subr.bf16.mxu0 0
    %6978 = vmatpush1.bf16.msra.mxu0 0
    %6979 = vmatprep.subr.bf16.mxu0 0
    %6980 = vmatpush1.bf16.msra.mxu0 0
    %6981 = vmatprep.subr.bf16.mxu0 0
    %6982 = vmatpush1.bf16.msra.mxu0 0
    %6983 = vmatprep.subr.bf16.mxu0 0
    %6984 = vmatpush1.bf16.msra.mxu0 0
    %6985 = vmatprep.subr.bf16.mxu0 0
    %6986 = vmatpush1.bf16.msra.mxu0 0
    %6987 = vmatprep.subr.bf16.mxu0 0
    %6988 = vmatpush1.bf16.msra.mxu0 0
    %6989 = vmatprep.subr.bf16.mxu0 0
    %6990 = vmatpush1.bf16.msra.mxu0 0
    %6991 = vmatprep.subr.bf16.mxu0 0
    %6992 = vmatpush1.bf16.msra.mxu0 0
    %6993 = vmatprep.mubr.bf16.mxu0 0
    %6994 = vmatmul.mubr.bf16.gmra.mrb[0].mxu0 %v6956
    %v6995 = vpop.f32.mrb[0].mxu0
    %v6996 = vadd.f32 0.0, %v6995
    %v6997 = vpop.f32.mrb[0].mxu0
    %v6998 = vpop.f32.mrb[0].mxu0
    %v6999 = vpop.f32.mrb[0].mxu0
    %7000 = vdwg.mxu0
    %7001 = vrot.lane.b32.xlu0 %v5282, 56
    %v7002 = vpop.permute.xlu0 %7001
    %v7004 = vsel %vm689, %v6664, 0
    %v7007 = vsel %vm1180, %v7002, 0
    %7009 = vmatprep.subr.bf16.mxu0 0
    %7010 = vmatpush1.bf16.msra.mxu0 %v7007
    %7011 = vmatprep.subr.bf16.mxu0 0
    %7012 = vmatpush1.bf16.msra.mxu0 0
    %7013 = vmatprep.subr.bf16.mxu0 0
    %7014 = vmatpush1.bf16.msra.mxu0 0
    %7015 = vmatprep.subr.bf16.mxu0 0
    %7016 = vmatpush1.bf16.msra.mxu0 0
    %7017 = vmatprep.subr.bf16.mxu0 0
    %7018 = vmatpush1.bf16.msra.mxu0 0
    %7019 = vmatprep.subr.bf16.mxu0 0
    %7020 = vmatpush1.bf16.msra.mxu0 0
    %7021 = vmatprep.subr.bf16.mxu0 0
    %7022 = vmatpush1.bf16.msra.mxu0 0
    %7023 = vmatprep.subr.bf16.mxu0 0
    %7024 = vmatpush1.bf16.msra.mxu0 0
    %7025 = vmatprep.subr.bf16.mxu0 0
    %7026 = vmatpush1.bf16.msra.mxu0 0
    %7027 = vmatprep.subr.bf16.mxu0 0
    %7028 = vmatpush1.bf16.msra.mxu0 0
    %7029 = vmatprep.subr.bf16.mxu0 0
    %7030 = vmatpush1.bf16.msra.mxu0 0
    %7031 = vmatprep.subr.bf16.mxu0 0
    %7032 = vmatpush1.bf16.msra.mxu0 0
    %7033 = vmatprep.subr.bf16.mxu0 0
    %7034 = vmatpush1.bf16.msra.mxu0 0
    %7035 = vmatprep.subr.bf16.mxu0 0
    %7036 = vmatpush1.bf16.msra.mxu0 0
    %7037 = vmatprep.subr.bf16.mxu0 0
    %7038 = vmatpush1.bf16.msra.mxu0 0
    %7039 = vmatprep.subr.bf16.mxu0 0
    %7040 = vmatpush1.bf16.msra.mxu0 0
    %7041 = vmatprep.mubr.bf16.mxu0 0
    %7042 = vmatmul.mubr.bf16.gmra.mrb[0].mxu0 %v7004
    %v7043 = vpop.f32.mrb[0].mxu0
    %v7044 = vadd.f32 0.0, %v7043
    %v7045 = vpop.f32.mrb[0].mxu0
    %v7046 = vpop.f32.mrb[0].mxu0
    %v7047 = vpop.f32.mrb[0].mxu0
    %7048 = vdwg.mxu0
    %v7049 = vpack.c.bf16 %v6756, %v6708
    %v7050 = vpack.c.bf16 %v6852, %v6804
    %v7051 = vpack.c.bf16 %v6948, %v6900
    %v7052 = vpack.c.bf16 %v7044, %v6996
    %v7053 = vld [vmem:[%s6159 + $0x4] sm:$0xf]
    %v7055 = vsel %vm689, %v7049, 0
    %v7058 = vsel %vm689, %v7050, 0
    %v7061 = vsel %vm689, %v7051, 0
    %v7064 = vsel %vm689, %v7052, 0
    %v7067 = vsel %vm1180, %v7053, 0
    %7069 = vmatprep.subr.bf16.mxu0 0
    %7070 = vmatpush1.bf16.msra.mxu0 %v7067
    %7071 = vmatprep.subr.bf16.mxu0 0
    %7072 = vmatpush1.bf16.msra.mxu0 0
    %7073 = vmatprep.subr.bf16.mxu0 0
    %7074 = vmatpush1.bf16.msra.mxu0 0
    %7075 = vmatprep.subr.bf16.mxu0 0
    %7076 = vmatpush1.bf16.msra.mxu0 0
    %7077 = vmatprep.subr.bf16.mxu0 0
    %7078 = vmatpush1.bf16.msra.mxu0 0
    %7079 = vmatprep.subr.bf16.mxu0 0
    %7080 = vmatpush1.bf16.msra.mxu0 0
    %7081 = vmatprep.subr.bf16.mxu0 0
    %7082 = vmatpush1.bf16.msra.mxu0 0
    %7083 = vmatprep.subr.bf16.mxu0 0
    %7084 = vmatpush1.bf16.msra.mxu0 0
    %7085 = vmatprep.subr.bf16.mxu0 0
    %7086 = vmatpush1.bf16.msra.mxu0 0
    %7087 = vmatprep.subr.bf16.mxu0 0
    %7088 = vmatpush1.bf16.msra.mxu0 0
    %7089 = vmatprep.subr.bf16.mxu0 0
    %7090 = vmatpush1.bf16.msra.mxu0 0
    %7091 = vmatprep.subr.bf16.mxu0 0
    %7092 = vmatpush1.bf16.msra.mxu0 0
    %7093 = vmatprep.subr.bf16.mxu0 0
    %7094 = vmatpush1.bf16.msra.mxu0 0
    %7095 = vmatprep.subr.bf16.mxu0 0
    %7096 = vmatpush1.bf16.msra.mxu0 0
    %7097 = vmatprep.subr.bf16.mxu0 0
    %7098 = vmatpush1.bf16.msra.mxu0 0
    %7099 = vmatprep.subr.bf16.mxu0 0
    %7100 = vmatpush1.bf16.msra.mxu0 0
    %7101 = vmatprep.mubr.bf16.mxu0 0
    %7102 = vmatmul.mubr.bf16.gmra.mrb[0].mxu0 %v7055
    %v7103 = vpop.f32.mrb[0].mxu0
    %v7104 = vadd.f32 0.0, %v7103
    %v7105 = vpop.f32.mrb[0].mxu0
    %v7106 = vpop.f32.mrb[0].mxu0
    %v7107 = vadd.f32 0.0, %v7106
    %v7108 = vpop.f32.mrb[0].mxu0
    %7109 = vmatprep.mubr.bf16.mxu0 0
    %7110 = vmatmul.mubr.bf16.gmra.mrb[0].mxu0 %v7058
    %v7111 = vpop.f32.mrb[0].mxu0
    %v7112 = vadd.f32 0.0, %v7111
    %v7113 = vpop.f32.mrb[0].mxu0
    %v7114 = vpop.f32.mrb[0].mxu0
    %v7115 = vadd.f32 0.0, %v7114
    %v7116 = vpop.f32.mrb[0].mxu0
    %7117 = vmatprep.mubr.bf16.mxu0 0
    %7118 = vmatmul.mubr.bf16.gmra.mrb[0].mxu0 %v7061
    %v7119 = vpop.f32.mrb[0].mxu0
    %v7120 = vadd.f32 0.0, %v7119
    %v7121 = vpop.f32.mrb[0].mxu0
    %v7122 = vpop.f32.mrb[0].mxu0
    %v7123 = vadd.f32 0.0, %v7122
    %v7124 = vpop.f32.mrb[0].mxu0
    %7125 = vmatprep.mubr.bf16.mxu0 0
    %7126 = vmatmul.mubr.bf16.gmra.mrb[0].mxu0 %v7064
    %v7127 = vpop.f32.mrb[0].mxu0
    %v7128 = vadd.f32 0.0, %v7127
    %v7129 = vpop.f32.mrb[0].mxu0
    %v7130 = vpop.f32.mrb[0].mxu0
    %v7131 = vadd.f32 0.0, %v7130
    %v7132 = vpop.f32.mrb[0].mxu0
    %7133 = vdwg.mxu0
    %v7135 = vsel %vm689, %v6155, 0
    %v7138 = vsel %vm689, %v6156, 0
    %v7141 = vsel %vm689, %v6157, 0
    %v7144 = vsel %vm689, %v6158, 0
    %v7147 = vsel %vm1180, %v6160, 0
    %7149 = vmatprep.subr.bf16.mxu0 0
    %7150 = vmatpush1.bf16.msra.mxu0 %v7147
    %7151 = vmatprep.subr.bf16.mxu0 0
    %7152 = vmatpush1.bf16.msra.mxu0 0
    %7153 = vmatprep.subr.bf16.mxu0 0
    %7154 = vmatpush1.bf16.msra.mxu0 0
    %7155 = vmatprep.subr.bf16.mxu0 0
    %7156 = vmatpush1.bf16.msra.mxu0 0
    %7157 = vmatprep.subr.bf16.mxu0 0
    %7158 = vmatpush1.bf16.msra.mxu0 0
    %7159 = vmatprep.subr.bf16.mxu0 0
    %7160 = vmatpush1.bf16.msra.mxu0 0
    %7161 = vmatprep.subr.bf16.mxu0 0
    %7162 = vmatpush1.bf16.msra.mxu0 0
    %7163 = vmatprep.subr.bf16.mxu0 0
    %7164 = vmatpush1.bf16.msra.mxu0 0
    %7165 = vmatprep.subr.bf16.mxu0 0
    %7166 = vmatpush1.bf16.msra.mxu0 0
    %7167 = vmatprep.subr.bf16.mxu0 0
    %7168 = vmatpush1.bf16.msra.mxu0 0
    %7169 = vmatprep.subr.bf16.mxu0 0
    %7170 = vmatpush1.bf16.msra.mxu0 0
    %7171 = vmatprep.subr.bf16.mxu0 0
    %7172 = vmatpush1.bf16.msra.mxu0 0
    %7173 = vmatprep.subr.bf16.mxu0 0
    %7174 = vmatpush1.bf16.msra.mxu0 0
    %7175 = vmatprep.subr.bf16.mxu0 0
    %7176 = vmatpush1.bf16.msra.mxu0 0
    %7177 = vmatprep.subr.bf16.mxu0 0
    %7178 = vmatpush1.bf16.msra.mxu0 0
    %7179 = vmatprep.subr.bf16.mxu0 0
    %7180 = vmatpush1.bf16.msra.mxu0 0
    %7181 = vmatprep.mubr.bf16.mxu0 0
    %7182 = vmatmul.mubr.bf16.gmra.mrb[0].mxu0 %v7135
    %v7183 = vpop.f32.mrb[0].mxu0
    %v7184 = vadd.f32 %v7104, %v7183
    %v7185 = vpop.f32.mrb[0].mxu0
    %v7186 = vpop.f32.mrb[0].mxu0
    %v7187 = vadd.f32 %v7107, %v7186
    %v7188 = vpop.f32.mrb[0].mxu0
    %7189 = vmatprep.mubr.bf16.mxu0 0
    %7190 = vmatmul.mubr.bf16.gmra.mrb[0].mxu0 %v7138
    %v7191 = vpop.f32.mrb[0].mxu0
    %v7192 = vadd.f32 %v7112, %v7191
    %v7193 = vpop.f32.mrb[0].mxu0
    %v7194 = vpop.f32.mrb[0].mxu0
    %v7195 = vadd.f32 %v7115, %v7194
    %v7196 = vpop.f32.mrb[0].mxu0
    %7197 = vmatprep.mubr.bf16.mxu0 0
    %7198 = vmatmul.mubr.bf16.gmra.mrb[0].mxu0 %v7141
    %v7199 = vpop.f32.mrb[0].mxu0
    %v7200 = vadd.f32 %v7120, %v7199
    %v7201 = vpop.f32.mrb[0].mxu0
    %v7202 = vpop.f32.mrb[0].mxu0
    %v7203 = vadd.f32 %v7123, %v7202
    %v7204 = vpop.f32.mrb[0].mxu0
    %7205 = vmatprep.mubr.bf16.mxu0 0
    %7206 = vmatmul.mubr.bf16.gmra.mrb[0].mxu0 %v7144
    %v7207 = vpop.f32.mrb[0].mxu0
    %v7208 = vadd.f32 %v7128, %v7207
    %v7209 = vpop.f32.mrb[0].mxu0
    %v7210 = vpop.f32.mrb[0].mxu0
    %v7211 = vadd.f32 %v7131, %v7210
    %v7212 = vpop.f32.mrb[0].mxu0
    %7213 = vdwg.mxu0
    %7214 = vrot.lane.b32.xlu0 %v5267, 112
    %v7215 = vpop.permute.xlu0 %7214
    %7216 = vrot.lane.b32.xlu0 %v5275, 80
    %v7217 = vpop.permute.xlu0 %7216
    %v7219 = vsel %vm689, %v7215, 0
    %v7222 = vsel %vm689, %v7217, 0
    %7224 = vmatprep.subr.bf16.mxu0 0
    %7225 = vmatpush1.bf16.xpose.msra.mxu0 %v7222
    %7226 = vmatprep.subr.bf16.mxu0 0
    %7227 = vmatpush1.bf16.xpose.msra.mxu0 0
    %7228 = vmatprep.subr.bf16.mxu0 0
    %7229 = vmatpush1.bf16.xpose.msra.mxu0 0
    %7230 = vmatprep.subr.bf16.mxu0 0
    %7231 = vmatpush1.bf16.xpose.msra.mxu0 0
    %7232 = vmatprep.subr.bf16.mxu0 0
    %7233 = vmatpush1.bf16.xpose.msra.mxu0 0
    %7234 = vmatprep.subr.bf16.mxu0 0
    %7235 = vmatpush1.bf16.xpose.msra.mxu0 0
    %7236 = vmatprep.subr.bf16.mxu0 0
    %7237 = vmatpush1.bf16.xpose.msra.mxu0 0
    %7238 = vmatprep.subr.bf16.mxu0 0
    %7239 = vmatpush1.bf16.xpose.msra.mxu0 0
    %7240 = vmatprep.subr.bf16.mxu0 0
    %7241 = vmatpush1.bf16.xpose.msra.mxu0 0
    %7242 = vmatprep.subr.bf16.mxu0 0
    %7243 = vmatpush1.bf16.xpose.msra.mxu0 0
    %7244 = vmatprep.subr.bf16.mxu0 0
    %7245 = vmatpush1.bf16.xpose.msra.mxu0 0
    %7246 = vmatprep.subr.bf16.mxu0 0
    %7247 = vmatpush1.bf16.xpose.msra.mxu0 0
    %7248 = vmatprep.subr.bf16.mxu0 0
    %7249 = vmatpush1.bf16.xpose.msra.mxu0 0
    %7250 = vmatprep.subr.bf16.mxu0 0
    %7251 = vmatpush1.bf16.xpose.msra.mxu0 0
    %7252 = vmatprep.subr.bf16.mxu0 0
    %7253 = vmatpush1.bf16.xpose.msra.mxu0 0
    %7254 = vmatprep.subr.bf16.mxu0 0
    %7255 = vmatpush1.bf16.xpose.msra.mxu0 0
    %7256 = vmatprep.mubr.bf16.mxu0 0
    %7257 = vmatmul.mubr.bf16.gmra.mrb[0].mxu0 %v7219
    %v7258 = vpop.f32.mrb[0].mxu0
    %v7259 = vadd.f32 %v423, %v7258
    %v7260 = vpop.f32.mrb[0].mxu0
    %v7261 = vpop.f32.mrb[0].mxu0
    %v7262 = vpop.f32.mrb[0].mxu0
    %7263 = vdwg.mxu0
    %7264 = vrot.lane.b32.xlu0 %v5268, 112
    %v7265 = vpop.permute.xlu0 %7264
    %7266 = vrot.lane.b32.xlu0 %v5276, 80
    %v7267 = vpop.permute.xlu0 %7266
    %v7269 = vsel %vm689, %v7265, 0
    %v7272 = vsel %vm689, %v7267, 0
    %7274 = vmatprep.subr.bf16.mxu0 0
    %7275 = vmatpush1.bf16.xpose.msra.mxu0 %v7272
    %7276 = vmatprep.subr.bf16.mxu0 0
    %7277 = vmatpush1.bf16.xpose.msra.mxu0 0
    %7278 = vmatprep.subr.bf16.mxu0 0
    %7279 = vmatpush1.bf16.xpose.msra.mxu0 0
    %7280 = vmatprep.subr.bf16.mxu0 0
    %7281 = vmatpush1.bf16.xpose.msra.mxu0 0
    %7282 = vmatprep.subr.bf16.mxu0 0
    %7283 = vmatpush1.bf16.xpose.msra.mxu0 0
    %7284 = vmatprep.subr.bf16.mxu0 0
    %7285 = vmatpush1.bf16.xpose.msra.mxu0 0
    %7286 = vmatprep.subr.bf16.mxu0 0
    %7287 = vmatpush1.bf16.xpose.msra.mxu0 0
    %7288 = vmatprep.subr.bf16.mxu0 0
    %7289 = vmatpush1.bf16.xpose.msra.mxu0 0
    %7290 = vmatprep.subr.bf16.mxu0 0
    %7291 = vmatpush1.bf16.xpose.msra.mxu0 0
    %7292 = vmatprep.subr.bf16.mxu0 0
    %7293 = vmatpush1.bf16.xpose.msra.mxu0 0
    %7294 = vmatprep.subr.bf16.mxu0 0
    %7295 = vmatpush1.bf16.xpose.msra.mxu0 0
    %7296 = vmatprep.subr.bf16.mxu0 0
    %7297 = vmatpush1.bf16.xpose.msra.mxu0 0
    %7298 = vmatprep.subr.bf16.mxu0 0
    %7299 = vmatpush1.bf16.xpose.msra.mxu0 0
    %7300 = vmatprep.subr.bf16.mxu0 0
    %7301 = vmatpush1.bf16.xpose.msra.mxu0 0
    %7302 = vmatprep.subr.bf16.mxu0 0
    %7303 = vmatpush1.bf16.xpose.msra.mxu0 0
    %7304 = vmatprep.subr.bf16.mxu0 0
    %7305 = vmatpush1.bf16.xpose.msra.mxu0 0
    %7306 = vmatprep.mubr.bf16.mxu0 0
    %7307 = vmatmul.mubr.bf16.gmra.mrb[0].mxu0 %v7269
    %v7308 = vpop.f32.mrb[0].mxu0
    %v7309 = vadd.f32 %v423, %v7308
    %v7310 = vpop.f32.mrb[0].mxu0
    %v7311 = vpop.f32.mrb[0].mxu0
    %v7312 = vpop.f32.mrb[0].mxu0
    %7313 = vdwg.mxu0
    %7314 = vrot.lane.b32.xlu0 %v5269, 112
    %v7315 = vpop.permute.xlu0 %7314
    %7316 = vrot.lane.b32.xlu0 %v5277, 80
    %v7317 = vpop.permute.xlu0 %7316
    %v7319 = vsel %vm689, %v7315, 0
    %v7322 = vsel %vm689, %v7317, 0
    %7324 = vmatprep.subr.bf16.mxu0 0
    %7325 = vmatpush1.bf16.xpose.msra.mxu0 %v7322
    %7326 = vmatprep.subr.bf16.mxu0 0
    %7327 = vmatpush1.bf16.xpose.msra.mxu0 0
    %7328 = vmatprep.subr.bf16.mxu0 0
    %7329 = vmatpush1.bf16.xpose.msra.mxu0 0
    %7330 = vmatprep.subr.bf16.mxu0 0
    %7331 = vmatpush1.bf16.xpose.msra.mxu0 0
    %7332 = vmatprep.subr.bf16.mxu0 0
    %7333 = vmatpush1.bf16.xpose.msra.mxu0 0
    %7334 = vmatprep.subr.bf16.mxu0 0
    %7335 = vmatpush1.bf16.xpose.msra.mxu0 0
    %7336 = vmatprep.subr.bf16.mxu0 0
    %7337 = vmatpush1.bf16.xpose.msra.mxu0 0
    %7338 = vmatprep.subr.bf16.mxu0 0
    %7339 = vmatpush1.bf16.xpose.msra.mxu0 0
    %7340 = vmatprep.subr.bf16.mxu0 0
    %7341 = vmatpush1.bf16.xpose.msra.mxu0 0
    %7342 = vmatprep.subr.bf16.mxu0 0
    %7343 = vmatpush1.bf16.xpose.msra.mxu0 0
    %7344 = vmatprep.subr.bf16.mxu0 0
    %7345 = vmatpush1.bf16.xpose.msra.mxu0 0
    %7346 = vmatprep.subr.bf16.mxu0 0
    %7347 = vmatpush1.bf16.xpose.msra.mxu0 0
    %7348 = vmatprep.subr.bf16.mxu0 0
    %7349 = vmatpush1.bf16.xpose.msra.mxu0 0
    %7350 = vmatprep.subr.bf16.mxu0 0
    %7351 = vmatpush1.bf16.xpose.msra.mxu0 0
    %7352 = vmatprep.subr.bf16.mxu0 0
    %7353 = vmatpush1.bf16.xpose.msra.mxu0 0
    %7354 = vmatprep.subr.bf16.mxu0 0
    %7355 = vmatpush1.bf16.xpose.msra.mxu0 0
    %7356 = vmatprep.mubr.bf16.mxu0 0
    %7357 = vmatmul.mubr.bf16.gmra.mrb[0].mxu0 %v7319
    %v7358 = vpop.f32.mrb[0].mxu0
    %v7359 = vadd.f32 %v423, %v7358
    %v7360 = vpop.f32.mrb[0].mxu0
    %v7361 = vpop.f32.mrb[0].mxu0
    %v7362 = vpop.f32.mrb[0].mxu0
    %7363 = vdwg.mxu0
    %7364 = vrot.lane.b32.xlu0 %v5270, 112
    %v7365 = vpop.permute.xlu0 %7364
    %7366 = vrot.lane.b32.xlu0 %v5278, 80
    %v7367 = vpop.permute.xlu0 %7366
    %v7369 = vsel %vm689, %v7365, 0
    %v7372 = vsel %vm689, %v7367, 0
    %7374 = vmatprep.subr.bf16.mxu0 0
    %7375 = vmatpush1.bf16.xpose.msra.mxu0 %v7372
    %7376 = vmatprep.subr.bf16.mxu0 0
    %7377 = vmatpush1.bf16.xpose.msra.mxu0 0
    %7378 = vmatprep.subr.bf16.mxu0 0
    %7379 = vmatpush1.bf16.xpose.msra.mxu0 0
    %7380 = vmatprep.subr.bf16.mxu0 0
    %7381 = vmatpush1.bf16.xpose.msra.mxu0 0
    %7382 = vmatprep.subr.bf16.mxu0 0
    %7383 = vmatpush1.bf16.xpose.msra.mxu0 0
    %7384 = vmatprep.subr.bf16.mxu0 0
    %7385 = vmatpush1.bf16.xpose.msra.mxu0 0
    %7386 = vmatprep.subr.bf16.mxu0 0
    %7387 = vmatpush1.bf16.xpose.msra.mxu0 0
    %7388 = vmatprep.subr.bf16.mxu0 0
    %7389 = vmatpush1.bf16.xpose.msra.mxu0 0
    %7390 = vmatprep.subr.bf16.mxu0 0
    %7391 = vmatpush1.bf16.xpose.msra.mxu0 0
    %7392 = vmatprep.subr.bf16.mxu0 0
    %7393 = vmatpush1.bf16.xpose.msra.mxu0 0
    %7394 = vmatprep.subr.bf16.mxu0 0
    %7395 = vmatpush1.bf16.xpose.msra.mxu0 0
    %7396 = vmatprep.subr.bf16.mxu0 0
    %7397 = vmatpush1.bf16.xpose.msra.mxu0 0
    %7398 = vmatprep.subr.bf16.mxu0 0
    %7399 = vmatpush1.bf16.xpose.msra.mxu0 0
    %7400 = vmatprep.subr.bf16.mxu0 0
    %7401 = vmatpush1.bf16.xpose.msra.mxu0 0
    %7402 = vmatprep.subr.bf16.mxu0 0
    %7403 = vmatpush1.bf16.xpose.msra.mxu0 0
    %7404 = vmatprep.subr.bf16.mxu0 0
    %7405 = vmatpush1.bf16.xpose.msra.mxu0 0
    %7406 = vmatprep.mubr.bf16.mxu0 0
    %7407 = vmatmul.mubr.bf16.gmra.mrb[0].mxu0 %v7369
    %v7408 = vpop.f32.mrb[0].mxu0
    %v7409 = vadd.f32 %v423, %v7408
    %v7410 = vpop.f32.mrb[0].mxu0
    %v7411 = vpop.f32.mrb[0].mxu0
    %v7412 = vpop.f32.mrb[0].mxu0
    %7413 = vdwg.mxu0
    %7414 = vrot.lane.b32.xlu0 %v5271, 112
    %v7415 = vpop.permute.xlu0 %7414
    %7416 = vrot.lane.b32.xlu0 %v5279, 80
    %v7417 = vpop.permute.xlu0 %7416
    %v7419 = vsel %vm689, %v7415, 0
    %v7422 = vsel %vm689, %v7417, 0
    %7424 = vmatprep.subr.bf16.mxu0 0
    %7425 = vmatpush1.bf16.xpose.msra.mxu0 %v7422
    %7426 = vmatprep.subr.bf16.mxu0 0
    %7427 = vmatpush1.bf16.xpose.msra.mxu0 0
    %7428 = vmatprep.subr.bf16.mxu0 0
    %7429 = vmatpush1.bf16.xpose.msra.mxu0 0
    %7430 = vmatprep.subr.bf16.mxu0 0
    %7431 = vmatpush1.bf16.xpose.msra.mxu0 0
    %7432 = vmatprep.subr.bf16.mxu0 0
    %7433 = vmatpush1.bf16.xpose.msra.mxu0 0
    %7434 = vmatprep.subr.bf16.mxu0 0
    %7435 = vmatpush1.bf16.xpose.msra.mxu0 0
    %7436 = vmatprep.subr.bf16.mxu0 0
    %7437 = vmatpush1.bf16.xpose.msra.mxu0 0
    %7438 = vmatprep.subr.bf16.mxu0 0
    %7439 = vmatpush1.bf16.xpose.msra.mxu0 0
    %7440 = vmatprep.subr.bf16.mxu0 0
    %7441 = vmatpush1.bf16.xpose.msra.mxu0 0
    %7442 = vmatprep.subr.bf16.mxu0 0
    %7443 = vmatpush1.bf16.xpose.msra.mxu0 0
    %7444 = vmatprep.subr.bf16.mxu0 0
    %7445 = vmatpush1.bf16.xpose.msra.mxu0 0
    %7446 = vmatprep.subr.bf16.mxu0 0
    %7447 = vmatpush1.bf16.xpose.msra.mxu0 0
    %7448 = vmatprep.subr.bf16.mxu0 0
    %7449 = vmatpush1.bf16.xpose.msra.mxu0 0
    %7450 = vmatprep.subr.bf16.mxu0 0
    %7451 = vmatpush1.bf16.xpose.msra.mxu0 0
    %7452 = vmatprep.subr.bf16.mxu0 0
    %7453 = vmatpush1.bf16.xpose.msra.mxu0 0
    %7454 = vmatprep.subr.bf16.mxu0 0
    %7455 = vmatpush1.bf16.xpose.msra.mxu0 0
    %7456 = vmatprep.mubr.bf16.mxu0 0
    %7457 = vmatmul.mubr.bf16.gmra.mrb[0].mxu0 %v7419
    %v7458 = vpop.f32.mrb[0].mxu0
    %v7459 = vadd.f32 %v423, %v7458
    %v7460 = vpop.f32.mrb[0].mxu0
    %v7461 = vpop.f32.mrb[0].mxu0
    %v7462 = vpop.f32.mrb[0].mxu0
    %7463 = vdwg.mxu0
    %7464 = vrot.lane.b32.xlu0 %v5272, 112
    %v7465 = vpop.permute.xlu0 %7464
    %7466 = vrot.lane.b32.xlu0 %v5280, 80
    %v7467 = vpop.permute.xlu0 %7466
    %v7469 = vsel %vm689, %v7465, 0
    %v7472 = vsel %vm689, %v7467, 0
    %7474 = vmatprep.subr.bf16.mxu0 0
    %7475 = vmatpush1.bf16.xpose.msra.mxu0 %v7472
    %7476 = vmatprep.subr.bf16.mxu0 0
    %7477 = vmatpush1.bf16.xpose.msra.mxu0 0
    %7478 = vmatprep.subr.bf16.mxu0 0
    %7479 = vmatpush1.bf16.xpose.msra.mxu0 0
    %7480 = vmatprep.subr.bf16.mxu0 0
    %7481 = vmatpush1.bf16.xpose.msra.mxu0 0
    %7482 = vmatprep.subr.bf16.mxu0 0
    %7483 = vmatpush1.bf16.xpose.msra.mxu0 0
    %7484 = vmatprep.subr.bf16.mxu0 0
    %7485 = vmatpush1.bf16.xpose.msra.mxu0 0
    %7486 = vmatprep.subr.bf16.mxu0 0
    %7487 = vmatpush1.bf16.xpose.msra.mxu0 0
    %7488 = vmatprep.subr.bf16.mxu0 0
    %7489 = vmatpush1.bf16.xpose.msra.mxu0 0
    %7490 = vmatprep.subr.bf16.mxu0 0
    %7491 = vmatpush1.bf16.xpose.msra.mxu0 0
    %7492 = vmatprep.subr.bf16.mxu0 0
    %7493 = vmatpush1.bf16.xpose.msra.mxu0 0
    %7494 = vmatprep.subr.bf16.mxu0 0
    %7495 = vmatpush1.bf16.xpose.msra.mxu0 0
    %7496 = vmatprep.subr.bf16.mxu0 0
    %7497 = vmatpush1.bf16.xpose.msra.mxu0 0
    %7498 = vmatprep.subr.bf16.mxu0 0
    %7499 = vmatpush1.bf16.xpose.msra.mxu0 0
    %7500 = vmatprep.subr.bf16.mxu0 0
    %7501 = vmatpush1.bf16.xpose.msra.mxu0 0
    %7502 = vmatprep.subr.bf16.mxu0 0
    %7503 = vmatpush1.bf16.xpose.msra.mxu0 0
    %7504 = vmatprep.subr.bf16.mxu0 0
    %7505 = vmatpush1.bf16.xpose.msra.mxu0 0
    %7506 = vmatprep.mubr.bf16.mxu0 0
    %7507 = vmatmul.mubr.bf16.gmra.mrb[0].mxu0 %v7469
    %v7508 = vpop.f32.mrb[0].mxu0
    %v7509 = vadd.f32 %v423, %v7508
    %v7510 = vpop.f32.mrb[0].mxu0
    %v7511 = vpop.f32.mrb[0].mxu0
    %v7512 = vpop.f32.mrb[0].mxu0
    %7513 = vdwg.mxu0
    %7514 = vrot.lane.b32.xlu0 %v5273, 112
    %v7515 = vpop.permute.xlu0 %7514
    %7516 = vrot.lane.b32.xlu0 %v5281, 80
    %v7517 = vpop.permute.xlu0 %7516
    %v7519 = vsel %vm689, %v7515, 0
    %v7522 = vsel %vm689, %v7517, 0
    %7524 = vmatprep.subr.bf16.mxu0 0
    %7525 = vmatpush1.bf16.xpose.msra.mxu0 %v7522
    %7526 = vmatprep.subr.bf16.mxu0 0
    %7527 = vmatpush1.bf16.xpose.msra.mxu0 0
    %7528 = vmatprep.subr.bf16.mxu0 0
    %7529 = vmatpush1.bf16.xpose.msra.mxu0 0
    %7530 = vmatprep.subr.bf16.mxu0 0
    %7531 = vmatpush1.bf16.xpose.msra.mxu0 0
    %7532 = vmatprep.subr.bf16.mxu0 0
    %7533 = vmatpush1.bf16.xpose.msra.mxu0 0
    %7534 = vmatprep.subr.bf16.mxu0 0
    %7535 = vmatpush1.bf16.xpose.msra.mxu0 0
    %7536 = vmatprep.subr.bf16.mxu0 0
    %7537 = vmatpush1.bf16.xpose.msra.mxu0 0
    %7538 = vmatprep.subr.bf16.mxu0 0
    %7539 = vmatpush1.bf16.xpose.msra.mxu0 0
    %7540 = vmatprep.subr.bf16.mxu0 0
    %7541 = vmatpush1.bf16.xpose.msra.mxu0 0
    %7542 = vmatprep.subr.bf16.mxu0 0
    %7543 = vmatpush1.bf16.xpose.msra.mxu0 0
    %7544 = vmatprep.subr.bf16.mxu0 0
    %7545 = vmatpush1.bf16.xpose.msra.mxu0 0
    %7546 = vmatprep.subr.bf16.mxu0 0
    %7547 = vmatpush1.bf16.xpose.msra.mxu0 0
    %7548 = vmatprep.subr.bf16.mxu0 0
    %7549 = vmatpush1.bf16.xpose.msra.mxu0 0
    %7550 = vmatprep.subr.bf16.mxu0 0
    %7551 = vmatpush1.bf16.xpose.msra.mxu0 0
    %7552 = vmatprep.subr.bf16.mxu0 0
    %7553 = vmatpush1.bf16.xpose.msra.mxu0 0
    %7554 = vmatprep.subr.bf16.mxu0 0
    %7555 = vmatpush1.bf16.xpose.msra.mxu0 0
    %7556 = vmatprep.mubr.bf16.mxu0 0
    %7557 = vmatmul.mubr.bf16.gmra.mrb[0].mxu0 %v7519
    %v7558 = vpop.f32.mrb[0].mxu0
    %v7559 = vadd.f32 %v423, %v7558
    %v7560 = vpop.f32.mrb[0].mxu0
    %v7561 = vpop.f32.mrb[0].mxu0
    %v7562 = vpop.f32.mrb[0].mxu0
    %7563 = vdwg.mxu0
    %7564 = vrot.lane.b32.xlu0 %v5274, 112
    %v7565 = vpop.permute.xlu0 %7564
    %7566 = vrot.lane.b32.xlu0 %v5282, 80
    %v7567 = vpop.permute.xlu0 %7566
    %v7569 = vsel %vm689, %v7565, 0
    %v7572 = vsel %vm689, %v7567, 0
    %7574 = vmatprep.subr.bf16.mxu0 0
    %7575 = vmatpush1.bf16.xpose.msra.mxu0 %v7572
    %7576 = vmatprep.subr.bf16.mxu0 0
    %7577 = vmatpush1.bf16.xpose.msra.mxu0 0
    %7578 = vmatprep.subr.bf16.mxu0 0
    %7579 = vmatpush1.bf16.xpose.msra.mxu0 0
    %7580 = vmatprep.subr.bf16.mxu0 0
    %7581 = vmatpush1.bf16.xpose.msra.mxu0 0
    %7582 = vmatprep.subr.bf16.mxu0 0
    %7583 = vmatpush1.bf16.xpose.msra.mxu0 0
    %7584 = vmatprep.subr.bf16.mxu0 0
    %7585 = vmatpush1.bf16.xpose.msra.mxu0 0
    %7586 = vmatprep.subr.bf16.mxu0 0
    %7587 = vmatpush1.bf16.xpose.msra.mxu0 0
    %7588 = vmatprep.subr.bf16.mxu0 0
    %7589 = vmatpush1.bf16.xpose.msra.mxu0 0
    %7590 = vmatprep.subr.bf16.mxu0 0
    %7591 = vmatpush1.bf16.xpose.msra.mxu0 0
    %7592 = vmatprep.subr.bf16.mxu0 0
    %7593 = vmatpush1.bf16.xpose.msra.mxu0 0
    %7594 = vmatprep.subr.bf16.mxu0 0
    %7595 = vmatpush1.bf16.xpose.msra.mxu0 0
    %7596 = vmatprep.subr.bf16.mxu0 0
    %7597 = vmatpush1.bf16.xpose.msra.mxu0 0
    %7598 = vmatprep.subr.bf16.mxu0 0
    %7599 = vmatpush1.bf16.xpose.msra.mxu0 0
    %7600 = vmatprep.subr.bf16.mxu0 0
    %7601 = vmatpush1.bf16.xpose.msra.mxu0 0
    %7602 = vmatprep.subr.bf16.mxu0 0
    %7603 = vmatpush1.bf16.xpose.msra.mxu0 0
    %7604 = vmatprep.subr.bf16.mxu0 0
    %7605 = vmatpush1.bf16.xpose.msra.mxu0 0
    %7606 = vmatprep.mubr.bf16.mxu0 0
    %7607 = vmatmul.mubr.bf16.gmra.mrb[0].mxu0 %v7569
    %v7608 = vpop.f32.mrb[0].mxu0
    %v7609 = vadd.f32 %v423, %v7608
    %v7610 = vpop.f32.mrb[0].mxu0
    %v7611 = vpop.f32.mrb[0].mxu0
    %v7612 = vpop.f32.mrb[0].mxu0
    %7613 = vdwg.mxu0
    %v7614 = vsel %vm689, %v7259, -inf
    %7615 = vmax.xlane.f32.xlu0 %v7614
    %v7616 = vpop.xlane.xlu0 %7615
    %v7617 = vsel %vm689, %v7309, -inf
    %7618 = vmax.xlane.f32.xlu0 %v7617
    %v7619 = vpop.xlane.xlu0 %7618
    %v7620 = vsel %vm689, %v7359, -inf
    %7621 = vmax.xlane.f32.xlu0 %v7620
    %v7622 = vpop.xlane.xlu0 %7621
    %v7623 = vsel %vm689, %v7409, -inf
    %7624 = vmax.xlane.f32.xlu0 %v7623
    %v7625 = vpop.xlane.xlu0 %7624
    %v7626 = vsel %vm689, %v7459, -inf
    %7627 = vmax.xlane.f32.xlu0 %v7626
    %v7628 = vpop.xlane.xlu0 %7627
    %v7629 = vsel %vm689, %v7509, -inf
    %7630 = vmax.xlane.f32.xlu0 %v7629
    %v7631 = vpop.xlane.xlu0 %7630
    %v7632 = vsel %vm689, %v7559, -inf
    %7633 = vmax.xlane.f32.xlu0 %v7632
    %v7634 = vpop.xlane.xlu0 %7633
    %v7635 = vsel %vm689, %v7609, -inf
    %7636 = vmax.xlane.f32.xlu0 %v7635
    %v7637 = vpop.xlane.xlu0 %7636
    %v7638 = vsub.f32 %v7259, %v7616
    %v7639 = vsub.f32 %v7309, %v7619
    %v7640 = vsub.f32 %v7359, %v7622
    %v7641 = vsub.f32 %v7409, %v7625
    %v7642 = vsub.f32 %v7459, %v7628
    %v7643 = vsub.f32 %v7509, %v7631
    %v7644 = vsub.f32 %v7559, %v7634
    %v7645 = vsub.f32 %v7609, %v7637
    %v7646 = vmul.f32 %v7638, 1.442695
    %v7647 = vpow.pop %v7646
    %v7648 = vmul.f32 %v7639, 1.442695
    %v7649 = vpow.pop %v7648
    %v7650 = vmul.f32 %v7640, 1.442695
    %v7651 = vpow.pop %v7650
    %v7652 = vmul.f32 %v7641, 1.442695
    %v7653 = vpow.pop %v7652
    %v7654 = vmul.f32 %v7642, 1.442695
    %v7655 = vpow.pop %v7654
    %v7656 = vmul.f32 %v7643, 1.442695
    %v7657 = vpow.pop %v7656
    %v7658 = vmul.f32 %v7644, 1.442695
    %v7659 = vpow.pop %v7658
    %v7660 = vmul.f32 %v7645, 1.442695
    %v7661 = vpow.pop %v7660
    %v7662 = vsel %vm689, %v7647, 0.0
    %7663 = vadd.xlane.f32.xlu0 %v7662
    %v7664 = vpop.xlane.xlu0 %7663
    %v7665 = vsel %vm689, %v7649, 0.0
    %7666 = vadd.xlane.f32.xlu0 %v7665
    %v7667 = vpop.xlane.xlu0 %7666
    %v7668 = vsel %vm689, %v7651, 0.0
    %7669 = vadd.xlane.f32.xlu0 %v7668
    %v7670 = vpop.xlane.xlu0 %7669
    %v7671 = vsel %vm689, %v7653, 0.0
    %7672 = vadd.xlane.f32.xlu0 %v7671
    %v7673 = vpop.xlane.xlu0 %7672
    %v7674 = vsel %vm689, %v7655, 0.0
    %7675 = vadd.xlane.f32.xlu0 %v7674
    %v7676 = vpop.xlane.xlu0 %7675
    %v7677 = vsel %vm689, %v7657, 0.0
    %7678 = vadd.xlane.f32.xlu0 %v7677
    %v7679 = vpop.xlane.xlu0 %7678
    %v7680 = vsel %vm689, %v7659, 0.0
    %7681 = vadd.xlane.f32.xlu0 %v7680
    %v7682 = vpop.xlane.xlu0 %7681
    %v7683 = vsel %vm689, %v7661, 0.0
    %7684 = vadd.xlane.f32.xlu0 %v7683
    %v7685 = vpop.xlane.xlu0 %7684
    %v7686 = vrcp.pop %v7664
    %v7687 = vrcp.pop %v7667
    %v7688 = vrcp.pop %v7670
    %v7689 = vrcp.pop %v7673
    %v7690 = vrcp.pop %v7676
    %v7691 = vrcp.pop %v7679
    %v7692 = vrcp.pop %v7682
    %v7693 = vrcp.pop %v7685
    %v7694 = vmul.f32 %v7647, %v7686
    %v7695 = vmul.f32 %v7649, %v7687
    %v7696 = vmul.f32 %v7651, %v7688
    %v7697 = vmul.f32 %v7653, %v7689
    %v7698 = vmul.f32 %v7655, %v7690
    %v7699 = vmul.f32 %v7657, %v7691
    %v7700 = vmul.f32 %v7659, %v7692
    %v7701 = vmul.f32 %v7661, %v7693
    %v7702 = vpack.c.bf16 %v7694, %v7694
    %v7703 = vpack.c.bf16 %v7695, %v7695
    %v7704 = vpack.c.bf16 %v7696, %v7696
    %v7705 = vpack.c.bf16 %v7697, %v7697
    %v7706 = vpack.c.bf16 %v7698, %v7698
    %v7707 = vpack.c.bf16 %v7699, %v7699
    %v7708 = vpack.c.bf16 %v7700, %v7700
    %v7709 = vpack.c.bf16 %v7701, %v7701
    %7710 = vrot.lane.b32.xlu0 %v5275, 48
    %v7711 = vpop.permute.xlu0 %7710
    %v7713 = vsel %vm689, %v7702, 0
    %v7716 = vsel %vm1180, %v7711, 0
    %7718 = vmatprep.subr.bf16.mxu0 0
    %7719 = vmatpush1.bf16.msra.mxu0 %v7716
    %7720 = vmatprep.subr.bf16.mxu0 0
    %7721 = vmatpush1.bf16.msra.mxu0 0
    %7722 = vmatprep.subr.bf16.mxu0 0
    %7723 = vmatpush1.bf16.msra.mxu0 0
    %7724 = vmatprep.subr.bf16.mxu0 0
    %7725 = vmatpush1.bf16.msra.mxu0 0
    %7726 = vmatprep.subr.bf16.mxu0 0
    %7727 = vmatpush1.bf16.msra.mxu0 0
    %7728 = vmatprep.subr.bf16.mxu0 0
    %7729 = vmatpush1.bf16.msra.mxu0 0
    %7730 = vmatprep.subr.bf16.mxu0 0
    %7731 = vmatpush1.bf16.msra.mxu0 0
    %7732 = vmatprep.subr.bf16.mxu0 0
    %7733 = vmatpush1.bf16.msra.mxu0 0
    %7734 = vmatprep.subr.bf16.mxu0 0
    %7735 = vmatpush1.bf16.msra.mxu0 0
    %7736 = vmatprep.subr.bf16.mxu0 0
    %7737 = vmatpush1.bf16.msra.mxu0 0
    %7738 = vmatprep.subr.bf16.mxu0 0
    %7739 = vmatpush1.bf16.msra.mxu0 0
    %7740 = vmatprep.subr.bf16.mxu0 0
    %7741 = vmatpush1.bf16.msra.mxu0 0
    %7742 = vmatprep.subr.bf16.mxu0 0
    %7743 = vmatpush1.bf16.msra.mxu0 0
    %7744 = vmatprep.subr.bf16.mxu0 0
    %7745 = vmatpush1.bf16.msra.mxu0 0
    %7746 = vmatprep.subr.bf16.mxu0 0
    %7747 = vmatpush1.bf16.msra.mxu0 0
    %7748 = vmatprep.subr.bf16.mxu0 0
    %7749 = vmatpush1.bf16.msra.mxu0 0
    %7750 = vmatprep.mubr.bf16.mxu0 0
    %7751 = vmatmul.mubr.bf16.gmra.mrb[0].mxu0 %v7713
    %v7752 = vpop.f32.mrb[0].mxu0
    %v7753 = vadd.f32 0.0, %v7752
    %v7754 = vpop.f32.mrb[0].mxu0
    %v7755 = vpop.f32.mrb[0].mxu0
    %v7756 = vpop.f32.mrb[0].mxu0
    %7757 = vdwg.mxu0
    %7758 = vrot.lane.b32.xlu0 %v5276, 48
    %v7759 = vpop.permute.xlu0 %7758
    %v7761 = vsel %vm689, %v7703, 0
    %v7764 = vsel %vm1180, %v7759, 0
    %7766 = vmatprep.subr.bf16.mxu0 0
    %7767 = vmatpush1.bf16.msra.mxu0 %v7764
    %7768 = vmatprep.subr.bf16.mxu0 0
    %7769 = vmatpush1.bf16.msra.mxu0 0
    %7770 = vmatprep.subr.bf16.mxu0 0
    %7771 = vmatpush1.bf16.msra.mxu0 0
    %7772 = vmatprep.subr.bf16.mxu0 0
    %7773 = vmatpush1.bf16.msra.mxu0 0
    %7774 = vmatprep.subr.bf16.mxu0 0
    %7775 = vmatpush1.bf16.msra.mxu0 0
    %7776 = vmatprep.subr.bf16.mxu0 0
    %7777 = vmatpush1.bf16.msra.mxu0 0
    %7778 = vmatprep.subr.bf16.mxu0 0
    %7779 = vmatpush1.bf16.msra.mxu0 0
    %7780 = vmatprep.subr.bf16.mxu0 0
    %7781 = vmatpush1.bf16.msra.mxu0 0
    %7782 = vmatprep.subr.bf16.mxu0 0
    %7783 = vmatpush1.bf16.msra.mxu0 0
    %7784 = vmatprep.subr.bf16.mxu0 0
    %7785 = vmatpush1.bf16.msra.mxu0 0
    %7786 = vmatprep.subr.bf16.mxu0 0
    %7787 = vmatpush1.bf16.msra.mxu0 0
    %7788 = vmatprep.subr.bf16.mxu0 0
    %7789 = vmatpush1.bf16.msra.mxu0 0
    %7790 = vmatprep.subr.bf16.mxu0 0
    %7791 = vmatpush1.bf16.msra.mxu0 0
    %7792 = vmatprep.subr.bf16.mxu0 0
    %7793 = vmatpush1.bf16.msra.mxu0 0
    %7794 = vmatprep.subr.bf16.mxu0 0
    %7795 = vmatpush1.bf16.msra.mxu0 0
    %7796 = vmatprep.subr.bf16.mxu0 0
    %7797 = vmatpush1.bf16.msra.mxu0 0
    %7798 = vmatprep.mubr.bf16.mxu0 0
    %7799 = vmatmul.mubr.bf16.gmra.mrb[0].mxu0 %v7761
    %v7800 = vpop.f32.mrb[0].mxu0
    %v7801 = vadd.f32 0.0, %v7800
    %v7802 = vpop.f32.mrb[0].mxu0
    %v7803 = vpop.f32.mrb[0].mxu0
    %v7804 = vpop.f32.mrb[0].mxu0
    %7805 = vdwg.mxu0
    %7806 = vrot.lane.b32.xlu0 %v5277, 48
    %v7807 = vpop.permute.xlu0 %7806
    %v7809 = vsel %vm689, %v7704, 0
    %v7812 = vsel %vm1180, %v7807, 0
    %7814 = vmatprep.subr.bf16.mxu0 0
    %7815 = vmatpush1.bf16.msra.mxu0 %v7812
    %7816 = vmatprep.subr.bf16.mxu0 0
    %7817 = vmatpush1.bf16.msra.mxu0 0
    %7818 = vmatprep.subr.bf16.mxu0 0
    %7819 = vmatpush1.bf16.msra.mxu0 0
    %7820 = vmatprep.subr.bf16.mxu0 0
    %7821 = vmatpush1.bf16.msra.mxu0 0
    %7822 = vmatprep.subr.bf16.mxu0 0
    %7823 = vmatpush1.bf16.msra.mxu0 0
    %7824 = vmatprep.subr.bf16.mxu0 0
    %7825 = vmatpush1.bf16.msra.mxu0 0
    %7826 = vmatprep.subr.bf16.mxu0 0
    %7827 = vmatpush1.bf16.msra.mxu0 0
    %7828 = vmatprep.subr.bf16.mxu0 0
    %7829 = vmatpush1.bf16.msra.mxu0 0
    %7830 = vmatprep.subr.bf16.mxu0 0
    %7831 = vmatpush1.bf16.msra.mxu0 0
    %7832 = vmatprep.subr.bf16.mxu0 0
    %7833 = vmatpush1.bf16.msra.mxu0 0
    %7834 = vmatprep.subr.bf16.mxu0 0
    %7835 = vmatpush1.bf16.msra.mxu0 0
    %7836 = vmatprep.subr.bf16.mxu0 0
    %7837 = vmatpush1.bf16.msra.mxu0 0
    %7838 = vmatprep.subr.bf16.mxu0 0
    %7839 = vmatpush1.bf16.msra.mxu0 0
    %7840 = vmatprep.subr.bf16.mxu0 0
    %7841 = vmatpush1.bf16.msra.mxu0 0
    %7842 = vmatprep.subr.bf16.mxu0 0
    %7843 = vmatpush1.bf16.msra.mxu0 0
    %7844 = vmatprep.subr.bf16.mxu0 0
    %7845 = vmatpush1.bf16.msra.mxu0 0
    %7846 = vmatprep.mubr.bf16.mxu0 0
    %7847 = vmatmul.mubr.bf16.gmra.mrb[0].mxu0 %v7809
    %v7848 = vpop.f32.mrb[0].mxu0
    %v7849 = vadd.f32 0.0, %v7848
    %v7850 = vpop.f32.mrb[0].mxu0
    %v7851 = vpop.f32.mrb[0].mxu0
    %v7852 = vpop.f32.mrb[0].mxu0
    %7853 = vdwg.mxu0
    %7854 = vrot.lane.b32.xlu0 %v5278, 48
    %v7855 = vpop.permute.xlu0 %7854
    %v7857 = vsel %vm689, %v7705, 0
    %v7860 = vsel %vm1180, %v7855, 0
    %7862 = vmatprep.subr.bf16.mxu0 0
    %7863 = vmatpush1.bf16.msra.mxu0 %v7860
    %7864 = vmatprep.subr.bf16.mxu0 0
    %7865 = vmatpush1.bf16.msra.mxu0 0
    %7866 = vmatprep.subr.bf16.mxu0 0
    %7867 = vmatpush1.bf16.msra.mxu0 0
    %7868 = vmatprep.subr.bf16.mxu0 0
    %7869 = vmatpush1.bf16.msra.mxu0 0
    %7870 = vmatprep.subr.bf16.mxu0 0
    %7871 = vmatpush1.bf16.msra.mxu0 0
    %7872 = vmatprep.subr.bf16.mxu0 0
    %7873 = vmatpush1.bf16.msra.mxu0 0
    %7874 = vmatprep.subr.bf16.mxu0 0
    %7875 = vmatpush1.bf16.msra.mxu0 0
    %7876 = vmatprep.subr.bf16.mxu0 0
    %7877 = vmatpush1.bf16.msra.mxu0 0
    %7878 = vmatprep.subr.bf16.mxu0 0
    %7879 = vmatpush1.bf16.msra.mxu0 0
    %7880 = vmatprep.subr.bf16.mxu0 0
    %7881 = vmatpush1.bf16.msra.mxu0 0
    %7882 = vmatprep.subr.bf16.mxu0 0
    %7883 = vmatpush1.bf16.msra.mxu0 0
    %7884 = vmatprep.subr.bf16.mxu0 0
    %7885 = vmatpush1.bf16.msra.mxu0 0
    %7886 = vmatprep.subr.bf16.mxu0 0
    %7887 = vmatpush1.bf16.msra.mxu0 0
    %7888 = vmatprep.subr.bf16.mxu0 0
    %7889 = vmatpush1.bf16.msra.mxu0 0
    %7890 = vmatprep.subr.bf16.mxu0 0
    %7891 = vmatpush1.bf16.msra.mxu0 0
    %7892 = vmatprep.subr.bf16.mxu0 0
    %7893 = vmatpush1.bf16.msra.mxu0 0
    %7894 = vmatprep.mubr.bf16.mxu0 0
    %7895 = vmatmul.mubr.bf16.gmra.mrb[0].mxu0 %v7857
    %v7896 = vpop.f32.mrb[0].mxu0
    %v7897 = vadd.f32 0.0, %v7896
    %v7898 = vpop.f32.mrb[0].mxu0
    %v7899 = vpop.f32.mrb[0].mxu0
    %v7900 = vpop.f32.mrb[0].mxu0
    %7901 = vdwg.mxu0
    %7902 = vrot.lane.b32.xlu0 %v5279, 48
    %v7903 = vpop.permute.xlu0 %7902
    %v7905 = vsel %vm689, %v7706, 0
    %v7908 = vsel %vm1180, %v7903, 0
    %7910 = vmatprep.subr.bf16.mxu0 0
    %7911 = vmatpush1.bf16.msra.mxu0 %v7908
    %7912 = vmatprep.subr.bf16.mxu0 0
    %7913 = vmatpush1.bf16.msra.mxu0 0
    %7914 = vmatprep.subr.bf16.mxu0 0
    %7915 = vmatpush1.bf16.msra.mxu0 0
    %7916 = vmatprep.subr.bf16.mxu0 0
    %7917 = vmatpush1.bf16.msra.mxu0 0
    %7918 = vmatprep.subr.bf16.mxu0 0
    %7919 = vmatpush1.bf16.msra.mxu0 0
    %7920 = vmatprep.subr.bf16.mxu0 0
    %7921 = vmatpush1.bf16.msra.mxu0 0
    %7922 = vmatprep.subr.bf16.mxu0 0
    %7923 = vmatpush1.bf16.msra.mxu0 0
    %7924 = vmatprep.subr.bf16.mxu0 0
    %7925 = vmatpush1.bf16.msra.mxu0 0
    %7926 = vmatprep.subr.bf16.mxu0 0
    %7927 = vmatpush1.bf16.msra.mxu0 0
    %7928 = vmatprep.subr.bf16.mxu0 0
    %7929 = vmatpush1.bf16.msra.mxu0 0
    %7930 = vmatprep.subr.bf16.mxu0 0
    %7931 = vmatpush1.bf16.msra.mxu0 0
    %7932 = vmatprep.subr.bf16.mxu0 0
    %7933 = vmatpush1.bf16.msra.mxu0 0
    %7934 = vmatprep.subr.bf16.mxu0 0
    %7935 = vmatpush1.bf16.msra.mxu0 0
    %7936 = vmatprep.subr.bf16.mxu0 0
    %7937 = vmatpush1.bf16.msra.mxu0 0
    %7938 = vmatprep.subr.bf16.mxu0 0
    %7939 = vmatpush1.bf16.msra.mxu0 0
    %7940 = vmatprep.subr.bf16.mxu0 0
    %7941 = vmatpush1.bf16.msra.mxu0 0
    %7942 = vmatprep.mubr.bf16.mxu0 0
    %7943 = vmatmul.mubr.bf16.gmra.mrb[0].mxu0 %v7905
    %v7944 = vpop.f32.mrb[0].mxu0
    %v7945 = vadd.f32 0.0, %v7944
    %v7946 = vpop.f32.mrb[0].mxu0
    %v7947 = vpop.f32.mrb[0].mxu0
    %v7948 = vpop.f32.mrb[0].mxu0
    %7949 = vdwg.mxu0
    %7950 = vrot.lane.b32.xlu0 %v5280, 48
    %v7951 = vpop.permute.xlu0 %7950
    %v7953 = vsel %vm689, %v7707, 0
    %v7956 = vsel %vm1180, %v7951, 0
    %7958 = vmatprep.subr.bf16.mxu0 0
    %7959 = vmatpush1.bf16.msra.mxu0 %v7956
    %7960 = vmatprep.subr.bf16.mxu0 0
    %7961 = vmatpush1.bf16.msra.mxu0 0
    %7962 = vmatprep.subr.bf16.mxu0 0
    %7963 = vmatpush1.bf16.msra.mxu0 0
    %7964 = vmatprep.subr.bf16.mxu0 0
    %7965 = vmatpush1.bf16.msra.mxu0 0
    %7966 = vmatprep.subr.bf16.mxu0 0
    %7967 = vmatpush1.bf16.msra.mxu0 0
    %7968 = vmatprep.subr.bf16.mxu0 0
    %7969 = vmatpush1.bf16.msra.mxu0 0
    %7970 = vmatprep.subr.bf16.mxu0 0
    %7971 = vmatpush1.bf16.msra.mxu0 0
    %7972 = vmatprep.subr.bf16.mxu0 0
    %7973 = vmatpush1.bf16.msra.mxu0 0
    %7974 = vmatprep.subr.bf16.mxu0 0
    %7975 = vmatpush1.bf16.msra.mxu0 0
    %7976 = vmatprep.subr.bf16.mxu0 0
    %7977 = vmatpush1.bf16.msra.mxu0 0
    %7978 = vmatprep.subr.bf16.mxu0 0
    %7979 = vmatpush1.bf16.msra.mxu0 0
    %7980 = vmatprep.subr.bf16.mxu0 0
    %7981 = vmatpush1.bf16.msra.mxu0 0
    %7982 = vmatprep.subr.bf16.mxu0 0
    %7983 = vmatpush1.bf16.msra.mxu0 0
    %7984 = vmatprep.subr.bf16.mxu0 0
    %7985 = vmatpush1.bf16.msra.mxu0 0
    %7986 = vmatprep.subr.bf16.mxu0 0
    %7987 = vmatpush1.bf16.msra.mxu0 0
    %7988 = vmatprep.subr.bf16.mxu0 0
    %7989 = vmatpush1.bf16.msra.mxu0 0
    %7990 = vmatprep.mubr.bf16.mxu0 0
    %7991 = vmatmul.mubr.bf16.gmra.mrb[0].mxu0 %v7953
    %v7992 = vpop.f32.mrb[0].mxu0
    %v7993 = vadd.f32 0.0, %v7992
    %v7994 = vpop.f32.mrb[0].mxu0
    %v7995 = vpop.f32.mrb[0].mxu0
    %v7996 = vpop.f32.mrb[0].mxu0
    %7997 = vdwg.mxu0
    %7998 = vrot.lane.b32.xlu0 %v5281, 48
    %v7999 = vpop.permute.xlu0 %7998
    %v8001 = vsel %vm689, %v7708, 0
    %v8004 = vsel %vm1180, %v7999, 0
    %8006 = vmatprep.subr.bf16.mxu0 0
    %8007 = vmatpush1.bf16.msra.mxu0 %v8004
    %8008 = vmatprep.subr.bf16.mxu0 0
    %8009 = vmatpush1.bf16.msra.mxu0 0
    %8010 = vmatprep.subr.bf16.mxu0 0
    %8011 = vmatpush1.bf16.msra.mxu0 0
    %8012 = vmatprep.subr.bf16.mxu0 0
    %8013 = vmatpush1.bf16.msra.mxu0 0
    %8014 = vmatprep.subr.bf16.mxu0 0
    %8015 = vmatpush1.bf16.msra.mxu0 0
    %8016 = vmatprep.subr.bf16.mxu0 0
    %8017 = vmatpush1.bf16.msra.mxu0 0
    %8018 = vmatprep.subr.bf16.mxu0 0
    %8019 = vmatpush1.bf16.msra.mxu0 0
    %8020 = vmatprep.subr.bf16.mxu0 0
    %8021 = vmatpush1.bf16.msra.mxu0 0
    %8022 = vmatprep.subr.bf16.mxu0 0
    %8023 = vmatpush1.bf16.msra.mxu0 0
    %8024 = vmatprep.subr.bf16.mxu0 0
    %8025 = vmatpush1.bf16.msra.mxu0 0
    %8026 = vmatprep.subr.bf16.mxu0 0
    %8027 = vmatpush1.bf16.msra.mxu0 0
    %8028 = vmatprep.subr.bf16.mxu0 0
    %8029 = vmatpush1.bf16.msra.mxu0 0
    %8030 = vmatprep.subr.bf16.mxu0 0
    %8031 = vmatpush1.bf16.msra.mxu0 0
    %8032 = vmatprep.subr.bf16.mxu0 0
    %8033 = vmatpush1.bf16.msra.mxu0 0
    %8034 = vmatprep.subr.bf16.mxu0 0
    %8035 = vmatpush1.bf16.msra.mxu0 0
    %8036 = vmatprep.subr.bf16.mxu0 0
    %8037 = vmatpush1.bf16.msra.mxu0 0
    %8038 = vmatprep.mubr.bf16.mxu0 0
    %8039 = vmatmul.mubr.bf16.gmra.mrb[0].mxu0 %v8001
    %v8040 = vpop.f32.mrb[0].mxu0
    %v8041 = vadd.f32 0.0, %v8040
    %v8042 = vpop.f32.mrb[0].mxu0
    %v8043 = vpop.f32.mrb[0].mxu0
    %v8044 = vpop.f32.mrb[0].mxu0
    %8045 = vdwg.mxu0
    %8046 = vrot.lane.b32.xlu0 %v5282, 48
    %v8047 = vpop.permute.xlu0 %8046
    %v8049 = vsel %vm689, %v7709, 0
    %v8052 = vsel %vm1180, %v8047, 0
    %8054 = vmatprep.subr.bf16.mxu0 0
    %8055 = vmatpush1.bf16.msra.mxu0 %v8052
    %8056 = vmatprep.subr.bf16.mxu0 0
    %8057 = vmatpush1.bf16.msra.mxu0 0
    %8058 = vmatprep.subr.bf16.mxu0 0
    %8059 = vmatpush1.bf16.msra.mxu0 0
    %8060 = vmatprep.subr.bf16.mxu0 0
    %8061 = vmatpush1.bf16.msra.mxu0 0
    %8062 = vmatprep.subr.bf16.mxu0 0
    %8063 = vmatpush1.bf16.msra.mxu0 0
    %8064 = vmatprep.subr.bf16.mxu0 0
    %8065 = vmatpush1.bf16.msra.mxu0 0
    %8066 = vmatprep.subr.bf16.mxu0 0
    %8067 = vmatpush1.bf16.msra.mxu0 0
    %8068 = vmatprep.subr.bf16.mxu0 0
    %8069 = vmatpush1.bf16.msra.mxu0 0
    %8070 = vmatprep.subr.bf16.mxu0 0
    %8071 = vmatpush1.bf16.msra.mxu0 0
    %8072 = vmatprep.subr.bf16.mxu0 0
    %8073 = vmatpush1.bf16.msra.mxu0 0
    %8074 = vmatprep.subr.bf16.mxu0 0
    %8075 = vmatpush1.bf16.msra.mxu0 0
    %8076 = vmatprep.subr.bf16.mxu0 0
    %8077 = vmatpush1.bf16.msra.mxu0 0
    %8078 = vmatprep.subr.bf16.mxu0 0
    %8079 = vmatpush1.bf16.msra.mxu0 0
    %8080 = vmatprep.subr.bf16.mxu0 0
    %8081 = vmatpush1.bf16.msra.mxu0 0
    %8082 = vmatprep.subr.bf16.mxu0 0
    %8083 = vmatpush1.bf16.msra.mxu0 0
    %8084 = vmatprep.subr.bf16.mxu0 0
    %8085 = vmatpush1.bf16.msra.mxu0 0
    %8086 = vmatprep.mubr.bf16.mxu0 0
    %8087 = vmatmul.mubr.bf16.gmra.mrb[0].mxu0 %v8049
    %v8088 = vpop.f32.mrb[0].mxu0
    %v8089 = vadd.f32 0.0, %v8088
    %v8090 = vpop.f32.mrb[0].mxu0
    %v8091 = vpop.f32.mrb[0].mxu0
    %v8092 = vpop.f32.mrb[0].mxu0
    %8093 = vdwg.mxu0
    %v8094 = vpack.c.bf16 %v7801, %v7753
    %v8095 = vpack.c.bf16 %v7897, %v7849
    %v8096 = vpack.c.bf16 %v7993, %v7945
    %v8097 = vpack.c.bf16 %v8089, %v8041
    %v8098 = vld [vmem:[%s6159 + $0x8] sm:$0xf]
    %v8100 = vsel %vm689, %v8094, 0
    %v8103 = vsel %vm689, %v8095, 0
    %v8106 = vsel %vm689, %v8096, 0
    %v8109 = vsel %vm689, %v8097, 0
    %v8112 = vsel %vm1180, %v8098, 0
    %8114 = vmatprep.subr.bf16.mxu0 0
    %8115 = vmatpush1.bf16.msra.mxu0 %v8112
    %8116 = vmatprep.subr.bf16.mxu0 0
    %8117 = vmatpush1.bf16.msra.mxu0 0
    %8118 = vmatprep.subr.bf16.mxu0 0
    %8119 = vmatpush1.bf16.msra.mxu0 0
    %8120 = vmatprep.subr.bf16.mxu0 0
    %8121 = vmatpush1.bf16.msra.mxu0 0
    %8122 = vmatprep.subr.bf16.mxu0 0
    %8123 = vmatpush1.bf16.msra.mxu0 0
    %8124 = vmatprep.subr.bf16.mxu0 0
    %8125 = vmatpush1.bf16.msra.mxu0 0
    %8126 = vmatprep.subr.bf16.mxu0 0
    %8127 = vmatpush1.bf16.msra.mxu0 0
    %8128 = vmatprep.subr.bf16.mxu0 0
    %8129 = vmatpush1.bf16.msra.mxu0 0
    %8130 = vmatprep.subr.bf16.mxu0 0
    %8131 = vmatpush1.bf16.msra.mxu0 0
    %8132 = vmatprep.subr.bf16.mxu0 0
    %8133 = vmatpush1.bf16.msra.mxu0 0
    %8134 = vmatprep.subr.bf16.mxu0 0
    %8135 = vmatpush1.bf16.msra.mxu0 0
    %8136 = vmatprep.subr.bf16.mxu0 0
    %8137 = vmatpush1.bf16.msra.mxu0 0
    %8138 = vmatprep.subr.bf16.mxu0 0
    %8139 = vmatpush1.bf16.msra.mxu0 0
    %8140 = vmatprep.subr.bf16.mxu0 0
    %8141 = vmatpush1.bf16.msra.mxu0 0
    %8142 = vmatprep.subr.bf16.mxu0 0
    %8143 = vmatpush1.bf16.msra.mxu0 0
    %8144 = vmatprep.subr.bf16.mxu0 0
    %8145 = vmatpush1.bf16.msra.mxu0 0
    %8146 = vmatprep.mubr.bf16.mxu0 0
    %8147 = vmatmul.mubr.bf16.gmra.mrb[0].mxu0 %v8100
    %v8148 = vpop.f32.mrb[0].mxu0
    %v8149 = vadd.f32 0.0, %v8148
    %v8150 = vpop.f32.mrb[0].mxu0
    %v8151 = vpop.f32.mrb[0].mxu0
    %v8152 = vadd.f32 0.0, %v8151
    %v8153 = vpop.f32.mrb[0].mxu0
    %8154 = vmatprep.mubr.bf16.mxu0 0
    %8155 = vmatmul.mubr.bf16.gmra.mrb[0].mxu0 %v8103
    %v8156 = vpop.f32.mrb[0].mxu0
    %v8157 = vadd.f32 0.0, %v8156
    %v8158 = vpop.f32.mrb[0].mxu0
    %v8159 = vpop.f32.mrb[0].mxu0
    %v8160 = vadd.f32 0.0, %v8159
    %v8161 = vpop.f32.mrb[0].mxu0
    %8162 = vmatprep.mubr.bf16.mxu0 0
    %8163 = vmatmul.mubr.bf16.gmra.mrb[0].mxu0 %v8106
    %v8164 = vpop.f32.mrb[0].mxu0
    %v8165 = vadd.f32 0.0, %v8164
    %v8166 = vpop.f32.mrb[0].mxu0
    %v8167 = vpop.f32.mrb[0].mxu0
    %v8168 = vadd.f32 0.0, %v8167
    %v8169 = vpop.f32.mrb[0].mxu0
    %8170 = vmatprep.mubr.bf16.mxu0 0
    %8171 = vmatmul.mubr.bf16.gmra.mrb[0].mxu0 %v8109
    %v8172 = vpop.f32.mrb[0].mxu0
    %v8173 = vadd.f32 0.0, %v8172
    %v8174 = vpop.f32.mrb[0].mxu0
    %v8175 = vpop.f32.mrb[0].mxu0
    %v8176 = vadd.f32 0.0, %v8175
    %v8177 = vpop.f32.mrb[0].mxu0
    %8178 = vdwg.mxu0
    %v8179 = vadd.f32 %v7184, %v8149
    %v8180 = vadd.f32 %v7187, %v8152
    %v8181 = vadd.f32 %v7192, %v8157
    %v8182 = vadd.f32 %v7195, %v8160
    %v8183 = vadd.f32 %v7200, %v8165
    %v8184 = vadd.f32 %v7203, %v8168
    %v8185 = vadd.f32 %v7208, %v8173
    %v8186 = vadd.f32 %v7211, %v8176
    %8187 = vrot.lane.b32.xlu0 %v5267, 104
    %v8188 = vpop.permute.xlu0 %8187
    %8189 = vrot.lane.b32.xlu0 %v5275, 72
    %v8190 = vpop.permute.xlu0 %8189
    %v8192 = vsel %vm689, %v8188, 0
    %v8195 = vsel %vm689, %v8190, 0
    %8197 = vmatprep.subr.bf16.mxu0 0
    %8198 = vmatpush1.bf16.xpose.msra.mxu0 %v8195
    %8199 = vmatprep.subr.bf16.mxu0 0
    %8200 = vmatpush1.bf16.xpose.msra.mxu0 0
    %8201 = vmatprep.subr.bf16.mxu0 0
    %8202 = vmatpush1.bf16.xpose.msra.mxu0 0
    %8203 = vmatprep.subr.bf16.mxu0 0
    %8204 = vmatpush1.bf16.xpose.msra.mxu0 0
    %8205 = vmatprep.subr.bf16.mxu0 0
    %8206 = vmatpush1.bf16.xpose.msra.mxu0 0
    %8207 = vmatprep.subr.bf16.mxu0 0
    %8208 = vmatpush1.bf16.xpose.msra.mxu0 0
    %8209 = vmatprep.subr.bf16.mxu0 0
    %8210 = vmatpush1.bf16.xpose.msra.mxu0 0
    %8211 = vmatprep.subr.bf16.mxu0 0
    %8212 = vmatpush1.bf16.xpose.msra.mxu0 0
    %8213 = vmatprep.subr.bf16.mxu0 0
    %8214 = vmatpush1.bf16.xpose.msra.mxu0 0
    %8215 = vmatprep.subr.bf16.mxu0 0
    %8216 = vmatpush1.bf16.xpose.msra.mxu0 0
    %8217 = vmatprep.subr.bf16.mxu0 0
    %8218 = vmatpush1.bf16.xpose.msra.mxu0 0
    %8219 = vmatprep.subr.bf16.mxu0 0
    %8220 = vmatpush1.bf16.xpose.msra.mxu0 0
    %8221 = vmatprep.subr.bf16.mxu0 0
    %8222 = vmatpush1.bf16.xpose.msra.mxu0 0
    %8223 = vmatprep.subr.bf16.mxu0 0
    %8224 = vmatpush1.bf16.xpose.msra.mxu0 0
    %8225 = vmatprep.subr.bf16.mxu0 0
    %8226 = vmatpush1.bf16.xpose.msra.mxu0 0
    %8227 = vmatprep.subr.bf16.mxu0 0
    %8228 = vmatpush1.bf16.xpose.msra.mxu0 0
    %8229 = vmatprep.mubr.bf16.mxu0 0
    %8230 = vmatmul.mubr.bf16.gmra.mrb[0].mxu0 %v8192
    %v8231 = vpop.f32.mrb[0].mxu0
    %v8232 = vadd.f32 %v423, %v8231
    %v8233 = vpop.f32.mrb[0].mxu0
    %v8234 = vpop.f32.mrb[0].mxu0
    %v8235 = vpop.f32.mrb[0].mxu0
    %8236 = vdwg.mxu0
    %8237 = vrot.lane.b32.xlu0 %v5268, 104
    %v8238 = vpop.permute.xlu0 %8237
    %8239 = vrot.lane.b32.xlu0 %v5276, 72
    %v8240 = vpop.permute.xlu0 %8239
    %v8242 = vsel %vm689, %v8238, 0
    %v8245 = vsel %vm689, %v8240, 0
    %8247 = vmatprep.subr.bf16.mxu0 0
    %8248 = vmatpush1.bf16.xpose.msra.mxu0 %v8245
    %8249 = vmatprep.subr.bf16.mxu0 0
    %8250 = vmatpush1.bf16.xpose.msra.mxu0 0
    %8251 = vmatprep.subr.bf16.mxu0 0
    %8252 = vmatpush1.bf16.xpose.msra.mxu0 0
    %8253 = vmatprep.subr.bf16.mxu0 0
    %8254 = vmatpush1.bf16.xpose.msra.mxu0 0
    %8255 = vmatprep.subr.bf16.mxu0 0
    %8256 = vmatpush1.bf16.xpose.msra.mxu0 0
    %8257 = vmatprep.subr.bf16.mxu0 0
    %8258 = vmatpush1.bf16.xpose.msra.mxu0 0
    %8259 = vmatprep.subr.bf16.mxu0 0
    %8260 = vmatpush1.bf16.xpose.msra.mxu0 0
    %8261 = vmatprep.subr.bf16.mxu0 0
    %8262 = vmatpush1.bf16.xpose.msra.mxu0 0
    %8263 = vmatprep.subr.bf16.mxu0 0
    %8264 = vmatpush1.bf16.xpose.msra.mxu0 0
    %8265 = vmatprep.subr.bf16.mxu0 0
    %8266 = vmatpush1.bf16.xpose.msra.mxu0 0
    %8267 = vmatprep.subr.bf16.mxu0 0
    %8268 = vmatpush1.bf16.xpose.msra.mxu0 0
    %8269 = vmatprep.subr.bf16.mxu0 0
    %8270 = vmatpush1.bf16.xpose.msra.mxu0 0
    %8271 = vmatprep.subr.bf16.mxu0 0
    %8272 = vmatpush1.bf16.xpose.msra.mxu0 0
    %8273 = vmatprep.subr.bf16.mxu0 0
    %8274 = vmatpush1.bf16.xpose.msra.mxu0 0
    %8275 = vmatprep.subr.bf16.mxu0 0
    %8276 = vmatpush1.bf16.xpose.msra.mxu0 0
    %8277 = vmatprep.subr.bf16.mxu0 0
    %8278 = vmatpush1.bf16.xpose.msra.mxu0 0
    %8279 = vmatprep.mubr.bf16.mxu0 0
    %8280 = vmatmul.mubr.bf16.gmra.mrb[0].mxu0 %v8242
    %v8281 = vpop.f32.mrb[0].mxu0
    %v8282 = vadd.f32 %v423, %v8281
    %v8283 = vpop.f32.mrb[0].mxu0
    %v8284 = vpop.f32.mrb[0].mxu0
    %v8285 = vpop.f32.mrb[0].mxu0
    %8286 = vdwg.mxu0
    %8287 = vrot.lane.b32.xlu0 %v5269, 104
    %v8288 = vpop.permute.xlu0 %8287
    %8289 = vrot.lane.b32.xlu0 %v5277, 72
    %v8290 = vpop.permute.xlu0 %8289
    %v8292 = vsel %vm689, %v8288, 0
    %v8295 = vsel %vm689, %v8290, 0
    %8297 = vmatprep.subr.bf16.mxu0 0
    %8298 = vmatpush1.bf16.xpose.msra.mxu0 %v8295
    %8299 = vmatprep.subr.bf16.mxu0 0
    %8300 = vmatpush1.bf16.xpose.msra.mxu0 0
    %8301 = vmatprep.subr.bf16.mxu0 0
    %8302 = vmatpush1.bf16.xpose.msra.mxu0 0
    %8303 = vmatprep.subr.bf16.mxu0 0
    %8304 = vmatpush1.bf16.xpose.msra.mxu0 0
    %8305 = vmatprep.subr.bf16.mxu0 0
    %8306 = vmatpush1.bf16.xpose.msra.mxu0 0
    %8307 = vmatprep.subr.bf16.mxu0 0
    %8308 = vmatpush1.bf16.xpose.msra.mxu0 0
    %8309 = vmatprep.subr.bf16.mxu0 0
    %8310 = vmatpush1.bf16.xpose.msra.mxu0 0
    %8311 = vmatprep.subr.bf16.mxu0 0
    %8312 = vmatpush1.bf16.xpose.msra.mxu0 0
    %8313 = vmatprep.subr.bf16.mxu0 0
    %8314 = vmatpush1.bf16.xpose.msra.mxu0 0
    %8315 = vmatprep.subr.bf16.mxu0 0
    %8316 = vmatpush1.bf16.xpose.msra.mxu0 0
    %8317 = vmatprep.subr.bf16.mxu0 0
    %8318 = vmatpush1.bf16.xpose.msra.mxu0 0
    %8319 = vmatprep.subr.bf16.mxu0 0
    %8320 = vmatpush1.bf16.xpose.msra.mxu0 0
    %8321 = vmatprep.subr.bf16.mxu0 0
    %8322 = vmatpush1.bf16.xpose.msra.mxu0 0
    %8323 = vmatprep.subr.bf16.mxu0 0
    %8324 = vmatpush1.bf16.xpose.msra.mxu0 0
    %8325 = vmatprep.subr.bf16.mxu0 0
    %8326 = vmatpush1.bf16.xpose.msra.mxu0 0
    %8327 = vmatprep.subr.bf16.mxu0 0
    %8328 = vmatpush1.bf16.xpose.msra.mxu0 0
    %8329 = vmatprep.mubr.bf16.mxu0 0
    %8330 = vmatmul.mubr.bf16.gmra.mrb[0].mxu0 %v8292
    %v8331 = vpop.f32.mrb[0].mxu0
    %v8332 = vadd.f32 %v423, %v8331
    %v8333 = vpop.f32.mrb[0].mxu0
    %v8334 = vpop.f32.mrb[0].mxu0
    %v8335 = vpop.f32.mrb[0].mxu0
    %8336 = vdwg.mxu0
    %8337 = vrot.lane.b32.xlu0 %v5270, 104
    %v8338 = vpop.permute.xlu0 %8337
    %8339 = vrot.lane.b32.xlu0 %v5278, 72
    %v8340 = vpop.permute.xlu0 %8339
    %v8342 = vsel %vm689, %v8338, 0
    %v8345 = vsel %vm689, %v8340, 0
    %8347 = vmatprep.subr.bf16.mxu0 0
    %8348 = vmatpush1.bf16.xpose.msra.mxu0 %v8345
    %8349 = vmatprep.subr.bf16.mxu0 0
    %8350 = vmatpush1.bf16.xpose.msra.mxu0 0
    %8351 = vmatprep.subr.bf16.mxu0 0
    %8352 = vmatpush1.bf16.xpose.msra.mxu0 0
    %8353 = vmatprep.subr.bf16.mxu0 0
    %8354 = vmatpush1.bf16.xpose.msra.mxu0 0
    %8355 = vmatprep.subr.bf16.mxu0 0
    %8356 = vmatpush1.bf16.xpose.msra.mxu0 0
    %8357 = vmatprep.subr.bf16.mxu0 0
    %8358 = vmatpush1.bf16.xpose.msra.mxu0 0
    %8359 = vmatprep.subr.bf16.mxu0 0
    %8360 = vmatpush1.bf16.xpose.msra.mxu0 0
    %8361 = vmatprep.subr.bf16.mxu0 0
    %8362 = vmatpush1.bf16.xpose.msra.mxu0 0
    %8363 = vmatprep.subr.bf16.mxu0 0
    %8364 = vmatpush1.bf16.xpose.msra.mxu0 0
    %8365 = vmatprep.subr.bf16.mxu0 0
    %8366 = vmatpush1.bf16.xpose.msra.mxu0 0
    %8367 = vmatprep.subr.bf16.mxu0 0
    %8368 = vmatpush1.bf16.xpose.msra.mxu0 0
    %8369 = vmatprep.subr.bf16.mxu0 0
    %8370 = vmatpush1.bf16.xpose.msra.mxu0 0
    %8371 = vmatprep.subr.bf16.mxu0 0
    %8372 = vmatpush1.bf16.xpose.msra.mxu0 0
    %8373 = vmatprep.subr.bf16.mxu0 0
    %8374 = vmatpush1.bf16.xpose.msra.mxu0 0
    %8375 = vmatprep.subr.bf16.mxu0 0
    %8376 = vmatpush1.bf16.xpose.msra.mxu0 0
    %8377 = vmatprep.subr.bf16.mxu0 0
    %8378 = vmatpush1.bf16.xpose.msra.mxu0 0
    %8379 = vmatprep.mubr.bf16.mxu0 0
    %8380 = vmatmul.mubr.bf16.gmra.mrb[0].mxu0 %v8342
    %v8381 = vpop.f32.mrb[0].mxu0
    %v8382 = vadd.f32 %v423, %v8381
    %v8383 = vpop.f32.mrb[0].mxu0
    %v8384 = vpop.f32.mrb[0].mxu0
    %v8385 = vpop.f32.mrb[0].mxu0
    %8386 = vdwg.mxu0
    %8387 = vrot.lane.b32.xlu0 %v5271, 104
    %v8388 = vpop.permute.xlu0 %8387
    %8389 = vrot.lane.b32.xlu0 %v5279, 72
    %v8390 = vpop.permute.xlu0 %8389
    %v8392 = vsel %vm689, %v8388, 0
    %v8395 = vsel %vm689, %v8390, 0
    %8397 = vmatprep.subr.bf16.mxu0 0
    %8398 = vmatpush1.bf16.xpose.msra.mxu0 %v8395
    %8399 = vmatprep.subr.bf16.mxu0 0
    %8400 = vmatpush1.bf16.xpose.msra.mxu0 0
    %8401 = vmatprep.subr.bf16.mxu0 0
    %8402 = vmatpush1.bf16.xpose.msra.mxu0 0
    %8403 = vmatprep.subr.bf16.mxu0 0
    %8404 = vmatpush1.bf16.xpose.msra.mxu0 0
    %8405 = vmatprep.subr.bf16.mxu0 0
    %8406 = vmatpush1.bf16.xpose.msra.mxu0 0
    %8407 = vmatprep.subr.bf16.mxu0 0
    %8408 = vmatpush1.bf16.xpose.msra.mxu0 0
    %8409 = vmatprep.subr.bf16.mxu0 0
    %8410 = vmatpush1.bf16.xpose.msra.mxu0 0
    %8411 = vmatprep.subr.bf16.mxu0 0
    %8412 = vmatpush1.bf16.xpose.msra.mxu0 0
    %8413 = vmatprep.subr.bf16.mxu0 0
    %8414 = vmatpush1.bf16.xpose.msra.mxu0 0
    %8415 = vmatprep.subr.bf16.mxu0 0
    %8416 = vmatpush1.bf16.xpose.msra.mxu0 0
    %8417 = vmatprep.subr.bf16.mxu0 0
    %8418 = vmatpush1.bf16.xpose.msra.mxu0 0
    %8419 = vmatprep.subr.bf16.mxu0 0
    %8420 = vmatpush1.bf16.xpose.msra.mxu0 0
    %8421 = vmatprep.subr.bf16.mxu0 0
    %8422 = vmatpush1.bf16.xpose.msra.mxu0 0
    %8423 = vmatprep.subr.bf16.mxu0 0
    %8424 = vmatpush1.bf16.xpose.msra.mxu0 0
    %8425 = vmatprep.subr.bf16.mxu0 0
    %8426 = vmatpush1.bf16.xpose.msra.mxu0 0
    %8427 = vmatprep.subr.bf16.mxu0 0
    %8428 = vmatpush1.bf16.xpose.msra.mxu0 0
    %8429 = vmatprep.mubr.bf16.mxu0 0
    %8430 = vmatmul.mubr.bf16.gmra.mrb[0].mxu0 %v8392
    %v8431 = vpop.f32.mrb[0].mxu0
    %v8432 = vadd.f32 %v423, %v8431
    %v8433 = vpop.f32.mrb[0].mxu0
    %v8434 = vpop.f32.mrb[0].mxu0
    %v8435 = vpop.f32.mrb[0].mxu0
    %8436 = vdwg.mxu0
    %8437 = vrot.lane.b32.xlu0 %v5272, 104
    %v8438 = vpop.permute.xlu0 %8437
    %8439 = vrot.lane.b32.xlu0 %v5280, 72
    %v8440 = vpop.permute.xlu0 %8439
    %v8442 = vsel %vm689, %v8438, 0
    %v8445 = vsel %vm689, %v8440, 0
    %8447 = vmatprep.subr.bf16.mxu0 0
    %8448 = vmatpush1.bf16.xpose.msra.mxu0 %v8445
    %8449 = vmatprep.subr.bf16.mxu0 0
    %8450 = vmatpush1.bf16.xpose.msra.mxu0 0
    %8451 = vmatprep.subr.bf16.mxu0 0
    %8452 = vmatpush1.bf16.xpose.msra.mxu0 0
    %8453 = vmatprep.subr.bf16.mxu0 0
    %8454 = vmatpush1.bf16.xpose.msra.mxu0 0
    %8455 = vmatprep.subr.bf16.mxu0 0
    %8456 = vmatpush1.bf16.xpose.msra.mxu0 0
    %8457 = vmatprep.subr.bf16.mxu0 0
    %8458 = vmatpush1.bf16.xpose.msra.mxu0 0
    %8459 = vmatprep.subr.bf16.mxu0 0
    %8460 = vmatpush1.bf16.xpose.msra.mxu0 0
    %8461 = vmatprep.subr.bf16.mxu0 0
    %8462 = vmatpush1.bf16.xpose.msra.mxu0 0
    %8463 = vmatprep.subr.bf16.mxu0 0
    %8464 = vmatpush1.bf16.xpose.msra.mxu0 0
    %8465 = vmatprep.subr.bf16.mxu0 0
    %8466 = vmatpush1.bf16.xpose.msra.mxu0 0
    %8467 = vmatprep.subr.bf16.mxu0 0
    %8468 = vmatpush1.bf16.xpose.msra.mxu0 0
    %8469 = vmatprep.subr.bf16.mxu0 0
    %8470 = vmatpush1.bf16.xpose.msra.mxu0 0
    %8471 = vmatprep.subr.bf16.mxu0 0
    %8472 = vmatpush1.bf16.xpose.msra.mxu0 0
    %8473 = vmatprep.subr.bf16.mxu0 0
    %8474 = vmatpush1.bf16.xpose.msra.mxu0 0
    %8475 = vmatprep.subr.bf16.mxu0 0
    %8476 = vmatpush1.bf16.xpose.msra.mxu0 0
    %8477 = vmatprep.subr.bf16.mxu0 0
    %8478 = vmatpush1.bf16.xpose.msra.mxu0 0
    %8479 = vmatprep.mubr.bf16.mxu0 0
    %8480 = vmatmul.mubr.bf16.gmra.mrb[0].mxu0 %v8442
    %v8481 = vpop.f32.mrb[0].mxu0
    %v8482 = vadd.f32 %v423, %v8481
    %v8483 = vpop.f32.mrb[0].mxu0
    %v8484 = vpop.f32.mrb[0].mxu0
    %v8485 = vpop.f32.mrb[0].mxu0
    %8486 = vdwg.mxu0
    %8487 = vrot.lane.b32.xlu0 %v5273, 104
    %v8488 = vpop.permute.xlu0 %8487
    %8489 = vrot.lane.b32.xlu0 %v5281, 72
    %v8490 = vpop.permute.xlu0 %8489
    %v8492 = vsel %vm689, %v8488, 0
    %v8495 = vsel %vm689, %v8490, 0
    %8497 = vmatprep.subr.bf16.mxu0 0
    %8498 = vmatpush1.bf16.xpose.msra.mxu0 %v8495
    %8499 = vmatprep.subr.bf16.mxu0 0
    %8500 = vmatpush1.bf16.xpose.msra.mxu0 0
    %8501 = vmatprep.subr.bf16.mxu0 0
    %8502 = vmatpush1.bf16.xpose.msra.mxu0 0
    %8503 = vmatprep.subr.bf16.mxu0 0
    %8504 = vmatpush1.bf16.xpose.msra.mxu0 0
    %8505 = vmatprep.subr.bf16.mxu0 0
    %8506 = vmatpush1.bf16.xpose.msra.mxu0 0
    %8507 = vmatprep.subr.bf16.mxu0 0
    %8508 = vmatpush1.bf16.xpose.msra.mxu0 0
    %8509 = vmatprep.subr.bf16.mxu0 0
    %8510 = vmatpush1.bf16.xpose.msra.mxu0 0
    %8511 = vmatprep.subr.bf16.mxu0 0
    %8512 = vmatpush1.bf16.xpose.msra.mxu0 0
    %8513 = vmatprep.subr.bf16.mxu0 0
    %8514 = vmatpush1.bf16.xpose.msra.mxu0 0
    %8515 = vmatprep.subr.bf16.mxu0 0
    %8516 = vmatpush1.bf16.xpose.msra.mxu0 0
    %8517 = vmatprep.subr.bf16.mxu0 0
    %8518 = vmatpush1.bf16.xpose.msra.mxu0 0
    %8519 = vmatprep.subr.bf16.mxu0 0
    %8520 = vmatpush1.bf16.xpose.msra.mxu0 0
    %8521 = vmatprep.subr.bf16.mxu0 0
    %8522 = vmatpush1.bf16.xpose.msra.mxu0 0
    %8523 = vmatprep.subr.bf16.mxu0 0
    %8524 = vmatpush1.bf16.xpose.msra.mxu0 0
    %8525 = vmatprep.subr.bf16.mxu0 0
    %8526 = vmatpush1.bf16.xpose.msra.mxu0 0
    %8527 = vmatprep.subr.bf16.mxu0 0
    %8528 = vmatpush1.bf16.xpose.msra.mxu0 0
    %8529 = vmatprep.mubr.bf16.mxu0 0
    %8530 = vmatmul.mubr.bf16.gmra.mrb[0].mxu0 %v8492
    %v8531 = vpop.f32.mrb[0].mxu0
    %v8532 = vadd.f32 %v423, %v8531
    %v8533 = vpop.f32.mrb[0].mxu0
    %v8534 = vpop.f32.mrb[0].mxu0
    %v8535 = vpop.f32.mrb[0].mxu0
    %8536 = vdwg.mxu0
    %8537 = vrot.lane.b32.xlu0 %v5274, 104
    %v8538 = vpop.permute.xlu0 %8537
    %8539 = vrot.lane.b32.xlu0 %v5282, 72
    %v8540 = vpop.permute.xlu0 %8539
    %v8542 = vsel %vm689, %v8538, 0
    %v8545 = vsel %vm689, %v8540, 0
    %8547 = vmatprep.subr.bf16.mxu0 0
    %8548 = vmatpush1.bf16.xpose.msra.mxu0 %v8545
    %8549 = vmatprep.subr.bf16.mxu0 0
    %8550 = vmatpush1.bf16.xpose.msra.mxu0 0
    %8551 = vmatprep.subr.bf16.mxu0 0
    %8552 = vmatpush1.bf16.xpose.msra.mxu0 0
    %8553 = vmatprep.subr.bf16.mxu0 0
    %8554 = vmatpush1.bf16.xpose.msra.mxu0 0
    %8555 = vmatprep.subr.bf16.mxu0 0
    %8556 = vmatpush1.bf16.xpose.msra.mxu0 0
    %8557 = vmatprep.subr.bf16.mxu0 0
    %8558 = vmatpush1.bf16.xpose.msra.mxu0 0
    %8559 = vmatprep.subr.bf16.mxu0 0
    %8560 = vmatpush1.bf16.xpose.msra.mxu0 0
    %8561 = vmatprep.subr.bf16.mxu0 0
    %8562 = vmatpush1.bf16.xpose.msra.mxu0 0
    %8563 = vmatprep.subr.bf16.mxu0 0
    %8564 = vmatpush1.bf16.xpose.msra.mxu0 0
    %8565 = vmatprep.subr.bf16.mxu0 0
    %8566 = vmatpush1.bf16.xpose.msra.mxu0 0
    %8567 = vmatprep.subr.bf16.mxu0 0
    %8568 = vmatpush1.bf16.xpose.msra.mxu0 0
    %8569 = vmatprep.subr.bf16.mxu0 0
    %8570 = vmatpush1.bf16.xpose.msra.mxu0 0
    %8571 = vmatprep.subr.bf16.mxu0 0
    %8572 = vmatpush1.bf16.xpose.msra.mxu0 0
    %8573 = vmatprep.subr.bf16.mxu0 0
    %8574 = vmatpush1.bf16.xpose.msra.mxu0 0
    %8575 = vmatprep.subr.bf16.mxu0 0
    %8576 = vmatpush1.bf16.xpose.msra.mxu0 0
    %8577 = vmatprep.subr.bf16.mxu0 0
    %8578 = vmatpush1.bf16.xpose.msra.mxu0 0
    %8579 = vmatprep.mubr.bf16.mxu0 0
    %8580 = vmatmul.mubr.bf16.gmra.mrb[0].mxu0 %v8542
    %v8581 = vpop.f32.mrb[0].mxu0
    %v8582 = vadd.f32 %v423, %v8581
    %v8583 = vpop.f32.mrb[0].mxu0
    %v8584 = vpop.f32.mrb[0].mxu0
    %v8585 = vpop.f32.mrb[0].mxu0
    %8586 = vdwg.mxu0
    %v8587 = vsel %vm689, %v8232, -inf
    %8588 = vmax.xlane.f32.xlu0 %v8587
    %v8589 = vpop.xlane.xlu0 %8588
    %v8590 = vsel %vm689, %v8282, -inf
    %8591 = vmax.xlane.f32.xlu0 %v8590
    %v8592 = vpop.xlane.xlu0 %8591
    %v8593 = vsel %vm689, %v8332, -inf
    %8594 = vmax.xlane.f32.xlu0 %v8593
    %v8595 = vpop.xlane.xlu0 %8594
    %v8596 = vsel %vm689, %v8382, -inf
    %8597 = vmax.xlane.f32.xlu0 %v8596
    %v8598 = vpop.xlane.xlu0 %8597
    %v8599 = vsel %vm689, %v8432, -inf
    %8600 = vmax.xlane.f32.xlu0 %v8599
    %v8601 = vpop.xlane.xlu0 %8600
    %v8602 = vsel %vm689, %v8482, -inf
    %8603 = vmax.xlane.f32.xlu0 %v8602
    %v8604 = vpop.xlane.xlu0 %8603
    %v8605 = vsel %vm689, %v8532, -inf
    %8606 = vmax.xlane.f32.xlu0 %v8605
    %v8607 = vpop.xlane.xlu0 %8606
    %v8608 = vsel %vm689, %v8582, -inf
    %8609 = vmax.xlane.f32.xlu0 %v8608
    %v8610 = vpop.xlane.xlu0 %8609
    %v8611 = vsub.f32 %v8232, %v8589
    %v8612 = vsub.f32 %v8282, %v8592
    %v8613 = vsub.f32 %v8332, %v8595
    %v8614 = vsub.f32 %v8382, %v8598
    %v8615 = vsub.f32 %v8432, %v8601
    %v8616 = vsub.f32 %v8482, %v8604
    %v8617 = vsub.f32 %v8532, %v8607
    %v8618 = vsub.f32 %v8582, %v8610
    %v8619 = vmul.f32 %v8611, 1.442695
    %v8620 = vpow.pop %v8619
    %v8621 = vmul.f32 %v8612, 1.442695
    %v8622 = vpow.pop %v8621
    %v8623 = vmul.f32 %v8613, 1.442695
    %v8624 = vpow.pop %v8623
    %v8625 = vmul.f32 %v8614, 1.442695
    %v8626 = vpow.pop %v8625
    %v8627 = vmul.f32 %v8615, 1.442695
    %v8628 = vpow.pop %v8627
    %v8629 = vmul.f32 %v8616, 1.442695
    %v8630 = vpow.pop %v8629
    %v8631 = vmul.f32 %v8617, 1.442695
    %v8632 = vpow.pop %v8631
    %v8633 = vmul.f32 %v8618, 1.442695
    %v8634 = vpow.pop %v8633
    %v8635 = vsel %vm689, %v8620, 0.0
    %8636 = vadd.xlane.f32.xlu0 %v8635
    %v8637 = vpop.xlane.xlu0 %8636
    %v8638 = vsel %vm689, %v8622, 0.0
    %8639 = vadd.xlane.f32.xlu0 %v8638
    %v8640 = vpop.xlane.xlu0 %8639
    %v8641 = vsel %vm689, %v8624, 0.0
    %8642 = vadd.xlane.f32.xlu0 %v8641
    %v8643 = vpop.xlane.xlu0 %8642
    %v8644 = vsel %vm689, %v8626, 0.0
    %8645 = vadd.xlane.f32.xlu0 %v8644
    %v8646 = vpop.xlane.xlu0 %8645
    %v8647 = vsel %vm689, %v8628, 0.0
    %8648 = vadd.xlane.f32.xlu0 %v8647
    %v8649 = vpop.xlane.xlu0 %8648
    %v8650 = vsel %vm689, %v8630, 0.0
    %8651 = vadd.xlane.f32.xlu0 %v8650
    %v8652 = vpop.xlane.xlu0 %8651
    %v8653 = vsel %vm689, %v8632, 0.0
    %8654 = vadd.xlane.f32.xlu0 %v8653
    %v8655 = vpop.xlane.xlu0 %8654
    %v8656 = vsel %vm689, %v8634, 0.0
    %8657 = vadd.xlane.f32.xlu0 %v8656
    %v8658 = vpop.xlane.xlu0 %8657
    %v8659 = vrcp.pop %v8637
    %v8660 = vrcp.pop %v8640
    %v8661 = vrcp.pop %v8643
    %v8662 = vrcp.pop %v8646
    %v8663 = vrcp.pop %v8649
    %v8664 = vrcp.pop %v8652
    %v8665 = vrcp.pop %v8655
    %v8666 = vrcp.pop %v8658
    %v8667 = vmul.f32 %v8620, %v8659
    %v8668 = vmul.f32 %v8622, %v8660
    %v8669 = vmul.f32 %v8624, %v8661
    %v8670 = vmul.f32 %v8626, %v8662
    %v8671 = vmul.f32 %v8628, %v8663
    %v8672 = vmul.f32 %v8630, %v8664
    %v8673 = vmul.f32 %v8632, %v8665
    %v8674 = vmul.f32 %v8634, %v8666
    %v8675 = vpack.c.bf16 %v8667, %v8667
    %v8676 = vpack.c.bf16 %v8668, %v8668
    %v8677 = vpack.c.bf16 %v8669, %v8669
    %v8678 = vpack.c.bf16 %v8670, %v8670
    %v8679 = vpack.c.bf16 %v8671, %v8671
    %v8680 = vpack.c.bf16 %v8672, %v8672
    %v8681 = vpack.c.bf16 %v8673, %v8673
    %v8682 = vpack.c.bf16 %v8674, %v8674
    %8683 = vrot.lane.b32.xlu0 %v5275, 40
    %v8684 = vpop.permute.xlu0 %8683
    %v8686 = vsel %vm689, %v8675, 0
    %v8689 = vsel %vm1180, %v8684, 0
    %8691 = vmatprep.subr.bf16.mxu0 0
    %8692 = vmatpush1.bf16.msra.mxu0 %v8689
    %8693 = vmatprep.subr.bf16.mxu0 0
    %8694 = vmatpush1.bf16.msra.mxu0 0
    %8695 = vmatprep.subr.bf16.mxu0 0
    %8696 = vmatpush1.bf16.msra.mxu0 0
    %8697 = vmatprep.subr.bf16.mxu0 0
    %8698 = vmatpush1.bf16.msra.mxu0 0
    %8699 = vmatprep.subr.bf16.mxu0 0
    %8700 = vmatpush1.bf16.msra.mxu0 0
    %8701 = vmatprep.subr.bf16.mxu0 0
    %8702 = vmatpush1.bf16.msra.mxu0 0
    %8703 = vmatprep.subr.bf16.mxu0 0
    %8704 = vmatpush1.bf16.msra.mxu0 0
    %8705 = vmatprep.subr.bf16.mxu0 0
    %8706 = vmatpush1.bf16.msra.mxu0 0
    %8707 = vmatprep.subr.bf16.mxu0 0
    %8708 = vmatpush1.bf16.msra.mxu0 0
    %8709 = vmatprep.subr.bf16.mxu0 0
    %8710 = vmatpush1.bf16.msra.mxu0 0
    %8711 = vmatprep.subr.bf16.mxu0 0
    %8712 = vmatpush1.bf16.msra.mxu0 0
    %8713 = vmatprep.subr.bf16.mxu0 0
    %8714 = vmatpush1.bf16.msra.mxu0 0
    %8715 = vmatprep.subr.bf16.mxu0 0
    %8716 = vmatpush1.bf16.msra.mxu0 0
    %8717 = vmatprep.subr.bf16.mxu0 0
    %8718 = vmatpush1.bf16.msra.mxu0 0
    %8719 = vmatprep.subr.bf16.mxu0 0
    %8720 = vmatpush1.bf16.msra.mxu0 0
    %8721 = vmatprep.subr.bf16.mxu0 0
    %8722 = vmatpush1.bf16.msra.mxu0 0
    %8723 = vmatprep.mubr.bf16.mxu0 0
    %8724 = vmatmul.mubr.bf16.gmra.mrb[0].mxu0 %v8686
    %v8725 = vpop.f32.mrb[0].mxu0
    %v8726 = vadd.f32 0.0, %v8725
    %v8727 = vpop.f32.mrb[0].mxu0
    %v8728 = vpop.f32.mrb[0].mxu0
    %v8729 = vpop.f32.mrb[0].mxu0
    %8730 = vdwg.mxu0
    %8731 = vrot.lane.b32.xlu0 %v5276, 40
    %v8732 = vpop.permute.xlu0 %8731
    %v8734 = vsel %vm689, %v8676, 0
    %v8737 = vsel %vm1180, %v8732, 0
    %8739 = vmatprep.subr.bf16.mxu0 0
    %8740 = vmatpush1.bf16.msra.mxu0 %v8737
    %8741 = vmatprep.subr.bf16.mxu0 0
    %8742 = vmatpush1.bf16.msra.mxu0 0
    %8743 = vmatprep.subr.bf16.mxu0 0
    %8744 = vmatpush1.bf16.msra.mxu0 0
    %8745 = vmatprep.subr.bf16.mxu0 0
    %8746 = vmatpush1.bf16.msra.mxu0 0
    %8747 = vmatprep.subr.bf16.mxu0 0
    %8748 = vmatpush1.bf16.msra.mxu0 0
    %8749 = vmatprep.subr.bf16.mxu0 0
    %8750 = vmatpush1.bf16.msra.mxu0 0
    %8751 = vmatprep.subr.bf16.mxu0 0
    %8752 = vmatpush1.bf16.msra.mxu0 0
    %8753 = vmatprep.subr.bf16.mxu0 0
    %8754 = vmatpush1.bf16.msra.mxu0 0
    %8755 = vmatprep.subr.bf16.mxu0 0
    %8756 = vmatpush1.bf16.msra.mxu0 0
    %8757 = vmatprep.subr.bf16.mxu0 0
    %8758 = vmatpush1.bf16.msra.mxu0 0
    %8759 = vmatprep.subr.bf16.mxu0 0
    %8760 = vmatpush1.bf16.msra.mxu0 0
    %8761 = vmatprep.subr.bf16.mxu0 0
    %8762 = vmatpush1.bf16.msra.mxu0 0
    %8763 = vmatprep.subr.bf16.mxu0 0
    %8764 = vmatpush1.bf16.msra.mxu0 0
    %8765 = vmatprep.subr.bf16.mxu0 0
    %8766 = vmatpush1.bf16.msra.mxu0 0
    %8767 = vmatprep.subr.bf16.mxu0 0
    %8768 = vmatpush1.bf16.msra.mxu0 0
    %8769 = vmatprep.subr.bf16.mxu0 0
    %8770 = vmatpush1.bf16.msra.mxu0 0
    %8771 = vmatprep.mubr.bf16.mxu0 0
    %8772 = vmatmul.mubr.bf16.gmra.mrb[0].mxu0 %v8734
    %v8773 = vpop.f32.mrb[0].mxu0
    %v8774 = vadd.f32 0.0, %v8773
    %v8775 = vpop.f32.mrb[0].mxu0
    %v8776 = vpop.f32.mrb[0].mxu0
    %v8777 = vpop.f32.mrb[0].mxu0
    %8778 = vdwg.mxu0
    %8779 = vrot.lane.b32.xlu0 %v5277, 40
    %v8780 = vpop.permute.xlu0 %8779
    %v8782 = vsel %vm689, %v8677, 0
    %v8785 = vsel %vm1180, %v8780, 0
    %8787 = vmatprep.subr.bf16.mxu0 0
    %8788 = vmatpush1.bf16.msra.mxu0 %v8785
    %8789 = vmatprep.subr.bf16.mxu0 0
    %8790 = vmatpush1.bf16.msra.mxu0 0
    %8791 = vmatprep.subr.bf16.mxu0 0
    %8792 = vmatpush1.bf16.msra.mxu0 0
    %8793 = vmatprep.subr.bf16.mxu0 0
    %8794 = vmatpush1.bf16.msra.mxu0 0
    %8795 = vmatprep.subr.bf16.mxu0 0
    %8796 = vmatpush1.bf16.msra.mxu0 0
    %8797 = vmatprep.subr.bf16.mxu0 0
    %8798 = vmatpush1.bf16.msra.mxu0 0
    %8799 = vmatprep.subr.bf16.mxu0 0
    %8800 = vmatpush1.bf16.msra.mxu0 0
    %8801 = vmatprep.subr.bf16.mxu0 0
    %8802 = vmatpush1.bf16.msra.mxu0 0
    %8803 = vmatprep.subr.bf16.mxu0 0
    %8804 = vmatpush1.bf16.msra.mxu0 0
    %8805 = vmatprep.subr.bf16.mxu0 0
    %8806 = vmatpush1.bf16.msra.mxu0 0
    %8807 = vmatprep.subr.bf16.mxu0 0
    %8808 = vmatpush1.bf16.msra.mxu0 0
    %8809 = vmatprep.subr.bf16.mxu0 0
    %8810 = vmatpush1.bf16.msra.mxu0 0
    %8811 = vmatprep.subr.bf16.mxu0 0
    %8812 = vmatpush1.bf16.msra.mxu0 0
    %8813 = vmatprep.subr.bf16.mxu0 0
    %8814 = vmatpush1.bf16.msra.mxu0 0
    %8815 = vmatprep.subr.bf16.mxu0 0
    %8816 = vmatpush1.bf16.msra.mxu0 0
    %8817 = vmatprep.subr.bf16.mxu0 0
    %8818 = vmatpush1.bf16.msra.mxu0 0
    %8819 = vmatprep.mubr.bf16.mxu0 0
    %8820 = vmatmul.mubr.bf16.gmra.mrb[0].mxu0 %v8782
    %v8821 = vpop.f32.mrb[0].mxu0
    %v8822 = vadd.f32 0.0, %v8821
    %v8823 = vpop.f32.mrb[0].mxu0
    %v8824 = vpop.f32.mrb[0].mxu0
    %v8825 = vpop.f32.mrb[0].mxu0
    %8826 = vdwg.mxu0
    %8827 = vrot.lane.b32.xlu0 %v5278, 40
    %v8828 = vpop.permute.xlu0 %8827
    %v8830 = vsel %vm689, %v8678, 0
    %v8833 = vsel %vm1180, %v8828, 0
    %8835 = vmatprep.subr.bf16.mxu0 0
    %8836 = vmatpush1.bf16.msra.mxu0 %v8833
    %8837 = vmatprep.subr.bf16.mxu0 0
    %8838 = vmatpush1.bf16.msra.mxu0 0
    %8839 = vmatprep.subr.bf16.mxu0 0
    %8840 = vmatpush1.bf16.msra.mxu0 0
    %8841 = vmatprep.subr.bf16.mxu0 0
    %8842 = vmatpush1.bf16.msra.mxu0 0
    %8843 = vmatprep.subr.bf16.mxu0 0
    %8844 = vmatpush1.bf16.msra.mxu0 0
    %8845 = vmatprep.subr.bf16.mxu0 0
    %8846 = vmatpush1.bf16.msra.mxu0 0
    %8847 = vmatprep.subr.bf16.mxu0 0
    %8848 = vmatpush1.bf16.msra.mxu0 0
    %8849 = vmatprep.subr.bf16.mxu0 0
    %8850 = vmatpush1.bf16.msra.mxu0 0
    %8851 = vmatprep.subr.bf16.mxu0 0
    %8852 = vmatpush1.bf16.msra.mxu0 0
    %8853 = vmatprep.subr.bf16.mxu0 0
    %8854 = vmatpush1.bf16.msra.mxu0 0
    %8855 = vmatprep.subr.bf16.mxu0 0
    %8856 = vmatpush1.bf16.msra.mxu0 0
    %8857 = vmatprep.subr.bf16.mxu0 0
    %8858 = vmatpush1.bf16.msra.mxu0 0
    %8859 = vmatprep.subr.bf16.mxu0 0
    %8860 = vmatpush1.bf16.msra.mxu0 0
    %8861 = vmatprep.subr.bf16.mxu0 0
    %8862 = vmatpush1.bf16.msra.mxu0 0
    %8863 = vmatprep.subr.bf16.mxu0 0
    %8864 = vmatpush1.bf16.msra.mxu0 0
    %8865 = vmatprep.subr.bf16.mxu0 0
    %8866 = vmatpush1.bf16.msra.mxu0 0
    %8867 = vmatprep.mubr.bf16.mxu0 0
    %8868 = vmatmul.mubr.bf16.gmra.mrb[0].mxu0 %v8830
    %v8869 = vpop.f32.mrb[0].mxu0
    %v8870 = vadd.f32 0.0, %v8869
    %v8871 = vpop.f32.mrb[0].mxu0
    %v8872 = vpop.f32.mrb[0].mxu0
    %v8873 = vpop.f32.mrb[0].mxu0
    %8874 = vdwg.mxu0
    %8875 = vrot.lane.b32.xlu0 %v5279, 40
    %v8876 = vpop.permute.xlu0 %8875
    %v8878 = vsel %vm689, %v8679, 0
    %v8881 = vsel %vm1180, %v8876, 0
    %8883 = vmatprep.subr.bf16.mxu0 0
    %8884 = vmatpush1.bf16.msra.mxu0 %v8881
    %8885 = vmatprep.subr.bf16.mxu0 0
    %8886 = vmatpush1.bf16.msra.mxu0 0
    %8887 = vmatprep.subr.bf16.mxu0 0
    %8888 = vmatpush1.bf16.msra.mxu0 0
    %8889 = vmatprep.subr.bf16.mxu0 0
    %8890 = vmatpush1.bf16.msra.mxu0 0
    %8891 = vmatprep.subr.bf16.mxu0 0
    %8892 = vmatpush1.bf16.msra.mxu0 0
    %8893 = vmatprep.subr.bf16.mxu0 0
    %8894 = vmatpush1.bf16.msra.mxu0 0
    %8895 = vmatprep.subr.bf16.mxu0 0
    %8896 = vmatpush1.bf16.msra.mxu0 0
    %8897 = vmatprep.subr.bf16.mxu0 0
    %8898 = vmatpush1.bf16.msra.mxu0 0
    %8899 = vmatprep.subr.bf16.mxu0 0
    %8900 = vmatpush1.bf16.msra.mxu0 0
    %8901 = vmatprep.subr.bf16.mxu0 0
    %8902 = vmatpush1.bf16.msra.mxu0 0
    %8903 = vmatprep.subr.bf16.mxu0 0
    %8904 = vmatpush1.bf16.msra.mxu0 0
    %8905 = vmatprep.subr.bf16.mxu0 0
    %8906 = vmatpush1.bf16.msra.mxu0 0
    %8907 = vmatprep.subr.bf16.mxu0 0
    %8908 = vmatpush1.bf16.msra.mxu0 0
    %8909 = vmatprep.subr.bf16.mxu0 0
    %8910 = vmatpush1.bf16.msra.mxu0 0
    %8911 = vmatprep.subr.bf16.mxu0 0
    %8912 = vmatpush1.bf16.msra.mxu0 0
    %8913 = vmatprep.subr.bf16.mxu0 0
    %8914 = vmatpush1.bf16.msra.mxu0 0
    %8915 = vmatprep.mubr.bf16.mxu0 0
    %8916 = vmatmul.mubr.bf16.gmra.mrb[0].mxu0 %v8878
    %v8917 = vpop.f32.mrb[0].mxu0
    %v8918 = vadd.f32 0.0, %v8917
    %v8919 = vpop.f32.mrb[0].mxu0
    %v8920 = vpop.f32.mrb[0].mxu0
    %v8921 = vpop.f32.mrb[0].mxu0
    %8922 = vdwg.mxu0
    %8923 = vrot.lane.b32.xlu0 %v5280, 40
    %v8924 = vpop.permute.xlu0 %8923
    %v8926 = vsel %vm689, %v8680, 0
    %v8929 = vsel %vm1180, %v8924, 0
    %8931 = vmatprep.subr.bf16.mxu0 0
    %8932 = vmatpush1.bf16.msra.mxu0 %v8929
    %8933 = vmatprep.subr.bf16.mxu0 0
    %8934 = vmatpush1.bf16.msra.mxu0 0
    %8935 = vmatprep.subr.bf16.mxu0 0
    %8936 = vmatpush1.bf16.msra.mxu0 0
    %8937 = vmatprep.subr.bf16.mxu0 0
    %8938 = vmatpush1.bf16.msra.mxu0 0
    %8939 = vmatprep.subr.bf16.mxu0 0
    %8940 = vmatpush1.bf16.msra.mxu0 0
    %8941 = vmatprep.subr.bf16.mxu0 0
    %8942 = vmatpush1.bf16.msra.mxu0 0
    %8943 = vmatprep.subr.bf16.mxu0 0
    %8944 = vmatpush1.bf16.msra.mxu0 0
    %8945 = vmatprep.subr.bf16.mxu0 0
    %8946 = vmatpush1.bf16.msra.mxu0 0
    %8947 = vmatprep.subr.bf16.mxu0 0
    %8948 = vmatpush1.bf16.msra.mxu0 0
    %8949 = vmatprep.subr.bf16.mxu0 0
    %8950 = vmatpush1.bf16.msra.mxu0 0
    %8951 = vmatprep.subr.bf16.mxu0 0
    %8952 = vmatpush1.bf16.msra.mxu0 0
    %8953 = vmatprep.subr.bf16.mxu0 0
    %8954 = vmatpush1.bf16.msra.mxu0 0
    %8955 = vmatprep.subr.bf16.mxu0 0
    %8956 = vmatpush1.bf16.msra.mxu0 0
    %8957 = vmatprep.subr.bf16.mxu0 0
    %8958 = vmatpush1.bf16.msra.mxu0 0
    %8959 = vmatprep.subr.bf16.mxu0 0
    %8960 = vmatpush1.bf16.msra.mxu0 0
    %8961 = vmatprep.subr.bf16.mxu0 0
    %8962 = vmatpush1.bf16.msra.mxu0 0
    %8963 = vmatprep.mubr.bf16.mxu0 0
    %8964 = vmatmul.mubr.bf16.gmra.mrb[0].mxu0 %v8926
    %v8965 = vpop.f32.mrb[0].mxu0
    %v8966 = vadd.f32 0.0, %v8965
    %v8967 = vpop.f32.mrb[0].mxu0
    %v8968 = vpop.f32.mrb[0].mxu0
    %v8969 = vpop.f32.mrb[0].mxu0
    %8970 = vdwg.mxu0
    %8971 = vrot.lane.b32.xlu0 %v5281, 40
    %v8972 = vpop.permute.xlu0 %8971
    %v8974 = vsel %vm689, %v8681, 0
    %v8977 = vsel %vm1180, %v8972, 0
    %8979 = vmatprep.subr.bf16.mxu0 0
    %8980 = vmatpush1.bf16.msra.mxu0 %v8977
    %8981 = vmatprep.subr.bf16.mxu0 0
    %8982 = vmatpush1.bf16.msra.mxu0 0
    %8983 = vmatprep.subr.bf16.mxu0 0
    %8984 = vmatpush1.bf16.msra.mxu0 0
    %8985 = vmatprep.subr.bf16.mxu0 0
    %8986 = vmatpush1.bf16.msra.mxu0 0
    %8987 = vmatprep.subr.bf16.mxu0 0
    %8988 = vmatpush1.bf16.msra.mxu0 0
    %8989 = vmatprep.subr.bf16.mxu0 0
    %8990 = vmatpush1.bf16.msra.mxu0 0
    %8991 = vmatprep.subr.bf16.mxu0 0
    %8992 = vmatpush1.bf16.msra.mxu0 0
    %8993 = vmatprep.subr.bf16.mxu0 0
    %8994 = vmatpush1.bf16.msra.mxu0 0
    %8995 = vmatprep.subr.bf16.mxu0 0
    %8996 = vmatpush1.bf16.msra.mxu0 0
    %8997 = vmatprep.subr.bf16.mxu0 0
    %8998 = vmatpush1.bf16.msra.mxu0 0
    %8999 = vmatprep.subr.bf16.mxu0 0
    %9000 = vmatpush1.bf16.msra.mxu0 0
    %9001 = vmatprep.subr.bf16.mxu0 0
    %9002 = vmatpush1.bf16.msra.mxu0 0
    %9003 = vmatprep.subr.bf16.mxu0 0
    %9004 = vmatpush1.bf16.msra.mxu0 0
    %9005 = vmatprep.subr.bf16.mxu0 0
    %9006 = vmatpush1.bf16.msra.mxu0 0
    %9007 = vmatprep.subr.bf16.mxu0 0
    %9008 = vmatpush1.bf16.msra.mxu0 0
    %9009 = vmatprep.subr.bf16.mxu0 0
    %9010 = vmatpush1.bf16.msra.mxu0 0
    %9011 = vmatprep.mubr.bf16.mxu0 0
    %9012 = vmatmul.mubr.bf16.gmra.mrb[0].mxu0 %v8974
    %v9013 = vpop.f32.mrb[0].mxu0
    %v9014 = vadd.f32 0.0, %v9013
    %v9015 = vpop.f32.mrb[0].mxu0
    %v9016 = vpop.f32.mrb[0].mxu0
    %v9017 = vpop.f32.mrb[0].mxu0
    %9018 = vdwg.mxu0
    %9019 = vrot.lane.b32.xlu0 %v5282, 40
    %v9020 = vpop.permute.xlu0 %9019
    %v9022 = vsel %vm689, %v8682, 0
    %v9025 = vsel %vm1180, %v9020, 0
    %9027 = vmatprep.subr.bf16.mxu0 0
    %9028 = vmatpush1.bf16.msra.mxu0 %v9025
    %9029 = vmatprep.subr.bf16.mxu0 0
    %9030 = vmatpush1.bf16.msra.mxu0 0
    %9031 = vmatprep.subr.bf16.mxu0 0
    %9032 = vmatpush1.bf16.msra.mxu0 0
    %9033 = vmatprep.subr.bf16.mxu0 0
    %9034 = vmatpush1.bf16.msra.mxu0 0
    %9035 = vmatprep.subr.bf16.mxu0 0
    %9036 = vmatpush1.bf16.msra.mxu0 0
    %9037 = vmatprep.subr.bf16.mxu0 0
    %9038 = vmatpush1.bf16.msra.mxu0 0
    %9039 = vmatprep.subr.bf16.mxu0 0
    %9040 = vmatpush1.bf16.msra.mxu0 0
    %9041 = vmatprep.subr.bf16.mxu0 0
    %9042 = vmatpush1.bf16.msra.mxu0 0
    %9043 = vmatprep.subr.bf16.mxu0 0
    %9044 = vmatpush1.bf16.msra.mxu0 0
    %9045 = vmatprep.subr.bf16.mxu0 0
    %9046 = vmatpush1.bf16.msra.mxu0 0
    %9047 = vmatprep.subr.bf16.mxu0 0
    %9048 = vmatpush1.bf16.msra.mxu0 0
    %9049 = vmatprep.subr.bf16.mxu0 0
    %9050 = vmatpush1.bf16.msra.mxu0 0
    %9051 = vmatprep.subr.bf16.mxu0 0
    %9052 = vmatpush1.bf16.msra.mxu0 0
    %9053 = vmatprep.subr.bf16.mxu0 0
    %9054 = vmatpush1.bf16.msra.mxu0 0
    %9055 = vmatprep.subr.bf16.mxu0 0
    %9056 = vmatpush1.bf16.msra.mxu0 0
    %9057 = vmatprep.subr.bf16.mxu0 0
    %9058 = vmatpush1.bf16.msra.mxu0 0
    %9059 = vmatprep.mubr.bf16.mxu0 0
    %9060 = vmatmul.mubr.bf16.gmra.mrb[0].mxu0 %v9022
    %v9061 = vpop.f32.mrb[0].mxu0
    %v9062 = vadd.f32 0.0, %v9061
    %v9063 = vpop.f32.mrb[0].mxu0
    %v9064 = vpop.f32.mrb[0].mxu0
    %v9065 = vpop.f32.mrb[0].mxu0
    %9066 = vdwg.mxu0
    %v9067 = vpack.c.bf16 %v8774, %v8726
    %v9068 = vpack.c.bf16 %v8870, %v8822
    %v9069 = vpack.c.bf16 %v8966, %v8918
    %v9070 = vpack.c.bf16 %v9062, %v9014
    %v9071 = vld [vmem:[%s6159 + $0xc] sm:$0xf]
    %v9073 = vsel %vm689, %v9067, 0
    %v9076 = vsel %vm689, %v9068, 0
    %v9079 = vsel %vm689, %v9069, 0
    %v9082 = vsel %vm689, %v9070, 0
    %v9085 = vsel %vm1180, %v9071, 0
    %9087 = vmatprep.subr.bf16.mxu0 0
    %9088 = vmatpush1.bf16.msra.mxu0 %v9085
    %9089 = vmatprep.subr.bf16.mxu0 0
    %9090 = vmatpush1.bf16.msra.mxu0 0
    %9091 = vmatprep.subr.bf16.mxu0 0
    %9092 = vmatpush1.bf16.msra.mxu0 0
    %9093 = vmatprep.subr.bf16.mxu0 0
    %9094 = vmatpush1.bf16.msra.mxu0 0
    %9095 = vmatprep.subr.bf16.mxu0 0
    %9096 = vmatpush1.bf16.msra.mxu0 0
    %9097 = vmatprep.subr.bf16.mxu0 0
    %9098 = vmatpush1.bf16.msra.mxu0 0
    %9099 = vmatprep.subr.bf16.mxu0 0
    %9100 = vmatpush1.bf16.msra.mxu0 0
    %9101 = vmatprep.subr.bf16.mxu0 0
    %9102 = vmatpush1.bf16.msra.mxu0 0
    %9103 = vmatprep.subr.bf16.mxu0 0
    %9104 = vmatpush1.bf16.msra.mxu0 0
    %9105 = vmatprep.subr.bf16.mxu0 0
    %9106 = vmatpush1.bf16.msra.mxu0 0
    %9107 = vmatprep.subr.bf16.mxu0 0
    %9108 = vmatpush1.bf16.msra.mxu0 0
    %9109 = vmatprep.subr.bf16.mxu0 0
    %9110 = vmatpush1.bf16.msra.mxu0 0
    %9111 = vmatprep.subr.bf16.mxu0 0
    %9112 = vmatpush1.bf16.msra.mxu0 0
    %9113 = vmatprep.subr.bf16.mxu0 0
    %9114 = vmatpush1.bf16.msra.mxu0 0
    %9115 = vmatprep.subr.bf16.mxu0 0
    %9116 = vmatpush1.bf16.msra.mxu0 0
    %9117 = vmatprep.subr.bf16.mxu0 0
    %9118 = vmatpush1.bf16.msra.mxu0 0
    %9119 = vmatprep.mubr.bf16.mxu0 0
    %9120 = vmatmul.mubr.bf16.gmra.mrb[0].mxu0 %v9073
    %v9121 = vpop.f32.mrb[0].mxu0
    %v9122 = vadd.f32 0.0, %v9121
    %v9123 = vpop.f32.mrb[0].mxu0
    %v9124 = vpop.f32.mrb[0].mxu0
    %v9125 = vadd.f32 0.0, %v9124
    %v9126 = vpop.f32.mrb[0].mxu0
    %9127 = vmatprep.mubr.bf16.mxu0 0
    %9128 = vmatmul.mubr.bf16.gmra.mrb[0].mxu0 %v9076
    %v9129 = vpop.f32.mrb[0].mxu0
    %v9130 = vadd.f32 0.0, %v9129
    %v9131 = vpop.f32.mrb[0].mxu0
    %v9132 = vpop.f32.mrb[0].mxu0
    %v9133 = vadd.f32 0.0, %v9132
    %v9134 = vpop.f32.mrb[0].mxu0
    %9135 = vmatprep.mubr.bf16.mxu0 0
    %9136 = vmatmul.mubr.bf16.gmra.mrb[0].mxu0 %v9079
    %v9137 = vpop.f32.mrb[0].mxu0
    %v9138 = vadd.f32 0.0, %v9137
    %v9139 = vpop.f32.mrb[0].mxu0
    %v9140 = vpop.f32.mrb[0].mxu0
    %v9141 = vadd.f32 0.0, %v9140
    %v9142 = vpop.f32.mrb[0].mxu0
    %9143 = vmatprep.mubr.bf16.mxu0 0
    %9144 = vmatmul.mubr.bf16.gmra.mrb[0].mxu0 %v9082
    %v9145 = vpop.f32.mrb[0].mxu0
    %v9146 = vadd.f32 0.0, %v9145
    %v9147 = vpop.f32.mrb[0].mxu0
    %v9148 = vpop.f32.mrb[0].mxu0
    %v9149 = vadd.f32 0.0, %v9148
    %v9150 = vpop.f32.mrb[0].mxu0
    %9151 = vdwg.mxu0
    %v9152 = vadd.f32 %v8179, %v9122
    %v9153 = vadd.f32 %v8180, %v9125
    %v9154 = vadd.f32 %v8181, %v9130
    %v9155 = vadd.f32 %v8182, %v9133
    %v9156 = vadd.f32 %v8183, %v9138
    %v9157 = vadd.f32 %v8184, %v9141
    %v9158 = vadd.f32 %v8185, %v9146
    %v9159 = vadd.f32 %v8186, %v9149
    %v9160 = vadd.f32 %v5009, %v9152
    %v9161 = vadd.f32 %v5010, %v9153
    %v9162 = vadd.f32 %v5011, %v9154
    %v9163 = vadd.f32 %v5012, %v9155
    %v9164 = vadd.f32 %v5013, %v9156
    %v9165 = vadd.f32 %v5014, %v9157
    %v9166 = vadd.f32 %v5015, %v9158
    %v9167 = vadd.f32 %v5016, %v9159
    %s9168 = scalar_lea.vmem %s10, 1
    %v9169 = vld [vmem:[%s9168] sm:$0x1]
    %v9171 = vlaneseq
    %v9172 = vshrl.u32 %v9171, 7
    %v9173 = vsub.s32 0, %v9172
    %v9174 = vrot.slane %v9169, %v9173
    %v9176 = vadd.f32 %v9160, %v9174
    %v9177 = vadd.f32 %v9161, %v9174
    %v9178 = vadd.f32 %v9162, %v9174
    %v9179 = vadd.f32 %v9163, %v9174
    %v9180 = vadd.f32 %v9164, %v9174
    %v9181 = vadd.f32 %v9165, %v9174
    %v9182 = vadd.f32 %v9166, %v9174
    %v9183 = vadd.f32 %v9167, %v9174
    %s9184 = scalar_lea.vmem %s11, 1
    %v9185 = vld [vmem:[%s9184] sm:$0x1]
    %s9186 = scalar_lea.vmem %s12, 1
    %v9187 = vld [vmem:[%s9186] sm:$0x1]
    %v9188 = vsel %vm286, %v9176, 0.0
    %9189 = vadd.xlane.f32.xlu0 %v9188
    %v9190 = vpop.xlane.xlu0 %9189
    %v9191 = vsel %vm286, %v9177, 0.0
    %9192 = vadd.xlane.f32.xlu0 %v9191
    %v9193 = vpop.xlane.xlu0 %9192
    %v9194 = vsel %vm286, %v9178, 0.0
    %9195 = vadd.xlane.f32.xlu0 %v9194
    %v9196 = vpop.xlane.xlu0 %9195
    %v9197 = vsel %vm286, %v9179, 0.0
    %9198 = vadd.xlane.f32.xlu0 %v9197
    %v9199 = vpop.xlane.xlu0 %9198
    %v9200 = vsel %vm286, %v9180, 0.0
    %9201 = vadd.xlane.f32.xlu0 %v9200
    %v9202 = vpop.xlane.xlu0 %9201
    %v9203 = vsel %vm286, %v9181, 0.0
    %9204 = vadd.xlane.f32.xlu0 %v9203
    %v9205 = vpop.xlane.xlu0 %9204
    %v9206 = vsel %vm286, %v9182, 0.0
    %9207 = vadd.xlane.f32.xlu0 %v9206
    %v9208 = vpop.xlane.xlu0 %9207
    %v9209 = vsel %vm286, %v9183, 0.0
    %9210 = vadd.xlane.f32.xlu0 %v9209
    %v9211 = vpop.xlane.xlu0 %9210
    %v9212 = vmul.f32 %v9190, %v311
    %v9213 = vmul.f32 %v9193, %v311
    %v9214 = vmul.f32 %v9196, %v311
    %v9215 = vmul.f32 %v9199, %v311
    %v9216 = vmul.f32 %v9202, %v311
    %v9217 = vmul.f32 %v9205, %v311
    %v9218 = vmul.f32 %v9208, %v311
    %v9219 = vmul.f32 %v9211, %v311
    %v9220 = vsub.f32 %v9176, %v9212
    %v9221 = vsub.f32 %v9177, %v9213
    %v9222 = vsub.f32 %v9178, %v9214
    %v9223 = vsub.f32 %v9179, %v9215
    %v9224 = vsub.f32 %v9180, %v9216
    %v9225 = vsub.f32 %v9181, %v9217
    %v9226 = vsub.f32 %v9182, %v9218
    %v9227 = vsub.f32 %v9183, %v9219
    %v9228 = vmul.f32 %v9220, %v9220
    %v9229 = vmul.f32 %v9221, %v9221
    %v9230 = vmul.f32 %v9222, %v9222
    %v9231 = vmul.f32 %v9223, %v9223
    %v9232 = vmul.f32 %v9224, %v9224
    %v9233 = vmul.f32 %v9225, %v9225
    %v9234 = vmul.f32 %v9226, %v9226
    %v9235 = vmul.f32 %v9227, %v9227
    %v9236 = vsel %vm286, %v9228, 0.0
    %9237 = vadd.xlane.f32.xlu0 %v9236
    %v9238 = vpop.xlane.xlu0 %9237
    %v9239 = vsel %vm286, %v9229, 0.0
    %9240 = vadd.xlane.f32.xlu0 %v9239
    %v9241 = vpop.xlane.xlu0 %9240
    %v9242 = vsel %vm286, %v9230, 0.0
    %9243 = vadd.xlane.f32.xlu0 %v9242
    %v9244 = vpop.xlane.xlu0 %9243
    %v9245 = vsel %vm286, %v9231, 0.0
    %9246 = vadd.xlane.f32.xlu0 %v9245
    %v9247 = vpop.xlane.xlu0 %9246
    %v9248 = vsel %vm286, %v9232, 0.0
    %9249 = vadd.xlane.f32.xlu0 %v9248
    %v9250 = vpop.xlane.xlu0 %9249
    %v9251 = vsel %vm286, %v9233, 0.0
    %9252 = vadd.xlane.f32.xlu0 %v9251
    %v9253 = vpop.xlane.xlu0 %9252
    %v9254 = vsel %vm286, %v9234, 0.0
    %9255 = vadd.xlane.f32.xlu0 %v9254
    %v9256 = vpop.xlane.xlu0 %9255
    %v9257 = vsel %vm286, %v9235, 0.0
    %9258 = vadd.xlane.f32.xlu0 %v9257
    %v9259 = vpop.xlane.xlu0 %9258
    %v9260 = vmul.f32 %v9238, %v311
    %v9261 = vmul.f32 %v9241, %v311
    %v9262 = vmul.f32 %v9244, %v311
    %v9263 = vmul.f32 %v9247, %v311
    %v9264 = vmul.f32 %v9250, %v311
    %v9265 = vmul.f32 %v9253, %v311
    %v9266 = vmul.f32 %v9256, %v311
    %v9267 = vmul.f32 %v9259, %v311
    %v9268 = vadd.f32 %v9260, 1e-05
    %v9269 = vadd.f32 %v9261, 1e-05
    %v9270 = vadd.f32 %v9262, 1e-05
    %v9271 = vadd.f32 %v9263, 1e-05
    %v9272 = vadd.f32 %v9264, 1e-05
    %v9273 = vadd.f32 %v9265, 1e-05
    %v9274 = vadd.f32 %v9266, 1e-05
    %v9275 = vadd.f32 %v9267, 1e-05
    %v9276 = vrsqrt.pop %v9268
    %v9277 = vrsqrt.pop %v9269
    %v9278 = vrsqrt.pop %v9270
    %v9279 = vrsqrt.pop %v9271
    %v9280 = vrsqrt.pop %v9272
    %v9281 = vrsqrt.pop %v9273
    %v9282 = vrsqrt.pop %v9274
    %v9283 = vrsqrt.pop %v9275
    %v9284 = vmul.f32 %v9220, %v9276
    %v9285 = vmul.f32 %v9221, %v9277
    %v9286 = vmul.f32 %v9222, %v9278
    %v9287 = vmul.f32 %v9223, %v9279
    %v9288 = vmul.f32 %v9224, %v9280
    %v9289 = vmul.f32 %v9225, %v9281
    %v9290 = vmul.f32 %v9226, %v9282
    %v9291 = vmul.f32 %v9227, %v9283
    %v9293 = vlaneseq
    %v9294 = vshrl.u32 %v9293, 7
    %v9295 = vsub.s32 0, %v9294
    %v9296 = vrot.slane %v9185, %v9295
    %v9298 = vmul.f32 %v9284, %v9296
    %v9299 = vmul.f32 %v9285, %v9296
    %v9300 = vmul.f32 %v9286, %v9296
    %v9301 = vmul.f32 %v9287, %v9296
    %v9302 = vmul.f32 %v9288, %v9296
    %v9303 = vmul.f32 %v9289, %v9296
    %v9304 = vmul.f32 %v9290, %v9296
    %v9305 = vmul.f32 %v9291, %v9296
    %v9307 = vlaneseq
    %v9308 = vshrl.u32 %v9307, 7
    %v9309 = vsub.s32 0, %v9308
    %v9310 = vrot.slane %v9187, %v9309
    %v9312 = vadd.f32 %v9298, %v9310
    %v9313 = vadd.f32 %v9299, %v9310
    %v9314 = vadd.f32 %v9300, %v9310
    %v9315 = vadd.f32 %v9301, %v9310
    %v9316 = vadd.f32 %v9302, %v9310
    %v9317 = vadd.f32 %v9303, %v9310
    %v9318 = vadd.f32 %v9304, %v9310
    %v9319 = vadd.f32 %v9305, %v9310
    %v9320 = vpack.c.bf16 %v9313, %v9312
    %v9321 = vpack.c.bf16 %v9315, %v9314
    %v9322 = vpack.c.bf16 %v9317, %v9316
    %v9323 = vpack.c.bf16 %v9319, %v9318
    %s9324 = scalar_lea.vmem %s13, 16
    %v9325 = vld [vmem:[%s9324] sm:$0xf]
    %v9326 = vld [vmem:[%s9324 + $0x4] sm:$0xf]
    %v9327 = vld [vmem:[%s9324 + $0x8] sm:$0xf]
    %v9328 = vld [vmem:[%s9324 + $0xc] sm:$0xf]
    %s9329 = scalar_lea.vmem %s14, 1
    %v9330 = vld [vmem:[%s9329] sm:$0x1]
    %v9332 = vlaneseq
    %v9333 = vshrl.u32 %v9332, 7
    %v9334 = vsub.s32 0, %v9333
    %v9335 = vrot.slane %v9330, %v9334
    %v9341 = vunpack.c.l.b16 %v9325
    %v9342 = vunpack.c.l.b16 %v9326
    %v9343 = vunpack.c.l.b16 %v9327
    %v9344 = vunpack.c.l.b16 %v9328
    %v9345 = vpack.c.b16 %v9342, %v9341
    %v9346 = vpack.c.b16 %v9344, %v9343
    %v9350 = vsel %vm286, %v9320, 0
    %v9353 = vsel %vm286, %v9321, 0
    %v9356 = vsel %vm286, %v9322, 0
    %v9359 = vsel %vm286, %v9323, 0
    %9361 = vmatprep.subr.bf16.mxu0 0
    %9362 = vmatpush1.bf16.msra.mxu0 %v9345
    %9363 = vmatprep.subr.bf16.mxu0 0
    %9364 = vmatpush1.bf16.msra.mxu0 %v9346
    %9365 = vmatprep.subr.bf16.mxu0 0
    %9366 = vmatpush1.bf16.msra.mxu0 0
    %9367 = vmatprep.subr.bf16.mxu0 0
    %9368 = vmatpush1.bf16.msra.mxu0 0
    %9369 = vmatprep.subr.bf16.mxu0 0
    %9370 = vmatpush1.bf16.msra.mxu0 0
    %9371 = vmatprep.subr.bf16.mxu0 0
    %9372 = vmatpush1.bf16.msra.mxu0 0
    %9373 = vmatprep.subr.bf16.mxu0 0
    %9374 = vmatpush1.bf16.msra.mxu0 0
    %9375 = vmatprep.subr.bf16.mxu0 0
    %9376 = vmatpush1.bf16.msra.mxu0 0
    %9377 = vmatprep.subr.bf16.mxu0 0
    %9378 = vmatpush1.bf16.msra.mxu0 0
    %9379 = vmatprep.subr.bf16.mxu0 0
    %9380 = vmatpush1.bf16.msra.mxu0 0
    %9381 = vmatprep.subr.bf16.mxu0 0
    %9382 = vmatpush1.bf16.msra.mxu0 0
    %9383 = vmatprep.subr.bf16.mxu0 0
    %9384 = vmatpush1.bf16.msra.mxu0 0
    %9385 = vmatprep.subr.bf16.mxu0 0
    %9386 = vmatpush1.bf16.msra.mxu0 0
    %9387 = vmatprep.subr.bf16.mxu0 0
    %9388 = vmatpush1.bf16.msra.mxu0 0
    %9389 = vmatprep.subr.bf16.mxu0 0
    %9390 = vmatpush1.bf16.msra.mxu0 0
    %9391 = vmatprep.subr.bf16.mxu0 0
    %9392 = vmatpush1.bf16.msra.mxu0 0
    %9393 = vmatprep.mubr.bf16.mxu0 0
    %9394 = vmatmul.mubr.bf16.gmra.mrb[0].mxu0 %v9350
    %v9395 = vpop.f32.mrb[0].mxu0
    %v9396 = vadd.f32 %v9335, %v9395
    %v9397 = vpop.f32.mrb[0].mxu0
    %v9398 = vpop.f32.mrb[0].mxu0
    %v9399 = vadd.f32 %v9335, %v9398
    %v9400 = vpop.f32.mrb[0].mxu0
    %9401 = vmatprep.mubr.bf16.mxu0 0
    %9402 = vmatmul.mubr.bf16.gmra.mrb[0].mxu0 %v9353
    %v9403 = vpop.f32.mrb[0].mxu0
    %v9404 = vadd.f32 %v9335, %v9403
    %v9405 = vpop.f32.mrb[0].mxu0
    %v9406 = vpop.f32.mrb[0].mxu0
    %v9407 = vadd.f32 %v9335, %v9406
    %v9408 = vpop.f32.mrb[0].mxu0
    %9409 = vmatprep.mubr.bf16.mxu0 0
    %9410 = vmatmul.mubr.bf16.gmra.mrb[0].mxu0 %v9356
    %v9411 = vpop.f32.mrb[0].mxu0
    %v9412 = vadd.f32 %v9335, %v9411
    %v9413 = vpop.f32.mrb[0].mxu0
    %v9414 = vpop.f32.mrb[0].mxu0
    %v9415 = vadd.f32 %v9335, %v9414
    %v9416 = vpop.f32.mrb[0].mxu0
    %9417 = vmatprep.mubr.bf16.mxu0 0
    %9418 = vmatmul.mubr.bf16.gmra.mrb[0].mxu0 %v9359
    %v9419 = vpop.f32.mrb[0].mxu0
    %v9420 = vadd.f32 %v9335, %v9419
    %v9421 = vpop.f32.mrb[0].mxu0
    %v9422 = vpop.f32.mrb[0].mxu0
    %v9423 = vadd.f32 %v9335, %v9422
    %v9424 = vpop.f32.mrb[0].mxu0
    %9425 = vdwg.mxu0
    %v9426 = vmul.f32 %v9396, 1.702
    %v9427 = vmul.f32 %v9399, 1.702
    %v9428 = vmul.f32 %v9404, 1.702
    %v9429 = vmul.f32 %v9407, 1.702
    %v9430 = vmul.f32 %v9412, 1.702
    %v9431 = vmul.f32 %v9415, 1.702
    %v9432 = vmul.f32 %v9420, 1.702
    %v9433 = vmul.f32 %v9423, 1.702
    %v9434 = vxor.u32 %v9426, 2147483648
    %v9435 = vxor.u32 %v9427, 2147483648
    %v9436 = vxor.u32 %v9428, 2147483648
    %v9437 = vxor.u32 %v9429, 2147483648
    %v9438 = vxor.u32 %v9430, 2147483648
    %v9439 = vxor.u32 %v9431, 2147483648
    %v9440 = vxor.u32 %v9432, 2147483648
    %v9441 = vxor.u32 %v9433, 2147483648
    %v9442 = vmul.f32 %v9434, 1.442695
    %v9443 = vpow.pop %v9442
    %v9444 = vmul.f32 %v9435, 1.442695
    %v9445 = vpow.pop %v9444
    %v9446 = vmul.f32 %v9436, 1.442695
    %v9447 = vpow.pop %v9446
    %v9448 = vmul.f32 %v9437, 1.442695
    %v9449 = vpow.pop %v9448
    %v9450 = vmul.f32 %v9438, 1.442695
    %v9451 = vpow.pop %v9450
    %v9452 = vmul.f32 %v9439, 1.442695
    %v9453 = vpow.pop %v9452
    %v9454 = vmul.f32 %v9440, 1.442695
    %v9455 = vpow.pop %v9454
    %v9456 = vmul.f32 %v9441, 1.442695
    %v9457 = vpow.pop %v9456
    %v9458 = vadd.f32 %v9443, 1.0
    %v9459 = vadd.f32 %v9445, 1.0
    %v9460 = vadd.f32 %v9447, 1.0
    %v9461 = vadd.f32 %v9449, 1.0
    %v9462 = vadd.f32 %v9451, 1.0
    %v9463 = vadd.f32 %v9453, 1.0
    %v9464 = vadd.f32 %v9455, 1.0
    %v9465 = vadd.f32 %v9457, 1.0
    %v9466 = vrcp.pop %v9458
    %v9467 = vmul.f32 1.0, %v9466
    %v9468 = vrcp.pop %v9459
    %v9469 = vmul.f32 1.0, %v9468
    %v9470 = vrcp.pop %v9460
    %v9471 = vmul.f32 1.0, %v9470
    %v9472 = vrcp.pop %v9461
    %v9473 = vmul.f32 1.0, %v9472
    %v9474 = vrcp.pop %v9462
    %v9475 = vmul.f32 1.0, %v9474
    %v9476 = vrcp.pop %v9463
    %v9477 = vmul.f32 1.0, %v9476
    %v9478 = vrcp.pop %v9464
    %v9479 = vmul.f32 1.0, %v9478
    %v9480 = vrcp.pop %v9465
    %v9481 = vmul.f32 1.0, %v9480
    %v9482 = vmul.f32 %v9396, %v9467
    %v9483 = vmul.f32 %v9399, %v9469
    %v9484 = vmul.f32 %v9404, %v9471
    %v9485 = vmul.f32 %v9407, %v9473
    %v9486 = vmul.f32 %v9412, %v9475
    %v9487 = vmul.f32 %v9415, %v9477
    %v9488 = vmul.f32 %v9420, %v9479
    %v9489 = vmul.f32 %v9423, %v9481
    %v9490 = vpack.c.bf16 %v9483, %v9482
    %v9491 = vpack.c.bf16 %v9485, %v9484
    %v9492 = vpack.c.bf16 %v9487, %v9486
    %v9493 = vpack.c.bf16 %v9489, %v9488
    %s9494 = scalar_lea.vmem %s15, 32
    %v9495 = vld [vmem:[%s9494] sm:$0xf]
    %v9496 = vld [vmem:[%s9494 + $0x4] sm:$0xf]
    %v9497 = vld [vmem:[%s9494 + $0x8] sm:$0xf]
    %v9498 = vld [vmem:[%s9494 + $0xc] sm:$0xf]
    %v9499 = vld [vmem:[%s9494 + $0x10] sm:$0xf]
    %v9500 = vld [vmem:[%s9494 + $0x14] sm:$0xf]
    %v9501 = vld [vmem:[%s9494 + $0x18] sm:$0xf]
    %v9502 = vld [vmem:[%s9494 + $0x1c] sm:$0xf]
    %s9503 = scalar_lea.vmem %s16, 1
    %v9504 = vld [vmem:[%s9503] sm:$0x1]
    %v9506 = vlaneseq
    %v9507 = vshrl.u32 %v9506, 7
    %v9508 = vsub.s32 0, %v9507
    %v9509 = vrot.slane %v9504, %v9508
    %v9519 = vunpack.c.l.b16 %v9495
    %v9520 = vunpack.c.l.b16 %v9496
    %v9521 = vunpack.c.l.b16 %v9497
    %v9522 = vunpack.c.l.b16 %v9498
    %v9523 = vunpack.c.l.b16 %v9499
    %v9524 = vunpack.c.l.b16 %v9500
    %v9525 = vunpack.c.l.b16 %v9501
    %v9526 = vunpack.c.l.b16 %v9502
    %v9527 = vpack.c.b16 %v9520, %v9519
    %v9528 = vpack.c.b16 %v9522, %v9521
    %v9529 = vpack.c.b16 %v9524, %v9523
    %v9530 = vpack.c.b16 %v9526, %v9525
    %v9536 = vsel %vm206, %v9490, 0
    %v9539 = vsel %vm206, %v9491, 0
    %v9542 = vsel %vm206, %v9492, 0
    %v9545 = vsel %vm206, %v9493, 0
    %9547 = vmatprep.subr.bf16.mxu0 0
    %9548 = vmatpush1.bf16.msra.mxu0 %v9527
    %9549 = vmatprep.subr.bf16.mxu0 0
    %9550 = vmatpush1.bf16.msra.mxu0 %v9528
    %9551 = vmatprep.subr.bf16.mxu0 0
    %9552 = vmatpush1.bf16.msra.mxu0 %v9529
    %9553 = vmatprep.subr.bf16.mxu0 0
    %9554 = vmatpush1.bf16.msra.mxu0 %v9530
    %9555 = vmatprep.subr.bf16.mxu0 0
    %9556 = vmatpush1.bf16.msra.mxu0 0
    %9557 = vmatprep.subr.bf16.mxu0 0
    %9558 = vmatpush1.bf16.msra.mxu0 0
    %9559 = vmatprep.subr.bf16.mxu0 0
    %9560 = vmatpush1.bf16.msra.mxu0 0
    %9561 = vmatprep.subr.bf16.mxu0 0
    %9562 = vmatpush1.bf16.msra.mxu0 0
    %9563 = vmatprep.subr.bf16.mxu0 0
    %9564 = vmatpush1.bf16.msra.mxu0 0
    %9565 = vmatprep.subr.bf16.mxu0 0
    %9566 = vmatpush1.bf16.msra.mxu0 0
    %9567 = vmatprep.subr.bf16.mxu0 0
    %9568 = vmatpush1.bf16.msra.mxu0 0
    %9569 = vmatprep.subr.bf16.mxu0 0
    %9570 = vmatpush1.bf16.msra.mxu0 0
    %9571 = vmatprep.subr.bf16.mxu0 0
    %9572 = vmatpush1.bf16.msra.mxu0 0
    %9573 = vmatprep.subr.bf16.mxu0 0
    %9574 = vmatpush1.bf16.msra.mxu0 0
    %9575 = vmatprep.subr.bf16.mxu0 0
    %9576 = vmatpush1.bf16.msra.mxu0 0
    %9577 = vmatprep.subr.bf16.mxu0 0
    %9578 = vmatpush1.bf16.msra.mxu0 0
    %9579 = vmatprep.mubr.bf16.mxu0 0
    %9580 = vmatmul.mubr.bf16.gmra.mrb[0].mxu0 %v9536
    %v9581 = vpop.f32.mrb[0].mxu0
    %v9582 = vadd.f32 %v9509, %v9581
    %v9583 = vpop.f32.mrb[0].mxu0
    %v9584 = vpop.f32.mrb[0].mxu0
    %v9585 = vadd.f32 %v9509, %v9584
    %v9586 = vpop.f32.mrb[0].mxu0
    %9587 = vmatprep.mubr.bf16.mxu0 0
    %9588 = vmatmul.mubr.bf16.gmra.mrb[0].mxu0 %v9539
    %v9589 = vpop.f32.mrb[0].mxu0
    %v9590 = vadd.f32 %v9509, %v9589
    %v9591 = vpop.f32.mrb[0].mxu0
    %v9592 = vpop.f32.mrb[0].mxu0
    %v9593 = vadd.f32 %v9509, %v9592
    %v9594 = vpop.f32.mrb[0].mxu0
    %9595 = vmatprep.mubr.bf16.mxu0 0
    %9596 = vmatmul.mubr.bf16.gmra.mrb[0].mxu0 %v9542
    %v9597 = vpop.f32.mrb[0].mxu0
    %v9598 = vadd.f32 %v9509, %v9597
    %v9599 = vpop.f32.mrb[0].mxu0
    %v9600 = vpop.f32.mrb[0].mxu0
    %v9601 = vadd.f32 %v9509, %v9600
    %v9602 = vpop.f32.mrb[0].mxu0
    %9603 = vmatprep.mubr.bf16.mxu0 0
    %9604 = vmatmul.mubr.bf16.gmra.mrb[0].mxu0 %v9545
    %v9605 = vpop.f32.mrb[0].mxu0
    %v9606 = vadd.f32 %v9509, %v9605
    %v9607 = vpop.f32.mrb[0].mxu0
    %v9608 = vpop.f32.mrb[0].mxu0
    %v9609 = vadd.f32 %v9509, %v9608
    %v9610 = vpop.f32.mrb[0].mxu0
    %9611 = vdwg.mxu0
    %v9612 = vadd.f32 %v9176, %v9582
    %v9613 = vadd.f32 %v9177, %v9585
    %v9614 = vadd.f32 %v9178, %v9590
    %v9615 = vadd.f32 %v9179, %v9593
    %v9616 = vadd.f32 %v9180, %v9598
    %v9617 = vadd.f32 %v9181, %v9601
    %v9618 = vadd.f32 %v9182, %v9606
    %v9619 = vadd.f32 %v9183, %v9609
    %v9620 = vcombine.low %v9612, %v9614
    %v9622 = vunpack.c.l.s4 1983009808
    %v9623 = vunpack.c.0.s8 %v9622
    %v9624 = vlaneseq
    %v9625 = vshrl.u32 %v9624, 7
    %v9626 = vsub.s32 %v9623, %v9625
    %v9627 = vrot.slane %v9620, %v9626
    %v9628 = vcombine.low %v9613, %v9615
    %v9630 = vunpack.c.l.s4 1983009808
    %v9631 = vunpack.c.0.s8 %v9630
    %v9632 = vlaneseq
    %v9633 = vshrl.u32 %v9632, 7
    %v9634 = vsub.s32 %v9631, %v9633
    %v9635 = vrot.slane %v9628, %v9634
    %v9636 = vcombine.low %v9616, %v9618
    %v9638 = vunpack.c.l.s4 1983009808
    %v9639 = vunpack.c.0.s8 %v9638
    %v9640 = vlaneseq
    %v9641 = vshrl.u32 %v9640, 7
    %v9642 = vsub.s32 %v9639, %v9641
    %v9643 = vrot.slane %v9636, %v9642
    %v9644 = vcombine.low %v9617, %v9619
    %v9646 = vunpack.c.l.s4 1983009808
    %v9647 = vunpack.c.0.s8 %v9646
    %v9648 = vlaneseq
    %v9649 = vshrl.u32 %v9648, 7
    %v9650 = vsub.s32 %v9647, %v9649
    %v9651 = vrot.slane %v9644, %v9650
    %v9652 = vcombine.low %v9627, %v9635
    %v9653 = vcombine.high %v9627, %v9635
    %v9655 = vunpack.c.l.s4 1934713408
    %v9656 = vunpack.c.0.s8 %v9655
    %v9657 = vlaneseq
    %v9658 = vshrl.u32 %v9657, 7
    %v9659 = vsub.s32 %v9656, %v9658
    %v9660 = vrot.slane %v9652, %v9659
    %v9662 = vunpack.c.l.s4 1934713408
    %v9663 = vunpack.c.0.s8 %v9662
    %v9664 = vlaneseq
    %v9665 = vshrl.u32 %v9664, 7
    %v9666 = vsub.s32 %v9663, %v9665
    %v9667 = vrot.slane %v9653, %v9666
    %v9668 = vcombine.low %v9643, %v9651
    %v9669 = vcombine.high %v9643, %v9651
    %v9671 = vunpack.c.l.s4 1934713408
    %v9672 = vunpack.c.0.s8 %v9671
    %v9673 = vlaneseq
    %v9674 = vshrl.u32 %v9673, 7
    %v9675 = vsub.s32 %v9672, %v9674
    %v9676 = vrot.slane %v9668, %v9675
    %v9678 = vunpack.c.l.s4 1934713408
    %v9679 = vunpack.c.0.s8 %v9678
    %v9680 = vlaneseq
    %v9681 = vshrl.u32 %v9680, 7
    %v9682 = vsub.s32 %v9679, %v9681
    %v9683 = vrot.slane %v9669, %v9682
    %v9684 = vcombine.low %v9660, %v9676
    %v9685 = vcombine.high %v9660, %v9676
    %v9686 = vcombine.low %v9667, %v9683
    %v9687 = vcombine.high %v9667, %v9683
    %9689 = vrot.lane.b32.xlu0 %v9685, 32
    %v9690 = vpop.permute.xlu0 %9689
    %9693 = vrot.lane.b32.xlu0 %v9686, 64
    %v9694 = vpop.permute.xlu0 %9693
    %9697 = vrot.lane.b32.xlu0 %v9687, 96
    %v9698 = vpop.permute.xlu0 %9697
    %v9700 = vsel %vm286, %v9684, %v9690
    %v9701 = vsel %vm206, %v9700, %v9694
    %vm9702 = vcmask 785408
    %v9703 = vsel %vm9702, %v9701, %v9698
    %9704 = vst [vmem:[#allocation2] sm:$0xff] %v9703
    // Predicated region
    $region70: #{tpu_custom_call.1} parent=1 // pred_check
      _
    $region71: #{tpu_custom_call.1} parent=1 // pred_check_branch
      %9706 = sbr.rel (0) target = $region73
    $region72: #{tpu_custom_call.1} parent=1 // pred_region
      %s9708 = ssub.s32 128, 128
      %9709 = vsyncadd [#allocation3], %s9708
      %s9711 = sshll.u32 [#allocation2], 4
      %s9712 = int_to_ptr.vmem [resolvable:$true] %s9711
      %9714 = dma.vmem_to_hbm [thread:$0]  %s9712, 128, %s17, [#allocation3]
    $region73: #{tpu_custom_call.1} parent=1 // pred_fallthru
      _
    // Predicated region
    $region74: #{tpu_custom_call.1} parent=1 // pred_check
      _
    $region75: #{tpu_custom_call.1} parent=1 // pred_check_branch
      %9716 = sbr.rel (0) target = $region77
    $region76: #{tpu_custom_call.1} parent=1 // pred_region
      %9717 = dma.done [#allocation3], 128
    $region77: #{tpu_custom_call.1} parent=1 // pred_fallthru
      _
    %9718 = vsyncpa [#allocation3], 1

</llo_original>
